<compile_context>
chip_gen: v7x
topology: tpu7x:2x2x1
jax: 0.10.0
libtpu: 0.0.40
codegen_flags: <defaults>
</compile_context>

<pallas_src>
import math

import jax
import jax.numpy as jnp
from jax import lax
from jax.experimental import pallas as pl
from jax.experimental.pallas import tpu as pltpu


def _round_up(x, m):
    return ((x + m - 1) // m) * m


def fixup_residual(x_nchw, w1, w2, b1, b2, b3, b4, scale, *,
                   block_n=1, compute_dtype=jnp.float32):
    """FixupResidual forward. x_nchw: (N, C, H, W); w1, w2: (C, C, 3, 3) OIHW."""
    N, C, H, W = x_nchw.shape
    assert N % block_n == 0, "block_n must divide N"

    Cp = _round_up(C, 128)          # lane-dense channel dim
    Wp = W + 2                      # "wide" row: W valid + 2 wrap columns
    Hw = H * Wp                     # rows per image in the wide layout
    P = (H + 2) * Wp                # rows per image in the flat padded layout
    lead = (-(Wp + 1)) % 8          # slack so the interior write is 8-aligned
    # +2: wrap rows of the last image row read up to flat index P+1.
    Pb = _round_up(lead + P + 2, 8)  # per-image row stride in the pad scratch
    Nb = block_n
    rows = Nb * Hw

    def kernel(x_ref, w1_ref, w2_ref, p_ref, o_ref, pad_ref, col_ref):
        bias1 = p_ref[0]
        bias2 = p_ref[1]
        bias3 = p_ref[2]
        bias4 = p_ref[3]
        scl = p_ref[4]

        # Column-in-row index of every wide row; j >= W are wrap columns that
        # must stay zero when fed back into the padded scratch.
        j_idx = lax.broadcasted_iota(jnp.int32, (rows, 1), 0) % Wp
        valid = j_idx < W

        # Zero only the halo rows that the contiguous interior writes below do
        # not cover (top padded row + tail of bottom padded row + slack).
        # Done every grid step (tiny: ~2*(W+2) rows/image) so the kernel stays
        # correct when the "parallel" batch axis is split across TensorCores.
        interior = lead + Wp + 1                     # multiple of 8
        tail = lead + (H + 1) * Wp + 1
        for b in range(Nb):
            base = b * Pb
            pad_ref[base:base + interior, :] = jnp.zeros(
                (interior, Cp), compute_dtype)
            pad_ref[base + tail:base + Pb, :] = jnp.zeros(
                (Pb - tail, Cp), compute_dtype)

        def conv3x3(act, w_ref):
            # act: (rows, Cp) in compute_dtype, wrap columns already zero.
            # One contiguous, 8-aligned write per image covers the interior
            # AND the left/right halo columns of the flat padded image.
            for b in range(Nb):
                pad_ref[b * Pb + interior:b * Pb + interior + Hw, :] = (
                    act[b * Hw:(b + 1) * Hw, :])
            # im2col: each 3x3 tap is a contiguous slice of the flat scratch;
            # writes land on 128-lane-aligned column blocks of col_ref.
            for k in range(9):
                ki, kj = divmod(k, 3)
                off = ki * Wp + kj
                for b in range(Nb):
                    col_ref[b * Hw:(b + 1) * Hw, k * Cp:(k + 1) * Cp] = (
                        pad_ref[b * Pb + lead + off:
                                b * Pb + lead + off + Hw, :])
            # Single fused matmul per conv, f32 accumulation on the MXU.
            return jnp.dot(col_ref[...], w_ref[...],
                           preferred_element_type=jnp.float32)

        x = x_ref[...].astype(jnp.float32)           # (rows, Cp); wrap cols 0
        xr = jnp.maximum(x, 0.0)                     # relu(x)

        a = jnp.where(valid, xr + bias1, 0.0)        # keep wrap columns at 0
        h = conv3x3(a.astype(compute_dtype), w1_ref)
        h = jnp.where(valid, jnp.maximum(h + bias2, 0.0) + bias3, 0.0)
        h = conv3x3(h.astype(compute_dtype), w2_ref)
        out = h * scl + bias4 + xr                   # wrap cols dropped later
        o_ref[...] = out.astype(o_ref.dtype)

    # ---- wrapper-side layout plumbing (plain XLA) --------------------------
    cpad = Cp - C
    x = jnp.transpose(x_nchw, (0, 2, 3, 1))                      # NCHW->NHWC
    x = jnp.pad(x, ((0, 0), (0, 0), (0, 2), (0, cpad)))          # wide + Cp
    x_wide = x.reshape(N * Hw, Cp)

    def pack_w(w):
        wk = jnp.transpose(w, (2, 3, 1, 0))                      # (3,3,Ci,Co)
        wk = jnp.pad(wk, ((0, 0), (0, 0), (0, cpad), (0, cpad)))
        return wk.reshape(9 * Cp, Cp).astype(compute_dtype)      # im2col wts

    w1k, w2k = pack_w(w1), pack_w(w2)
    params = jnp.pad(jnp.stack([b1, b2, b3, b4, scale], axis=0),
                     ((0, 0), (0, cpad))).astype(jnp.float32)    # (5, Cp)

    out_wide = pl.pallas_call(
        kernel,
        out_shape=jax.ShapeDtypeStruct((N * Hw, Cp), x_nchw.dtype),
        grid=(N // Nb,),
        in_specs=[
            pl.BlockSpec((rows, Cp), lambda n: (n, 0)),
            pl.BlockSpec((9 * Cp, Cp), lambda n: (0, 0)),
            pl.BlockSpec((9 * Cp, Cp), lambda n: (0, 0)),
            pl.BlockSpec((5, Cp), lambda n: (0, 0)),
        ],
        out_specs=pl.BlockSpec((rows, Cp), lambda n: (n, 0)),
        scratch_shapes=[
            pltpu.VMEM((Nb * Pb, Cp), compute_dtype),     # flat padded image
            pltpu.VMEM((rows, 9 * Cp), compute_dtype),    # im2col buffer
        ],
        compiler_params=pltpu.CompilerParams(
            dimension_semantics=("parallel",)),           # v7x: 2 TensorCores
    )(x_wide, w1k, w2k, params)

    out = out_wide.reshape(N, H, Wp, Cp)[:, :, :W, :C]    # drop wrap + cpad
    return jnp.transpose(out, (0, 3, 1, 2))               # NHWC -> NCHW


def reference_forward(x, w1, w2, b1, b2, b3, b4, scale):
    """Pure-JAX reference mirroring the PyTorch forward (NCHW)."""
    def conv(inp, w):
        return lax.conv_general_dilated(
            inp, w, window_strides=(1, 1), padding="SAME",
            dimension_numbers=("NCHW", "OIHW", "NCHW"))

    def bc(v):
        return v.reshape(1, -1, 1, 1)

    xr = jnp.maximum(x, 0.0)
    out = conv(xr + bc(b1), w1)
    out = jnp.maximum(out + bc(b2), 0.0) + bc(b3)
    out = conv(out, w2)
    out = out * bc(scale) + bc(b4)
    return out + xr


if __name__ == "__main__":
    N, C, H, W = 2, 4, 16, 16
    num_residual = 3

    key = jax.random.PRNGKey(0)
    kx, kw1, kw2, kb1, kb2, kb3, kb4, ks = jax.random.split(key, 8)

    x = jax.random.normal(kx, (N, C, H, W), jnp.float32)
    fan_in = C * 3 * 3
    w1 = (jax.random.normal(kw1, (C, C, 3, 3), jnp.float32)
          / math.sqrt(fan_in) / math.sqrt(num_residual))
    w2 = jax.random.normal(kw2, (C, C, 3, 3), jnp.float32) * 0.05
    b1 = jax.random.normal(kb1, (C,), jnp.float32) * 0.1
    b2 = jax.random.normal(kb2, (C,), jnp.float32) * 0.1
    b3 = jax.random.normal(kb3, (C,), jnp.float32) * 0.1
    b4 = jax.random.normal(kb4, (C,), jnp.float32) * 0.1
    scale = 1.0 + jax.random.normal(ks, (C,), jnp.float32) * 0.1

    ref = jax.block_until_ready(
        reference_forward(x, w1, w2, b1, b2, b3, b4, scale))

    # f32 matmul path: one batch element per grid step ("parallel" axis).
    out_f32 = jax.block_until_ready(
        fixup_residual(x, w1, w2, b1, b2, b3, b4, scale,
                       block_n=1, compute_dtype=jnp.float32))
    assert out_f32.shape == (N, C, H, W)
    err32 = jnp.max(jnp.abs(out_f32 - ref))
    assert jnp.allclose(out_f32, ref, atol=1e-4, rtol=1e-4), (
        f"f32 path max abs err {err32}")

    # bf16 MXU path with both batch elements fused into one grid step.
    out_bf16 = jax.block_until_ready(
        fixup_residual(x, w1, w2, b1, b2, b3, b4, scale,
                       block_n=2, compute_dtype=jnp.bfloat16))
    errbf = jnp.max(jnp.abs(out_bf16 - ref))
    assert jnp.allclose(out_bf16, ref, atol=2e-2, rtol=2e-2), (
        f"bf16 path max abs err {errbf}")

    print("KERNEL_OK")
</pallas_src>

<mosaic_0001>
module attributes {stable_mosaic.version = 11 : i64} {
  func.func @kernel(%arg0: i32, %arg1: memref<288x128xf32, #tpu.memory_space<vmem>>, %arg2: memref<1152x128xf32, #tpu.memory_space<vmem>>, %arg3: memref<1152x128xf32, #tpu.memory_space<vmem>>, %arg4: memref<5x128xf32, #tpu.memory_space<vmem>>, %arg5: memref<288x128xf32, #tpu.memory_space<vmem>>, %arg6: memref<336x128xf32, #tpu.memory_space<vmem>>, %arg7: memref<288x1152xf32, #tpu.memory_space<vmem>>) attributes {dimension_semantics = [#tpu.dimension_semantics<parallel>], iteration_bounds = array<i64: 2>, scalar_prefetch = 0 : i64, scratch_operands = 2 : i64, tpu.core_type = #tpu.core_type<tc>, window_params = [{transform_indices = @transform_0, window_bounds = array<i64: 288, 128>}, {pipeline_mode = #tpu.pipeline_mode<synchronous>, transform_indices = @transform_1, window_bounds = array<i64: 1152, 128>}, {pipeline_mode = #tpu.pipeline_mode<synchronous>, transform_indices = @transform_2, window_bounds = array<i64: 1152, 128>}, {pipeline_mode = #tpu.pipeline_mode<synchronous>, transform_indices = @transform_3, window_bounds = array<i64: 5, 128>}, {transform_indices = @transform_4, window_bounds = array<i64: 288, 128>}]} {
    %c0 = arith.constant 0 : index
    %c0_0 = arith.constant 0 : index
    %0 = vector.load %arg4[%c0, %c0_0] : memref<5x128xf32, #tpu.memory_space<vmem>>, vector<1x128xf32>
    %1 = vector.shape_cast %0 : vector<1x128xf32> to vector<128xf32>
    %c1 = arith.constant 1 : index
    %c0_1 = arith.constant 0 : index
    %2 = vector.load %arg4[%c1, %c0_1] : memref<5x128xf32, #tpu.memory_space<vmem>>, vector<1x128xf32>
    %3 = vector.shape_cast %2 : vector<1x128xf32> to vector<128xf32>
    %c2 = arith.constant 2 : index
    %c0_2 = arith.constant 0 : index
    %4 = vector.load %arg4[%c2, %c0_2] : memref<5x128xf32, #tpu.memory_space<vmem>>, vector<1x128xf32>
    %5 = vector.shape_cast %4 : vector<1x128xf32> to vector<128xf32>
    %c3 = arith.constant 3 : index
    %c0_3 = arith.constant 0 : index
    %6 = vector.load %arg4[%c3, %c0_3] : memref<5x128xf32, #tpu.memory_space<vmem>>, vector<1x128xf32>
    %7 = vector.shape_cast %6 : vector<1x128xf32> to vector<128xf32>
    %c4 = arith.constant 4 : index
    %c0_4 = arith.constant 0 : index
    %8 = vector.load %arg4[%c4, %c0_4] : memref<5x128xf32, #tpu.memory_space<vmem>>, vector<1x128xf32>
    %9 = vector.shape_cast %8 : vector<1x128xf32> to vector<128xf32>
    %10 = tpu.iota {dimensions = array<i32: 0>} : vector<288x1xi32>
    %c18_i32 = arith.constant 18 : i32
    %c0_i32 = arith.constant 0 : i32
    %11 = arith.cmpi eq, %c18_i32, %c0_i32 : i32
    %c1_i32 = arith.constant 1 : i32
    %12 = arith.select %11, %c1_i32, %c18_i32 : i32
    %13 = vector.broadcast %12 : i32 to vector<288x1xi32>
    %14 = arith.remsi %10, %13 : vector<288x1xi32>
    %c0_i32_5 = arith.constant 0 : i32
    %15 = vector.broadcast %c0_i32_5 : i32 to vector<288x1xi32>
    %16 = arith.cmpi ne, %14, %15 : vector<288x1xi32>
    %c0_i32_6 = arith.constant 0 : i32
    %17 = vector.broadcast %c0_i32_6 : i32 to vector<288x1xi32>
    %18 = arith.cmpi slt, %14, %17 : vector<288x1xi32>
    %c0_i32_7 = arith.constant 0 : i32
    %19 = arith.cmpi slt, %12, %c0_i32_7 : i32
    %20 = vector.broadcast %19 : i1 to vector<288x1xi1>
    %21 = vector.broadcast %20 : vector<288x1xi1> to vector<288x1xi1>
    %22 = arith.xori %18, %21 : vector<288x1xi1>
    %23 = arith.andi %22, %16 : vector<288x1xi1>
    %24 = vector.broadcast %12 : i32 to vector<288x1xi32>
    %25 = arith.addi %14, %24 : vector<288x1xi32>
    %26 = arith.select %23, %25, %14 : vector<288x1xi1>, vector<288x1xi32>
    %c16_i32 = arith.constant 16 : i32
    %27 = vector.broadcast %c16_i32 : i32 to vector<288x1xi32>
    %28 = arith.cmpi slt, %26, %27 : vector<288x1xi32>
    %cst = arith.constant 0.000000e+00 : f32
    %29 = vector.broadcast %cst : f32 to vector<24x128xf32>
    %c0_8 = arith.constant 0 : index
    %c0_9 = arith.constant 0 : index
    %30 = vector.load %arg6[%c0_8, %c0_9] : memref<336x128xf32, #tpu.memory_space<vmem>>, vector<24x128xf32>
    tpu.vector_store %arg6[%c0_8, %c0_9], %29 {strides = array<i32>} : memref<336x128xf32, #tpu.memory_space<vmem>>, vector<24x128xf32>,
    %cst_10 = arith.constant 0.000000e+00 : f32
    %31 = vector.broadcast %cst_10 : f32 to vector<24x128xf32>
    %c312 = arith.constant 312 : index
    %c0_11 = arith.constant 0 : index
    %32 = vector.load %arg6[%c312, %c0_11] : memref<336x128xf32, #tpu.memory_space<vmem>>, vector<24x128xf32>
    tpu.vector_store %arg6[%c312, %c0_11], %31 {strides = array<i32>} : memref<336x128xf32, #tpu.memory_space<vmem>>, vector<24x128xf32>,
    %c0_12 = arith.constant 0 : index
    %c0_13 = arith.constant 0 : index
    %33 = vector.load %arg1[%c0_12, %c0_13] : memref<288x128xf32, #tpu.memory_space<vmem>>, vector<288x128xf32>
    %cst_14 = arith.constant 0.000000e+00 : f32
    %34 = vector.broadcast %cst_14 : f32 to vector<288x128xf32>
    %35 = arith.maximumf %33, %34 : vector<288x128xf32>
    %36 = vector.shape_cast %1 : vector<128xf32> to vector<1x128xf32>
    %37 = vector.broadcast %36 : vector<1x128xf32> to vector<288x128xf32>
    %38 = arith.addf %35, %37 : vector<288x128xf32>
    %cst_15 = arith.constant 0.000000e+00 : f32
    %39 = vector.shape_cast %28 : vector<288x1xi1> to vector<288x1xi1>
    %40 = vector.broadcast %39 : vector<288x1xi1> to vector<288x128xi1>
    %41 = vector.broadcast %cst_15 : f32 to vector<288x128xf32>
    %42 = arith.select %40, %38, %41 : vector<288x128xi1>, vector<288x128xf32>
    %c24 = arith.constant 24 : index
    %c0_16 = arith.constant 0 : index
    %43 = vector.load %arg6[%c24, %c0_16] : memref<336x128xf32, #tpu.memory_space<vmem>>, vector<288x128xf32>
    tpu.vector_store %arg6[%c24, %c0_16], %42 {strides = array<i32>} : memref<336x128xf32, #tpu.memory_space<vmem>>, vector<288x128xf32>,
    %c5 = arith.constant 5 : index
    %c0_17 = arith.constant 0 : index
    %44 = vector.load %arg6[%c5, %c0_17] : memref<336x128xf32, #tpu.memory_space<vmem>>, vector<288x128xf32>
    %c0_18 = arith.constant 0 : index
    %c0_19 = arith.constant 0 : index
    %45 = vector.load %arg7[%c0_18, %c0_19] : memref<288x1152xf32, #tpu.memory_space<vmem>>, vector<288x128xf32>
    tpu.vector_store %arg7[%c0_18, %c0_19], %44 {strides = array<i32>} : memref<288x1152xf32, #tpu.memory_space<vmem>>, vector<288x128xf32>,
    %c6 = arith.constant 6 : index
    %c0_20 = arith.constant 0 : index
    %46 = vector.load %arg6[%c6, %c0_20] : memref<336x128xf32, #tpu.memory_space<vmem>>, vector<288x128xf32>
    %c0_21 = arith.constant 0 : index
    %c128 = arith.constant 128 : index
    %47 = vector.load %arg7[%c0_21, %c128] : memref<288x1152xf32, #tpu.memory_space<vmem>>, vector<288x128xf32>
    tpu.vector_store %arg7[%c0_21, %c128], %46 {strides = array<i32>} : memref<288x1152xf32, #tpu.memory_space<vmem>>, vector<288x128xf32>,
    %c7 = arith.constant 7 : index
    %c0_22 = arith.constant 0 : index
    %48 = vector.load %arg6[%c7, %c0_22] : memref<336x128xf32, #tpu.memory_space<vmem>>, vector<288x128xf32>
    %c0_23 = arith.constant 0 : index
    %c256 = arith.constant 256 : index
    %49 = vector.load %arg7[%c0_23, %c256] : memref<288x1152xf32, #tpu.memory_space<vmem>>, vector<288x128xf32>
    tpu.vector_store %arg7[%c0_23, %c256], %48 {strides = array<i32>} : memref<288x1152xf32, #tpu.memory_space<vmem>>, vector<288x128xf32>,
    %c23 = arith.constant 23 : index
    %c0_24 = arith.constant 0 : index
    %50 = vector.load %arg6[%c23, %c0_24] : memref<336x128xf32, #tpu.memory_space<vmem>>, vector<288x128xf32>
    %c0_25 = arith.constant 0 : index
    %c384 = arith.constant 384 : index
    %51 = vector.load %arg7[%c0_25, %c384] : memref<288x1152xf32, #tpu.memory_space<vmem>>, vector<288x128xf32>
    tpu.vector_store %arg7[%c0_25, %c384], %50 {strides = array<i32>} : memref<288x1152xf32, #tpu.memory_space<vmem>>, vector<288x128xf32>,
    %c24_26 = arith.constant 24 : index
    %c0_27 = arith.constant 0 : index
    %52 = vector.load %arg6[%c24_26, %c0_27] : memref<336x128xf32, #tpu.memory_space<vmem>>, vector<288x128xf32>
    %c0_28 = arith.constant 0 : index
    %c512 = arith.constant 512 : index
    %53 = vector.load %arg7[%c0_28, %c512] : memref<288x1152xf32, #tpu.memory_space<vmem>>, vector<288x128xf32>
    tpu.vector_store %arg7[%c0_28, %c512], %52 {strides = array<i32>} : memref<288x1152xf32, #tpu.memory_space<vmem>>, vector<288x128xf32>,
    %c25 = arith.constant 25 : index
    %c0_29 = arith.constant 0 : index
    %54 = vector.load %arg6[%c25, %c0_29] : memref<336x128xf32, #tpu.memory_space<vmem>>, vector<288x128xf32>
    %c0_30 = arith.constant 0 : index
    %c640 = arith.constant 640 : index
    %55 = vector.load %arg7[%c0_30, %c640] : memref<288x1152xf32, #tpu.memory_space<vmem>>, vector<288x128xf32>
    tpu.vector_store %arg7[%c0_30, %c640], %54 {strides = array<i32>} : memref<288x1152xf32, #tpu.memory_space<vmem>>, vector<288x128xf32>,
    %c41 = arith.constant 41 : index
    %c0_31 = arith.constant 0 : index
    %56 = vector.load %arg6[%c41, %c0_31] : memref<336x128xf32, #tpu.memory_space<vmem>>, vector<288x128xf32>
    %c0_32 = arith.constant 0 : index
    %c768 = arith.constant 768 : index
    %57 = vector.load %arg7[%c0_32, %c768] : memref<288x1152xf32, #tpu.memory_space<vmem>>, vector<288x128xf32>
    tpu.vector_store %arg7[%c0_32, %c768], %56 {strides = array<i32>} : memref<288x1152xf32, #tpu.memory_space<vmem>>, vector<288x128xf32>,
    %c42 = arith.constant 42 : index
    %c0_33 = arith.constant 0 : index
    %58 = vector.load %arg6[%c42, %c0_33] : memref<336x128xf32, #tpu.memory_space<vmem>>, vector<288x128xf32>
    %c0_34 = arith.constant 0 : index
    %c896 = arith.constant 896 : index
    %59 = vector.load %arg7[%c0_34, %c896] : memref<288x1152xf32, #tpu.memory_space<vmem>>, vector<288x128xf32>
    tpu.vector_store %arg7[%c0_34, %c896], %58 {strides = array<i32>} : memref<288x1152xf32, #tpu.memory_space<vmem>>, vector<288x128xf32>,
    %c43 = arith.constant 43 : index
    %c0_35 = arith.constant 0 : index
    %60 = vector.load %arg6[%c43, %c0_35] : memref<336x128xf32, #tpu.memory_space<vmem>>, vector<288x128xf32>
    %c0_36 = arith.constant 0 : index
    %c1024 = arith.constant 1024 : index
    %61 = vector.load %arg7[%c0_36, %c1024] : memref<288x1152xf32, #tpu.memory_space<vmem>>, vector<288x128xf32>
    tpu.vector_store %arg7[%c0_36, %c1024], %60 {strides = array<i32>} : memref<288x1152xf32, #tpu.memory_space<vmem>>, vector<288x128xf32>,
    %c0_37 = arith.constant 0 : index
    %c0_38 = arith.constant 0 : index
    %62 = vector.load %arg7[%c0_37, %c0_38] : memref<288x1152xf32, #tpu.memory_space<vmem>>, vector<288x1152xf32>
    %c0_39 = arith.constant 0 : index
    %c0_40 = arith.constant 0 : index
    %63 = vector.load %arg2[%c0_39, %c0_40] : memref<1152x128xf32, #tpu.memory_space<vmem>>, vector<1152x128xf32>
    %cst_41 = arith.constant dense<0.000000e+00> : vector<288x128xf32>
    %64 = tpu.matmul %62, %63, %cst_41 {dimension_numbers = #tpu.dot_dimension_numbers<[1], [0], [0], [1], [0, 0, 1, 1], [], []>} : vector<288x1152xf32>, vector<1152x128xf32>, vector<288x128xf32> -> vector<288x128xf32>
    %65 = vector.shape_cast %3 : vector<128xf32> to vector<1x128xf32>
    %66 = vector.broadcast %65 : vector<1x128xf32> to vector<288x128xf32>
    %67 = arith.addf %64, %66 : vector<288x128xf32>
    %cst_42 = arith.constant 0.000000e+00 : f32
    %68 = vector.broadcast %cst_42 : f32 to vector<288x128xf32>
    %69 = arith.maximumf %67, %68 : vector<288x128xf32>
    %70 = vector.shape_cast %5 : vector<128xf32> to vector<1x128xf32>
    %71 = vector.broadcast %70 : vector<1x128xf32> to vector<288x128xf32>
    %72 = arith.addf %69, %71 : vector<288x128xf32>
    %cst_43 = arith.constant 0.000000e+00 : f32
    %73 = vector.shape_cast %28 : vector<288x1xi1> to vector<288x1xi1>
    %74 = vector.broadcast %73 : vector<288x1xi1> to vector<288x128xi1>
    %75 = vector.broadcast %cst_43 : f32 to vector<288x128xf32>
    %76 = arith.select %74, %72, %75 : vector<288x128xi1>, vector<288x128xf32>
    %c24_44 = arith.constant 24 : index
    %c0_45 = arith.constant 0 : index
    %77 = vector.load %arg6[%c24_44, %c0_45] : memref<336x128xf32, #tpu.memory_space<vmem>>, vector<288x128xf32>
    tpu.vector_store %arg6[%c24_44, %c0_45], %76 {strides = array<i32>} : memref<336x128xf32, #tpu.memory_space<vmem>>, vector<288x128xf32>,
    %c5_46 = arith.constant 5 : index
    %c0_47 = arith.constant 0 : index
    %78 = vector.load %arg6[%c5_46, %c0_47] : memref<336x128xf32, #tpu.memory_space<vmem>>, vector<288x128xf32>
    %c0_48 = arith.constant 0 : index
    %c0_49 = arith.constant 0 : index
    %79 = vector.load %arg7[%c0_48, %c0_49] : memref<288x1152xf32, #tpu.memory_space<vmem>>, vector<288x128xf32>
    tpu.vector_store %arg7[%c0_48, %c0_49], %78 {strides = array<i32>} : memref<288x1152xf32, #tpu.memory_space<vmem>>, vector<288x128xf32>,
    %c6_50 = arith.constant 6 : index
    %c0_51 = arith.constant 0 : index
    %80 = vector.load %arg6[%c6_50, %c0_51] : memref<336x128xf32, #tpu.memory_space<vmem>>, vector<288x128xf32>
    %c0_52 = arith.constant 0 : index
    %c128_53 = arith.constant 128 : index
    %81 = vector.load %arg7[%c0_52, %c128_53] : memref<288x1152xf32, #tpu.memory_space<vmem>>, vector<288x128xf32>
    tpu.vector_store %arg7[%c0_52, %c128_53], %80 {strides = array<i32>} : memref<288x1152xf32, #tpu.memory_space<vmem>>, vector<288x128xf32>,
    %c7_54 = arith.constant 7 : index
    %c0_55 = arith.constant 0 : index
    %82 = vector.load %arg6[%c7_54, %c0_55] : memref<336x128xf32, #tpu.memory_space<vmem>>, vector<288x128xf32>
    %c0_56 = arith.constant 0 : index
    %c256_57 = arith.constant 256 : index
    %83 = vector.load %arg7[%c0_56, %c256_57] : memref<288x1152xf32, #tpu.memory_space<vmem>>, vector<288x128xf32>
    tpu.vector_store %arg7[%c0_56, %c256_57], %82 {strides = array<i32>} : memref<288x1152xf32, #tpu.memory_space<vmem>>, vector<288x128xf32>,
    %c23_58 = arith.constant 23 : index
    %c0_59 = arith.constant 0 : index
    %84 = vector.load %arg6[%c23_58, %c0_59] : memref<336x128xf32, #tpu.memory_space<vmem>>, vector<288x128xf32>
    %c0_60 = arith.constant 0 : index
    %c384_61 = arith.constant 384 : index
    %85 = vector.load %arg7[%c0_60, %c384_61] : memref<288x1152xf32, #tpu.memory_space<vmem>>, vector<288x128xf32>
    tpu.vector_store %arg7[%c0_60, %c384_61], %84 {strides = array<i32>} : memref<288x1152xf32, #tpu.memory_space<vmem>>, vector<288x128xf32>,
    %c24_62 = arith.constant 24 : index
    %c0_63 = arith.constant 0 : index
    %86 = vector.load %arg6[%c24_62, %c0_63] : memref<336x128xf32, #tpu.memory_space<vmem>>, vector<288x128xf32>
    %c0_64 = arith.constant 0 : index
    %c512_65 = arith.constant 512 : index
    %87 = vector.load %arg7[%c0_64, %c512_65] : memref<288x1152xf32, #tpu.memory_space<vmem>>, vector<288x128xf32>
    tpu.vector_store %arg7[%c0_64, %c512_65], %86 {strides = array<i32>} : memref<288x1152xf32, #tpu.memory_space<vmem>>, vector<288x128xf32>,
    %c25_66 = arith.constant 25 : index
    %c0_67 = arith.constant 0 : index
    %88 = vector.load %arg6[%c25_66, %c0_67] : memref<336x128xf32, #tpu.memory_space<vmem>>, vector<288x128xf32>
    %c0_68 = arith.constant 0 : index
    %c640_69 = arith.constant 640 : index
    %89 = vector.load %arg7[%c0_68, %c640_69] : memref<288x1152xf32, #tpu.memory_space<vmem>>, vector<288x128xf32>
    tpu.vector_store %arg7[%c0_68, %c640_69], %88 {strides = array<i32>} : memref<288x1152xf32, #tpu.memory_space<vmem>>, vector<288x128xf32>,
    %c41_70 = arith.constant 41 : index
    %c0_71 = arith.constant 0 : index
    %90 = vector.load %arg6[%c41_70, %c0_71] : memref<336x128xf32, #tpu.memory_space<vmem>>, vector<288x128xf32>
    %c0_72 = arith.constant 0 : index
    %c768_73 = arith.constant 768 : index
    %91 = vector.load %arg7[%c0_72, %c768_73] : memref<288x1152xf32, #tpu.memory_space<vmem>>, vector<288x128xf32>
    tpu.vector_store %arg7[%c0_72, %c768_73], %90 {strides = array<i32>} : memref<288x1152xf32, #tpu.memory_space<vmem>>, vector<288x128xf32>,
    %c42_74 = arith.constant 42 : index
    %c0_75 = arith.constant 0 : index
    %92 = vector.load %arg6[%c42_74, %c0_75] : memref<336x128xf32, #tpu.memory_space<vmem>>, vector<288x128xf32>
    %c0_76 = arith.constant 0 : index
    %c896_77 = arith.constant 896 : index
    %93 = vector.load %arg7[%c0_76, %c896_77] : memref<288x1152xf32, #tpu.memory_space<vmem>>, vector<288x128xf32>
    tpu.vector_store %arg7[%c0_76, %c896_77], %92 {strides = array<i32>} : memref<288x1152xf32, #tpu.memory_space<vmem>>, vector<288x128xf32>,
    %c43_78 = arith.constant 43 : index
    %c0_79 = arith.constant 0 : index
    %94 = vector.load %arg6[%c43_78, %c0_79] : memref<336x128xf32, #tpu.memory_space<vmem>>, vector<288x128xf32>
    %c0_80 = arith.constant 0 : index
    %c1024_81 = arith.constant 1024 : index
    %95 = vector.load %arg7[%c0_80, %c1024_81] : memref<288x1152xf32, #tpu.memory_space<vmem>>, vector<288x128xf32>
    tpu.vector_store %arg7[%c0_80, %c1024_81], %94 {strides = array<i32>} : memref<288x1152xf32, #tpu.memory_space<vmem>>, vector<288x128xf32>,
    %c0_82 = arith.constant 0 : index
    %c0_83 = arith.constant 0 : index
    %96 = vector.load %arg7[%c0_82, %c0_83] : memref<288x1152xf32, #tpu.memory_space<vmem>>, vector<288x1152xf32>
    %c0_84 = arith.constant 0 : index
    %c0_85 = arith.constant 0 : index
    %97 = vector.load %arg3[%c0_84, %c0_85] : memref<1152x128xf32, #tpu.memory_space<vmem>>, vector<1152x128xf32>
    %cst_86 = arith.constant dense<0.000000e+00> : vector<288x128xf32>
    %98 = tpu.matmul %96, %97, %cst_86 {dimension_numbers = #tpu.dot_dimension_numbers<[1], [0], [0], [1], [0, 0, 1, 1], [], []>} : vector<288x1152xf32>, vector<1152x128xf32>, vector<288x128xf32> -> vector<288x128xf32>
    %99 = vector.shape_cast %9 : vector<128xf32> to vector<1x128xf32>
    %100 = vector.broadcast %99 : vector<1x128xf32> to vector<288x128xf32>
    %101 = arith.mulf %98, %100 : vector<288x128xf32>
    %102 = vector.shape_cast %7 : vector<128xf32> to vector<1x128xf32>
    %103 = vector.broadcast %102 : vector<1x128xf32> to vector<288x128xf32>
    %104 = arith.addf %101, %103 : vector<288x128xf32>
    %105 = arith.addf %104, %35 : vector<288x128xf32>
    %c0_87 = arith.constant 0 : index
    %c0_88 = arith.constant 0 : index
    %106 = vector.load %arg5[%c0_87, %c0_88] : memref<288x128xf32, #tpu.memory_space<vmem>>, vector<288x128xf32>
    tpu.vector_store %arg5[%c0_87, %c0_88], %105 {strides = array<i32>} : memref<288x128xf32, #tpu.memory_space<vmem>>, vector<288x128xf32>,
    return
  }
  func.func @transform_0(%arg0: i32) -> (i32, i32) {
    %c0_i32 = arith.constant 0 : i32
    %c0_i32_0 = arith.constant 0 : i32
    return %arg0, %c0_i32 : i32, i32
  }
  func.func @transform_1(%arg0: i32) -> (i32, i32) {
    %c0_i32 = arith.constant 0 : i32
    %c0_i32_0 = arith.constant 0 : i32
    %c0_i32_1 = arith.constant 0 : i32
    return %c0_i32, %c0_i32_0 : i32, i32
  }
  func.func @transform_2(%arg0: i32) -> (i32, i32) {
    %c0_i32 = arith.constant 0 : i32
    %c0_i32_0 = arith.constant 0 : i32
    %c0_i32_1 = arith.constant 0 : i32
    return %c0_i32, %c0_i32_0 : i32, i32
  }
  func.func @transform_3(%arg0: i32) -> (i32, i32) {
    %c0_i32 = arith.constant 0 : i32
    %c0_i32_0 = arith.constant 0 : i32
    %c0_i32_1 = arith.constant 0 : i32
    return %c0_i32, %c0_i32_0 : i32, i32
  }
  func.func @transform_4(%arg0: i32) -> (i32, i32) {
    %c0_i32 = arith.constant 0 : i32
    %c0_i32_0 = arith.constant 0 : i32
    return %arg0, %c0_i32 : i32, i32
  }
}

</mosaic_0001>

<llo_original>
// kernel: tpu_custom_call.1
$region0: #{tpu_custom_call.1}
  #allocation0 [shape = 'u32[]', space=smem, size = 0x4, offset = 0x4, fixed_abs, tag = 'smem constant byte address 0x4 - core index']
  #allocation1 [shape = 'u32[144,128]{1,0:T(1,128)}', space=vmem, size = 0x12000, scoped, tag = 'internal scratch']
  #allocation2 [shape = 'f32[336,128]{1,0:T(8,128)}', space=vmem, size = 0x2a000, scoped, tag = 'scratch operand']
  #allocation3 [shape = 'f32[288,1152]{1,0:T(8,128)}', space=vmem, size = 0x144000, scoped, tag = 'scratch operand']
  %s0 = inlined_call_operand.hbm [shape: f32[576,128], index: 0, kind: input, shape index: {}]
  %s1 = inlined_call_operand.hbm [shape: f32[1152,128], index: 1, kind: input, shape index: {}]
  %s2 = inlined_call_operand.hbm [shape: f32[1152,128], index: 2, kind: input, shape index: {}]
  %s3 = inlined_call_operand.vmem [shape: f32[5,128], index: 3, kind: input, shape index: {}]
  %s4 = inlined_call_operand.hbm [shape: f32[576,128], index: 4, kind: output, shape index: {}]
  %s5 = sld [smem:[#allocation0]]
  $region61: #{tpu_custom_call.1} parent=0
    _
  %s7 = ssub.s32 1, %s5
  %s8 = scalar_select 0, %s7, %s5
  $region1: #{tpu_custom_call.1} parent=0
    #allocation4 [shape = 'u8[294912]{0}', space=vmem, size = 0x48000, scoped, tag = 'input window, operand 0']
    #allocation5 [shape = 's32[2]{0}', space=sflag, size = 0x8, scoped, tag = 'scoped memory for tpu_custom_call.1']
    #allocation6 [shape = 's32[2]{0}', space=sflag, size = 0x8, scoped, tag = 'scoped memory for tpu_custom_call.1']
    #allocation7 [shape = 'u8[589824]{0}', space=vmem, size = 0x90000, scoped, tag = 'input window, operand 1, single buffered']
    #allocation8 [shape = 's32[1]{0}', space=sflag, size = 0x4, scoped, tag = 'scoped memory for tpu_custom_call.1']
    #allocation9 [shape = 'u8[589824]{0}', space=vmem, size = 0x90000, scoped, tag = 'input window, operand 2, single buffered']
    #allocation10 [shape = 'u8[294912]{0}', space=vmem, size = 0x48000, scoped, tag = 'output window, operand 0']
    %9 = vsyncpa [#allocation5], 0
    %s10 = scalar_lea.sflag [#allocation5], 1
    %11 = vsyncpa %s10, 0
    %12 = vsyncpa [#allocation8], 0
    %13 = vsyncpa [#allocation6], 0
    %s14 = scalar_lea.sflag [#allocation6], 1
    %15 = vsyncpa %s14, 0
    loop: start=0, step=1, limit=4
    $region2: #{tpu_custom_call.1} parent=1 // loop_pre_header
      _
    $region3: #{tpu_custom_call.1} parent=1 // loop_header
      %s17 = sphi 0, %s21
      %p18 = scmp.ge.s32.totalorder %s17, 4
      %s27 = sphi 0, %s29
      %s30 = sphi 0, %s27
      %s31 = sphi 0, %s30
      %s47 = sphi 0, %s31
      %s51 = sphi 0, %s51
      %s53 = sphi 0, %s51
      %s54 = sphi 0, %s53
      %s68 = sphi 0, %s54
      %s72 = sphi 0, %s72
      %s74 = sphi 0, %s72
      %s75 = sphi 0, %s74
      %s89 = sphi 0, %s75
      %s93 = sphi 0, %s93
      %s95 = sphi 0, %s93
      %s96 = sphi 0, %s95
      %s110 = sphi 0, %s96
      %s116 = sphi 0, %s118
      %s119 = sphi 0, %s116
      %s120 = sphi 0, %s119
      %s136 = sphi 0, %s120
    $region4: #{tpu_custom_call.1} parent=1 // loop_header_branch
      %20 = sbr.rel (%p18) target = $region8
    $region5: #{tpu_custom_call.1} parent=1 // loop_body
      %s22 = ssub.s32 %s17, 1
      %s23 = ssub.s32 %s17, 2
      %s24 = sadd.s32 %s17, 1
      %s25 = ssub.s32 %s17, %s24
      %p26 = scmp.eq.s32.totalorder %s25, 0
      %s28 = sadd.s32 %s27, 1
      %s29 = scalar_select %p26, %s27, %s28
      %p32 = pneg %p26
      %p33 = scmp.eq.s32.totalorder %s17, 1
      %p34 = por %p32, %p33
      %p35 = scmp.ne.s32.totalorder %s27, %s30
      %p36 = scmp.eq.s32.totalorder %s17, 0
      %p37 = por %p35, %p36
      %p38 = scmp.ne.s32.totalorder %s27, %s30
      %p39 = scmp.eq.s32.totalorder %s22, 1
      %p40 = por %p38, %p39
      %p41 = scmp.ne.s32.totalorder %s30, %s31
      %p42 = scmp.eq.s32.totalorder %s22, 0
      %p43 = por %p41, %p42
      %p44 = scmp.ne.s32.totalorder %s30, %s31
      %p45 = scmp.eq.s32.totalorder %s23, 1
      %p46 = por %p44, %p45
      %p48 = scmp.ne.s32.totalorder %s31, %s47
      %p49 = scmp.eq.s32.totalorder %s23, 0
      %p50 = por %p48, %p49
      %s52 = sadd.s32 %s51, 1
      %p55 = scmp.eq.s32.totalorder %s17, 1
      %p56 = scmp.ne.s32.totalorder %s51, %s53
      %p57 = scmp.eq.s32.totalorder %s17, 0
      %p58 = por %p56, %p57
      %p59 = scmp.ne.s32.totalorder %s51, %s53
      %p60 = scmp.eq.s32.totalorder %s22, 1
      %p61 = por %p59, %p60
      %p62 = scmp.ne.s32.totalorder %s53, %s54
      %p63 = scmp.eq.s32.totalorder %s22, 0
      %p64 = por %p62, %p63
      %p65 = scmp.ne.s32.totalorder %s53, %s54
      %p66 = scmp.eq.s32.totalorder %s23, 1
      %p67 = por %p65, %p66
      %p69 = scmp.ne.s32.totalorder %s54, %s68
      %p70 = scmp.eq.s32.totalorder %s23, 0
      %p71 = por %p69, %p70
      %s73 = sadd.s32 %s72, 1
      %p76 = scmp.eq.s32.totalorder %s17, 1
      %p77 = scmp.ne.s32.totalorder %s72, %s74
      %p78 = scmp.eq.s32.totalorder %s17, 0
      %p79 = por %p77, %p78
      %p80 = scmp.ne.s32.totalorder %s72, %s74
      %p81 = scmp.eq.s32.totalorder %s22, 1
      %p82 = por %p80, %p81
      %p83 = scmp.ne.s32.totalorder %s74, %s75
      %p84 = scmp.eq.s32.totalorder %s22, 0
      %p85 = por %p83, %p84
      %p86 = scmp.ne.s32.totalorder %s74, %s75
      %p87 = scmp.eq.s32.totalorder %s23, 1
      %p88 = por %p86, %p87
      %p90 = scmp.ne.s32.totalorder %s75, %s89
      %p91 = scmp.eq.s32.totalorder %s23, 0
      %p92 = por %p90, %p91
      %s94 = sadd.s32 %s93, 1
      %p97 = scmp.eq.s32.totalorder %s17, 1
      %p98 = scmp.ne.s32.totalorder %s93, %s95
      %p99 = scmp.eq.s32.totalorder %s17, 0
      %p100 = por %p98, %p99
      %p101 = scmp.ne.s32.totalorder %s93, %s95
      %p102 = scmp.eq.s32.totalorder %s22, 1
      %p103 = por %p101, %p102
      %p104 = scmp.ne.s32.totalorder %s95, %s96
      %p105 = scmp.eq.s32.totalorder %s22, 0
      %p106 = por %p104, %p105
      %p107 = scmp.ne.s32.totalorder %s95, %s96
      %p108 = scmp.eq.s32.totalorder %s23, 1
      %p109 = por %p107, %p108
      %p111 = scmp.ne.s32.totalorder %s96, %s110
      %p112 = scmp.eq.s32.totalorder %s23, 0
      %p113 = por %p111, %p112
      %s114 = ssub.s32 %s17, %s24
      %p115 = scmp.eq.s32.totalorder %s114, 0
      %s117 = sadd.s32 %s116, 1
      %s118 = scalar_select %p115, %s116, %s117
      %p121 = pneg %p115
      %p122 = scmp.eq.s32.totalorder %s17, 1
      %p123 = por %p121, %p122
      %p124 = scmp.ne.s32.totalorder %s116, %s119
      %p125 = scmp.eq.s32.totalorder %s17, 0
      %p126 = por %p124, %p125
      %p127 = scmp.ne.s32.totalorder %s116, %s119
      %p128 = scmp.eq.s32.totalorder %s22, 1
      %p129 = por %p127, %p128
      %p130 = scmp.ne.s32.totalorder %s119, %s120
      %p131 = scmp.eq.s32.totalorder %s22, 0
      %p132 = por %p130, %p131
      %p133 = scmp.ne.s32.totalorder %s119, %s120
      %p134 = scmp.eq.s32.totalorder %s23, 1
      %p135 = por %p133, %p134
      %p137 = scmp.ne.s32.totalorder %s120, %s136
      %p138 = scmp.eq.s32.totalorder %s23, 0
      %p139 = por %p137, %p138
      %p140 = scmp.le.s32.totalorder 1, %s17
      %p141 = scmp.lt.s32.totalorder %s17, 3
      %p142 = pnand %p140, %p141
      %p143 = pneg %p142
      // Predicated region
      $region9: #{tpu_custom_call.1} parent=5 // pred_check
        _
      $region10: #{tpu_custom_call.1} parent=5 // pred_check_branch
        %145 = sbr.rel (%p142) target = $region12
      $region11: #{tpu_custom_call.1} parent=5 // pred_region
        %s146 = ssub.s32 %s17, 1
        // Predicated region
        $region13: #{tpu_custom_call.1} parent=11 // pred_check
          %p147 = pneg %p64
        $region14: #{tpu_custom_call.1} parent=11 // pred_check_branch
          %149 = sbr.rel (%p147) target = $region16
        $region15: #{tpu_custom_call.1} parent=11 // pred_region
          %s151 = ssub.s32 18432, 18432
          %152 = vsyncadd [#allocation8], %s151
          %s153 = sshll.u32 [#allocation7], 4
          %s154 = int_to_ptr.vmem [resolvable:$true] %s153
          %159 = dma.hbm_to_vmem [thread:$0]  %s1, 18432, %s154, [#allocation8], 128, 128, 8
        $region16: #{tpu_custom_call.1} parent=11 // pred_fallthru
          _
        // Predicated region
        $region17: #{tpu_custom_call.1} parent=11 // pred_check
          %p160 = pneg %p85
        $region18: #{tpu_custom_call.1} parent=11 // pred_check_branch
          %162 = sbr.rel (%p160) target = $region20
        $region19: #{tpu_custom_call.1} parent=11 // pred_region
          %s164 = ssub.s32 18432, 18432
          %165 = vsyncadd [#allocation8], %s164
          %s166 = sshll.u32 [#allocation9], 4
          %s167 = int_to_ptr.vmem [resolvable:$true] %s166
          %172 = dma.hbm_to_vmem [thread:$0]  %s2, 18432, %s167, [#allocation8], 128, 128, 8
        $region20: #{tpu_custom_call.1} parent=11 // pred_fallthru
          _
        // Predicated region
        $region21: #{tpu_custom_call.1} parent=11 // pred_check
          %p173 = pneg %p106
        $region22: #{tpu_custom_call.1} parent=11 // pred_check_branch
          %175 = sbr.rel (%p173) target = $region24
        $region23: #{tpu_custom_call.1} parent=11 // pred_region
          _
        $region24: #{tpu_custom_call.1} parent=11 // pred_fallthru
          _
      $region12: #{tpu_custom_call.1} parent=5 // pred_fallthru
        _
      %p176 = scmp.lt.s32.totalorder %s17, 2
      // Predicated region
      $region25: #{tpu_custom_call.1} parent=5 // pred_check
        %p177 = pneg %p176
      $region26: #{tpu_custom_call.1} parent=5 // pred_check_branch
        %179 = sbr.rel (%p177) target = $region28
      $region27: #{tpu_custom_call.1} parent=5 // pred_region
        // Predicated region
        $region29: #{tpu_custom_call.1} parent=27 // pred_check
          %p180 = pneg %p37
        $region30: #{tpu_custom_call.1} parent=27 // pred_check_branch
          %182 = sbr.rel (%p180) target = $region32
        $region31: #{tpu_custom_call.1} parent=27 // pred_region
          %s183 = sand.u32 %s27, 1
          %s184 = scalar_lea.sflag [#allocation5], %s183
          %s185 = sand.u32 %s27, 1
          %s186 = smul.addr %s185, 288
          %s187 = scalar_lea.vmem [#allocation4], %s186
          %s188 = smul.u32 36, %s17
          %s190 = ssub.s32 4608, 4608
          %191 = vsyncadd %s184, %s190
          %s192 = smul.addr %s188, 128
          %s193 = scalar_lea.hbm %s0, %s192
          %s194 = sshll.u32 %s187, 4
          %s195 = int_to_ptr.vmem [resolvable:$true] %s194
          %200 = dma.hbm_to_vmem [thread:$0]  %s193, 4608, %s195, %s184, 128, 128, 8
        $region32: #{tpu_custom_call.1} parent=27 // pred_fallthru
          _
      $region28: #{tpu_custom_call.1} parent=5 // pred_fallthru
        _
      %p201 = scmp.le.s32.totalorder 1, %s17
      %p202 = scmp.lt.s32.totalorder %s17, 3
      %p203 = pnand %p201, %p202
      %p204 = pneg %p203
      // Predicated region
      $region33: #{tpu_custom_call.1} parent=5 // pred_check
        _
      $region34: #{tpu_custom_call.1} parent=5 // pred_check_branch
        %206 = sbr.rel (%p203) target = $region36
      $region35: #{tpu_custom_call.1} parent=5 // pred_region
        %s207 = ssub.s32 %s17, 1
        %s208 = sand.u32 %s30, 1
        %s209 = scalar_lea.sflag [#allocation5], %s208
        %s210 = sand.u32 %s30, 1
        %s211 = smul.addr %s210, 288
        %s212 = scalar_lea.vmem [#allocation4], %s211
        // Predicated region
        $region37: #{tpu_custom_call.1} parent=35 // pred_check
          %p213 = pneg %p43
        $region38: #{tpu_custom_call.1} parent=35 // pred_check_branch
          %215 = sbr.rel (%p213) target = $region40
        $region39: #{tpu_custom_call.1} parent=35 // pred_region
          %216 = dma.done %s209, 4608
        $region40: #{tpu_custom_call.1} parent=35 // pred_fallthru
          _
        // Predicated region
        $region41: #{tpu_custom_call.1} parent=35 // pred_check
          %p217 = pneg %p64
        $region42: #{tpu_custom_call.1} parent=35 // pred_check_branch
          %219 = sbr.rel (%p217) target = $region44
        $region43: #{tpu_custom_call.1} parent=35 // pred_region
          %220 = dma.done [#allocation8], 18432
        $region44: #{tpu_custom_call.1} parent=35 // pred_fallthru
          _
        // Predicated region
        $region45: #{tpu_custom_call.1} parent=35 // pred_check
          %p221 = pneg %p85
        $region46: #{tpu_custom_call.1} parent=35 // pred_check_branch
          %223 = sbr.rel (%p221) target = $region48
        $region47: #{tpu_custom_call.1} parent=35 // pred_region
          %224 = dma.done [#allocation8], 18432
        $region48: #{tpu_custom_call.1} parent=35 // pred_fallthru
          _
        %s225 = sand.u32 %s30, 1
        %s226 = scalar_lea.sflag [#allocation5], %s225
        %s227 = sand.u32 %s30, 1
        %s228 = smul.addr %s227, 288
        %s229 = scalar_lea.vmem [#allocation4], %s228
        %p230 = pneg %p43
        %p231 = pneg %p40
        %p232 = pneg %p64
        %p233 = pneg %p61
        %p234 = pneg %p85
        %p235 = pneg %p82
        %p236 = pneg %p106
        %p237 = pneg %p103
        %p238 = pneg %p132
        %p239 = pneg %p129
        %s240 = sand.u32 %s119, 1
        %s241 = scalar_lea.sflag [#allocation6], %s240
        %s242 = sand.u32 %s119, 1
        %s243 = smul.addr %s242, 288
        %s244 = scalar_lea.vmem [#allocation10], %s243
        %s245 = smul.u32 36, %s22
        %s246 = smul.u32 36, %s22
        %v247 = vld [vmem:[%s3] sm:$0x1]
        %v248 = vld [vmem:[%s3 + $0x1] sm:$0x1]
        %v249 = vld [vmem:[%s3 + $0x2] sm:$0x1]
        %v250 = vld [vmem:[%s3 + $0x3] sm:$0x1]
        %v251 = vld [vmem:[%s3 + $0x4] sm:$0x1]
        %v252 = vlaneseq
        %v253 = vshrl.u32 %v252, 7
        %v254 = vadd.s32 %v253, 8
        %v255 = vadd.s32 %v253, 16
        %v256 = vadd.s32 %v253, 24
        %v257 = vadd.s32 %v253, 32
        %v258 = vadd.s32 %v253, 40
        %v259 = vadd.s32 %v253, 48
        %v260 = vadd.s32 %v253, 56
        %v261 = vadd.s32 %v253, 64
        %v262 = vadd.s32 %v253, 72
        %v263 = vadd.s32 %v253, 80
        %v264 = vadd.s32 %v253, 88
        %v265 = vadd.s32 %v253, 96
        %v266 = vadd.s32 %v253, 104
        %v267 = vadd.s32 %v253, 112
        %v268 = vadd.s32 %v253, 120
        %v269 = vadd.s32 %v253, 128
        %v270 = vadd.s32 %v253, 136
        %v271 = vadd.s32 %v253, 144
        %v272 = vadd.s32 %v253, 152
        %v273 = vadd.s32 %v253, 160
        %v274 = vadd.s32 %v253, 168
        %v275 = vadd.s32 %v253, 176
        %v276 = vadd.s32 %v253, 184
        %v277 = vadd.s32 %v253, 192
        %v278 = vadd.s32 %v253, 200
        %v279 = vadd.s32 %v253, 208
        %v280 = vadd.s32 %v253, 216
        %v281 = vadd.s32 %v253, 224
        %v282 = vadd.s32 %v253, 232
        %v283 = vadd.s32 %v253, 240
        %v284 = vadd.s32 %v253, 248
        %v285 = vadd.s32 %v253, 256
        %v286 = vadd.s32 %v253, 264
        %v287 = vadd.s32 %v253, 272
        %v288 = vadd.s32 %v253, 280
        %vm289 = vcmp.lt.s32.totalorder %v253, 0
        %v290 = vsub.s32 0, %v253
        %v291 = vsel %vm289, %v290, %v253
        %v292 = vmul.u32.u64.compose %v291, 3817748708
        %v293 = vextract.low.u32 %v292
        %v294 = vextract.high.u32 %v292
        %v295 = vshrl.u32 %v294, 4
        %v296 = vmul.u32 %v295, 18
        %v297 = vsub.s32 %v291, %v296
        %v298 = vsub.s32 0, %v297
        %v299 = vsel %vm289, %v298, %v297
        %vm300 = vcmp.lt.s32.totalorder %v254, 0
        %v301 = vsub.s32 0, %v254
        %v302 = vsel %vm300, %v301, %v254
        %v303 = vmul.u32.u64.compose %v302, 3817748708
        %v304 = vextract.low.u32 %v303
        %v305 = vextract.high.u32 %v303
        %v306 = vshrl.u32 %v305, 4
        %v307 = vmul.u32 %v306, 18
        %v308 = vsub.s32 %v302, %v307
        %v309 = vsub.s32 0, %v308
        %v310 = vsel %vm300, %v309, %v308
        %vm311 = vcmp.lt.s32.totalorder %v255, 0
        %v312 = vsub.s32 0, %v255
        %v313 = vsel %vm311, %v312, %v255
        %v314 = vmul.u32.u64.compose %v313, 3817748708
        %v315 = vextract.low.u32 %v314
        %v316 = vextract.high.u32 %v314
        %v317 = vshrl.u32 %v316, 4
        %v318 = vmul.u32 %v317, 18
        %v319 = vsub.s32 %v313, %v318
        %v320 = vsub.s32 0, %v319
        %v321 = vsel %vm311, %v320, %v319
        %vm322 = vcmp.lt.s32.totalorder %v256, 0
        %v323 = vsub.s32 0, %v256
        %v324 = vsel %vm322, %v323, %v256
        %v325 = vmul.u32.u64.compose %v324, 3817748708
        %v326 = vextract.low.u32 %v325
        %v327 = vextract.high.u32 %v325
        %v328 = vshrl.u32 %v327, 4
        %v329 = vmul.u32 %v328, 18
        %v330 = vsub.s32 %v324, %v329
        %v331 = vsub.s32 0, %v330
        %v332 = vsel %vm322, %v331, %v330
        %vm333 = vcmp.lt.s32.totalorder %v257, 0
        %v334 = vsub.s32 0, %v257
        %v335 = vsel %vm333, %v334, %v257
        %v336 = vmul.u32.u64.compose %v335, 3817748708
        %v337 = vextract.low.u32 %v336
        %v338 = vextract.high.u32 %v336
        %v339 = vshrl.u32 %v338, 4
        %v340 = vmul.u32 %v339, 18
        %v341 = vsub.s32 %v335, %v340
        %v342 = vsub.s32 0, %v341
        %v343 = vsel %vm333, %v342, %v341
        %vm344 = vcmp.lt.s32.totalorder %v258, 0
        %v345 = vsub.s32 0, %v258
        %v346 = vsel %vm344, %v345, %v258
        %v347 = vmul.u32.u64.compose %v346, 3817748708
        %v348 = vextract.low.u32 %v347
        %v349 = vextract.high.u32 %v347
        %v350 = vshrl.u32 %v349, 4
        %v351 = vmul.u32 %v350, 18
        %v352 = vsub.s32 %v346, %v351
        %v353 = vsub.s32 0, %v352
        %v354 = vsel %vm344, %v353, %v352
        %vm355 = vcmp.lt.s32.totalorder %v259, 0
        %v356 = vsub.s32 0, %v259
        %v357 = vsel %vm355, %v356, %v259
        %v358 = vmul.u32.u64.compose %v357, 3817748708
        %v359 = vextract.low.u32 %v358
        %v360 = vextract.high.u32 %v358
        %v361 = vshrl.u32 %v360, 4
        %v362 = vmul.u32 %v361, 18
        %v363 = vsub.s32 %v357, %v362
        %v364 = vsub.s32 0, %v363
        %v365 = vsel %vm355, %v364, %v363
        %vm366 = vcmp.lt.s32.totalorder %v260, 0
        %v367 = vsub.s32 0, %v260
        %v368 = vsel %vm366, %v367, %v260
        %v369 = vmul.u32.u64.compose %v368, 3817748708
        %v370 = vextract.low.u32 %v369
        %v371 = vextract.high.u32 %v369
        %v372 = vshrl.u32 %v371, 4
        %v373 = vmul.u32 %v372, 18
        %v374 = vsub.s32 %v368, %v373
        %v375 = vsub.s32 0, %v374
        %v376 = vsel %vm366, %v375, %v374
        %vm377 = vcmp.lt.s32.totalorder %v261, 0
        %v378 = vsub.s32 0, %v261
        %v379 = vsel %vm377, %v378, %v261
        %v380 = vmul.u32.u64.compose %v379, 3817748708
        %v381 = vextract.low.u32 %v380
        %v382 = vextract.high.u32 %v380
        %v383 = vshrl.u32 %v382, 4
        %v384 = vmul.u32 %v383, 18
        %v385 = vsub.s32 %v379, %v384
        %v386 = vsub.s32 0, %v385
        %v387 = vsel %vm377, %v386, %v385
        %vm388 = vcmp.lt.s32.totalorder %v262, 0
        %v389 = vsub.s32 0, %v262
        %v390 = vsel %vm388, %v389, %v262
        %v391 = vmul.u32.u64.compose %v390, 3817748708
        %v392 = vextract.low.u32 %v391
        %v393 = vextract.high.u32 %v391
        %v394 = vshrl.u32 %v393, 4
        %v395 = vmul.u32 %v394, 18
        %v396 = vsub.s32 %v390, %v395
        %v397 = vsub.s32 0, %v396
        %v398 = vsel %vm388, %v397, %v396
        %vm399 = vcmp.lt.s32.totalorder %v263, 0
        %v400 = vsub.s32 0, %v263
        %v401 = vsel %vm399, %v400, %v263
        %v402 = vmul.u32.u64.compose %v401, 3817748708
        %v403 = vextract.low.u32 %v402
        %v404 = vextract.high.u32 %v402
        %v405 = vshrl.u32 %v404, 4
        %v406 = vmul.u32 %v405, 18
        %v407 = vsub.s32 %v401, %v406
        %v408 = vsub.s32 0, %v407
        %v409 = vsel %vm399, %v408, %v407
        %vm410 = vcmp.lt.s32.totalorder %v264, 0
        %v411 = vsub.s32 0, %v264
        %v412 = vsel %vm410, %v411, %v264
        %v413 = vmul.u32.u64.compose %v412, 3817748708
        %v414 = vextract.low.u32 %v413
        %v415 = vextract.high.u32 %v413
        %v416 = vshrl.u32 %v415, 4
        %v417 = vmul.u32 %v416, 18
        %v418 = vsub.s32 %v412, %v417
        %v419 = vsub.s32 0, %v418
        %v420 = vsel %vm410, %v419, %v418
        %vm421 = vcmp.lt.s32.totalorder %v265, 0
        %v422 = vsub.s32 0, %v265
        %v423 = vsel %vm421, %v422, %v265
        %v424 = vmul.u32.u64.compose %v423, 3817748708
        %v425 = vextract.low.u32 %v424
        %v426 = vextract.high.u32 %v424
        %v427 = vshrl.u32 %v426, 4
        %v428 = vmul.u32 %v427, 18
        %v429 = vsub.s32 %v423, %v428
        %v430 = vsub.s32 0, %v429
        %v431 = vsel %vm421, %v430, %v429
        %vm432 = vcmp.lt.s32.totalorder %v266, 0
        %v433 = vsub.s32 0, %v266
        %v434 = vsel %vm432, %v433, %v266
        %v435 = vmul.u32.u64.compose %v434, 3817748708
        %v436 = vextract.low.u32 %v435
        %v437 = vextract.high.u32 %v435
        %v438 = vshrl.u32 %v437, 4
        %v439 = vmul.u32 %v438, 18
        %v440 = vsub.s32 %v434, %v439
        %v441 = vsub.s32 0, %v440
        %v442 = vsel %vm432, %v441, %v440
        %vm443 = vcmp.lt.s32.totalorder %v267, 0
        %v444 = vsub.s32 0, %v267
        %v445 = vsel %vm443, %v444, %v267
        %v446 = vmul.u32.u64.compose %v445, 3817748708
        %v447 = vextract.low.u32 %v446
        %v448 = vextract.high.u32 %v446
        %v449 = vshrl.u32 %v448, 4
        %v450 = vmul.u32 %v449, 18
        %v451 = vsub.s32 %v445, %v450
        %v452 = vsub.s32 0, %v451
        %v453 = vsel %vm443, %v452, %v451
        %vm454 = vcmp.lt.s32.totalorder %v268, 0
        %v455 = vsub.s32 0, %v268
        %v456 = vsel %vm454, %v455, %v268
        %v457 = vmul.u32.u64.compose %v456, 3817748708
        %v458 = vextract.low.u32 %v457
        %v459 = vextract.high.u32 %v457
        %v460 = vshrl.u32 %v459, 4
        %v461 = vmul.u32 %v460, 18
        %v462 = vsub.s32 %v456, %v461
        %v463 = vsub.s32 0, %v462
        %v464 = vsel %vm454, %v463, %v462
        %vm465 = vcmp.lt.s32.totalorder %v269, 0
        %v466 = vsub.s32 0, %v269
        %v467 = vsel %vm465, %v466, %v269
        %v468 = vmul.u32.u64.compose %v467, 3817748708
        %v469 = vextract.low.u32 %v468
        %v470 = vextract.high.u32 %v468
        %v471 = vshrl.u32 %v470, 4
        %v472 = vmul.u32 %v471, 18
        %v473 = vsub.s32 %v467, %v472
        %v474 = vsub.s32 0, %v473
        %v475 = vsel %vm465, %v474, %v473
        %vm476 = vcmp.lt.s32.totalorder %v270, 0
        %v477 = vsub.s32 0, %v270
        %v478 = vsel %vm476, %v477, %v270
        %v479 = vmul.u32.u64.compose %v478, 3817748708
        %v480 = vextract.low.u32 %v479
        %v481 = vextract.high.u32 %v479
        %v482 = vshrl.u32 %v481, 4
        %v483 = vmul.u32 %v482, 18
        %v484 = vsub.s32 %v478, %v483
        %v485 = vsub.s32 0, %v484
        %v486 = vsel %vm476, %v485, %v484
        %vm487 = vcmp.lt.s32.totalorder %v271, 0
        %v488 = vsub.s32 0, %v271
        %v489 = vsel %vm487, %v488, %v271
        %v490 = vmul.u32.u64.compose %v489, 3817748708
        %v491 = vextract.low.u32 %v490
        %v492 = vextract.high.u32 %v490
        %v493 = vshrl.u32 %v492, 4
        %v494 = vmul.u32 %v493, 18
        %v495 = vsub.s32 %v489, %v494
        %v496 = vsub.s32 0, %v495
        %v497 = vsel %vm487, %v496, %v495
        %vm498 = vcmp.lt.s32.totalorder %v272, 0
        %v499 = vsub.s32 0, %v272
        %v500 = vsel %vm498, %v499, %v272
        %v501 = vmul.u32.u64.compose %v500, 3817748708
        %v502 = vextract.low.u32 %v501
        %v503 = vextract.high.u32 %v501
        %v504 = vshrl.u32 %v503, 4
        %v505 = vmul.u32 %v504, 18
        %v506 = vsub.s32 %v500, %v505
        %v507 = vsub.s32 0, %v506
        %v508 = vsel %vm498, %v507, %v506
        %vm509 = vcmp.lt.s32.totalorder %v273, 0
        %v510 = vsub.s32 0, %v273
        %v511 = vsel %vm509, %v510, %v273
        %v512 = vmul.u32.u64.compose %v511, 3817748708
        %v513 = vextract.low.u32 %v512
        %v514 = vextract.high.u32 %v512
        %v515 = vshrl.u32 %v514, 4
        %v516 = vmul.u32 %v515, 18
        %v517 = vsub.s32 %v511, %v516
        %v518 = vsub.s32 0, %v517
        %v519 = vsel %vm509, %v518, %v517
        %vm520 = vcmp.lt.s32.totalorder %v274, 0
        %v521 = vsub.s32 0, %v274
        %v522 = vsel %vm520, %v521, %v274
        %v523 = vmul.u32.u64.compose %v522, 3817748708
        %v524 = vextract.low.u32 %v523
        %v525 = vextract.high.u32 %v523
        %v526 = vshrl.u32 %v525, 4
        %v527 = vmul.u32 %v526, 18
        %v528 = vsub.s32 %v522, %v527
        %v529 = vsub.s32 0, %v528
        %v530 = vsel %vm520, %v529, %v528
        %vm531 = vcmp.lt.s32.totalorder %v275, 0
        %v532 = vsub.s32 0, %v275
        %v533 = vsel %vm531, %v532, %v275
        %v534 = vmul.u32.u64.compose %v533, 3817748708
        %v535 = vextract.low.u32 %v534
        %v536 = vextract.high.u32 %v534
        %v537 = vshrl.u32 %v536, 4
        %v538 = vmul.u32 %v537, 18
        %v539 = vsub.s32 %v533, %v538
        %v540 = vsub.s32 0, %v539
        %v541 = vsel %vm531, %v540, %v539
        %vm542 = vcmp.lt.s32.totalorder %v276, 0
        %v543 = vsub.s32 0, %v276
        %v544 = vsel %vm542, %v543, %v276
        %v545 = vmul.u32.u64.compose %v544, 3817748708
        %v546 = vextract.low.u32 %v545
        %v547 = vextract.high.u32 %v545
        %v548 = vshrl.u32 %v547, 4
        %v549 = vmul.u32 %v548, 18
        %v550 = vsub.s32 %v544, %v549
        %v551 = vsub.s32 0, %v550
        %v552 = vsel %vm542, %v551, %v550
        %vm553 = vcmp.lt.s32.totalorder %v277, 0
        %v554 = vsub.s32 0, %v277
        %v555 = vsel %vm553, %v554, %v277
        %v556 = vmul.u32.u64.compose %v555, 3817748708
        %v557 = vextract.low.u32 %v556
        %v558 = vextract.high.u32 %v556
        %v559 = vshrl.u32 %v558, 4
        %v560 = vmul.u32 %v559, 18
        %v561 = vsub.s32 %v555, %v560
        %v562 = vsub.s32 0, %v561
        %v563 = vsel %vm553, %v562, %v561
        %vm564 = vcmp.lt.s32.totalorder %v278, 0
        %v565 = vsub.s32 0, %v278
        %v566 = vsel %vm564, %v565, %v278
        %v567 = vmul.u32.u64.compose %v566, 3817748708
        %v568 = vextract.low.u32 %v567
        %v569 = vextract.high.u32 %v567
        %v570 = vshrl.u32 %v569, 4
        %v571 = vmul.u32 %v570, 18
        %v572 = vsub.s32 %v566, %v571
        %v573 = vsub.s32 0, %v572
        %v574 = vsel %vm564, %v573, %v572
        %vm575 = vcmp.lt.s32.totalorder %v279, 0
        %v576 = vsub.s32 0, %v279
        %v577 = vsel %vm575, %v576, %v279
        %v578 = vmul.u32.u64.compose %v577, 3817748708
        %v579 = vextract.low.u32 %v578
        %v580 = vextract.high.u32 %v578
        %v581 = vshrl.u32 %v580, 4
        %v582 = vmul.u32 %v581, 18
        %v583 = vsub.s32 %v577, %v582
        %v584 = vsub.s32 0, %v583
        %v585 = vsel %vm575, %v584, %v583
        %vm586 = vcmp.lt.s32.totalorder %v280, 0
        %v587 = vsub.s32 0, %v280
        %v588 = vsel %vm586, %v587, %v280
        %v589 = vmul.u32.u64.compose %v588, 3817748708
        %v590 = vextract.low.u32 %v589
        %v591 = vextract.high.u32 %v589
        %v592 = vshrl.u32 %v591, 4
        %v593 = vmul.u32 %v592, 18
        %v594 = vsub.s32 %v588, %v593
        %v595 = vsub.s32 0, %v594
        %v596 = vsel %vm586, %v595, %v594
        %vm597 = vcmp.lt.s32.totalorder %v281, 0
        %v598 = vsub.s32 0, %v281
        %v599 = vsel %vm597, %v598, %v281
        %v600 = vmul.u32.u64.compose %v599, 3817748708
        %v601 = vextract.low.u32 %v600
        %v602 = vextract.high.u32 %v600
        %v603 = vshrl.u32 %v602, 4
        %v604 = vmul.u32 %v603, 18
        %v605 = vsub.s32 %v599, %v604
        %v606 = vsub.s32 0, %v605
        %v607 = vsel %vm597, %v606, %v605
        %vm608 = vcmp.lt.s32.totalorder %v282, 0
        %v609 = vsub.s32 0, %v282
        %v610 = vsel %vm608, %v609, %v282
        %v611 = vmul.u32.u64.compose %v610, 3817748708
        %v612 = vextract.low.u32 %v611
        %v613 = vextract.high.u32 %v611
        %v614 = vshrl.u32 %v613, 4
        %v615 = vmul.u32 %v614, 18
        %v616 = vsub.s32 %v610, %v615
        %v617 = vsub.s32 0, %v616
        %v618 = vsel %vm608, %v617, %v616
        %vm619 = vcmp.lt.s32.totalorder %v283, 0
        %v620 = vsub.s32 0, %v283
        %v621 = vsel %vm619, %v620, %v283
        %v622 = vmul.u32.u64.compose %v621, 3817748708
        %v623 = vextract.low.u32 %v622
        %v624 = vextract.high.u32 %v622
        %v625 = vshrl.u32 %v624, 4
        %v626 = vmul.u32 %v625, 18
        %v627 = vsub.s32 %v621, %v626
        %v628 = vsub.s32 0, %v627
        %v629 = vsel %vm619, %v628, %v627
        %vm630 = vcmp.lt.s32.totalorder %v284, 0
        %v631 = vsub.s32 0, %v284
        %v632 = vsel %vm630, %v631, %v284
        %v633 = vmul.u32.u64.compose %v632, 3817748708
        %v634 = vextract.low.u32 %v633
        %v635 = vextract.high.u32 %v633
        %v636 = vshrl.u32 %v635, 4
        %v637 = vmul.u32 %v636, 18
        %v638 = vsub.s32 %v632, %v637
        %v639 = vsub.s32 0, %v638
        %v640 = vsel %vm630, %v639, %v638
        %vm641 = vcmp.lt.s32.totalorder %v285, 0
        %v642 = vsub.s32 0, %v285
        %v643 = vsel %vm641, %v642, %v285
        %v644 = vmul.u32.u64.compose %v643, 3817748708
        %v645 = vextract.low.u32 %v644
        %v646 = vextract.high.u32 %v644
        %v647 = vshrl.u32 %v646, 4
        %v648 = vmul.u32 %v647, 18
        %v649 = vsub.s32 %v643, %v648
        %v650 = vsub.s32 0, %v649
        %v651 = vsel %vm641, %v650, %v649
        %vm652 = vcmp.lt.s32.totalorder %v286, 0
        %v653 = vsub.s32 0, %v286
        %v654 = vsel %vm652, %v653, %v286
        %v655 = vmul.u32.u64.compose %v654, 3817748708
        %v656 = vextract.low.u32 %v655
        %v657 = vextract.high.u32 %v655
        %v658 = vshrl.u32 %v657, 4
        %v659 = vmul.u32 %v658, 18
        %v660 = vsub.s32 %v654, %v659
        %v661 = vsub.s32 0, %v660
        %v662 = vsel %vm652, %v661, %v660
        %vm663 = vcmp.lt.s32.totalorder %v287, 0
        %v664 = vsub.s32 0, %v287
        %v665 = vsel %vm663, %v664, %v287
        %v666 = vmul.u32.u64.compose %v665, 3817748708
        %v667 = vextract.low.u32 %v666
        %v668 = vextract.high.u32 %v666
        %v669 = vshrl.u32 %v668, 4
        %v670 = vmul.u32 %v669, 18
        %v671 = vsub.s32 %v665, %v670
        %v672 = vsub.s32 0, %v671
        %v673 = vsel %vm663, %v672, %v671
        %vm674 = vcmp.lt.s32.totalorder %v288, 0
        %v675 = vsub.s32 0, %v288
        %v676 = vsel %vm674, %v675, %v288
        %v677 = vmul.u32.u64.compose %v676, 3817748708
        %v678 = vextract.low.u32 %v677
        %v679 = vextract.high.u32 %v677
        %v680 = vshrl.u32 %v679, 4
        %v681 = vmul.u32 %v680, 18
        %v682 = vsub.s32 %v676, %v681
        %v683 = vsub.s32 0, %v682
        %v684 = vsel %vm674, %v683, %v682
        %vm685 = vcmp.ne.s32.totalorder %v299, 0
        %vm686 = vcmp.ne.s32.totalorder %v310, 0
        %vm687 = vcmp.ne.s32.totalorder %v321, 0
        %vm688 = vcmp.ne.s32.totalorder %v332, 0
        %vm689 = vcmp.ne.s32.totalorder %v343, 0
        %vm690 = vcmp.ne.s32.totalorder %v354, 0
        %vm691 = vcmp.ne.s32.totalorder %v365, 0
        %vm692 = vcmp.ne.s32.totalorder %v376, 0
        %vm693 = vcmp.ne.s32.totalorder %v387, 0
        %vm694 = vcmp.ne.s32.totalorder %v398, 0
        %vm695 = vcmp.ne.s32.totalorder %v409, 0
        %vm696 = vcmp.ne.s32.totalorder %v420, 0
        %vm697 = vcmp.ne.s32.totalorder %v431, 0
        %vm698 = vcmp.ne.s32.totalorder %v442, 0
        %vm699 = vcmp.ne.s32.totalorder %v453, 0
        %vm700 = vcmp.ne.s32.totalorder %v464, 0
        %vm701 = vcmp.ne.s32.totalorder %v475, 0
        %vm702 = vcmp.ne.s32.totalorder %v486, 0
        %vm703 = vcmp.ne.s32.totalorder %v497, 0
        %vm704 = vcmp.ne.s32.totalorder %v508, 0
        %vm705 = vcmp.ne.s32.totalorder %v519, 0
        %vm706 = vcmp.ne.s32.totalorder %v530, 0
        %vm707 = vcmp.ne.s32.totalorder %v541, 0
        %vm708 = vcmp.ne.s32.totalorder %v552, 0
        %vm709 = vcmp.ne.s32.totalorder %v563, 0
        %vm710 = vcmp.ne.s32.totalorder %v574, 0
        %vm711 = vcmp.ne.s32.totalorder %v585, 0
        %vm712 = vcmp.ne.s32.totalorder %v596, 0
        %vm713 = vcmp.ne.s32.totalorder %v607, 0
        %vm714 = vcmp.ne.s32.totalorder %v618, 0
        %vm715 = vcmp.ne.s32.totalorder %v629, 0
        %vm716 = vcmp.ne.s32.totalorder %v640, 0
        %vm717 = vcmp.ne.s32.totalorder %v651, 0
        %vm718 = vcmp.ne.s32.totalorder %v662, 0
        %vm719 = vcmp.ne.s32.totalorder %v673, 0
        %vm720 = vcmp.ne.s32.totalorder %v684, 0
        %vm721 = vcmp.lt.s32.totalorder %v299, 0
        %vm722 = vcmp.lt.s32.totalorder %v310, 0
        %vm723 = vcmp.lt.s32.totalorder %v321, 0
        %vm724 = vcmp.lt.s32.totalorder %v332, 0
        %vm725 = vcmp.lt.s32.totalorder %v343, 0
        %vm726 = vcmp.lt.s32.totalorder %v354, 0
        %vm727 = vcmp.lt.s32.totalorder %v365, 0
        %vm728 = vcmp.lt.s32.totalorder %v376, 0
        %vm729 = vcmp.lt.s32.totalorder %v387, 0
        %vm730 = vcmp.lt.s32.totalorder %v398, 0
        %vm731 = vcmp.lt.s32.totalorder %v409, 0
        %vm732 = vcmp.lt.s32.totalorder %v420, 0
        %vm733 = vcmp.lt.s32.totalorder %v431, 0
        %vm734 = vcmp.lt.s32.totalorder %v442, 0
        %vm735 = vcmp.lt.s32.totalorder %v453, 0
        %vm736 = vcmp.lt.s32.totalorder %v464, 0
        %vm737 = vcmp.lt.s32.totalorder %v475, 0
        %vm738 = vcmp.lt.s32.totalorder %v486, 0
        %vm739 = vcmp.lt.s32.totalorder %v497, 0
        %vm740 = vcmp.lt.s32.totalorder %v508, 0
        %vm741 = vcmp.lt.s32.totalorder %v519, 0
        %vm742 = vcmp.lt.s32.totalorder %v530, 0
        %vm743 = vcmp.lt.s32.totalorder %v541, 0
        %vm744 = vcmp.lt.s32.totalorder %v552, 0
        %vm745 = vcmp.lt.s32.totalorder %v563, 0
        %vm746 = vcmp.lt.s32.totalorder %v574, 0
        %vm747 = vcmp.lt.s32.totalorder %v585, 0
        %vm748 = vcmp.lt.s32.totalorder %v596, 0
        %vm749 = vcmp.lt.s32.totalorder %v607, 0
        %vm750 = vcmp.lt.s32.totalorder %v618, 0
        %vm751 = vcmp.lt.s32.totalorder %v629, 0
        %vm752 = vcmp.lt.s32.totalorder %v640, 0
        %vm753 = vcmp.lt.s32.totalorder %v651, 0
        %vm754 = vcmp.lt.s32.totalorder %v662, 0
        %vm755 = vcmp.lt.s32.totalorder %v673, 0
        %vm756 = vcmp.lt.s32.totalorder %v684, 0
        %vm757 = vmand %vm721, %vm685
        %vm758 = vmand %vm722, %vm686
        %vm759 = vmand %vm723, %vm687
        %vm760 = vmand %vm724, %vm688
        %vm761 = vmand %vm725, %vm689
        %vm762 = vmand %vm726, %vm690
        %vm763 = vmand %vm727, %vm691
        %vm764 = vmand %vm728, %vm692
        %vm765 = vmand %vm729, %vm693
        %vm766 = vmand %vm730, %vm694
        %vm767 = vmand %vm731, %vm695
        %vm768 = vmand %vm732, %vm696
        %vm769 = vmand %vm733, %vm697
        %vm770 = vmand %vm734, %vm698
        %vm771 = vmand %vm735, %vm699
        %vm772 = vmand %vm736, %vm700
        %vm773 = vmand %vm737, %vm701
        %vm774 = vmand %vm738, %vm702
        %vm775 = vmand %vm739, %vm703
        %vm776 = vmand %vm740, %vm704
        %vm777 = vmand %vm741, %vm705
        %vm778 = vmand %vm742, %vm706
        %vm779 = vmand %vm743, %vm707
        %vm780 = vmand %vm744, %vm708
        %vm781 = vmand %vm745, %vm709
        %vm782 = vmand %vm746, %vm710
        %vm783 = vmand %vm747, %vm711
        %vm784 = vmand %vm748, %vm712
        %vm785 = vmand %vm749, %vm713
        %vm786 = vmand %vm750, %vm714
        %vm787 = vmand %vm751, %vm715
        %vm788 = vmand %vm752, %vm716
        %vm789 = vmand %vm753, %vm717
        %vm790 = vmand %vm754, %vm718
        %vm791 = vmand %vm755, %vm719
        %vm792 = vmand %vm756, %vm720
        %v793 = vadd.s32 %v299, 18
        %v794 = vadd.s32 %v310, 18
        %v795 = vadd.s32 %v321, 18
        %v796 = vadd.s32 %v332, 18
        %v797 = vadd.s32 %v343, 18
        %v798 = vadd.s32 %v354, 18
        %v799 = vadd.s32 %v365, 18
        %v800 = vadd.s32 %v376, 18
        %v801 = vadd.s32 %v387, 18
        %v802 = vadd.s32 %v398, 18
        %v803 = vadd.s32 %v409, 18
        %v804 = vadd.s32 %v420, 18
        %v805 = vadd.s32 %v431, 18
        %v806 = vadd.s32 %v442, 18
        %v807 = vadd.s32 %v453, 18
        %v808 = vadd.s32 %v464, 18
        %v809 = vadd.s32 %v475, 18
        %v810 = vadd.s32 %v486, 18
        %v811 = vadd.s32 %v497, 18
        %v812 = vadd.s32 %v508, 18
        %v813 = vadd.s32 %v519, 18
        %v814 = vadd.s32 %v530, 18
        %v815 = vadd.s32 %v541, 18
        %v816 = vadd.s32 %v552, 18
        %v817 = vadd.s32 %v563, 18
        %v818 = vadd.s32 %v574, 18
        %v819 = vadd.s32 %v585, 18
        %v820 = vadd.s32 %v596, 18
        %v821 = vadd.s32 %v607, 18
        %v822 = vadd.s32 %v618, 18
        %v823 = vadd.s32 %v629, 18
        %v824 = vadd.s32 %v640, 18
        %v825 = vadd.s32 %v651, 18
        %v826 = vadd.s32 %v662, 18
        %v827 = vadd.s32 %v673, 18
        %v828 = vadd.s32 %v684, 18
        %v829 = vsel %vm757, %v793, %v299
        %v830 = vsel %vm758, %v794, %v310
        %v831 = vsel %vm759, %v795, %v321
        %v832 = vsel %vm760, %v796, %v332
        %v833 = vsel %vm761, %v797, %v343
        %v834 = vsel %vm762, %v798, %v354
        %v835 = vsel %vm763, %v799, %v365
        %v836 = vsel %vm764, %v800, %v376
        %v837 = vsel %vm765, %v801, %v387
        %v838 = vsel %vm766, %v802, %v398
        %v839 = vsel %vm767, %v803, %v409
        %v840 = vsel %vm768, %v804, %v420
        %v841 = vsel %vm769, %v805, %v431
        %v842 = vsel %vm770, %v806, %v442
        %v843 = vsel %vm771, %v807, %v453
        %v844 = vsel %vm772, %v808, %v464
        %v845 = vsel %vm773, %v809, %v475
        %v846 = vsel %vm774, %v810, %v486
        %v847 = vsel %vm775, %v811, %v497
        %v848 = vsel %vm776, %v812, %v508
        %v849 = vsel %vm777, %v813, %v519
        %v850 = vsel %vm778, %v814, %v530
        %v851 = vsel %vm779, %v815, %v541
        %v852 = vsel %vm780, %v816, %v552
        %v853 = vsel %vm781, %v817, %v563
        %v854 = vsel %vm782, %v818, %v574
        %v855 = vsel %vm783, %v819, %v585
        %v856 = vsel %vm784, %v820, %v596
        %v857 = vsel %vm785, %v821, %v607
        %v858 = vsel %vm786, %v822, %v618
        %v859 = vsel %vm787, %v823, %v629
        %v860 = vsel %vm788, %v824, %v640
        %v861 = vsel %vm789, %v825, %v651
        %v862 = vsel %vm790, %v826, %v662
        %v863 = vsel %vm791, %v827, %v673
        %v864 = vsel %vm792, %v828, %v684
        %vm865 = vcmp.lt.s32.totalorder %v829, 16
        %vm866 = vcmp.lt.s32.totalorder %v830, 16
        %vm867 = vcmp.lt.s32.totalorder %v831, 16
        %vm868 = vcmp.lt.s32.totalorder %v832, 16
        %vm869 = vcmp.lt.s32.totalorder %v833, 16
        %vm870 = vcmp.lt.s32.totalorder %v834, 16
        %vm871 = vcmp.lt.s32.totalorder %v835, 16
        %vm872 = vcmp.lt.s32.totalorder %v836, 16
        %vm873 = vcmp.lt.s32.totalorder %v837, 16
        %vm874 = vcmp.lt.s32.totalorder %v838, 16
        %vm875 = vcmp.lt.s32.totalorder %v839, 16
        %vm876 = vcmp.lt.s32.totalorder %v840, 16
        %vm877 = vcmp.lt.s32.totalorder %v841, 16
        %vm878 = vcmp.lt.s32.totalorder %v842, 16
        %vm879 = vcmp.lt.s32.totalorder %v843, 16
        %vm880 = vcmp.lt.s32.totalorder %v844, 16
        %vm881 = vcmp.lt.s32.totalorder %v845, 16
        %vm882 = vcmp.lt.s32.totalorder %v846, 16
        %vm883 = vcmp.lt.s32.totalorder %v847, 16
        %vm884 = vcmp.lt.s32.totalorder %v848, 16
        %vm885 = vcmp.lt.s32.totalorder %v849, 16
        %vm886 = vcmp.lt.s32.totalorder %v850, 16
        %vm887 = vcmp.lt.s32.totalorder %v851, 16
        %vm888 = vcmp.lt.s32.totalorder %v852, 16
        %vm889 = vcmp.lt.s32.totalorder %v853, 16
        %vm890 = vcmp.lt.s32.totalorder %v854, 16
        %vm891 = vcmp.lt.s32.totalorder %v855, 16
        %vm892 = vcmp.lt.s32.totalorder %v856, 16
        %vm893 = vcmp.lt.s32.totalorder %v857, 16
        %vm894 = vcmp.lt.s32.totalorder %v858, 16
        %vm895 = vcmp.lt.s32.totalorder %v859, 16
        %vm896 = vcmp.lt.s32.totalorder %v860, 16
        %vm897 = vcmp.lt.s32.totalorder %v861, 16
        %vm898 = vcmp.lt.s32.totalorder %v862, 16
        %vm899 = vcmp.lt.s32.totalorder %v863, 16
        %vm900 = vcmp.lt.s32.totalorder %v864, 16
        %901 = vst [vmem:[#allocation2] sm:$0xff] 0.0
        %902 = vst [vmem:[#allocation2 + $0x8] sm:$0xff] 0.0
        %903 = vst [vmem:[#allocation2 + $0x10] sm:$0xff] 0.0
        %904 = vst [vmem:[#allocation2 + $0x138] sm:$0xff] 0.0
        %905 = vst [vmem:[#allocation2 + $0x140] sm:$0xff] 0.0
        %906 = vst [vmem:[#allocation2 + $0x148] sm:$0xff] 0.0
        %v907 = vld [vmem:[%s212] sm:$0xff]
        %v908 = vld [vmem:[%s212 + $0x8] sm:$0xff]
        %v909 = vld [vmem:[%s212 + $0x10] sm:$0xff]
        %v910 = vld [vmem:[%s212 + $0x18] sm:$0xff]
        %v911 = vld [vmem:[%s212 + $0x20] sm:$0xff]
        %v912 = vld [vmem:[%s212 + $0x28] sm:$0xff]
        %v913 = vld [vmem:[%s212 + $0x30] sm:$0xff]
        %v914 = vld [vmem:[%s212 + $0x38] sm:$0xff]
        %v915 = vld [vmem:[%s212 + $0x40] sm:$0xff]
        %v916 = vld [vmem:[%s212 + $0x48] sm:$0xff]
        %v917 = vld [vmem:[%s212 + $0x50] sm:$0xff]
        %v918 = vld [vmem:[%s212 + $0x58] sm:$0xff]
        %v919 = vld [vmem:[%s212 + $0x60] sm:$0xff]
        %v920 = vld [vmem:[%s212 + $0x68] sm:$0xff]
        %v921 = vld [vmem:[%s212 + $0x70] sm:$0xff]
        %v922 = vld [vmem:[%s212 + $0x78] sm:$0xff]
        %v923 = vld [vmem:[%s212 + $0x80] sm:$0xff]
        %v924 = vld [vmem:[%s212 + $0x88] sm:$0xff]
        %v925 = vld [vmem:[%s212 + $0x90] sm:$0xff]
        %v926 = vld [vmem:[%s212 + $0x98] sm:$0xff]
        %v927 = vld [vmem:[%s212 + $0xa0] sm:$0xff]
        %v928 = vld [vmem:[%s212 + $0xa8] sm:$0xff]
        %v929 = vld [vmem:[%s212 + $0xb0] sm:$0xff]
        %v930 = vld [vmem:[%s212 + $0xb8] sm:$0xff]
        %v931 = vld [vmem:[%s212 + $0xc0] sm:$0xff]
        %v932 = vld [vmem:[%s212 + $0xc8] sm:$0xff]
        %v933 = vld [vmem:[%s212 + $0xd0] sm:$0xff]
        %v934 = vld [vmem:[%s212 + $0xd8] sm:$0xff]
        %v935 = vld [vmem:[%s212 + $0xe0] sm:$0xff]
        %v936 = vld [vmem:[%s212 + $0xe8] sm:$0xff]
        %v937 = vld [vmem:[%s212 + $0xf0] sm:$0xff]
        %v938 = vld [vmem:[%s212 + $0xf8] sm:$0xff]
        %v939 = vld [vmem:[%s212 + $0x100] sm:$0xff]
        %v940 = vld [vmem:[%s212 + $0x108] sm:$0xff]
        %v941 = vld [vmem:[%s212 + $0x110] sm:$0xff]
        %v942 = vld [vmem:[%s212 + $0x118] sm:$0xff]
        %v943 = vmax.f32 %v907, 0.0
        %v944 = vmax.f32 %v908, 0.0
        %v945 = vmax.f32 %v909, 0.0
        %v946 = vmax.f32 %v910, 0.0
        %v947 = vmax.f32 %v911, 0.0
        %v948 = vmax.f32 %v912, 0.0
        %v949 = vmax.f32 %v913, 0.0
        %v950 = vmax.f32 %v914, 0.0
        %v951 = vmax.f32 %v915, 0.0
        %v952 = vmax.f32 %v916, 0.0
        %v953 = vmax.f32 %v917, 0.0
        %v954 = vmax.f32 %v918, 0.0
        %v955 = vmax.f32 %v919, 0.0
        %v956 = vmax.f32 %v920, 0.0
        %v957 = vmax.f32 %v921, 0.0
        %v958 = vmax.f32 %v922, 0.0
        %v959 = vmax.f32 %v923, 0.0
        %v960 = vmax.f32 %v924, 0.0
        %v961 = vmax.f32 %v925, 0.0
        %v962 = vmax.f32 %v926, 0.0
        %v963 = vmax.f32 %v927, 0.0
        %v964 = vmax.f32 %v928, 0.0
        %v965 = vmax.f32 %v929, 0.0
        %v966 = vmax.f32 %v930, 0.0
        %v967 = vmax.f32 %v931, 0.0
        %v968 = vmax.f32 %v932, 0.0
        %v969 = vmax.f32 %v933, 0.0
        %v970 = vmax.f32 %v934, 0.0
        %v971 = vmax.f32 %v935, 0.0
        %v972 = vmax.f32 %v936, 0.0
        %v973 = vmax.f32 %v937, 0.0
        %v974 = vmax.f32 %v938, 0.0
        %v975 = vmax.f32 %v939, 0.0
        %v976 = vmax.f32 %v940, 0.0
        %v977 = vmax.f32 %v941, 0.0
        %v978 = vmax.f32 %v942, 0.0
        %v979 = vlaneseq
        %v980 = vshrl.u32 %v979, 7
        %v981 = vsub.s32 0, %v980
        %v982 = vrot.slane %v247, %v981
        %v983 = vadd.f32 %v943, %v982
        %v984 = vadd.f32 %v944, %v982
        %v985 = vadd.f32 %v945, %v982
        %v986 = vadd.f32 %v946, %v982
        %v987 = vadd.f32 %v947, %v982
        %v988 = vadd.f32 %v948, %v982
        %v989 = vadd.f32 %v949, %v982
        %v990 = vadd.f32 %v950, %v982
        %v991 = vadd.f32 %v951, %v982
        %v992 = vadd.f32 %v952, %v982
        %v993 = vadd.f32 %v953, %v982
        %v994 = vadd.f32 %v954, %v982
        %v995 = vadd.f32 %v955, %v982
        %v996 = vadd.f32 %v956, %v982
        %v997 = vadd.f32 %v957, %v982
        %v998 = vadd.f32 %v958, %v982
        %v999 = vadd.f32 %v959, %v982
        %v1000 = vadd.f32 %v960, %v982
        %v1001 = vadd.f32 %v961, %v982
        %v1002 = vadd.f32 %v962, %v982
        %v1003 = vadd.f32 %v963, %v982
        %v1004 = vadd.f32 %v964, %v982
        %v1005 = vadd.f32 %v965, %v982
        %v1006 = vadd.f32 %v966, %v982
        %v1007 = vadd.f32 %v967, %v982
        %v1008 = vadd.f32 %v968, %v982
        %v1009 = vadd.f32 %v969, %v982
        %v1010 = vadd.f32 %v970, %v982
        %v1011 = vadd.f32 %v971, %v982
        %v1012 = vadd.f32 %v972, %v982
        %v1013 = vadd.f32 %v973, %v982
        %v1014 = vadd.f32 %v974, %v982
        %v1015 = vadd.f32 %v975, %v982
        %v1016 = vadd.f32 %v976, %v982
        %v1017 = vadd.f32 %v977, %v982
        %v1018 = vadd.f32 %v978, %v982
        %v1019 = vsel %vm865, 1, 0
        %v1020 = vsel %vm866, 1, 0
        %v1021 = vsel %vm867, 1, 0
        %v1022 = vsel %vm868, 1, 0
        %v1023 = vsel %vm869, 1, 0
        %v1024 = vsel %vm870, 1, 0
        %v1025 = vsel %vm871, 1, 0
        %v1026 = vsel %vm872, 1, 0
        %v1027 = vsel %vm873, 1, 0
        %v1028 = vsel %vm874, 1, 0
        %v1029 = vsel %vm875, 1, 0
        %v1030 = vsel %vm876, 1, 0
        %v1031 = vsel %vm877, 1, 0
        %v1032 = vsel %vm878, 1, 0
        %v1033 = vsel %vm879, 1, 0
        %v1034 = vsel %vm880, 1, 0
        %v1035 = vsel %vm881, 1, 0
        %v1036 = vsel %vm882, 1, 0
        %v1037 = vsel %vm883, 1, 0
        %v1038 = vsel %vm884, 1, 0
        %v1039 = vsel %vm885, 1, 0
        %v1040 = vsel %vm886, 1, 0
        %v1041 = vsel %vm887, 1, 0
        %v1042 = vsel %vm888, 1, 0
        %v1043 = vsel %vm889, 1, 0
        %v1044 = vsel %vm890, 1, 0
        %v1045 = vsel %vm891, 1, 0
        %v1046 = vsel %vm892, 1, 0
        %v1047 = vsel %vm893, 1, 0
        %v1048 = vsel %vm894, 1, 0
        %v1049 = vsel %vm895, 1, 0
        %v1050 = vsel %vm896, 1, 0
        %v1051 = vsel %vm897, 1, 0
        %v1052 = vsel %vm898, 1, 0
        %v1053 = vsel %vm899, 1, 0
        %v1054 = vsel %vm900, 1, 0
        %vm1055 = vcmp.eq.s32.totalorder %v1019, 1
        %vm1056 = vcmp.eq.s32.totalorder %v1020, 1
        %vm1057 = vcmp.eq.s32.totalorder %v1021, 1
        %vm1058 = vcmp.eq.s32.totalorder %v1022, 1
        %vm1059 = vcmp.eq.s32.totalorder %v1023, 1
        %vm1060 = vcmp.eq.s32.totalorder %v1024, 1
        %vm1061 = vcmp.eq.s32.totalorder %v1025, 1
        %vm1062 = vcmp.eq.s32.totalorder %v1026, 1
        %vm1063 = vcmp.eq.s32.totalorder %v1027, 1
        %vm1064 = vcmp.eq.s32.totalorder %v1028, 1
        %vm1065 = vcmp.eq.s32.totalorder %v1029, 1
        %vm1066 = vcmp.eq.s32.totalorder %v1030, 1
        %vm1067 = vcmp.eq.s32.totalorder %v1031, 1
        %vm1068 = vcmp.eq.s32.totalorder %v1032, 1
        %vm1069 = vcmp.eq.s32.totalorder %v1033, 1
        %vm1070 = vcmp.eq.s32.totalorder %v1034, 1
        %vm1071 = vcmp.eq.s32.totalorder %v1035, 1
        %vm1072 = vcmp.eq.s32.totalorder %v1036, 1
        %vm1073 = vcmp.eq.s32.totalorder %v1037, 1
        %vm1074 = vcmp.eq.s32.totalorder %v1038, 1
        %vm1075 = vcmp.eq.s32.totalorder %v1039, 1
        %vm1076 = vcmp.eq.s32.totalorder %v1040, 1
        %vm1077 = vcmp.eq.s32.totalorder %v1041, 1
        %vm1078 = vcmp.eq.s32.totalorder %v1042, 1
        %vm1079 = vcmp.eq.s32.totalorder %v1043, 1
        %vm1080 = vcmp.eq.s32.totalorder %v1044, 1
        %vm1081 = vcmp.eq.s32.totalorder %v1045, 1
        %vm1082 = vcmp.eq.s32.totalorder %v1046, 1
        %vm1083 = vcmp.eq.s32.totalorder %v1047, 1
        %vm1084 = vcmp.eq.s32.totalorder %v1048, 1
        %vm1085 = vcmp.eq.s32.totalorder %v1049, 1
        %vm1086 = vcmp.eq.s32.totalorder %v1050, 1
        %vm1087 = vcmp.eq.s32.totalorder %v1051, 1
        %vm1088 = vcmp.eq.s32.totalorder %v1052, 1
        %vm1089 = vcmp.eq.s32.totalorder %v1053, 1
        %vm1090 = vcmp.eq.s32.totalorder %v1054, 1
        %v1091 = vsel %vm1055, %v983, 0.0
        %v1092 = vsel %vm1056, %v984, 0.0
        %v1093 = vsel %vm1057, %v985, 0.0
        %v1094 = vsel %vm1058, %v986, 0.0
        %v1095 = vsel %vm1059, %v987, 0.0
        %v1096 = vsel %vm1060, %v988, 0.0
        %v1097 = vsel %vm1061, %v989, 0.0
        %v1098 = vsel %vm1062, %v990, 0.0
        %v1099 = vsel %vm1063, %v991, 0.0
        %v1100 = vsel %vm1064, %v992, 0.0
        %v1101 = vsel %vm1065, %v993, 0.0
        %v1102 = vsel %vm1066, %v994, 0.0
        %v1103 = vsel %vm1067, %v995, 0.0
        %v1104 = vsel %vm1068, %v996, 0.0
        %v1105 = vsel %vm1069, %v997, 0.0
        %v1106 = vsel %vm1070, %v998, 0.0
        %v1107 = vsel %vm1071, %v999, 0.0
        %v1108 = vsel %vm1072, %v1000, 0.0
        %v1109 = vsel %vm1073, %v1001, 0.0
        %v1110 = vsel %vm1074, %v1002, 0.0
        %v1111 = vsel %vm1075, %v1003, 0.0
        %v1112 = vsel %vm1076, %v1004, 0.0
        %v1113 = vsel %vm1077, %v1005, 0.0
        %v1114 = vsel %vm1078, %v1006, 0.0
        %v1115 = vsel %vm1079, %v1007, 0.0
        %v1116 = vsel %vm1080, %v1008, 0.0
        %v1117 = vsel %vm1081, %v1009, 0.0
        %v1118 = vsel %vm1082, %v1010, 0.0
        %v1119 = vsel %vm1083, %v1011, 0.0
        %v1120 = vsel %vm1084, %v1012, 0.0
        %v1121 = vsel %vm1085, %v1013, 0.0
        %v1122 = vsel %vm1086, %v1014, 0.0
        %v1123 = vsel %vm1087, %v1015, 0.0
        %v1124 = vsel %vm1088, %v1016, 0.0
        %v1125 = vsel %vm1089, %v1017, 0.0
        %v1126 = vsel %vm1090, %v1018, 0.0
        %1127 = vst [vmem:[#allocation2 + $0x18] sm:$0xff] %v1091
        %1128 = vst [vmem:[#allocation2 + $0x20] sm:$0xff] %v1092
        %1129 = vst [vmem:[#allocation2 + $0x28] sm:$0xff] %v1093
        %1130 = vst [vmem:[#allocation2 + $0x30] sm:$0xff] %v1094
        %1131 = vst [vmem:[#allocation2 + $0x38] sm:$0xff] %v1095
        %1132 = vst [vmem:[#allocation2 + $0x40] sm:$0xff] %v1096
        %1133 = vst [vmem:[#allocation2 + $0x48] sm:$0xff] %v1097
        %1134 = vst [vmem:[#allocation2 + $0x50] sm:$0xff] %v1098
        %1135 = vst [vmem:[#allocation2 + $0x58] sm:$0xff] %v1099
        %1136 = vst [vmem:[#allocation2 + $0x60] sm:$0xff] %v1100
        %1137 = vst [vmem:[#allocation2 + $0x68] sm:$0xff] %v1101
        %1138 = vst [vmem:[#allocation2 + $0x70] sm:$0xff] %v1102
        %1139 = vst [vmem:[#allocation2 + $0x78] sm:$0xff] %v1103
        %1140 = vst [vmem:[#allocation2 + $0x80] sm:$0xff] %v1104
        %1141 = vst [vmem:[#allocation2 + $0x88] sm:$0xff] %v1105
        %1142 = vst [vmem:[#allocation2 + $0x90] sm:$0xff] %v1106
        %1143 = vst [vmem:[#allocation2 + $0x98] sm:$0xff] %v1107
        %1144 = vst [vmem:[#allocation2 + $0xa0] sm:$0xff] %v1108
        %1145 = vst [vmem:[#allocation2 + $0xa8] sm:$0xff] %v1109
        %1146 = vst [vmem:[#allocation2 + $0xb0] sm:$0xff] %v1110
        %1147 = vst [vmem:[#allocation2 + $0xb8] sm:$0xff] %v1111
        %1148 = vst [vmem:[#allocation2 + $0xc0] sm:$0xff] %v1112
        %1149 = vst [vmem:[#allocation2 + $0xc8] sm:$0xff] %v1113
        %1150 = vst [vmem:[#allocation2 + $0xd0] sm:$0xff] %v1114
        %1151 = vst [vmem:[#allocation2 + $0xd8] sm:$0xff] %v1115
        %1152 = vst [vmem:[#allocation2 + $0xe0] sm:$0xff] %v1116
        %1153 = vst [vmem:[#allocation2 + $0xe8] sm:$0xff] %v1117
        %1154 = vst [vmem:[#allocation2 + $0xf0] sm:$0xff] %v1118
        %1155 = vst [vmem:[#allocation2 + $0xf8] sm:$0xff] %v1119
        %1156 = vst [vmem:[#allocation2 + $0x100] sm:$0xff] %v1120
        %1157 = vst [vmem:[#allocation2 + $0x108] sm:$0xff] %v1121
        %1158 = vst [vmem:[#allocation2 + $0x110] sm:$0xff] %v1122
        %1159 = vst [vmem:[#allocation2 + $0x118] sm:$0xff] %v1123
        %1160 = vst [vmem:[#allocation2 + $0x120] sm:$0xff] %v1124
        %1161 = vst [vmem:[#allocation2 + $0x128] sm:$0xff] %v1125
        %1162 = vst [vmem:[#allocation2 + $0x130] sm:$0xff] %v1126
        %v1163 = vld [vmem:[#allocation2 + $0x5] sm:$0xff]
        %v1164 = vld [vmem:[#allocation2 + $0xd] sm:$0xff]
        %v1165 = vld [vmem:[#allocation2 + $0x15] sm:$0xff]
        %v1166 = vld [vmem:[#allocation2 + $0x1d] sm:$0xff]
        %v1167 = vld [vmem:[#allocation2 + $0x25] sm:$0xff]
        %v1168 = vld [vmem:[#allocation2 + $0x2d] sm:$0xff]
        %v1169 = vld [vmem:[#allocation2 + $0x35] sm:$0xff]
        %v1170 = vld [vmem:[#allocation2 + $0x3d] sm:$0xff]
        %v1171 = vld [vmem:[#allocation2 + $0x45] sm:$0xff]
        %v1172 = vld [vmem:[#allocation2 + $0x4d] sm:$0xff]
        %v1173 = vld [vmem:[#allocation2 + $0x55] sm:$0xff]
        %v1174 = vld [vmem:[#allocation2 + $0x5d] sm:$0xff]
        %v1175 = vld [vmem:[#allocation2 + $0x65] sm:$0xff]
        %v1176 = vld [vmem:[#allocation2 + $0x6d] sm:$0xff]
        %v1177 = vld [vmem:[#allocation2 + $0x75] sm:$0xff]
        %v1178 = vld [vmem:[#allocation2 + $0x7d] sm:$0xff]
        %v1179 = vld [vmem:[#allocation2 + $0x85] sm:$0xff]
        %v1180 = vld [vmem:[#allocation2 + $0x8d] sm:$0xff]
        %v1181 = vld [vmem:[#allocation2 + $0x95] sm:$0xff]
        %v1182 = vld [vmem:[#allocation2 + $0x9d] sm:$0xff]
        %v1183 = vld [vmem:[#allocation2 + $0xa5] sm:$0xff]
        %v1184 = vld [vmem:[#allocation2 + $0xad] sm:$0xff]
        %v1185 = vld [vmem:[#allocation2 + $0xb5] sm:$0xff]
        %v1186 = vld [vmem:[#allocation2 + $0xbd] sm:$0xff]
        %v1187 = vld [vmem:[#allocation2 + $0xc5] sm:$0xff]
        %v1188 = vld [vmem:[#allocation2 + $0xcd] sm:$0xff]
        %v1189 = vld [vmem:[#allocation2 + $0xd5] sm:$0xff]
        %v1190 = vld [vmem:[#allocation2 + $0xdd] sm:$0xff]
        %v1191 = vld [vmem:[#allocation2 + $0xe5] sm:$0xff]
        %v1192 = vld [vmem:[#allocation2 + $0xed] sm:$0xff]
        %v1193 = vld [vmem:[#allocation2 + $0xf5] sm:$0xff]
        %v1194 = vld [vmem:[#allocation2 + $0xfd] sm:$0xff]
        %v1195 = vld [vmem:[#allocation2 + $0x105] sm:$0xff]
        %v1196 = vld [vmem:[#allocation2 + $0x10d] sm:$0xff]
        %v1197 = vld [vmem:[#allocation2 + $0x115] sm:$0xff]
        %v1198 = vld [vmem:[#allocation2 + $0x11d] sm:$0xff]
        %1199 = vst [vmem:[#allocation3] sm:$0xff] %v1163
        %1200 = vst [vmem:[#allocation3 + $0x48] sm:$0xff] %v1164
        %1201 = vst [vmem:[#allocation3 + $0x90] sm:$0xff] %v1165
        %1202 = vst [vmem:[#allocation3 + $0xd8] sm:$0xff] %v1166
        %1203 = vst [vmem:[#allocation3 + $0x120] sm:$0xff] %v1167
        %1204 = vst [vmem:[#allocation3 + $0x168] sm:$0xff] %v1168
        %1205 = vst [vmem:[#allocation3 + $0x1b0] sm:$0xff] %v1169
        %1206 = vst [vmem:[#allocation3 + $0x1f8] sm:$0xff] %v1170
        %1207 = vst [vmem:[#allocation3 + $0x240] sm:$0xff] %v1171
        %1208 = vst [vmem:[#allocation3 + $0x288] sm:$0xff] %v1172
        %1209 = vst [vmem:[#allocation3 + $0x2d0] sm:$0xff] %v1173
        %1210 = vst [vmem:[#allocation3 + $0x318] sm:$0xff] %v1174
        %1211 = vst [vmem:[#allocation3 + $0x360] sm:$0xff] %v1175
        %1212 = vst [vmem:[#allocation3 + $0x3a8] sm:$0xff] %v1176
        %1213 = vst [vmem:[#allocation3 + $0x3f0] sm:$0xff] %v1177
        %1214 = vst [vmem:[#allocation3 + $0x438] sm:$0xff] %v1178
        %1215 = vst [vmem:[#allocation3 + $0x480] sm:$0xff] %v1179
        %1216 = vst [vmem:[#allocation3 + $0x4c8] sm:$0xff] %v1180
        %1217 = vst [vmem:[#allocation3 + $0x510] sm:$0xff] %v1181
        %1218 = vst [vmem:[#allocation3 + $0x558] sm:$0xff] %v1182
        %1219 = vst [vmem:[#allocation3 + $0x5a0] sm:$0xff] %v1183
        %1220 = vst [vmem:[#allocation3 + $0x5e8] sm:$0xff] %v1184
        %1221 = vst [vmem:[#allocation3 + $0x630] sm:$0xff] %v1185
        %1222 = vst [vmem:[#allocation3 + $0x678] sm:$0xff] %v1186
        %1223 = vst [vmem:[#allocation3 + $0x6c0] sm:$0xff] %v1187
        %1224 = vst [vmem:[#allocation3 + $0x708] sm:$0xff] %v1188
        %1225 = vst [vmem:[#allocation3 + $0x750] sm:$0xff] %v1189
        %1226 = vst [vmem:[#allocation3 + $0x798] sm:$0xff] %v1190
        %1227 = vst [vmem:[#allocation3 + $0x7e0] sm:$0xff] %v1191
        %1228 = vst [vmem:[#allocation3 + $0x828] sm:$0xff] %v1192
        %1229 = vst [vmem:[#allocation3 + $0x870] sm:$0xff] %v1193
        %1230 = vst [vmem:[#allocation3 + $0x8b8] sm:$0xff] %v1194
        %1231 = vst [vmem:[#allocation3 + $0x900] sm:$0xff] %v1195
        %1232 = vst [vmem:[#allocation3 + $0x948] sm:$0xff] %v1196
        %1233 = vst [vmem:[#allocation3 + $0x990] sm:$0xff] %v1197
        %1234 = vst [vmem:[#allocation3 + $0x9d8] sm:$0xff] %v1198
        %v1235 = vld [vmem:[#allocation2 + $0x6] sm:$0xff]
        %v1236 = vld [vmem:[#allocation2 + $0xe] sm:$0xff]
        %v1237 = vld [vmem:[#allocation2 + $0x16] sm:$0xff]
        %v1238 = vld [vmem:[#allocation2 + $0x1e] sm:$0xff]
        %v1239 = vld [vmem:[#allocation2 + $0x26] sm:$0xff]
        %v1240 = vld [vmem:[#allocation2 + $0x2e] sm:$0xff]
        %v1241 = vld [vmem:[#allocation2 + $0x36] sm:$0xff]
        %v1242 = vld [vmem:[#allocation2 + $0x3e] sm:$0xff]
        %v1243 = vld [vmem:[#allocation2 + $0x46] sm:$0xff]
        %v1244 = vld [vmem:[#allocation2 + $0x4e] sm:$0xff]
        %v1245 = vld [vmem:[#allocation2 + $0x56] sm:$0xff]
        %v1246 = vld [vmem:[#allocation2 + $0x5e] sm:$0xff]
        %v1247 = vld [vmem:[#allocation2 + $0x66] sm:$0xff]
        %v1248 = vld [vmem:[#allocation2 + $0x6e] sm:$0xff]
        %v1249 = vld [vmem:[#allocation2 + $0x76] sm:$0xff]
        %v1250 = vld [vmem:[#allocation2 + $0x7e] sm:$0xff]
        %v1251 = vld [vmem:[#allocation2 + $0x86] sm:$0xff]
        %v1252 = vld [vmem:[#allocation2 + $0x8e] sm:$0xff]
        %v1253 = vld [vmem:[#allocation2 + $0x96] sm:$0xff]
        %v1254 = vld [vmem:[#allocation2 + $0x9e] sm:$0xff]
        %v1255 = vld [vmem:[#allocation2 + $0xa6] sm:$0xff]
        %v1256 = vld [vmem:[#allocation2 + $0xae] sm:$0xff]
        %v1257 = vld [vmem:[#allocation2 + $0xb6] sm:$0xff]
        %v1258 = vld [vmem:[#allocation2 + $0xbe] sm:$0xff]
        %v1259 = vld [vmem:[#allocation2 + $0xc6] sm:$0xff]
        %v1260 = vld [vmem:[#allocation2 + $0xce] sm:$0xff]
        %v1261 = vld [vmem:[#allocation2 + $0xd6] sm:$0xff]
        %v1262 = vld [vmem:[#allocation2 + $0xde] sm:$0xff]
        %v1263 = vld [vmem:[#allocation2 + $0xe6] sm:$0xff]
        %v1264 = vld [vmem:[#allocation2 + $0xee] sm:$0xff]
        %v1265 = vld [vmem:[#allocation2 + $0xf6] sm:$0xff]
        %v1266 = vld [vmem:[#allocation2 + $0xfe] sm:$0xff]
        %v1267 = vld [vmem:[#allocation2 + $0x106] sm:$0xff]
        %v1268 = vld [vmem:[#allocation2 + $0x10e] sm:$0xff]
        %v1269 = vld [vmem:[#allocation2 + $0x116] sm:$0xff]
        %v1270 = vld [vmem:[#allocation2 + $0x11e] sm:$0xff]
        %1271 = vst [vmem:[#allocation3 + $0x8] sm:$0xff] %v1235
        %1272 = vst [vmem:[#allocation3 + $0x50] sm:$0xff] %v1236
        %1273 = vst [vmem:[#allocation3 + $0x98] sm:$0xff] %v1237
        %1274 = vst [vmem:[#allocation3 + $0xe0] sm:$0xff] %v1238
        %1275 = vst [vmem:[#allocation3 + $0x128] sm:$0xff] %v1239
        %1276 = vst [vmem:[#allocation3 + $0x170] sm:$0xff] %v1240
        %1277 = vst [vmem:[#allocation3 + $0x1b8] sm:$0xff] %v1241
        %1278 = vst [vmem:[#allocation3 + $0x200] sm:$0xff] %v1242
        %1279 = vst [vmem:[#allocation3 + $0x248] sm:$0xff] %v1243
        %1280 = vst [vmem:[#allocation3 + $0x290] sm:$0xff] %v1244
        %1281 = vst [vmem:[#allocation3 + $0x2d8] sm:$0xff] %v1245
        %1282 = vst [vmem:[#allocation3 + $0x320] sm:$0xff] %v1246
        %1283 = vst [vmem:[#allocation3 + $0x368] sm:$0xff] %v1247
        %1284 = vst [vmem:[#allocation3 + $0x3b0] sm:$0xff] %v1248
        %1285 = vst [vmem:[#allocation3 + $0x3f8] sm:$0xff] %v1249
        %1286 = vst [vmem:[#allocation3 + $0x440] sm:$0xff] %v1250
        %1287 = vst [vmem:[#allocation3 + $0x488] sm:$0xff] %v1251
        %1288 = vst [vmem:[#allocation3 + $0x4d0] sm:$0xff] %v1252
        %1289 = vst [vmem:[#allocation3 + $0x518] sm:$0xff] %v1253
        %1290 = vst [vmem:[#allocation3 + $0x560] sm:$0xff] %v1254
        %1291 = vst [vmem:[#allocation3 + $0x5a8] sm:$0xff] %v1255
        %1292 = vst [vmem:[#allocation3 + $0x5f0] sm:$0xff] %v1256
        %1293 = vst [vmem:[#allocation3 + $0x638] sm:$0xff] %v1257
        %1294 = vst [vmem:[#allocation3 + $0x680] sm:$0xff] %v1258
        %1295 = vst [vmem:[#allocation3 + $0x6c8] sm:$0xff] %v1259
        %1296 = vst [vmem:[#allocation3 + $0x710] sm:$0xff] %v1260
        %1297 = vst [vmem:[#allocation3 + $0x758] sm:$0xff] %v1261
        %1298 = vst [vmem:[#allocation3 + $0x7a0] sm:$0xff] %v1262
        %1299 = vst [vmem:[#allocation3 + $0x7e8] sm:$0xff] %v1263
        %1300 = vst [vmem:[#allocation3 + $0x830] sm:$0xff] %v1264
        %1301 = vst [vmem:[#allocation3 + $0x878] sm:$0xff] %v1265
        %1302 = vst [vmem:[#allocation3 + $0x8c0] sm:$0xff] %v1266
        %1303 = vst [vmem:[#allocation3 + $0x908] sm:$0xff] %v1267
        %1304 = vst [vmem:[#allocation3 + $0x950] sm:$0xff] %v1268
        %1305 = vst [vmem:[#allocation3 + $0x998] sm:$0xff] %v1269
        %1306 = vst [vmem:[#allocation3 + $0x9e0] sm:$0xff] %v1270
        %v1307 = vld [vmem:[#allocation2 + $0x7] sm:$0xff]
        %v1308 = vld [vmem:[#allocation2 + $0xf] sm:$0xff]
        %v1309 = vld [vmem:[#allocation2 + $0x17] sm:$0xff]
        %v1310 = vld [vmem:[#allocation2 + $0x1f] sm:$0xff]
        %v1311 = vld [vmem:[#allocation2 + $0x27] sm:$0xff]
        %v1312 = vld [vmem:[#allocation2 + $0x2f] sm:$0xff]
        %v1313 = vld [vmem:[#allocation2 + $0x37] sm:$0xff]
        %v1314 = vld [vmem:[#allocation2 + $0x3f] sm:$0xff]
        %v1315 = vld [vmem:[#allocation2 + $0x47] sm:$0xff]
        %v1316 = vld [vmem:[#allocation2 + $0x4f] sm:$0xff]
        %v1317 = vld [vmem:[#allocation2 + $0x57] sm:$0xff]
        %v1318 = vld [vmem:[#allocation2 + $0x5f] sm:$0xff]
        %v1319 = vld [vmem:[#allocation2 + $0x67] sm:$0xff]
        %v1320 = vld [vmem:[#allocation2 + $0x6f] sm:$0xff]
        %v1321 = vld [vmem:[#allocation2 + $0x77] sm:$0xff]
        %v1322 = vld [vmem:[#allocation2 + $0x7f] sm:$0xff]
        %v1323 = vld [vmem:[#allocation2 + $0x87] sm:$0xff]
        %v1324 = vld [vmem:[#allocation2 + $0x8f] sm:$0xff]
        %v1325 = vld [vmem:[#allocation2 + $0x97] sm:$0xff]
        %v1326 = vld [vmem:[#allocation2 + $0x9f] sm:$0xff]
        %v1327 = vld [vmem:[#allocation2 + $0xa7] sm:$0xff]
        %v1328 = vld [vmem:[#allocation2 + $0xaf] sm:$0xff]
        %v1329 = vld [vmem:[#allocation2 + $0xb7] sm:$0xff]
        %v1330 = vld [vmem:[#allocation2 + $0xbf] sm:$0xff]
        %v1331 = vld [vmem:[#allocation2 + $0xc7] sm:$0xff]
        %v1332 = vld [vmem:[#allocation2 + $0xcf] sm:$0xff]
        %v1333 = vld [vmem:[#allocation2 + $0xd7] sm:$0xff]
        %v1334 = vld [vmem:[#allocation2 + $0xdf] sm:$0xff]
        %v1335 = vld [vmem:[#allocation2 + $0xe7] sm:$0xff]
        %v1336 = vld [vmem:[#allocation2 + $0xef] sm:$0xff]
        %v1337 = vld [vmem:[#allocation2 + $0xf7] sm:$0xff]
        %v1338 = vld [vmem:[#allocation2 + $0xff] sm:$0xff]
        %v1339 = vld [vmem:[#allocation2 + $0x107] sm:$0xff]
        %v1340 = vld [vmem:[#allocation2 + $0x10f] sm:$0xff]
        %v1341 = vld [vmem:[#allocation2 + $0x117] sm:$0xff]
        %v1342 = vld [vmem:[#allocation2 + $0x11f] sm:$0xff]
        %1343 = vst [vmem:[#allocation3 + $0x10] sm:$0xff] %v1307
        %1344 = vst [vmem:[#allocation3 + $0x58] sm:$0xff] %v1308
        %1345 = vst [vmem:[#allocation3 + $0xa0] sm:$0xff] %v1309
        %1346 = vst [vmem:[#allocation3 + $0xe8] sm:$0xff] %v1310
        %1347 = vst [vmem:[#allocation3 + $0x130] sm:$0xff] %v1311
        %1348 = vst [vmem:[#allocation3 + $0x178] sm:$0xff] %v1312
        %1349 = vst [vmem:[#allocation3 + $0x1c0] sm:$0xff] %v1313
        %1350 = vst [vmem:[#allocation3 + $0x208] sm:$0xff] %v1314
        %1351 = vst [vmem:[#allocation3 + $0x250] sm:$0xff] %v1315
        %1352 = vst [vmem:[#allocation3 + $0x298] sm:$0xff] %v1316
        %1353 = vst [vmem:[#allocation3 + $0x2e0] sm:$0xff] %v1317
        %1354 = vst [vmem:[#allocation3 + $0x328] sm:$0xff] %v1318
        %1355 = vst [vmem:[#allocation3 + $0x370] sm:$0xff] %v1319
        %1356 = vst [vmem:[#allocation3 + $0x3b8] sm:$0xff] %v1320
        %1357 = vst [vmem:[#allocation3 + $0x400] sm:$0xff] %v1321
        %1358 = vst [vmem:[#allocation3 + $0x448] sm:$0xff] %v1322
        %1359 = vst [vmem:[#allocation3 + $0x490] sm:$0xff] %v1323
        %1360 = vst [vmem:[#allocation3 + $0x4d8] sm:$0xff] %v1324
        %1361 = vst [vmem:[#allocation3 + $0x520] sm:$0xff] %v1325
        %1362 = vst [vmem:[#allocation3 + $0x568] sm:$0xff] %v1326
        %1363 = vst [vmem:[#allocation3 + $0x5b0] sm:$0xff] %v1327
        %1364 = vst [vmem:[#allocation3 + $0x5f8] sm:$0xff] %v1328
        %1365 = vst [vmem:[#allocation3 + $0x640] sm:$0xff] %v1329
        %1366 = vst [vmem:[#allocation3 + $0x688] sm:$0xff] %v1330
        %1367 = vst [vmem:[#allocation3 + $0x6d0] sm:$0xff] %v1331
        %1368 = vst [vmem:[#allocation3 + $0x718] sm:$0xff] %v1332
        %1369 = vst [vmem:[#allocation3 + $0x760] sm:$0xff] %v1333
        %1370 = vst [vmem:[#allocation3 + $0x7a8] sm:$0xff] %v1334
        %1371 = vst [vmem:[#allocation3 + $0x7f0] sm:$0xff] %v1335
        %1372 = vst [vmem:[#allocation3 + $0x838] sm:$0xff] %v1336
        %1373 = vst [vmem:[#allocation3 + $0x880] sm:$0xff] %v1337
        %1374 = vst [vmem:[#allocation3 + $0x8c8] sm:$0xff] %v1338
        %1375 = vst [vmem:[#allocation3 + $0x910] sm:$0xff] %v1339
        %1376 = vst [vmem:[#allocation3 + $0x958] sm:$0xff] %v1340
        %1377 = vst [vmem:[#allocation3 + $0x9a0] sm:$0xff] %v1341
        %1378 = vst [vmem:[#allocation3 + $0x9e8] sm:$0xff] %v1342
        %v1379 = vld [vmem:[#allocation2 + $0x17] sm:$0xff]
        %v1380 = vld [vmem:[#allocation2 + $0x1f] sm:$0xff]
        %v1381 = vld [vmem:[#allocation2 + $0x27] sm:$0xff]
        %v1382 = vld [vmem:[#allocation2 + $0x2f] sm:$0xff]
        %v1383 = vld [vmem:[#allocation2 + $0x37] sm:$0xff]
        %v1384 = vld [vmem:[#allocation2 + $0x3f] sm:$0xff]
        %v1385 = vld [vmem:[#allocation2 + $0x47] sm:$0xff]
        %v1386 = vld [vmem:[#allocation2 + $0x4f] sm:$0xff]
        %v1387 = vld [vmem:[#allocation2 + $0x57] sm:$0xff]
        %v1388 = vld [vmem:[#allocation2 + $0x5f] sm:$0xff]
        %v1389 = vld [vmem:[#allocation2 + $0x67] sm:$0xff]
        %v1390 = vld [vmem:[#allocation2 + $0x6f] sm:$0xff]
        %v1391 = vld [vmem:[#allocation2 + $0x77] sm:$0xff]
        %v1392 = vld [vmem:[#allocation2 + $0x7f] sm:$0xff]
        %v1393 = vld [vmem:[#allocation2 + $0x87] sm:$0xff]
        %v1394 = vld [vmem:[#allocation2 + $0x8f] sm:$0xff]
        %v1395 = vld [vmem:[#allocation2 + $0x97] sm:$0xff]
        %v1396 = vld [vmem:[#allocation2 + $0x9f] sm:$0xff]
        %v1397 = vld [vmem:[#allocation2 + $0xa7] sm:$0xff]
        %v1398 = vld [vmem:[#allocation2 + $0xaf] sm:$0xff]
        %v1399 = vld [vmem:[#allocation2 + $0xb7] sm:$0xff]
        %v1400 = vld [vmem:[#allocation2 + $0xbf] sm:$0xff]
        %v1401 = vld [vmem:[#allocation2 + $0xc7] sm:$0xff]
        %v1402 = vld [vmem:[#allocation2 + $0xcf] sm:$0xff]
        %v1403 = vld [vmem:[#allocation2 + $0xd7] sm:$0xff]
        %v1404 = vld [vmem:[#allocation2 + $0xdf] sm:$0xff]
        %v1405 = vld [vmem:[#allocation2 + $0xe7] sm:$0xff]
        %v1406 = vld [vmem:[#allocation2 + $0xef] sm:$0xff]
        %v1407 = vld [vmem:[#allocation2 + $0xf7] sm:$0xff]
        %v1408 = vld [vmem:[#allocation2 + $0xff] sm:$0xff]
        %v1409 = vld [vmem:[#allocation2 + $0x107] sm:$0xff]
        %v1410 = vld [vmem:[#allocation2 + $0x10f] sm:$0xff]
        %v1411 = vld [vmem:[#allocation2 + $0x117] sm:$0xff]
        %v1412 = vld [vmem:[#allocation2 + $0x11f] sm:$0xff]
        %v1413 = vld [vmem:[#allocation2 + $0x127] sm:$0xff]
        %v1414 = vld [vmem:[#allocation2 + $0x12f] sm:$0xff]
        %1415 = vst [vmem:[#allocation3 + $0x18] sm:$0xff] %v1379
        %1416 = vst [vmem:[#allocation3 + $0x60] sm:$0xff] %v1380
        %1417 = vst [vmem:[#allocation3 + $0xa8] sm:$0xff] %v1381
        %1418 = vst [vmem:[#allocation3 + $0xf0] sm:$0xff] %v1382
        %1419 = vst [vmem:[#allocation3 + $0x138] sm:$0xff] %v1383
        %1420 = vst [vmem:[#allocation3 + $0x180] sm:$0xff] %v1384
        %1421 = vst [vmem:[#allocation3 + $0x1c8] sm:$0xff] %v1385
        %1422 = vst [vmem:[#allocation3 + $0x210] sm:$0xff] %v1386
        %1423 = vst [vmem:[#allocation3 + $0x258] sm:$0xff] %v1387
        %1424 = vst [vmem:[#allocation3 + $0x2a0] sm:$0xff] %v1388
        %1425 = vst [vmem:[#allocation3 + $0x2e8] sm:$0xff] %v1389
        %1426 = vst [vmem:[#allocation3 + $0x330] sm:$0xff] %v1390
        %1427 = vst [vmem:[#allocation3 + $0x378] sm:$0xff] %v1391
        %1428 = vst [vmem:[#allocation3 + $0x3c0] sm:$0xff] %v1392
        %1429 = vst [vmem:[#allocation3 + $0x408] sm:$0xff] %v1393
        %1430 = vst [vmem:[#allocation3 + $0x450] sm:$0xff] %v1394
        %1431 = vst [vmem:[#allocation3 + $0x498] sm:$0xff] %v1395
        %1432 = vst [vmem:[#allocation3 + $0x4e0] sm:$0xff] %v1396
        %1433 = vst [vmem:[#allocation3 + $0x528] sm:$0xff] %v1397
        %1434 = vst [vmem:[#allocation3 + $0x570] sm:$0xff] %v1398
        %1435 = vst [vmem:[#allocation3 + $0x5b8] sm:$0xff] %v1399
        %1436 = vst [vmem:[#allocation3 + $0x600] sm:$0xff] %v1400
        %1437 = vst [vmem:[#allocation3 + $0x648] sm:$0xff] %v1401
        %1438 = vst [vmem:[#allocation3 + $0x690] sm:$0xff] %v1402
        %1439 = vst [vmem:[#allocation3 + $0x6d8] sm:$0xff] %v1403
        %1440 = vst [vmem:[#allocation3 + $0x720] sm:$0xff] %v1404
        %1441 = vst [vmem:[#allocation3 + $0x768] sm:$0xff] %v1405
        %1442 = vst [vmem:[#allocation3 + $0x7b0] sm:$0xff] %v1406
        %1443 = vst [vmem:[#allocation3 + $0x7f8] sm:$0xff] %v1407
        %1444 = vst [vmem:[#allocation3 + $0x840] sm:$0xff] %v1408
        %1445 = vst [vmem:[#allocation3 + $0x888] sm:$0xff] %v1409
        %1446 = vst [vmem:[#allocation3 + $0x8d0] sm:$0xff] %v1410
        %1447 = vst [vmem:[#allocation3 + $0x918] sm:$0xff] %v1411
        %1448 = vst [vmem:[#allocation3 + $0x960] sm:$0xff] %v1412
        %1449 = vst [vmem:[#allocation3 + $0x9a8] sm:$0xff] %v1413
        %1450 = vst [vmem:[#allocation3 + $0x9f0] sm:$0xff] %v1414
        %v1451 = vld [vmem:[#allocation2 + $0x18] sm:$0xff]
        %v1452 = vld [vmem:[#allocation2 + $0x20] sm:$0xff]
        %v1453 = vld [vmem:[#allocation2 + $0x28] sm:$0xff]
        %v1454 = vld [vmem:[#allocation2 + $0x30] sm:$0xff]
        %v1455 = vld [vmem:[#allocation2 + $0x38] sm:$0xff]
        %v1456 = vld [vmem:[#allocation2 + $0x40] sm:$0xff]
        %v1457 = vld [vmem:[#allocation2 + $0x48] sm:$0xff]
        %v1458 = vld [vmem:[#allocation2 + $0x50] sm:$0xff]
        %v1459 = vld [vmem:[#allocation2 + $0x58] sm:$0xff]
        %v1460 = vld [vmem:[#allocation2 + $0x60] sm:$0xff]
        %v1461 = vld [vmem:[#allocation2 + $0x68] sm:$0xff]
        %v1462 = vld [vmem:[#allocation2 + $0x70] sm:$0xff]
        %v1463 = vld [vmem:[#allocation2 + $0x78] sm:$0xff]
        %v1464 = vld [vmem:[#allocation2 + $0x80] sm:$0xff]
        %v1465 = vld [vmem:[#allocation2 + $0x88] sm:$0xff]
        %v1466 = vld [vmem:[#allocation2 + $0x90] sm:$0xff]
        %v1467 = vld [vmem:[#allocation2 + $0x98] sm:$0xff]
        %v1468 = vld [vmem:[#allocation2 + $0xa0] sm:$0xff]
        %v1469 = vld [vmem:[#allocation2 + $0xa8] sm:$0xff]
        %v1470 = vld [vmem:[#allocation2 + $0xb0] sm:$0xff]
        %v1471 = vld [vmem:[#allocation2 + $0xb8] sm:$0xff]
        %v1472 = vld [vmem:[#allocation2 + $0xc0] sm:$0xff]
        %v1473 = vld [vmem:[#allocation2 + $0xc8] sm:$0xff]
        %v1474 = vld [vmem:[#allocation2 + $0xd0] sm:$0xff]
        %v1475 = vld [vmem:[#allocation2 + $0xd8] sm:$0xff]
        %v1476 = vld [vmem:[#allocation2 + $0xe0] sm:$0xff]
        %v1477 = vld [vmem:[#allocation2 + $0xe8] sm:$0xff]
        %v1478 = vld [vmem:[#allocation2 + $0xf0] sm:$0xff]
        %v1479 = vld [vmem:[#allocation2 + $0xf8] sm:$0xff]
        %v1480 = vld [vmem:[#allocation2 + $0x100] sm:$0xff]
        %v1481 = vld [vmem:[#allocation2 + $0x108] sm:$0xff]
        %v1482 = vld [vmem:[#allocation2 + $0x110] sm:$0xff]
        %v1483 = vld [vmem:[#allocation2 + $0x118] sm:$0xff]
        %v1484 = vld [vmem:[#allocation2 + $0x120] sm:$0xff]
        %v1485 = vld [vmem:[#allocation2 + $0x128] sm:$0xff]
        %v1486 = vld [vmem:[#allocation2 + $0x130] sm:$0xff]
        %1487 = vst [vmem:[#allocation3 + $0x20] sm:$0xff] %v1451
        %1488 = vst [vmem:[#allocation3 + $0x68] sm:$0xff] %v1452
        %1489 = vst [vmem:[#allocation3 + $0xb0] sm:$0xff] %v1453
        %1490 = vst [vmem:[#allocation3 + $0xf8] sm:$0xff] %v1454
        %1491 = vst [vmem:[#allocation3 + $0x140] sm:$0xff] %v1455
        %1492 = vst [vmem:[#allocation3 + $0x188] sm:$0xff] %v1456
        %1493 = vst [vmem:[#allocation3 + $0x1d0] sm:$0xff] %v1457
        %1494 = vst [vmem:[#allocation3 + $0x218] sm:$0xff] %v1458
        %1495 = vst [vmem:[#allocation3 + $0x260] sm:$0xff] %v1459
        %1496 = vst [vmem:[#allocation3 + $0x2a8] sm:$0xff] %v1460
        %1497 = vst [vmem:[#allocation3 + $0x2f0] sm:$0xff] %v1461
        %1498 = vst [vmem:[#allocation3 + $0x338] sm:$0xff] %v1462
        %1499 = vst [vmem:[#allocation3 + $0x380] sm:$0xff] %v1463
        %1500 = vst [vmem:[#allocation3 + $0x3c8] sm:$0xff] %v1464
        %1501 = vst [vmem:[#allocation3 + $0x410] sm:$0xff] %v1465
        %1502 = vst [vmem:[#allocation3 + $0x458] sm:$0xff] %v1466
        %1503 = vst [vmem:[#allocation3 + $0x4a0] sm:$0xff] %v1467
        %1504 = vst [vmem:[#allocation3 + $0x4e8] sm:$0xff] %v1468
        %1505 = vst [vmem:[#allocation3 + $0x530] sm:$0xff] %v1469
        %1506 = vst [vmem:[#allocation3 + $0x578] sm:$0xff] %v1470
        %1507 = vst [vmem:[#allocation3 + $0x5c0] sm:$0xff] %v1471
        %1508 = vst [vmem:[#allocation3 + $0x608] sm:$0xff] %v1472
        %1509 = vst [vmem:[#allocation3 + $0x650] sm:$0xff] %v1473
        %1510 = vst [vmem:[#allocation3 + $0x698] sm:$0xff] %v1474
        %1511 = vst [vmem:[#allocation3 + $0x6e0] sm:$0xff] %v1475
        %1512 = vst [vmem:[#allocation3 + $0x728] sm:$0xff] %v1476
        %1513 = vst [vmem:[#allocation3 + $0x770] sm:$0xff] %v1477
        %1514 = vst [vmem:[#allocation3 + $0x7b8] sm:$0xff] %v1478
        %1515 = vst [vmem:[#allocation3 + $0x800] sm:$0xff] %v1479
        %1516 = vst [vmem:[#allocation3 + $0x848] sm:$0xff] %v1480
        %1517 = vst [vmem:[#allocation3 + $0x890] sm:$0xff] %v1481
        %1518 = vst [vmem:[#allocation3 + $0x8d8] sm:$0xff] %v1482
        %1519 = vst [vmem:[#allocation3 + $0x920] sm:$0xff] %v1483
        %1520 = vst [vmem:[#allocation3 + $0x968] sm:$0xff] %v1484
        %1521 = vst [vmem:[#allocation3 + $0x9b0] sm:$0xff] %v1485
        %1522 = vst [vmem:[#allocation3 + $0x9f8] sm:$0xff] %v1486
        %v1523 = vld [vmem:[#allocation2 + $0x19] sm:$0xff]
        %v1524 = vld [vmem:[#allocation2 + $0x21] sm:$0xff]
        %v1525 = vld [vmem:[#allocation2 + $0x29] sm:$0xff]
        %v1526 = vld [vmem:[#allocation2 + $0x31] sm:$0xff]
        %v1527 = vld [vmem:[#allocation2 + $0x39] sm:$0xff]
        %v1528 = vld [vmem:[#allocation2 + $0x41] sm:$0xff]
        %v1529 = vld [vmem:[#allocation2 + $0x49] sm:$0xff]
        %v1530 = vld [vmem:[#allocation2 + $0x51] sm:$0xff]
        %v1531 = vld [vmem:[#allocation2 + $0x59] sm:$0xff]
        %v1532 = vld [vmem:[#allocation2 + $0x61] sm:$0xff]
        %v1533 = vld [vmem:[#allocation2 + $0x69] sm:$0xff]
        %v1534 = vld [vmem:[#allocation2 + $0x71] sm:$0xff]
        %v1535 = vld [vmem:[#allocation2 + $0x79] sm:$0xff]
        %v1536 = vld [vmem:[#allocation2 + $0x81] sm:$0xff]
        %v1537 = vld [vmem:[#allocation2 + $0x89] sm:$0xff]
        %v1538 = vld [vmem:[#allocation2 + $0x91] sm:$0xff]
        %v1539 = vld [vmem:[#allocation2 + $0x99] sm:$0xff]
        %v1540 = vld [vmem:[#allocation2 + $0xa1] sm:$0xff]
        %v1541 = vld [vmem:[#allocation2 + $0xa9] sm:$0xff]
        %v1542 = vld [vmem:[#allocation2 + $0xb1] sm:$0xff]
        %v1543 = vld [vmem:[#allocation2 + $0xb9] sm:$0xff]
        %v1544 = vld [vmem:[#allocation2 + $0xc1] sm:$0xff]
        %v1545 = vld [vmem:[#allocation2 + $0xc9] sm:$0xff]
        %v1546 = vld [vmem:[#allocation2 + $0xd1] sm:$0xff]
        %v1547 = vld [vmem:[#allocation2 + $0xd9] sm:$0xff]
        %v1548 = vld [vmem:[#allocation2 + $0xe1] sm:$0xff]
        %v1549 = vld [vmem:[#allocation2 + $0xe9] sm:$0xff]
        %v1550 = vld [vmem:[#allocation2 + $0xf1] sm:$0xff]
        %v1551 = vld [vmem:[#allocation2 + $0xf9] sm:$0xff]
        %v1552 = vld [vmem:[#allocation2 + $0x101] sm:$0xff]
        %v1553 = vld [vmem:[#allocation2 + $0x109] sm:$0xff]
        %v1554 = vld [vmem:[#allocation2 + $0x111] sm:$0xff]
        %v1555 = vld [vmem:[#allocation2 + $0x119] sm:$0xff]
        %v1556 = vld [vmem:[#allocation2 + $0x121] sm:$0xff]
        %v1557 = vld [vmem:[#allocation2 + $0x129] sm:$0xff]
        %v1558 = vld [vmem:[#allocation2 + $0x131] sm:$0xff]
        %1559 = vst [vmem:[#allocation3 + $0x28] sm:$0xff] %v1523
        %1560 = vst [vmem:[#allocation3 + $0x70] sm:$0xff] %v1524
        %1561 = vst [vmem:[#allocation3 + $0xb8] sm:$0xff] %v1525
        %1562 = vst [vmem:[#allocation3 + $0x100] sm:$0xff] %v1526
        %1563 = vst [vmem:[#allocation3 + $0x148] sm:$0xff] %v1527
        %1564 = vst [vmem:[#allocation3 + $0x190] sm:$0xff] %v1528
        %1565 = vst [vmem:[#allocation3 + $0x1d8] sm:$0xff] %v1529
        %1566 = vst [vmem:[#allocation3 + $0x220] sm:$0xff] %v1530
        %1567 = vst [vmem:[#allocation3 + $0x268] sm:$0xff] %v1531
        %1568 = vst [vmem:[#allocation3 + $0x2b0] sm:$0xff] %v1532
        %1569 = vst [vmem:[#allocation3 + $0x2f8] sm:$0xff] %v1533
        %1570 = vst [vmem:[#allocation3 + $0x340] sm:$0xff] %v1534
        %1571 = vst [vmem:[#allocation3 + $0x388] sm:$0xff] %v1535
        %1572 = vst [vmem:[#allocation3 + $0x3d0] sm:$0xff] %v1536
        %1573 = vst [vmem:[#allocation3 + $0x418] sm:$0xff] %v1537
        %1574 = vst [vmem:[#allocation3 + $0x460] sm:$0xff] %v1538
        %1575 = vst [vmem:[#allocation3 + $0x4a8] sm:$0xff] %v1539
        %1576 = vst [vmem:[#allocation3 + $0x4f0] sm:$0xff] %v1540
        %1577 = vst [vmem:[#allocation3 + $0x538] sm:$0xff] %v1541
        %1578 = vst [vmem:[#allocation3 + $0x580] sm:$0xff] %v1542
        %1579 = vst [vmem:[#allocation3 + $0x5c8] sm:$0xff] %v1543
        %1580 = vst [vmem:[#allocation3 + $0x610] sm:$0xff] %v1544
        %1581 = vst [vmem:[#allocation3 + $0x658] sm:$0xff] %v1545
        %1582 = vst [vmem:[#allocation3 + $0x6a0] sm:$0xff] %v1546
        %1583 = vst [vmem:[#allocation3 + $0x6e8] sm:$0xff] %v1547
        %1584 = vst [vmem:[#allocation3 + $0x730] sm:$0xff] %v1548
        %1585 = vst [vmem:[#allocation3 + $0x778] sm:$0xff] %v1549
        %1586 = vst [vmem:[#allocation3 + $0x7c0] sm:$0xff] %v1550
        %1587 = vst [vmem:[#allocation3 + $0x808] sm:$0xff] %v1551
        %1588 = vst [vmem:[#allocation3 + $0x850] sm:$0xff] %v1552
        %1589 = vst [vmem:[#allocation3 + $0x898] sm:$0xff] %v1553
        %1590 = vst [vmem:[#allocation3 + $0x8e0] sm:$0xff] %v1554
        %1591 = vst [vmem:[#allocation3 + $0x928] sm:$0xff] %v1555
        %1592 = vst [vmem:[#allocation3 + $0x970] sm:$0xff] %v1556
        %1593 = vst [vmem:[#allocation3 + $0x9b8] sm:$0xff] %v1557
        %1594 = vst [vmem:[#allocation3 + $0xa00] sm:$0xff] %v1558
        %v1595 = vld [vmem:[#allocation2 + $0x29] sm:$0xff]
        %v1596 = vld [vmem:[#allocation2 + $0x31] sm:$0xff]
        %v1597 = vld [vmem:[#allocation2 + $0x39] sm:$0xff]
        %v1598 = vld [vmem:[#allocation2 + $0x41] sm:$0xff]
        %v1599 = vld [vmem:[#allocation2 + $0x49] sm:$0xff]
        %v1600 = vld [vmem:[#allocation2 + $0x51] sm:$0xff]
        %v1601 = vld [vmem:[#allocation2 + $0x59] sm:$0xff]
        %v1602 = vld [vmem:[#allocation2 + $0x61] sm:$0xff]
        %v1603 = vld [vmem:[#allocation2 + $0x69] sm:$0xff]
        %v1604 = vld [vmem:[#allocation2 + $0x71] sm:$0xff]
        %v1605 = vld [vmem:[#allocation2 + $0x79] sm:$0xff]
        %v1606 = vld [vmem:[#allocation2 + $0x81] sm:$0xff]
        %v1607 = vld [vmem:[#allocation2 + $0x89] sm:$0xff]
        %v1608 = vld [vmem:[#allocation2 + $0x91] sm:$0xff]
        %v1609 = vld [vmem:[#allocation2 + $0x99] sm:$0xff]
        %v1610 = vld [vmem:[#allocation2 + $0xa1] sm:$0xff]
        %v1611 = vld [vmem:[#allocation2 + $0xa9] sm:$0xff]
        %v1612 = vld [vmem:[#allocation2 + $0xb1] sm:$0xff]
        %v1613 = vld [vmem:[#allocation2 + $0xb9] sm:$0xff]
        %v1614 = vld [vmem:[#allocation2 + $0xc1] sm:$0xff]
        %v1615 = vld [vmem:[#allocation2 + $0xc9] sm:$0xff]
        %v1616 = vld [vmem:[#allocation2 + $0xd1] sm:$0xff]
        %v1617 = vld [vmem:[#allocation2 + $0xd9] sm:$0xff]
        %v1618 = vld [vmem:[#allocation2 + $0xe1] sm:$0xff]
        %v1619 = vld [vmem:[#allocation2 + $0xe9] sm:$0xff]
        %v1620 = vld [vmem:[#allocation2 + $0xf1] sm:$0xff]
        %v1621 = vld [vmem:[#allocation2 + $0xf9] sm:$0xff]
        %v1622 = vld [vmem:[#allocation2 + $0x101] sm:$0xff]
        %v1623 = vld [vmem:[#allocation2 + $0x109] sm:$0xff]
        %v1624 = vld [vmem:[#allocation2 + $0x111] sm:$0xff]
        %v1625 = vld [vmem:[#allocation2 + $0x119] sm:$0xff]
        %v1626 = vld [vmem:[#allocation2 + $0x121] sm:$0xff]
        %v1627 = vld [vmem:[#allocation2 + $0x129] sm:$0xff]
        %v1628 = vld [vmem:[#allocation2 + $0x131] sm:$0xff]
        %v1629 = vld [vmem:[#allocation2 + $0x139] sm:$0xff]
        %v1630 = vld [vmem:[#allocation2 + $0x141] sm:$0xff]
        %1631 = vst [vmem:[#allocation3 + $0x30] sm:$0xff] %v1595
        %1632 = vst [vmem:[#allocation3 + $0x78] sm:$0xff] %v1596
        %1633 = vst [vmem:[#allocation3 + $0xc0] sm:$0xff] %v1597
        %1634 = vst [vmem:[#allocation3 + $0x108] sm:$0xff] %v1598
        %1635 = vst [vmem:[#allocation3 + $0x150] sm:$0xff] %v1599
        %1636 = vst [vmem:[#allocation3 + $0x198] sm:$0xff] %v1600
        %1637 = vst [vmem:[#allocation3 + $0x1e0] sm:$0xff] %v1601
        %1638 = vst [vmem:[#allocation3 + $0x228] sm:$0xff] %v1602
        %1639 = vst [vmem:[#allocation3 + $0x270] sm:$0xff] %v1603
        %1640 = vst [vmem:[#allocation3 + $0x2b8] sm:$0xff] %v1604
        %1641 = vst [vmem:[#allocation3 + $0x300] sm:$0xff] %v1605
        %1642 = vst [vmem:[#allocation3 + $0x348] sm:$0xff] %v1606
        %1643 = vst [vmem:[#allocation3 + $0x390] sm:$0xff] %v1607
        %1644 = vst [vmem:[#allocation3 + $0x3d8] sm:$0xff] %v1608
        %1645 = vst [vmem:[#allocation3 + $0x420] sm:$0xff] %v1609
        %1646 = vst [vmem:[#allocation3 + $0x468] sm:$0xff] %v1610
        %1647 = vst [vmem:[#allocation3 + $0x4b0] sm:$0xff] %v1611
        %1648 = vst [vmem:[#allocation3 + $0x4f8] sm:$0xff] %v1612
        %1649 = vst [vmem:[#allocation3 + $0x540] sm:$0xff] %v1613
        %1650 = vst [vmem:[#allocation3 + $0x588] sm:$0xff] %v1614
        %1651 = vst [vmem:[#allocation3 + $0x5d0] sm:$0xff] %v1615
        %1652 = vst [vmem:[#allocation3 + $0x618] sm:$0xff] %v1616
        %1653 = vst [vmem:[#allocation3 + $0x660] sm:$0xff] %v1617
        %1654 = vst [vmem:[#allocation3 + $0x6a8] sm:$0xff] %v1618
        %1655 = vst [vmem:[#allocation3 + $0x6f0] sm:$0xff] %v1619
        %1656 = vst [vmem:[#allocation3 + $0x738] sm:$0xff] %v1620
        %1657 = vst [vmem:[#allocation3 + $0x780] sm:$0xff] %v1621
        %1658 = vst [vmem:[#allocation3 + $0x7c8] sm:$0xff] %v1622
        %1659 = vst [vmem:[#allocation3 + $0x810] sm:$0xff] %v1623
        %1660 = vst [vmem:[#allocation3 + $0x858] sm:$0xff] %v1624
        %1661 = vst [vmem:[#allocation3 + $0x8a0] sm:$0xff] %v1625
        %1662 = vst [vmem:[#allocation3 + $0x8e8] sm:$0xff] %v1626
        %1663 = vst [vmem:[#allocation3 + $0x930] sm:$0xff] %v1627
        %1664 = vst [vmem:[#allocation3 + $0x978] sm:$0xff] %v1628
        %1665 = vst [vmem:[#allocation3 + $0x9c0] sm:$0xff] %v1629
        %1666 = vst [vmem:[#allocation3 + $0xa08] sm:$0xff] %v1630
        %v1667 = vld [vmem:[#allocation2 + $0x2a] sm:$0xff]
        %v1668 = vld [vmem:[#allocation2 + $0x32] sm:$0xff]
        %v1669 = vld [vmem:[#allocation2 + $0x3a] sm:$0xff]
        %v1670 = vld [vmem:[#allocation2 + $0x42] sm:$0xff]
        %v1671 = vld [vmem:[#allocation2 + $0x4a] sm:$0xff]
        %v1672 = vld [vmem:[#allocation2 + $0x52] sm:$0xff]
        %v1673 = vld [vmem:[#allocation2 + $0x5a] sm:$0xff]
        %v1674 = vld [vmem:[#allocation2 + $0x62] sm:$0xff]
        %v1675 = vld [vmem:[#allocation2 + $0x6a] sm:$0xff]
        %v1676 = vld [vmem:[#allocation2 + $0x72] sm:$0xff]
        %v1677 = vld [vmem:[#allocation2 + $0x7a] sm:$0xff]
        %v1678 = vld [vmem:[#allocation2 + $0x82] sm:$0xff]
        %v1679 = vld [vmem:[#allocation2 + $0x8a] sm:$0xff]
        %v1680 = vld [vmem:[#allocation2 + $0x92] sm:$0xff]
        %v1681 = vld [vmem:[#allocation2 + $0x9a] sm:$0xff]
        %v1682 = vld [vmem:[#allocation2 + $0xa2] sm:$0xff]
        %v1683 = vld [vmem:[#allocation2 + $0xaa] sm:$0xff]
        %v1684 = vld [vmem:[#allocation2 + $0xb2] sm:$0xff]
        %v1685 = vld [vmem:[#allocation2 + $0xba] sm:$0xff]
        %v1686 = vld [vmem:[#allocation2 + $0xc2] sm:$0xff]
        %v1687 = vld [vmem:[#allocation2 + $0xca] sm:$0xff]
        %v1688 = vld [vmem:[#allocation2 + $0xd2] sm:$0xff]
        %v1689 = vld [vmem:[#allocation2 + $0xda] sm:$0xff]
        %v1690 = vld [vmem:[#allocation2 + $0xe2] sm:$0xff]
        %v1691 = vld [vmem:[#allocation2 + $0xea] sm:$0xff]
        %v1692 = vld [vmem:[#allocation2 + $0xf2] sm:$0xff]
        %v1693 = vld [vmem:[#allocation2 + $0xfa] sm:$0xff]
        %v1694 = vld [vmem:[#allocation2 + $0x102] sm:$0xff]
        %v1695 = vld [vmem:[#allocation2 + $0x10a] sm:$0xff]
        %v1696 = vld [vmem:[#allocation2 + $0x112] sm:$0xff]
        %v1697 = vld [vmem:[#allocation2 + $0x11a] sm:$0xff]
        %v1698 = vld [vmem:[#allocation2 + $0x122] sm:$0xff]
        %v1699 = vld [vmem:[#allocation2 + $0x12a] sm:$0xff]
        %v1700 = vld [vmem:[#allocation2 + $0x132] sm:$0xff]
        %v1701 = vld [vmem:[#allocation2 + $0x13a] sm:$0xff]
        %v1702 = vld [vmem:[#allocation2 + $0x142] sm:$0xff]
        %1703 = vst [vmem:[#allocation3 + $0x38] sm:$0xff] %v1667
        %1704 = vst [vmem:[#allocation3 + $0x80] sm:$0xff] %v1668
        %1705 = vst [vmem:[#allocation3 + $0xc8] sm:$0xff] %v1669
        %1706 = vst [vmem:[#allocation3 + $0x110] sm:$0xff] %v1670
        %1707 = vst [vmem:[#allocation3 + $0x158] sm:$0xff] %v1671
        %1708 = vst [vmem:[#allocation3 + $0x1a0] sm:$0xff] %v1672
        %1709 = vst [vmem:[#allocation3 + $0x1e8] sm:$0xff] %v1673
        %1710 = vst [vmem:[#allocation3 + $0x230] sm:$0xff] %v1674
        %1711 = vst [vmem:[#allocation3 + $0x278] sm:$0xff] %v1675
        %1712 = vst [vmem:[#allocation3 + $0x2c0] sm:$0xff] %v1676
        %1713 = vst [vmem:[#allocation3 + $0x308] sm:$0xff] %v1677
        %1714 = vst [vmem:[#allocation3 + $0x350] sm:$0xff] %v1678
        %1715 = vst [vmem:[#allocation3 + $0x398] sm:$0xff] %v1679
        %1716 = vst [vmem:[#allocation3 + $0x3e0] sm:$0xff] %v1680
        %1717 = vst [vmem:[#allocation3 + $0x428] sm:$0xff] %v1681
        %1718 = vst [vmem:[#allocation3 + $0x470] sm:$0xff] %v1682
        %1719 = vst [vmem:[#allocation3 + $0x4b8] sm:$0xff] %v1683
        %1720 = vst [vmem:[#allocation3 + $0x500] sm:$0xff] %v1684
        %1721 = vst [vmem:[#allocation3 + $0x548] sm:$0xff] %v1685
        %1722 = vst [vmem:[#allocation3 + $0x590] sm:$0xff] %v1686
        %1723 = vst [vmem:[#allocation3 + $0x5d8] sm:$0xff] %v1687
        %1724 = vst [vmem:[#allocation3 + $0x620] sm:$0xff] %v1688
        %1725 = vst [vmem:[#allocation3 + $0x668] sm:$0xff] %v1689
        %1726 = vst [vmem:[#allocation3 + $0x6b0] sm:$0xff] %v1690
        %1727 = vst [vmem:[#allocation3 + $0x6f8] sm:$0xff] %v1691
        %1728 = vst [vmem:[#allocation3 + $0x740] sm:$0xff] %v1692
        %1729 = vst [vmem:[#allocation3 + $0x788] sm:$0xff] %v1693
        %1730 = vst [vmem:[#allocation3 + $0x7d0] sm:$0xff] %v1694
        %1731 = vst [vmem:[#allocation3 + $0x818] sm:$0xff] %v1695
        %1732 = vst [vmem:[#allocation3 + $0x860] sm:$0xff] %v1696
        %1733 = vst [vmem:[#allocation3 + $0x8a8] sm:$0xff] %v1697
        %1734 = vst [vmem:[#allocation3 + $0x8f0] sm:$0xff] %v1698
        %1735 = vst [vmem:[#allocation3 + $0x938] sm:$0xff] %v1699
        %1736 = vst [vmem:[#allocation3 + $0x980] sm:$0xff] %v1700
        %1737 = vst [vmem:[#allocation3 + $0x9c8] sm:$0xff] %v1701
        %1738 = vst [vmem:[#allocation3 + $0xa10] sm:$0xff] %v1702
        %v1739 = vld [vmem:[#allocation2 + $0x2b] sm:$0xff]
        %v1740 = vld [vmem:[#allocation2 + $0x33] sm:$0xff]
        %v1741 = vld [vmem:[#allocation2 + $0x3b] sm:$0xff]
        %v1742 = vld [vmem:[#allocation2 + $0x43] sm:$0xff]
        %v1743 = vld [vmem:[#allocation2 + $0x4b] sm:$0xff]
        %v1744 = vld [vmem:[#allocation2 + $0x53] sm:$0xff]
        %v1745 = vld [vmem:[#allocation2 + $0x5b] sm:$0xff]
        %v1746 = vld [vmem:[#allocation2 + $0x63] sm:$0xff]
        %v1747 = vld [vmem:[#allocation2 + $0x6b] sm:$0xff]
        %v1748 = vld [vmem:[#allocation2 + $0x73] sm:$0xff]
        %v1749 = vld [vmem:[#allocation2 + $0x7b] sm:$0xff]
        %v1750 = vld [vmem:[#allocation2 + $0x83] sm:$0xff]
        %v1751 = vld [vmem:[#allocation2 + $0x8b] sm:$0xff]
        %v1752 = vld [vmem:[#allocation2 + $0x93] sm:$0xff]
        %v1753 = vld [vmem:[#allocation2 + $0x9b] sm:$0xff]
        %v1754 = vld [vmem:[#allocation2 + $0xa3] sm:$0xff]
        %v1755 = vld [vmem:[#allocation2 + $0xab] sm:$0xff]
        %v1756 = vld [vmem:[#allocation2 + $0xb3] sm:$0xff]
        %v1757 = vld [vmem:[#allocation2 + $0xbb] sm:$0xff]
        %v1758 = vld [vmem:[#allocation2 + $0xc3] sm:$0xff]
        %v1759 = vld [vmem:[#allocation2 + $0xcb] sm:$0xff]
        %v1760 = vld [vmem:[#allocation2 + $0xd3] sm:$0xff]
        %v1761 = vld [vmem:[#allocation2 + $0xdb] sm:$0xff]
        %v1762 = vld [vmem:[#allocation2 + $0xe3] sm:$0xff]
        %v1763 = vld [vmem:[#allocation2 + $0xeb] sm:$0xff]
        %v1764 = vld [vmem:[#allocation2 + $0xf3] sm:$0xff]
        %v1765 = vld [vmem:[#allocation2 + $0xfb] sm:$0xff]
        %v1766 = vld [vmem:[#allocation2 + $0x103] sm:$0xff]
        %v1767 = vld [vmem:[#allocation2 + $0x10b] sm:$0xff]
        %v1768 = vld [vmem:[#allocation2 + $0x113] sm:$0xff]
        %v1769 = vld [vmem:[#allocation2 + $0x11b] sm:$0xff]
        %v1770 = vld [vmem:[#allocation2 + $0x123] sm:$0xff]
        %v1771 = vld [vmem:[#allocation2 + $0x12b] sm:$0xff]
        %v1772 = vld [vmem:[#allocation2 + $0x133] sm:$0xff]
        %v1773 = vld [vmem:[#allocation2 + $0x13b] sm:$0xff]
        %v1774 = vld [vmem:[#allocation2 + $0x143] sm:$0xff]
        %1775 = vst [vmem:[#allocation3 + $0x40] sm:$0xff] %v1739
        %1776 = vst [vmem:[#allocation3 + $0x88] sm:$0xff] %v1740
        %1777 = vst [vmem:[#allocation3 + $0xd0] sm:$0xff] %v1741
        %1778 = vst [vmem:[#allocation3 + $0x118] sm:$0xff] %v1742
        %1779 = vst [vmem:[#allocation3 + $0x160] sm:$0xff] %v1743
        %1780 = vst [vmem:[#allocation3 + $0x1a8] sm:$0xff] %v1744
        %1781 = vst [vmem:[#allocation3 + $0x1f0] sm:$0xff] %v1745
        %1782 = vst [vmem:[#allocation3 + $0x238] sm:$0xff] %v1746
        %1783 = vst [vmem:[#allocation3 + $0x280] sm:$0xff] %v1747
        %1784 = vst [vmem:[#allocation3 + $0x2c8] sm:$0xff] %v1748
        %1785 = vst [vmem:[#allocation3 + $0x310] sm:$0xff] %v1749
        %1786 = vst [vmem:[#allocation3 + $0x358] sm:$0xff] %v1750
        %1787 = vst [vmem:[#allocation3 + $0x3a0] sm:$0xff] %v1751
        %1788 = vst [vmem:[#allocation3 + $0x3e8] sm:$0xff] %v1752
        %1789 = vst [vmem:[#allocation3 + $0x430] sm:$0xff] %v1753
        %1790 = vst [vmem:[#allocation3 + $0x478] sm:$0xff] %v1754
        %1791 = vst [vmem:[#allocation3 + $0x4c0] sm:$0xff] %v1755
        %1792 = vst [vmem:[#allocation3 + $0x508] sm:$0xff] %v1756
        %1793 = vst [vmem:[#allocation3 + $0x550] sm:$0xff] %v1757
        %1794 = vst [vmem:[#allocation3 + $0x598] sm:$0xff] %v1758
        %1795 = vst [vmem:[#allocation3 + $0x5e0] sm:$0xff] %v1759
        %1796 = vst [vmem:[#allocation3 + $0x628] sm:$0xff] %v1760
        %1797 = vst [vmem:[#allocation3 + $0x670] sm:$0xff] %v1761
        %1798 = vst [vmem:[#allocation3 + $0x6b8] sm:$0xff] %v1762
        %1799 = vst [vmem:[#allocation3 + $0x700] sm:$0xff] %v1763
        %1800 = vst [vmem:[#allocation3 + $0x748] sm:$0xff] %v1764
        %1801 = vst [vmem:[#allocation3 + $0x790] sm:$0xff] %v1765
        %1802 = vst [vmem:[#allocation3 + $0x7d8] sm:$0xff] %v1766
        %1803 = vst [vmem:[#allocation3 + $0x820] sm:$0xff] %v1767
        %1804 = vst [vmem:[#allocation3 + $0x868] sm:$0xff] %v1768
        %1805 = vst [vmem:[#allocation3 + $0x8b0] sm:$0xff] %v1769
        %1806 = vst [vmem:[#allocation3 + $0x8f8] sm:$0xff] %v1770
        %1807 = vst [vmem:[#allocation3 + $0x940] sm:$0xff] %v1771
        %1808 = vst [vmem:[#allocation3 + $0x988] sm:$0xff] %v1772
        %1809 = vst [vmem:[#allocation3 + $0x9d0] sm:$0xff] %v1773
        %1810 = vst [vmem:[#allocation3 + $0xa18] sm:$0xff] %v1774
        %v1811 = vld [vmem:[#allocation3] sm:$0xff]
        %v1812 = vld [vmem:[#allocation3 + $0x8] sm:$0xff]
        %v1813 = vld [vmem:[#allocation3 + $0x10] sm:$0xff]
        %v1814 = vld [vmem:[#allocation3 + $0x18] sm:$0xff]
        %v1815 = vld [vmem:[#allocation3 + $0x20] sm:$0xff]
        %v1816 = vld [vmem:[#allocation3 + $0x28] sm:$0xff]
        %v1817 = vld [vmem:[#allocation3 + $0x30] sm:$0xff]
        %v1818 = vld [vmem:[#allocation3 + $0x38] sm:$0xff]
        %v1819 = vld [vmem:[#allocation3 + $0x40] sm:$0xff]
        %v1820 = vld [vmem:[#allocation3 + $0x48] sm:$0xff]
        %v1821 = vld [vmem:[#allocation3 + $0x50] sm:$0xff]
        %v1822 = vld [vmem:[#allocation3 + $0x58] sm:$0xff]
        %v1823 = vld [vmem:[#allocation3 + $0x60] sm:$0xff]
        %v1824 = vld [vmem:[#allocation3 + $0x68] sm:$0xff]
        %v1825 = vld [vmem:[#allocation3 + $0x70] sm:$0xff]
        %v1826 = vld [vmem:[#allocation3 + $0x78] sm:$0xff]
        %v1827 = vld [vmem:[#allocation3 + $0x80] sm:$0xff]
        %v1828 = vld [vmem:[#allocation3 + $0x88] sm:$0xff]
        %v1829 = vld [vmem:[#allocation3 + $0x90] sm:$0xff]
        %v1830 = vld [vmem:[#allocation3 + $0x98] sm:$0xff]
        %v1831 = vld [vmem:[#allocation3 + $0xa0] sm:$0xff]
        %v1832 = vld [vmem:[#allocation3 + $0xa8] sm:$0xff]
        %v1833 = vld [vmem:[#allocation3 + $0xb0] sm:$0xff]
        %v1834 = vld [vmem:[#allocation3 + $0xb8] sm:$0xff]
        %v1835 = vld [vmem:[#allocation3 + $0xc0] sm:$0xff]
        %v1836 = vld [vmem:[#allocation3 + $0xc8] sm:$0xff]
        %v1837 = vld [vmem:[#allocation3 + $0xd0] sm:$0xff]
        %v1838 = vld [vmem:[#allocation3 + $0xd8] sm:$0xff]
        %v1839 = vld [vmem:[#allocation3 + $0xe0] sm:$0xff]
        %v1840 = vld [vmem:[#allocation3 + $0xe8] sm:$0xff]
        %v1841 = vld [vmem:[#allocation3 + $0xf0] sm:$0xff]
        %v1842 = vld [vmem:[#allocation3 + $0xf8] sm:$0xff]
        %v1843 = vld [vmem:[#allocation3 + $0x100] sm:$0xff]
        %v1844 = vld [vmem:[#allocation3 + $0x108] sm:$0xff]
        %v1845 = vld [vmem:[#allocation3 + $0x110] sm:$0xff]
        %v1846 = vld [vmem:[#allocation3 + $0x118] sm:$0xff]
        %v1847 = vld [vmem:[#allocation3 + $0x120] sm:$0xff]
        %v1848 = vld [vmem:[#allocation3 + $0x128] sm:$0xff]
        %v1849 = vld [vmem:[#allocation3 + $0x130] sm:$0xff]
        %v1850 = vld [vmem:[#allocation3 + $0x138] sm:$0xff]
        %v1851 = vld [vmem:[#allocation3 + $0x140] sm:$0xff]
        %v1852 = vld [vmem:[#allocation3 + $0x148] sm:$0xff]
        %v1853 = vld [vmem:[#allocation3 + $0x150] sm:$0xff]
        %v1854 = vld [vmem:[#allocation3 + $0x158] sm:$0xff]
        %v1855 = vld [vmem:[#allocation3 + $0x160] sm:$0xff]
        %v1856 = vld [vmem:[#allocation3 + $0x168] sm:$0xff]
        %v1857 = vld [vmem:[#allocation3 + $0x170] sm:$0xff]
        %v1858 = vld [vmem:[#allocation3 + $0x178] sm:$0xff]
        %v1859 = vld [vmem:[#allocation3 + $0x180] sm:$0xff]
        %v1860 = vld [vmem:[#allocation3 + $0x188] sm:$0xff]
        %v1861 = vld [vmem:[#allocation3 + $0x190] sm:$0xff]
        %v1862 = vld [vmem:[#allocation3 + $0x198] sm:$0xff]
        %v1863 = vld [vmem:[#allocation3 + $0x1a0] sm:$0xff]
        %v1864 = vld [vmem:[#allocation3 + $0x1a8] sm:$0xff]
        %v1865 = vld [vmem:[#allocation3 + $0x1b0] sm:$0xff]
        %v1866 = vld [vmem:[#allocation3 + $0x1b8] sm:$0xff]
        %v1867 = vld [vmem:[#allocation3 + $0x1c0] sm:$0xff]
        %v1868 = vld [vmem:[#allocation3 + $0x1c8] sm:$0xff]
        %v1869 = vld [vmem:[#allocation3 + $0x1d0] sm:$0xff]
        %v1870 = vld [vmem:[#allocation3 + $0x1d8] sm:$0xff]
        %v1871 = vld [vmem:[#allocation3 + $0x1e0] sm:$0xff]
        %v1872 = vld [vmem:[#allocation3 + $0x1e8] sm:$0xff]
        %v1873 = vld [vmem:[#allocation3 + $0x1f0] sm:$0xff]
        %v1874 = vld [vmem:[#allocation3 + $0x1f8] sm:$0xff]
        %v1875 = vld [vmem:[#allocation3 + $0x200] sm:$0xff]
        %v1876 = vld [vmem:[#allocation3 + $0x208] sm:$0xff]
        %v1877 = vld [vmem:[#allocation3 + $0x210] sm:$0xff]
        %v1878 = vld [vmem:[#allocation3 + $0x218] sm:$0xff]
        %v1879 = vld [vmem:[#allocation3 + $0x220] sm:$0xff]
        %v1880 = vld [vmem:[#allocation3 + $0x228] sm:$0xff]
        %v1881 = vld [vmem:[#allocation3 + $0x230] sm:$0xff]
        %v1882 = vld [vmem:[#allocation3 + $0x238] sm:$0xff]
        %v1883 = vld [vmem:[#allocation3 + $0x240] sm:$0xff]
        %v1884 = vld [vmem:[#allocation3 + $0x248] sm:$0xff]
        %v1885 = vld [vmem:[#allocation3 + $0x250] sm:$0xff]
        %v1886 = vld [vmem:[#allocation3 + $0x258] sm:$0xff]
        %v1887 = vld [vmem:[#allocation3 + $0x260] sm:$0xff]
        %v1888 = vld [vmem:[#allocation3 + $0x268] sm:$0xff]
        %v1889 = vld [vmem:[#allocation3 + $0x270] sm:$0xff]
        %v1890 = vld [vmem:[#allocation3 + $0x278] sm:$0xff]
        %v1891 = vld [vmem:[#allocation3 + $0x280] sm:$0xff]
        %v1892 = vld [vmem:[#allocation3 + $0x288] sm:$0xff]
        %v1893 = vld [vmem:[#allocation3 + $0x290] sm:$0xff]
        %v1894 = vld [vmem:[#allocation3 + $0x298] sm:$0xff]
        %v1895 = vld [vmem:[#allocation3 + $0x2a0] sm:$0xff]
        %v1896 = vld [vmem:[#allocation3 + $0x2a8] sm:$0xff]
        %v1897 = vld [vmem:[#allocation3 + $0x2b0] sm:$0xff]
        %v1898 = vld [vmem:[#allocation3 + $0x2b8] sm:$0xff]
        %v1899 = vld [vmem:[#allocation3 + $0x2c0] sm:$0xff]
        %v1900 = vld [vmem:[#allocation3 + $0x2c8] sm:$0xff]
        %v1901 = vld [vmem:[#allocation3 + $0x2d0] sm:$0xff]
        %v1902 = vld [vmem:[#allocation3 + $0x2d8] sm:$0xff]
        %v1903 = vld [vmem:[#allocation3 + $0x2e0] sm:$0xff]
        %v1904 = vld [vmem:[#allocation3 + $0x2e8] sm:$0xff]
        %v1905 = vld [vmem:[#allocation3 + $0x2f0] sm:$0xff]
        %v1906 = vld [vmem:[#allocation3 + $0x2f8] sm:$0xff]
        %v1907 = vld [vmem:[#allocation3 + $0x300] sm:$0xff]
        %v1908 = vld [vmem:[#allocation3 + $0x308] sm:$0xff]
        %v1909 = vld [vmem:[#allocation3 + $0x310] sm:$0xff]
        %v1910 = vld [vmem:[#allocation3 + $0x318] sm:$0xff]
        %v1911 = vld [vmem:[#allocation3 + $0x320] sm:$0xff]
        %v1912 = vld [vmem:[#allocation3 + $0x328] sm:$0xff]
        %v1913 = vld [vmem:[#allocation3 + $0x330] sm:$0xff]
        %v1914 = vld [vmem:[#allocation3 + $0x338] sm:$0xff]
        %v1915 = vld [vmem:[#allocation3 + $0x340] sm:$0xff]
        %v1916 = vld [vmem:[#allocation3 + $0x348] sm:$0xff]
        %v1917 = vld [vmem:[#allocation3 + $0x350] sm:$0xff]
        %v1918 = vld [vmem:[#allocation3 + $0x358] sm:$0xff]
        %v1919 = vld [vmem:[#allocation3 + $0x360] sm:$0xff]
        %v1920 = vld [vmem:[#allocation3 + $0x368] sm:$0xff]
        %v1921 = vld [vmem:[#allocation3 + $0x370] sm:$0xff]
        %v1922 = vld [vmem:[#allocation3 + $0x378] sm:$0xff]
        %v1923 = vld [vmem:[#allocation3 + $0x380] sm:$0xff]
        %v1924 = vld [vmem:[#allocation3 + $0x388] sm:$0xff]
        %v1925 = vld [vmem:[#allocation3 + $0x390] sm:$0xff]
        %v1926 = vld [vmem:[#allocation3 + $0x398] sm:$0xff]
        %v1927 = vld [vmem:[#allocation3 + $0x3a0] sm:$0xff]
        %v1928 = vld [vmem:[#allocation3 + $0x3a8] sm:$0xff]
        %v1929 = vld [vmem:[#allocation3 + $0x3b0] sm:$0xff]
        %v1930 = vld [vmem:[#allocation3 + $0x3b8] sm:$0xff]
        %v1931 = vld [vmem:[#allocation3 + $0x3c0] sm:$0xff]
        %v1932 = vld [vmem:[#allocation3 + $0x3c8] sm:$0xff]
        %v1933 = vld [vmem:[#allocation3 + $0x3d0] sm:$0xff]
        %v1934 = vld [vmem:[#allocation3 + $0x3d8] sm:$0xff]
        %v1935 = vld [vmem:[#allocation3 + $0x3e0] sm:$0xff]
        %v1936 = vld [vmem:[#allocation3 + $0x3e8] sm:$0xff]
        %v1937 = vld [vmem:[#allocation3 + $0x3f0] sm:$0xff]
        %v1938 = vld [vmem:[#allocation3 + $0x3f8] sm:$0xff]
        %v1939 = vld [vmem:[#allocation3 + $0x400] sm:$0xff]
        %v1940 = vld [vmem:[#allocation3 + $0x408] sm:$0xff]
        %v1941 = vld [vmem:[#allocation3 + $0x410] sm:$0xff]
        %v1942 = vld [vmem:[#allocation3 + $0x418] sm:$0xff]
        %v1943 = vld [vmem:[#allocation3 + $0x420] sm:$0xff]
        %v1944 = vld [vmem:[#allocation3 + $0x428] sm:$0xff]
        %v1945 = vld [vmem:[#allocation3 + $0x430] sm:$0xff]
        %v1946 = vld [vmem:[#allocation3 + $0x438] sm:$0xff]
        %v1947 = vld [vmem:[#allocation3 + $0x440] sm:$0xff]
        %v1948 = vld [vmem:[#allocation3 + $0x448] sm:$0xff]
        %v1949 = vld [vmem:[#allocation3 + $0x450] sm:$0xff]
        %v1950 = vld [vmem:[#allocation3 + $0x458] sm:$0xff]
        %v1951 = vld [vmem:[#allocation3 + $0x460] sm:$0xff]
        %v1952 = vld [vmem:[#allocation3 + $0x468] sm:$0xff]
        %v1953 = vld [vmem:[#allocation3 + $0x470] sm:$0xff]
        %v1954 = vld [vmem:[#allocation3 + $0x478] sm:$0xff]
        %v1955 = vld [vmem:[#allocation3 + $0x480] sm:$0xff]
        %v1956 = vld [vmem:[#allocation3 + $0x488] sm:$0xff]
        %v1957 = vld [vmem:[#allocation3 + $0x490] sm:$0xff]
        %v1958 = vld [vmem:[#allocation3 + $0x498] sm:$0xff]
        %v1959 = vld [vmem:[#allocation3 + $0x4a0] sm:$0xff]
        %v1960 = vld [vmem:[#allocation3 + $0x4a8] sm:$0xff]
        %v1961 = vld [vmem:[#allocation3 + $0x4b0] sm:$0xff]
        %v1962 = vld [vmem:[#allocation3 + $0x4b8] sm:$0xff]
        %v1963 = vld [vmem:[#allocation3 + $0x4c0] sm:$0xff]
        %v1964 = vld [vmem:[#allocation3 + $0x4c8] sm:$0xff]
        %v1965 = vld [vmem:[#allocation3 + $0x4d0] sm:$0xff]
        %v1966 = vld [vmem:[#allocation3 + $0x4d8] sm:$0xff]
        %v1967 = vld [vmem:[#allocation3 + $0x4e0] sm:$0xff]
        %v1968 = vld [vmem:[#allocation3 + $0x4e8] sm:$0xff]
        %v1969 = vld [vmem:[#allocation3 + $0x4f0] sm:$0xff]
        %v1970 = vld [vmem:[#allocation3 + $0x4f8] sm:$0xff]
        %v1971 = vld [vmem:[#allocation3 + $0x500] sm:$0xff]
        %v1972 = vld [vmem:[#allocation3 + $0x508] sm:$0xff]
        %v1973 = vld [vmem:[#allocation3 + $0x510] sm:$0xff]
        %v1974 = vld [vmem:[#allocation3 + $0x518] sm:$0xff]
        %v1975 = vld [vmem:[#allocation3 + $0x520] sm:$0xff]
        %v1976 = vld [vmem:[#allocation3 + $0x528] sm:$0xff]
        %v1977 = vld [vmem:[#allocation3 + $0x530] sm:$0xff]
        %v1978 = vld [vmem:[#allocation3 + $0x538] sm:$0xff]
        %v1979 = vld [vmem:[#allocation3 + $0x540] sm:$0xff]
        %v1980 = vld [vmem:[#allocation3 + $0x548] sm:$0xff]
        %v1981 = vld [vmem:[#allocation3 + $0x550] sm:$0xff]
        %v1982 = vld [vmem:[#allocation3 + $0x558] sm:$0xff]
        %v1983 = vld [vmem:[#allocation3 + $0x560] sm:$0xff]
        %v1984 = vld [vmem:[#allocation3 + $0x568] sm:$0xff]
        %v1985 = vld [vmem:[#allocation3 + $0x570] sm:$0xff]
        %v1986 = vld [vmem:[#allocation3 + $0x578] sm:$0xff]
        %v1987 = vld [vmem:[#allocation3 + $0x580] sm:$0xff]
        %v1988 = vld [vmem:[#allocation3 + $0x588] sm:$0xff]
        %v1989 = vld [vmem:[#allocation3 + $0x590] sm:$0xff]
        %v1990 = vld [vmem:[#allocation3 + $0x598] sm:$0xff]
        %v1991 = vld [vmem:[#allocation3 + $0x5a0] sm:$0xff]
        %v1992 = vld [vmem:[#allocation3 + $0x5a8] sm:$0xff]
        %v1993 = vld [vmem:[#allocation3 + $0x5b0] sm:$0xff]
        %v1994 = vld [vmem:[#allocation3 + $0x5b8] sm:$0xff]
        %v1995 = vld [vmem:[#allocation3 + $0x5c0] sm:$0xff]
        %v1996 = vld [vmem:[#allocation3 + $0x5c8] sm:$0xff]
        %v1997 = vld [vmem:[#allocation3 + $0x5d0] sm:$0xff]
        %v1998 = vld [vmem:[#allocation3 + $0x5d8] sm:$0xff]
        %v1999 = vld [vmem:[#allocation3 + $0x5e0] sm:$0xff]
        %v2000 = vld [vmem:[#allocation3 + $0x5e8] sm:$0xff]
        %v2001 = vld [vmem:[#allocation3 + $0x5f0] sm:$0xff]
        %v2002 = vld [vmem:[#allocation3 + $0x5f8] sm:$0xff]
        %v2003 = vld [vmem:[#allocation3 + $0x600] sm:$0xff]
        %v2004 = vld [vmem:[#allocation3 + $0x608] sm:$0xff]
        %v2005 = vld [vmem:[#allocation3 + $0x610] sm:$0xff]
        %v2006 = vld [vmem:[#allocation3 + $0x618] sm:$0xff]
        %v2007 = vld [vmem:[#allocation3 + $0x620] sm:$0xff]
        %v2008 = vld [vmem:[#allocation3 + $0x628] sm:$0xff]
        %v2009 = vld [vmem:[#allocation3 + $0x630] sm:$0xff]
        %v2010 = vld [vmem:[#allocation3 + $0x638] sm:$0xff]
        %v2011 = vld [vmem:[#allocation3 + $0x640] sm:$0xff]
        %v2012 = vld [vmem:[#allocation3 + $0x648] sm:$0xff]
        %v2013 = vld [vmem:[#allocation3 + $0x650] sm:$0xff]
        %v2014 = vld [vmem:[#allocation3 + $0x658] sm:$0xff]
        %v2015 = vld [vmem:[#allocation3 + $0x660] sm:$0xff]
        %v2016 = vld [vmem:[#allocation3 + $0x668] sm:$0xff]
        %v2017 = vld [vmem:[#allocation3 + $0x670] sm:$0xff]
        %v2018 = vld [vmem:[#allocation3 + $0x678] sm:$0xff]
        %v2019 = vld [vmem:[#allocation3 + $0x680] sm:$0xff]
        %v2020 = vld [vmem:[#allocation3 + $0x688] sm:$0xff]
        %v2021 = vld [vmem:[#allocation3 + $0x690] sm:$0xff]
        %v2022 = vld [vmem:[#allocation3 + $0x698] sm:$0xff]
        %v2023 = vld [vmem:[#allocation3 + $0x6a0] sm:$0xff]
        %v2024 = vld [vmem:[#allocation3 + $0x6a8] sm:$0xff]
        %v2025 = vld [vmem:[#allocation3 + $0x6b0] sm:$0xff]
        %v2026 = vld [vmem:[#allocation3 + $0x6b8] sm:$0xff]
        %v2027 = vld [vmem:[#allocation3 + $0x6c0] sm:$0xff]
        %v2028 = vld [vmem:[#allocation3 + $0x6c8] sm:$0xff]
        %v2029 = vld [vmem:[#allocation3 + $0x6d0] sm:$0xff]
        %v2030 = vld [vmem:[#allocation3 + $0x6d8] sm:$0xff]
        %v2031 = vld [vmem:[#allocation3 + $0x6e0] sm:$0xff]
        %v2032 = vld [vmem:[#allocation3 + $0x6e8] sm:$0xff]
        %v2033 = vld [vmem:[#allocation3 + $0x6f0] sm:$0xff]
        %v2034 = vld [vmem:[#allocation3 + $0x6f8] sm:$0xff]
        %v2035 = vld [vmem:[#allocation3 + $0x700] sm:$0xff]
        %v2036 = vld [vmem:[#allocation3 + $0x708] sm:$0xff]
        %v2037 = vld [vmem:[#allocation3 + $0x710] sm:$0xff]
        %v2038 = vld [vmem:[#allocation3 + $0x718] sm:$0xff]
        %v2039 = vld [vmem:[#allocation3 + $0x720] sm:$0xff]
        %v2040 = vld [vmem:[#allocation3 + $0x728] sm:$0xff]
        %v2041 = vld [vmem:[#allocation3 + $0x730] sm:$0xff]
        %v2042 = vld [vmem:[#allocation3 + $0x738] sm:$0xff]
        %v2043 = vld [vmem:[#allocation3 + $0x740] sm:$0xff]
        %v2044 = vld [vmem:[#allocation3 + $0x748] sm:$0xff]
        %v2045 = vld [vmem:[#allocation3 + $0x750] sm:$0xff]
        %v2046 = vld [vmem:[#allocation3 + $0x758] sm:$0xff]
        %v2047 = vld [vmem:[#allocation3 + $0x760] sm:$0xff]
        %v2048 = vld [vmem:[#allocation3 + $0x768] sm:$0xff]
        %v2049 = vld [vmem:[#allocation3 + $0x770] sm:$0xff]
        %v2050 = vld [vmem:[#allocation3 + $0x778] sm:$0xff]
        %v2051 = vld [vmem:[#allocation3 + $0x780] sm:$0xff]
        %v2052 = vld [vmem:[#allocation3 + $0x788] sm:$0xff]
        %v2053 = vld [vmem:[#allocation3 + $0x790] sm:$0xff]
        %v2054 = vld [vmem:[#allocation3 + $0x798] sm:$0xff]
        %v2055 = vld [vmem:[#allocation3 + $0x7a0] sm:$0xff]
        %v2056 = vld [vmem:[#allocation3 + $0x7a8] sm:$0xff]
        %v2057 = vld [vmem:[#allocation3 + $0x7b0] sm:$0xff]
        %v2058 = vld [vmem:[#allocation3 + $0x7b8] sm:$0xff]
        %v2059 = vld [vmem:[#allocation3 + $0x7c0] sm:$0xff]
        %v2060 = vld [vmem:[#allocation3 + $0x7c8] sm:$0xff]
        %v2061 = vld [vmem:[#allocation3 + $0x7d0] sm:$0xff]
        %v2062 = vld [vmem:[#allocation3 + $0x7d8] sm:$0xff]
        %v2063 = vld [vmem:[#allocation3 + $0x7e0] sm:$0xff]
        %v2064 = vld [vmem:[#allocation3 + $0x7e8] sm:$0xff]
        %v2065 = vld [vmem:[#allocation3 + $0x7f0] sm:$0xff]
        %v2066 = vld [vmem:[#allocation3 + $0x7f8] sm:$0xff]
        %v2067 = vld [vmem:[#allocation3 + $0x800] sm:$0xff]
        %v2068 = vld [vmem:[#allocation3 + $0x808] sm:$0xff]
        %v2069 = vld [vmem:[#allocation3 + $0x810] sm:$0xff]
        %v2070 = vld [vmem:[#allocation3 + $0x818] sm:$0xff]
        %v2071 = vld [vmem:[#allocation3 + $0x820] sm:$0xff]
        %v2072 = vld [vmem:[#allocation3 + $0x828] sm:$0xff]
        %v2073 = vld [vmem:[#allocation3 + $0x830] sm:$0xff]
        %v2074 = vld [vmem:[#allocation3 + $0x838] sm:$0xff]
        %v2075 = vld [vmem:[#allocation3 + $0x840] sm:$0xff]
        %v2076 = vld [vmem:[#allocation3 + $0x848] sm:$0xff]
        %v2077 = vld [vmem:[#allocation3 + $0x850] sm:$0xff]
        %v2078 = vld [vmem:[#allocation3 + $0x858] sm:$0xff]
        %v2079 = vld [vmem:[#allocation3 + $0x860] sm:$0xff]
        %v2080 = vld [vmem:[#allocation3 + $0x868] sm:$0xff]
        %v2081 = vld [vmem:[#allocation3 + $0x870] sm:$0xff]
        %v2082 = vld [vmem:[#allocation3 + $0x878] sm:$0xff]
        %v2083 = vld [vmem:[#allocation3 + $0x880] sm:$0xff]
        %v2084 = vld [vmem:[#allocation3 + $0x888] sm:$0xff]
        %v2085 = vld [vmem:[#allocation3 + $0x890] sm:$0xff]
        %v2086 = vld [vmem:[#allocation3 + $0x898] sm:$0xff]
        %v2087 = vld [vmem:[#allocation3 + $0x8a0] sm:$0xff]
        %v2088 = vld [vmem:[#allocation3 + $0x8a8] sm:$0xff]
        %v2089 = vld [vmem:[#allocation3 + $0x8b0] sm:$0xff]
        %v2090 = vld [vmem:[#allocation3 + $0x8b8] sm:$0xff]
        %v2091 = vld [vmem:[#allocation3 + $0x8c0] sm:$0xff]
        %v2092 = vld [vmem:[#allocation3 + $0x8c8] sm:$0xff]
        %v2093 = vld [vmem:[#allocation3 + $0x8d0] sm:$0xff]
        %v2094 = vld [vmem:[#allocation3 + $0x8d8] sm:$0xff]
        %v2095 = vld [vmem:[#allocation3 + $0x8e0] sm:$0xff]
        %v2096 = vld [vmem:[#allocation3 + $0x8e8] sm:$0xff]
        %v2097 = vld [vmem:[#allocation3 + $0x8f0] sm:$0xff]
        %v2098 = vld [vmem:[#allocation3 + $0x8f8] sm:$0xff]
        %v2099 = vld [vmem:[#allocation3 + $0x900] sm:$0xff]
        %v2100 = vld [vmem:[#allocation3 + $0x908] sm:$0xff]
        %v2101 = vld [vmem:[#allocation3 + $0x910] sm:$0xff]
        %v2102 = vld [vmem:[#allocation3 + $0x918] sm:$0xff]
        %v2103 = vld [vmem:[#allocation3 + $0x920] sm:$0xff]
        %v2104 = vld [vmem:[#allocation3 + $0x928] sm:$0xff]
        %v2105 = vld [vmem:[#allocation3 + $0x930] sm:$0xff]
        %v2106 = vld [vmem:[#allocation3 + $0x938] sm:$0xff]
        %v2107 = vld [vmem:[#allocation3 + $0x940] sm:$0xff]
        %v2108 = vld [vmem:[#allocation3 + $0x948] sm:$0xff]
        %v2109 = vld [vmem:[#allocation3 + $0x950] sm:$0xff]
        %v2110 = vld [vmem:[#allocation3 + $0x958] sm:$0xff]
        %v2111 = vld [vmem:[#allocation3 + $0x960] sm:$0xff]
        %v2112 = vld [vmem:[#allocation3 + $0x968] sm:$0xff]
        %v2113 = vld [vmem:[#allocation3 + $0x970] sm:$0xff]
        %v2114 = vld [vmem:[#allocation3 + $0x978] sm:$0xff]
        %v2115 = vld [vmem:[#allocation3 + $0x980] sm:$0xff]
        %v2116 = vld [vmem:[#allocation3 + $0x988] sm:$0xff]
        %v2117 = vld [vmem:[#allocation3 + $0x990] sm:$0xff]
        %v2118 = vld [vmem:[#allocation3 + $0x998] sm:$0xff]
        %v2119 = vld [vmem:[#allocation3 + $0x9a0] sm:$0xff]
        %v2120 = vld [vmem:[#allocation3 + $0x9a8] sm:$0xff]
        %v2121 = vld [vmem:[#allocation3 + $0x9b0] sm:$0xff]
        %v2122 = vld [vmem:[#allocation3 + $0x9b8] sm:$0xff]
        %v2123 = vld [vmem:[#allocation3 + $0x9c0] sm:$0xff]
        %v2124 = vld [vmem:[#allocation3 + $0x9c8] sm:$0xff]
        %v2125 = vld [vmem:[#allocation3 + $0x9d0] sm:$0xff]
        %v2126 = vld [vmem:[#allocation3 + $0x9d8] sm:$0xff]
        %v2127 = vld [vmem:[#allocation3 + $0x9e0] sm:$0xff]
        %v2128 = vld [vmem:[#allocation3 + $0x9e8] sm:$0xff]
        %v2129 = vld [vmem:[#allocation3 + $0x9f0] sm:$0xff]
        %v2130 = vld [vmem:[#allocation3 + $0x9f8] sm:$0xff]
        %v2131 = vld [vmem:[#allocation3 + $0xa00] sm:$0xff]
        %v2132 = vld [vmem:[#allocation3 + $0xa08] sm:$0xff]
        %v2133 = vld [vmem:[#allocation3 + $0xa10] sm:$0xff]
        %v2134 = vld [vmem:[#allocation3 + $0xa18] sm:$0xff]
        %v2135 = vld [vmem:[#allocation7] sm:$0xff]
        %v2136 = vld [vmem:[#allocation7 + $0x8] sm:$0xff]
        %v2137 = vld [vmem:[#allocation7 + $0x10] sm:$0xff]
        %v2138 = vld [vmem:[#allocation7 + $0x18] sm:$0xff]
        %v2139 = vld [vmem:[#allocation7 + $0x20] sm:$0xff]
        %v2140 = vld [vmem:[#allocation7 + $0x28] sm:$0xff]
        %v2141 = vld [vmem:[#allocation7 + $0x30] sm:$0xff]
        %v2142 = vld [vmem:[#allocation7 + $0x38] sm:$0xff]
        %v2143 = vld [vmem:[#allocation7 + $0x40] sm:$0xff]
        %v2144 = vld [vmem:[#allocation7 + $0x48] sm:$0xff]
        %v2145 = vld [vmem:[#allocation7 + $0x50] sm:$0xff]
        %v2146 = vld [vmem:[#allocation7 + $0x58] sm:$0xff]
        %v2147 = vld [vmem:[#allocation7 + $0x60] sm:$0xff]
        %v2148 = vld [vmem:[#allocation7 + $0x68] sm:$0xff]
        %v2149 = vld [vmem:[#allocation7 + $0x70] sm:$0xff]
        %v2150 = vld [vmem:[#allocation7 + $0x78] sm:$0xff]
        %v2151 = vld [vmem:[#allocation7 + $0x80] sm:$0xff]
        %v2152 = vld [vmem:[#allocation7 + $0x88] sm:$0xff]
        %v2153 = vld [vmem:[#allocation7 + $0x90] sm:$0xff]
        %v2154 = vld [vmem:[#allocation7 + $0x98] sm:$0xff]
        %v2155 = vld [vmem:[#allocation7 + $0xa0] sm:$0xff]
        %v2156 = vld [vmem:[#allocation7 + $0xa8] sm:$0xff]
        %v2157 = vld [vmem:[#allocation7 + $0xb0] sm:$0xff]
        %v2158 = vld [vmem:[#allocation7 + $0xb8] sm:$0xff]
        %v2159 = vld [vmem:[#allocation7 + $0xc0] sm:$0xff]
        %v2160 = vld [vmem:[#allocation7 + $0xc8] sm:$0xff]
        %v2161 = vld [vmem:[#allocation7 + $0xd0] sm:$0xff]
        %v2162 = vld [vmem:[#allocation7 + $0xd8] sm:$0xff]
        %v2163 = vld [vmem:[#allocation7 + $0xe0] sm:$0xff]
        %v2164 = vld [vmem:[#allocation7 + $0xe8] sm:$0xff]
        %v2165 = vld [vmem:[#allocation7 + $0xf0] sm:$0xff]
        %v2166 = vld [vmem:[#allocation7 + $0xf8] sm:$0xff]
        %v2167 = vld [vmem:[#allocation7 + $0x100] sm:$0xff]
        %v2168 = vld [vmem:[#allocation7 + $0x108] sm:$0xff]
        %v2169 = vld [vmem:[#allocation7 + $0x110] sm:$0xff]
        %v2170 = vld [vmem:[#allocation7 + $0x118] sm:$0xff]
        %v2171 = vld [vmem:[#allocation7 + $0x120] sm:$0xff]
        %v2172 = vld [vmem:[#allocation7 + $0x128] sm:$0xff]
        %v2173 = vld [vmem:[#allocation7 + $0x130] sm:$0xff]
        %v2174 = vld [vmem:[#allocation7 + $0x138] sm:$0xff]
        %v2175 = vld [vmem:[#allocation7 + $0x140] sm:$0xff]
        %v2176 = vld [vmem:[#allocation7 + $0x148] sm:$0xff]
        %v2177 = vld [vmem:[#allocation7 + $0x150] sm:$0xff]
        %v2178 = vld [vmem:[#allocation7 + $0x158] sm:$0xff]
        %v2179 = vld [vmem:[#allocation7 + $0x160] sm:$0xff]
        %v2180 = vld [vmem:[#allocation7 + $0x168] sm:$0xff]
        %v2181 = vld [vmem:[#allocation7 + $0x170] sm:$0xff]
        %v2182 = vld [vmem:[#allocation7 + $0x178] sm:$0xff]
        %v2183 = vld [vmem:[#allocation7 + $0x180] sm:$0xff]
        %v2184 = vld [vmem:[#allocation7 + $0x188] sm:$0xff]
        %v2185 = vld [vmem:[#allocation7 + $0x190] sm:$0xff]
        %v2186 = vld [vmem:[#allocation7 + $0x198] sm:$0xff]
        %v2187 = vld [vmem:[#allocation7 + $0x1a0] sm:$0xff]
        %v2188 = vld [vmem:[#allocation7 + $0x1a8] sm:$0xff]
        %v2189 = vld [vmem:[#allocation7 + $0x1b0] sm:$0xff]
        %v2190 = vld [vmem:[#allocation7 + $0x1b8] sm:$0xff]
        %v2191 = vld [vmem:[#allocation7 + $0x1c0] sm:$0xff]
        %v2192 = vld [vmem:[#allocation7 + $0x1c8] sm:$0xff]
        %v2193 = vld [vmem:[#allocation7 + $0x1d0] sm:$0xff]
        %v2194 = vld [vmem:[#allocation7 + $0x1d8] sm:$0xff]
        %v2195 = vld [vmem:[#allocation7 + $0x1e0] sm:$0xff]
        %v2196 = vld [vmem:[#allocation7 + $0x1e8] sm:$0xff]
        %v2197 = vld [vmem:[#allocation7 + $0x1f0] sm:$0xff]
        %v2198 = vld [vmem:[#allocation7 + $0x1f8] sm:$0xff]
        %v2199 = vld [vmem:[#allocation7 + $0x200] sm:$0xff]
        %v2200 = vld [vmem:[#allocation7 + $0x208] sm:$0xff]
        %v2201 = vld [vmem:[#allocation7 + $0x210] sm:$0xff]
        %v2202 = vld [vmem:[#allocation7 + $0x218] sm:$0xff]
        %v2203 = vld [vmem:[#allocation7 + $0x220] sm:$0xff]
        %v2204 = vld [vmem:[#allocation7 + $0x228] sm:$0xff]
        %v2205 = vld [vmem:[#allocation7 + $0x230] sm:$0xff]
        %v2206 = vld [vmem:[#allocation7 + $0x238] sm:$0xff]
        %v2207 = vld [vmem:[#allocation7 + $0x240] sm:$0xff]
        %v2208 = vld [vmem:[#allocation7 + $0x248] sm:$0xff]
        %v2209 = vld [vmem:[#allocation7 + $0x250] sm:$0xff]
        %v2210 = vld [vmem:[#allocation7 + $0x258] sm:$0xff]
        %v2211 = vld [vmem:[#allocation7 + $0x260] sm:$0xff]
        %v2212 = vld [vmem:[#allocation7 + $0x268] sm:$0xff]
        %v2213 = vld [vmem:[#allocation7 + $0x270] sm:$0xff]
        %v2214 = vld [vmem:[#allocation7 + $0x278] sm:$0xff]
        %v2215 = vld [vmem:[#allocation7 + $0x280] sm:$0xff]
        %v2216 = vld [vmem:[#allocation7 + $0x288] sm:$0xff]
        %v2217 = vld [vmem:[#allocation7 + $0x290] sm:$0xff]
        %v2218 = vld [vmem:[#allocation7 + $0x298] sm:$0xff]
        %v2219 = vld [vmem:[#allocation7 + $0x2a0] sm:$0xff]
        %v2220 = vld [vmem:[#allocation7 + $0x2a8] sm:$0xff]
        %v2221 = vld [vmem:[#allocation7 + $0x2b0] sm:$0xff]
        %v2222 = vld [vmem:[#allocation7 + $0x2b8] sm:$0xff]
        %v2223 = vld [vmem:[#allocation7 + $0x2c0] sm:$0xff]
        %v2224 = vld [vmem:[#allocation7 + $0x2c8] sm:$0xff]
        %v2225 = vld [vmem:[#allocation7 + $0x2d0] sm:$0xff]
        %v2226 = vld [vmem:[#allocation7 + $0x2d8] sm:$0xff]
        %v2227 = vld [vmem:[#allocation7 + $0x2e0] sm:$0xff]
        %v2228 = vld [vmem:[#allocation7 + $0x2e8] sm:$0xff]
        %v2229 = vld [vmem:[#allocation7 + $0x2f0] sm:$0xff]
        %v2230 = vld [vmem:[#allocation7 + $0x2f8] sm:$0xff]
        %v2231 = vld [vmem:[#allocation7 + $0x300] sm:$0xff]
        %v2232 = vld [vmem:[#allocation7 + $0x308] sm:$0xff]
        %v2233 = vld [vmem:[#allocation7 + $0x310] sm:$0xff]
        %v2234 = vld [vmem:[#allocation7 + $0x318] sm:$0xff]
        %v2235 = vld [vmem:[#allocation7 + $0x320] sm:$0xff]
        %v2236 = vld [vmem:[#allocation7 + $0x328] sm:$0xff]
        %v2237 = vld [vmem:[#allocation7 + $0x330] sm:$0xff]
        %v2238 = vld [vmem:[#allocation7 + $0x338] sm:$0xff]
        %v2239 = vld [vmem:[#allocation7 + $0x340] sm:$0xff]
        %v2240 = vld [vmem:[#allocation7 + $0x348] sm:$0xff]
        %v2241 = vld [vmem:[#allocation7 + $0x350] sm:$0xff]
        %v2242 = vld [vmem:[#allocation7 + $0x358] sm:$0xff]
        %v2243 = vld [vmem:[#allocation7 + $0x360] sm:$0xff]
        %v2244 = vld [vmem:[#allocation7 + $0x368] sm:$0xff]
        %v2245 = vld [vmem:[#allocation7 + $0x370] sm:$0xff]
        %v2246 = vld [vmem:[#allocation7 + $0x378] sm:$0xff]
        %v2247 = vld [vmem:[#allocation7 + $0x380] sm:$0xff]
        %v2248 = vld [vmem:[#allocation7 + $0x388] sm:$0xff]
        %v2249 = vld [vmem:[#allocation7 + $0x390] sm:$0xff]
        %v2250 = vld [vmem:[#allocation7 + $0x398] sm:$0xff]
        %v2251 = vld [vmem:[#allocation7 + $0x3a0] sm:$0xff]
        %v2252 = vld [vmem:[#allocation7 + $0x3a8] sm:$0xff]
        %v2253 = vld [vmem:[#allocation7 + $0x3b0] sm:$0xff]
        %v2254 = vld [vmem:[#allocation7 + $0x3b8] sm:$0xff]
        %v2255 = vld [vmem:[#allocation7 + $0x3c0] sm:$0xff]
        %v2256 = vld [vmem:[#allocation7 + $0x3c8] sm:$0xff]
        %v2257 = vld [vmem:[#allocation7 + $0x3d0] sm:$0xff]
        %v2258 = vld [vmem:[#allocation7 + $0x3d8] sm:$0xff]
        %v2259 = vld [vmem:[#allocation7 + $0x3e0] sm:$0xff]
        %v2260 = vld [vmem:[#allocation7 + $0x3e8] sm:$0xff]
        %v2261 = vld [vmem:[#allocation7 + $0x3f0] sm:$0xff]
        %v2262 = vld [vmem:[#allocation7 + $0x3f8] sm:$0xff]
        %v2263 = vld [vmem:[#allocation7 + $0x400] sm:$0xff]
        %v2264 = vld [vmem:[#allocation7 + $0x408] sm:$0xff]
        %v2265 = vld [vmem:[#allocation7 + $0x410] sm:$0xff]
        %v2266 = vld [vmem:[#allocation7 + $0x418] sm:$0xff]
        %v2267 = vld [vmem:[#allocation7 + $0x420] sm:$0xff]
        %v2268 = vld [vmem:[#allocation7 + $0x428] sm:$0xff]
        %v2269 = vld [vmem:[#allocation7 + $0x430] sm:$0xff]
        %v2270 = vld [vmem:[#allocation7 + $0x438] sm:$0xff]
        %v2271 = vld [vmem:[#allocation7 + $0x440] sm:$0xff]
        %v2272 = vld [vmem:[#allocation7 + $0x448] sm:$0xff]
        %v2273 = vld [vmem:[#allocation7 + $0x450] sm:$0xff]
        %v2274 = vld [vmem:[#allocation7 + $0x458] sm:$0xff]
        %v2275 = vld [vmem:[#allocation7 + $0x460] sm:$0xff]
        %v2276 = vld [vmem:[#allocation7 + $0x468] sm:$0xff]
        %v2277 = vld [vmem:[#allocation7 + $0x470] sm:$0xff]
        %v2278 = vld [vmem:[#allocation7 + $0x478] sm:$0xff]
        %v2279 = vlaneseq
        %v2280 = vshrl.u32 %v2279, 7
        %v2281 = vsub.s32 0, %v2280
        %v2282 = vrot.slane %v248, %v2281
        %2283 = vmatprep.subr.mxu0 0.0
        %2284 = vmatpush1.msra.mxu0 %v2135
        %2285 = vmatprep.subr.mxu0 0.0
        %2286 = vmatpush1.msra.mxu0 %v2136
        %2287 = vmatprep.subr.mxu0 0.0
        %2288 = vmatpush1.msra.mxu0 %v2137
        %2289 = vmatprep.subr.mxu0 0.0
        %2290 = vmatpush1.msra.mxu0 %v2138
        %2291 = vmatprep.subr.mxu0 0.0
        %2292 = vmatpush1.msra.mxu0 %v2139
        %2293 = vmatprep.subr.mxu0 0.0
        %2294 = vmatpush1.msra.mxu0 %v2140
        %2295 = vmatprep.subr.mxu0 0.0
        %2296 = vmatpush1.msra.mxu0 %v2141
        %2297 = vmatprep.subr.mxu0 0.0
        %2298 = vmatpush1.msra.mxu0 %v2142
        %2299 = vmatprep.subr.mxu0 0.0
        %2300 = vmatpush1.msra.mxu0 %v2143
        %2301 = vmatprep.subr.mxu0 0.0
        %2302 = vmatpush1.msra.mxu0 %v2144
        %2303 = vmatprep.subr.mxu0 0.0
        %2304 = vmatpush1.msra.mxu0 %v2145
        %2305 = vmatprep.subr.mxu0 0.0
        %2306 = vmatpush1.msra.mxu0 %v2146
        %2307 = vmatprep.subr.mxu0 0.0
        %2308 = vmatpush1.msra.mxu0 %v2147
        %2309 = vmatprep.subr.mxu0 0.0
        %2310 = vmatpush1.msra.mxu0 %v2148
        %2311 = vmatprep.subr.mxu0 0.0
        %2312 = vmatpush1.msra.mxu0 %v2149
        %2313 = vmatprep.subr.mxu0 0.0
        %2314 = vmatpush1.msra.mxu0 %v2150
        %2315 = vmatprep.subr.mxu0 0.0
        %2316 = vmatpush1.msra.mxu0 %v2151
        %2317 = vmatprep.subr.mxu0 0.0
        %2318 = vmatpush1.msra.mxu0 %v2152
        %2319 = vmatprep.subr.mxu0 0.0
        %2320 = vmatpush1.msra.mxu0 %v2153
        %2321 = vmatprep.subr.mxu0 0.0
        %2322 = vmatpush1.msra.mxu0 %v2154
        %2323 = vmatprep.subr.mxu0 0.0
        %2324 = vmatpush1.msra.mxu0 %v2155
        %2325 = vmatprep.subr.mxu0 0.0
        %2326 = vmatpush1.msra.mxu0 %v2156
        %2327 = vmatprep.subr.mxu0 0.0
        %2328 = vmatpush1.msra.mxu0 %v2157
        %2329 = vmatprep.subr.mxu0 0.0
        %2330 = vmatpush1.msra.mxu0 %v2158
        %2331 = vmatprep.subr.mxu0 0.0
        %2332 = vmatpush1.msra.mxu0 %v2159
        %2333 = vmatprep.subr.mxu0 0.0
        %2334 = vmatpush1.msra.mxu0 %v2160
        %2335 = vmatprep.subr.mxu0 0.0
        %2336 = vmatpush1.msra.mxu0 %v2161
        %2337 = vmatprep.subr.mxu0 0.0
        %2338 = vmatpush1.msra.mxu0 %v2162
        %2339 = vmatprep.subr.mxu0 0.0
        %2340 = vmatpush1.msra.mxu0 %v2163
        %2341 = vmatprep.subr.mxu0 0.0
        %2342 = vmatpush1.msra.mxu0 %v2164
        %2343 = vmatprep.subr.mxu0 0.0
        %2344 = vmatpush1.msra.mxu0 %v2165
        %2345 = vmatprep.subr.mxu0 0.0
        %2346 = vmatpush1.msra.mxu0 %v2166
        %2347 = vmatprep.mubr.f32.mxu0 %v1812
        %2348 = vmatmul.mubr.f32.gmra.mrb[0].mxu0 %v1811
        %v2349 = vpop.f32.mrb[0].mxu0
        %v2350 = vadd.f32 %v2282, %v2349
        %v2351 = vpop.f32.mrb[0].mxu0
        %2352 = vmatprep.mubr.f32.mxu0 %v1821
        %2353 = vmatmul.mubr.f32.gmra.mrb[0].mxu0 %v1820
        %v2354 = vpop.f32.mrb[0].mxu0
        %v2355 = vadd.f32 %v2282, %v2354
        %v2356 = vpop.f32.mrb[0].mxu0
        %2357 = vmatprep.mubr.f32.mxu0 %v1830
        %2358 = vmatmul.mubr.f32.gmra.mrb[0].mxu0 %v1829
        %v2359 = vpop.f32.mrb[0].mxu0
        %v2360 = vadd.f32 %v2282, %v2359
        %v2361 = vpop.f32.mrb[0].mxu0
        %2362 = vmatprep.mubr.f32.mxu0 %v1839
        %2363 = vmatmul.mubr.f32.gmra.mrb[0].mxu0 %v1838
        %v2364 = vpop.f32.mrb[0].mxu0
        %v2365 = vadd.f32 %v2282, %v2364
        %v2366 = vpop.f32.mrb[0].mxu0
        %2367 = vmatprep.mubr.f32.mxu0 %v1848
        %2368 = vmatmul.mubr.f32.gmra.mrb[0].mxu0 %v1847
        %v2369 = vpop.f32.mrb[0].mxu0
        %v2370 = vadd.f32 %v2282, %v2369
        %v2371 = vpop.f32.mrb[0].mxu0
        %2372 = vmatprep.mubr.f32.mxu0 %v1857
        %2373 = vmatmul.mubr.f32.gmra.mrb[0].mxu0 %v1856
        %v2374 = vpop.f32.mrb[0].mxu0
        %v2375 = vadd.f32 %v2282, %v2374
        %v2376 = vpop.f32.mrb[0].mxu0
        %2377 = vmatprep.mubr.f32.mxu0 %v1866
        %2378 = vmatmul.mubr.f32.gmra.mrb[0].mxu0 %v1865
        %v2379 = vpop.f32.mrb[0].mxu0
        %v2380 = vadd.f32 %v2282, %v2379
        %v2381 = vpop.f32.mrb[0].mxu0
        %2382 = vmatprep.mubr.f32.mxu0 %v1875
        %2383 = vmatmul.mubr.f32.gmra.mrb[0].mxu0 %v1874
        %v2384 = vpop.f32.mrb[0].mxu0
        %v2385 = vadd.f32 %v2282, %v2384
        %v2386 = vpop.f32.mrb[0].mxu0
        %2387 = vmatprep.mubr.f32.mxu0 %v1884
        %2388 = vmatmul.mubr.f32.gmra.mrb[0].mxu0 %v1883
        %v2389 = vpop.f32.mrb[0].mxu0
        %v2390 = vadd.f32 %v2282, %v2389
        %v2391 = vpop.f32.mrb[0].mxu0
        %2392 = vmatprep.mubr.f32.mxu0 %v1893
        %2393 = vmatmul.mubr.f32.gmra.mrb[0].mxu0 %v1892
        %v2394 = vpop.f32.mrb[0].mxu0
        %v2395 = vadd.f32 %v2282, %v2394
        %v2396 = vpop.f32.mrb[0].mxu0
        %2397 = vmatprep.mubr.f32.mxu0 %v1902
        %2398 = vmatmul.mubr.f32.gmra.mrb[0].mxu0 %v1901
        %v2399 = vpop.f32.mrb[0].mxu0
        %v2400 = vadd.f32 %v2282, %v2399
        %v2401 = vpop.f32.mrb[0].mxu0
        %2402 = vmatprep.mubr.f32.mxu0 %v1911
        %2403 = vmatmul.mubr.f32.gmra.mrb[0].mxu0 %v1910
        %v2404 = vpop.f32.mrb[0].mxu0
        %v2405 = vadd.f32 %v2282, %v2404
        %v2406 = vpop.f32.mrb[0].mxu0
        %2407 = vmatprep.mubr.f32.mxu0 %v1920
        %2408 = vmatmul.mubr.f32.gmra.mrb[0].mxu0 %v1919
        %v2409 = vpop.f32.mrb[0].mxu0
        %v2410 = vadd.f32 %v2282, %v2409
        %v2411 = vpop.f32.mrb[0].mxu0
        %2412 = vmatprep.mubr.f32.mxu0 %v1929
        %2413 = vmatmul.mubr.f32.gmra.mrb[0].mxu0 %v1928
        %v2414 = vpop.f32.mrb[0].mxu0
        %v2415 = vadd.f32 %v2282, %v2414
        %v2416 = vpop.f32.mrb[0].mxu0
        %2417 = vmatprep.mubr.f32.mxu0 %v1938
        %2418 = vmatmul.mubr.f32.gmra.mrb[0].mxu0 %v1937
        %v2419 = vpop.f32.mrb[0].mxu0
        %v2420 = vadd.f32 %v2282, %v2419
        %v2421 = vpop.f32.mrb[0].mxu0
        %2422 = vmatprep.mubr.f32.mxu0 %v1947
        %2423 = vmatmul.mubr.f32.gmra.mrb[0].mxu0 %v1946
        %v2424 = vpop.f32.mrb[0].mxu0
        %v2425 = vadd.f32 %v2282, %v2424
        %v2426 = vpop.f32.mrb[0].mxu0
        %2427 = vmatprep.mubr.f32.mxu0 %v1956
        %2428 = vmatmul.mubr.f32.gmra.mrb[0].mxu0 %v1955
        %v2429 = vpop.f32.mrb[0].mxu0
        %v2430 = vadd.f32 %v2282, %v2429
        %v2431 = vpop.f32.mrb[0].mxu0
        %2432 = vmatprep.mubr.f32.mxu0 %v1965
        %2433 = vmatmul.mubr.f32.gmra.mrb[0].mxu0 %v1964
        %v2434 = vpop.f32.mrb[0].mxu0
        %v2435 = vadd.f32 %v2282, %v2434
        %v2436 = vpop.f32.mrb[0].mxu0
        %2437 = vmatprep.mubr.f32.mxu0 %v1974
        %2438 = vmatmul.mubr.f32.gmra.mrb[0].mxu0 %v1973
        %v2439 = vpop.f32.mrb[0].mxu0
        %v2440 = vadd.f32 %v2282, %v2439
        %v2441 = vpop.f32.mrb[0].mxu0
        %2442 = vmatprep.mubr.f32.mxu0 %v1983
        %2443 = vmatmul.mubr.f32.gmra.mrb[0].mxu0 %v1982
        %v2444 = vpop.f32.mrb[0].mxu0
        %v2445 = vadd.f32 %v2282, %v2444
        %v2446 = vpop.f32.mrb[0].mxu0
        %2447 = vmatprep.mubr.f32.mxu0 %v1992
        %2448 = vmatmul.mubr.f32.gmra.mrb[0].mxu0 %v1991
        %v2449 = vpop.f32.mrb[0].mxu0
        %v2450 = vadd.f32 %v2282, %v2449
        %v2451 = vpop.f32.mrb[0].mxu0
        %2452 = vmatprep.mubr.f32.mxu0 %v2001
        %2453 = vmatmul.mubr.f32.gmra.mrb[0].mxu0 %v2000
        %v2454 = vpop.f32.mrb[0].mxu0
        %v2455 = vadd.f32 %v2282, %v2454
        %v2456 = vpop.f32.mrb[0].mxu0
        %2457 = vmatprep.mubr.f32.mxu0 %v2010
        %2458 = vmatmul.mubr.f32.gmra.mrb[0].mxu0 %v2009
        %v2459 = vpop.f32.mrb[0].mxu0
        %v2460 = vadd.f32 %v2282, %v2459
        %v2461 = vpop.f32.mrb[0].mxu0
        %2462 = vmatprep.mubr.f32.mxu0 %v2019
        %2463 = vmatmul.mubr.f32.gmra.mrb[0].mxu0 %v2018
        %v2464 = vpop.f32.mrb[0].mxu0
        %v2465 = vadd.f32 %v2282, %v2464
        %v2466 = vpop.f32.mrb[0].mxu0
        %2467 = vmatprep.mubr.f32.mxu0 %v2028
        %2468 = vmatmul.mubr.f32.gmra.mrb[0].mxu0 %v2027
        %v2469 = vpop.f32.mrb[0].mxu0
        %v2470 = vadd.f32 %v2282, %v2469
        %v2471 = vpop.f32.mrb[0].mxu0
        %2472 = vmatprep.mubr.f32.mxu0 %v2037
        %2473 = vmatmul.mubr.f32.gmra.mrb[0].mxu0 %v2036
        %v2474 = vpop.f32.mrb[0].mxu0
        %v2475 = vadd.f32 %v2282, %v2474
        %v2476 = vpop.f32.mrb[0].mxu0
        %2477 = vmatprep.mubr.f32.mxu0 %v2046
        %2478 = vmatmul.mubr.f32.gmra.mrb[0].mxu0 %v2045
        %v2479 = vpop.f32.mrb[0].mxu0
        %v2480 = vadd.f32 %v2282, %v2479
        %v2481 = vpop.f32.mrb[0].mxu0
        %2482 = vmatprep.mubr.f32.mxu0 %v2055
        %2483 = vmatmul.mubr.f32.gmra.mrb[0].mxu0 %v2054
        %v2484 = vpop.f32.mrb[0].mxu0
        %v2485 = vadd.f32 %v2282, %v2484
        %v2486 = vpop.f32.mrb[0].mxu0
        %2487 = vmatprep.mubr.f32.mxu0 %v2064
        %2488 = vmatmul.mubr.f32.gmra.mrb[0].mxu0 %v2063
        %v2489 = vpop.f32.mrb[0].mxu0
        %v2490 = vadd.f32 %v2282, %v2489
        %v2491 = vpop.f32.mrb[0].mxu0
        %2492 = vmatprep.mubr.f32.mxu0 %v2073
        %2493 = vmatmul.mubr.f32.gmra.mrb[0].mxu0 %v2072
        %v2494 = vpop.f32.mrb[0].mxu0
        %v2495 = vadd.f32 %v2282, %v2494
        %v2496 = vpop.f32.mrb[0].mxu0
        %2497 = vmatprep.mubr.f32.mxu0 %v2082
        %2498 = vmatmul.mubr.f32.gmra.mrb[0].mxu0 %v2081
        %v2499 = vpop.f32.mrb[0].mxu0
        %v2500 = vadd.f32 %v2282, %v2499
        %v2501 = vpop.f32.mrb[0].mxu0
        %2502 = vmatprep.mubr.f32.mxu0 %v2091
        %2503 = vmatmul.mubr.f32.gmra.mrb[0].mxu0 %v2090
        %v2504 = vpop.f32.mrb[0].mxu0
        %v2505 = vadd.f32 %v2282, %v2504
        %v2506 = vpop.f32.mrb[0].mxu0
        %2507 = vmatprep.mubr.f32.mxu0 %v2100
        %2508 = vmatmul.mubr.f32.gmra.mrb[0].mxu0 %v2099
        %v2509 = vpop.f32.mrb[0].mxu0
        %v2510 = vadd.f32 %v2282, %v2509
        %v2511 = vpop.f32.mrb[0].mxu0
        %2512 = vmatprep.mubr.f32.mxu0 %v2109
        %2513 = vmatmul.mubr.f32.gmra.mrb[0].mxu0 %v2108
        %v2514 = vpop.f32.mrb[0].mxu0
        %v2515 = vadd.f32 %v2282, %v2514
        %v2516 = vpop.f32.mrb[0].mxu0
        %2517 = vmatprep.mubr.f32.mxu0 %v2118
        %2518 = vmatmul.mubr.f32.gmra.mrb[0].mxu0 %v2117
        %v2519 = vpop.f32.mrb[0].mxu0
        %v2520 = vadd.f32 %v2282, %v2519
        %v2521 = vpop.f32.mrb[0].mxu0
        %2522 = vmatprep.mubr.f32.mxu0 %v2127
        %2523 = vmatmul.mubr.f32.gmra.mrb[0].mxu0 %v2126
        %v2524 = vpop.f32.mrb[0].mxu0
        %v2525 = vadd.f32 %v2282, %v2524
        %v2526 = vpop.f32.mrb[0].mxu0
        %2527 = vdwg.mxu0
        %2528 = vmatprep.subr.mxu0 0.0
        %2529 = vmatpush1.msra.mxu0 %v2167
        %2530 = vmatprep.subr.mxu0 0.0
        %2531 = vmatpush1.msra.mxu0 %v2168
        %2532 = vmatprep.subr.mxu0 0.0
        %2533 = vmatpush1.msra.mxu0 %v2169
        %2534 = vmatprep.subr.mxu0 0.0
        %2535 = vmatpush1.msra.mxu0 %v2170
        %2536 = vmatprep.subr.mxu0 0.0
        %2537 = vmatpush1.msra.mxu0 %v2171
        %2538 = vmatprep.subr.mxu0 0.0
        %2539 = vmatpush1.msra.mxu0 %v2172
        %2540 = vmatprep.subr.mxu0 0.0
        %2541 = vmatpush1.msra.mxu0 %v2173
        %2542 = vmatprep.subr.mxu0 0.0
        %2543 = vmatpush1.msra.mxu0 %v2174
        %2544 = vmatprep.subr.mxu0 0.0
        %2545 = vmatpush1.msra.mxu0 %v2175
        %2546 = vmatprep.subr.mxu0 0.0
        %2547 = vmatpush1.msra.mxu0 %v2176
        %2548 = vmatprep.subr.mxu0 0.0
        %2549 = vmatpush1.msra.mxu0 %v2177
        %2550 = vmatprep.subr.mxu0 0.0
        %2551 = vmatpush1.msra.mxu0 %v2178
        %2552 = vmatprep.subr.mxu0 0.0
        %2553 = vmatpush1.msra.mxu0 %v2179
        %2554 = vmatprep.subr.mxu0 0.0
        %2555 = vmatpush1.msra.mxu0 %v2180
        %2556 = vmatprep.subr.mxu0 0.0
        %2557 = vmatpush1.msra.mxu0 %v2181
        %2558 = vmatprep.subr.mxu0 0.0
        %2559 = vmatpush1.msra.mxu0 %v2182
        %2560 = vmatprep.subr.mxu0 0.0
        %2561 = vmatpush1.msra.mxu0 %v2183
        %2562 = vmatprep.subr.mxu0 0.0
        %2563 = vmatpush1.msra.mxu0 %v2184
        %2564 = vmatprep.subr.mxu0 0.0
        %2565 = vmatpush1.msra.mxu0 %v2185
        %2566 = vmatprep.subr.mxu0 0.0
        %2567 = vmatpush1.msra.mxu0 %v2186
        %2568 = vmatprep.subr.mxu0 0.0
        %2569 = vmatpush1.msra.mxu0 %v2187
        %2570 = vmatprep.subr.mxu0 0.0
        %2571 = vmatpush1.msra.mxu0 %v2188
        %2572 = vmatprep.subr.mxu0 0.0
        %2573 = vmatpush1.msra.mxu0 %v2189
        %2574 = vmatprep.subr.mxu0 0.0
        %2575 = vmatpush1.msra.mxu0 %v2190
        %2576 = vmatprep.subr.mxu0 0.0
        %2577 = vmatpush1.msra.mxu0 %v2191
        %2578 = vmatprep.subr.mxu0 0.0
        %2579 = vmatpush1.msra.mxu0 %v2192
        %2580 = vmatprep.subr.mxu0 0.0
        %2581 = vmatpush1.msra.mxu0 %v2193
        %2582 = vmatprep.subr.mxu0 0.0
        %2583 = vmatpush1.msra.mxu0 %v2194
        %2584 = vmatprep.subr.mxu0 0.0
        %2585 = vmatpush1.msra.mxu0 %v2195
        %2586 = vmatprep.subr.mxu0 0.0
        %2587 = vmatpush1.msra.mxu0 %v2196
        %2588 = vmatprep.subr.mxu0 0.0
        %2589 = vmatpush1.msra.mxu0 %v2197
        %2590 = vmatprep.subr.mxu0 0.0
        %2591 = vmatpush1.msra.mxu0 %v2198
        %2592 = vmatprep.mubr.f32.mxu0 %v1814
        %2593 = vmatmul.mubr.f32.gmra.mrb[0].mxu0 %v1813
        %v2594 = vpop.f32.mrb[0].mxu0
        %v2595 = vadd.f32 %v2350, %v2594
        %v2596 = vpop.f32.mrb[0].mxu0
        %2597 = vmatprep.mubr.f32.mxu0 %v1823
        %2598 = vmatmul.mubr.f32.gmra.mrb[0].mxu0 %v1822
        %v2599 = vpop.f32.mrb[0].mxu0
        %v2600 = vadd.f32 %v2355, %v2599
        %v2601 = vpop.f32.mrb[0].mxu0
        %2602 = vmatprep.mubr.f32.mxu0 %v1832
        %2603 = vmatmul.mubr.f32.gmra.mrb[0].mxu0 %v1831
        %v2604 = vpop.f32.mrb[0].mxu0
        %v2605 = vadd.f32 %v2360, %v2604
        %v2606 = vpop.f32.mrb[0].mxu0
        %2607 = vmatprep.mubr.f32.mxu0 %v1841
        %2608 = vmatmul.mubr.f32.gmra.mrb[0].mxu0 %v1840
        %v2609 = vpop.f32.mrb[0].mxu0
        %v2610 = vadd.f32 %v2365, %v2609
        %v2611 = vpop.f32.mrb[0].mxu0
        %2612 = vmatprep.mubr.f32.mxu0 %v1850
        %2613 = vmatmul.mubr.f32.gmra.mrb[0].mxu0 %v1849
        %v2614 = vpop.f32.mrb[0].mxu0
        %v2615 = vadd.f32 %v2370, %v2614
        %v2616 = vpop.f32.mrb[0].mxu0
        %2617 = vmatprep.mubr.f32.mxu0 %v1859
        %2618 = vmatmul.mubr.f32.gmra.mrb[0].mxu0 %v1858
        %v2619 = vpop.f32.mrb[0].mxu0
        %v2620 = vadd.f32 %v2375, %v2619
        %v2621 = vpop.f32.mrb[0].mxu0
        %2622 = vmatprep.mubr.f32.mxu0 %v1868
        %2623 = vmatmul.mubr.f32.gmra.mrb[0].mxu0 %v1867
        %v2624 = vpop.f32.mrb[0].mxu0
        %v2625 = vadd.f32 %v2380, %v2624
        %v2626 = vpop.f32.mrb[0].mxu0
        %2627 = vmatprep.mubr.f32.mxu0 %v1877
        %2628 = vmatmul.mubr.f32.gmra.mrb[0].mxu0 %v1876
        %v2629 = vpop.f32.mrb[0].mxu0
        %v2630 = vadd.f32 %v2385, %v2629
        %v2631 = vpop.f32.mrb[0].mxu0
        %2632 = vmatprep.mubr.f32.mxu0 %v1886
        %2633 = vmatmul.mubr.f32.gmra.mrb[0].mxu0 %v1885
        %v2634 = vpop.f32.mrb[0].mxu0
        %v2635 = vadd.f32 %v2390, %v2634
        %v2636 = vpop.f32.mrb[0].mxu0
        %2637 = vmatprep.mubr.f32.mxu0 %v1895
        %2638 = vmatmul.mubr.f32.gmra.mrb[0].mxu0 %v1894
        %v2639 = vpop.f32.mrb[0].mxu0
        %v2640 = vadd.f32 %v2395, %v2639
        %v2641 = vpop.f32.mrb[0].mxu0
        %2642 = vmatprep.mubr.f32.mxu0 %v1904
        %2643 = vmatmul.mubr.f32.gmra.mrb[0].mxu0 %v1903
        %v2644 = vpop.f32.mrb[0].mxu0
        %v2645 = vadd.f32 %v2400, %v2644
        %v2646 = vpop.f32.mrb[0].mxu0
        %2647 = vmatprep.mubr.f32.mxu0 %v1913
        %2648 = vmatmul.mubr.f32.gmra.mrb[0].mxu0 %v1912
        %v2649 = vpop.f32.mrb[0].mxu0
        %v2650 = vadd.f32 %v2405, %v2649
        %v2651 = vpop.f32.mrb[0].mxu0
        %2652 = vmatprep.mubr.f32.mxu0 %v1922
        %2653 = vmatmul.mubr.f32.gmra.mrb[0].mxu0 %v1921
        %v2654 = vpop.f32.mrb[0].mxu0
        %v2655 = vadd.f32 %v2410, %v2654
        %v2656 = vpop.f32.mrb[0].mxu0
        %2657 = vmatprep.mubr.f32.mxu0 %v1931
        %2658 = vmatmul.mubr.f32.gmra.mrb[0].mxu0 %v1930
        %v2659 = vpop.f32.mrb[0].mxu0
        %v2660 = vadd.f32 %v2415, %v2659
        %v2661 = vpop.f32.mrb[0].mxu0
        %2662 = vmatprep.mubr.f32.mxu0 %v1940
        %2663 = vmatmul.mubr.f32.gmra.mrb[0].mxu0 %v1939
        %v2664 = vpop.f32.mrb[0].mxu0
        %v2665 = vadd.f32 %v2420, %v2664
        %v2666 = vpop.f32.mrb[0].mxu0
        %2667 = vmatprep.mubr.f32.mxu0 %v1949
        %2668 = vmatmul.mubr.f32.gmra.mrb[0].mxu0 %v1948
        %v2669 = vpop.f32.mrb[0].mxu0
        %v2670 = vadd.f32 %v2425, %v2669
        %v2671 = vpop.f32.mrb[0].mxu0
        %2672 = vmatprep.mubr.f32.mxu0 %v1958
        %2673 = vmatmul.mubr.f32.gmra.mrb[0].mxu0 %v1957
        %v2674 = vpop.f32.mrb[0].mxu0
        %v2675 = vadd.f32 %v2430, %v2674
        %v2676 = vpop.f32.mrb[0].mxu0
        %2677 = vmatprep.mubr.f32.mxu0 %v1967
        %2678 = vmatmul.mubr.f32.gmra.mrb[0].mxu0 %v1966
        %v2679 = vpop.f32.mrb[0].mxu0
        %v2680 = vadd.f32 %v2435, %v2679
        %v2681 = vpop.f32.mrb[0].mxu0
        %2682 = vmatprep.mubr.f32.mxu0 %v1976
        %2683 = vmatmul.mubr.f32.gmra.mrb[0].mxu0 %v1975
        %v2684 = vpop.f32.mrb[0].mxu0
        %v2685 = vadd.f32 %v2440, %v2684
        %v2686 = vpop.f32.mrb[0].mxu0
        %2687 = vmatprep.mubr.f32.mxu0 %v1985
        %2688 = vmatmul.mubr.f32.gmra.mrb[0].mxu0 %v1984
        %v2689 = vpop.f32.mrb[0].mxu0
        %v2690 = vadd.f32 %v2445, %v2689
        %v2691 = vpop.f32.mrb[0].mxu0
        %2692 = vmatprep.mubr.f32.mxu0 %v1994
        %2693 = vmatmul.mubr.f32.gmra.mrb[0].mxu0 %v1993
        %v2694 = vpop.f32.mrb[0].mxu0
        %v2695 = vadd.f32 %v2450, %v2694
        %v2696 = vpop.f32.mrb[0].mxu0
        %2697 = vmatprep.mubr.f32.mxu0 %v2003
        %2698 = vmatmul.mubr.f32.gmra.mrb[0].mxu0 %v2002
        %v2699 = vpop.f32.mrb[0].mxu0
        %v2700 = vadd.f32 %v2455, %v2699
        %v2701 = vpop.f32.mrb[0].mxu0
        %2702 = vmatprep.mubr.f32.mxu0 %v2012
        %2703 = vmatmul.mubr.f32.gmra.mrb[0].mxu0 %v2011
        %v2704 = vpop.f32.mrb[0].mxu0
        %v2705 = vadd.f32 %v2460, %v2704
        %v2706 = vpop.f32.mrb[0].mxu0
        %2707 = vmatprep.mubr.f32.mxu0 %v2021
        %2708 = vmatmul.mubr.f32.gmra.mrb[0].mxu0 %v2020
        %v2709 = vpop.f32.mrb[0].mxu0
        %v2710 = vadd.f32 %v2465, %v2709
        %v2711 = vpop.f32.mrb[0].mxu0
        %2712 = vmatprep.mubr.f32.mxu0 %v2030
        %2713 = vmatmul.mubr.f32.gmra.mrb[0].mxu0 %v2029
        %v2714 = vpop.f32.mrb[0].mxu0
        %v2715 = vadd.f32 %v2470, %v2714
        %v2716 = vpop.f32.mrb[0].mxu0
        %2717 = vmatprep.mubr.f32.mxu0 %v2039
        %2718 = vmatmul.mubr.f32.gmra.mrb[0].mxu0 %v2038
        %v2719 = vpop.f32.mrb[0].mxu0
        %v2720 = vadd.f32 %v2475, %v2719
        %v2721 = vpop.f32.mrb[0].mxu0
        %2722 = vmatprep.mubr.f32.mxu0 %v2048
        %2723 = vmatmul.mubr.f32.gmra.mrb[0].mxu0 %v2047
        %v2724 = vpop.f32.mrb[0].mxu0
        %v2725 = vadd.f32 %v2480, %v2724
        %v2726 = vpop.f32.mrb[0].mxu0
        %2727 = vmatprep.mubr.f32.mxu0 %v2057
        %2728 = vmatmul.mubr.f32.gmra.mrb[0].mxu0 %v2056
        %v2729 = vpop.f32.mrb[0].mxu0
        %v2730 = vadd.f32 %v2485, %v2729
        %v2731 = vpop.f32.mrb[0].mxu0
        %2732 = vmatprep.mubr.f32.mxu0 %v2066
        %2733 = vmatmul.mubr.f32.gmra.mrb[0].mxu0 %v2065
        %v2734 = vpop.f32.mrb[0].mxu0
        %v2735 = vadd.f32 %v2490, %v2734
        %v2736 = vpop.f32.mrb[0].mxu0
        %2737 = vmatprep.mubr.f32.mxu0 %v2075
        %2738 = vmatmul.mubr.f32.gmra.mrb[0].mxu0 %v2074
        %v2739 = vpop.f32.mrb[0].mxu0
        %v2740 = vadd.f32 %v2495, %v2739
        %v2741 = vpop.f32.mrb[0].mxu0
        %2742 = vmatprep.mubr.f32.mxu0 %v2084
        %2743 = vmatmul.mubr.f32.gmra.mrb[0].mxu0 %v2083
        %v2744 = vpop.f32.mrb[0].mxu0
        %v2745 = vadd.f32 %v2500, %v2744
        %v2746 = vpop.f32.mrb[0].mxu0
        %2747 = vmatprep.mubr.f32.mxu0 %v2093
        %2748 = vmatmul.mubr.f32.gmra.mrb[0].mxu0 %v2092
        %v2749 = vpop.f32.mrb[0].mxu0
        %v2750 = vadd.f32 %v2505, %v2749
        %v2751 = vpop.f32.mrb[0].mxu0
        %2752 = vmatprep.mubr.f32.mxu0 %v2102
        %2753 = vmatmul.mubr.f32.gmra.mrb[0].mxu0 %v2101
        %v2754 = vpop.f32.mrb[0].mxu0
        %v2755 = vadd.f32 %v2510, %v2754
        %v2756 = vpop.f32.mrb[0].mxu0
        %2757 = vmatprep.mubr.f32.mxu0 %v2111
        %2758 = vmatmul.mubr.f32.gmra.mrb[0].mxu0 %v2110
        %v2759 = vpop.f32.mrb[0].mxu0
        %v2760 = vadd.f32 %v2515, %v2759
        %v2761 = vpop.f32.mrb[0].mxu0
        %2762 = vmatprep.mubr.f32.mxu0 %v2120
        %2763 = vmatmul.mubr.f32.gmra.mrb[0].mxu0 %v2119
        %v2764 = vpop.f32.mrb[0].mxu0
        %v2765 = vadd.f32 %v2520, %v2764
        %v2766 = vpop.f32.mrb[0].mxu0
        %2767 = vmatprep.mubr.f32.mxu0 %v2129
        %2768 = vmatmul.mubr.f32.gmra.mrb[0].mxu0 %v2128
        %v2769 = vpop.f32.mrb[0].mxu0
        %v2770 = vadd.f32 %v2525, %v2769
        %v2771 = vpop.f32.mrb[0].mxu0
        %2772 = vdwg.mxu0
        %2773 = vmatprep.subr.mxu0 0.0
        %2774 = vmatpush1.msra.mxu0 %v2199
        %2775 = vmatprep.subr.mxu0 0.0
        %2776 = vmatpush1.msra.mxu0 %v2200
        %2777 = vmatprep.subr.mxu0 0.0
        %2778 = vmatpush1.msra.mxu0 %v2201
        %2779 = vmatprep.subr.mxu0 0.0
        %2780 = vmatpush1.msra.mxu0 %v2202
        %2781 = vmatprep.subr.mxu0 0.0
        %2782 = vmatpush1.msra.mxu0 %v2203
        %2783 = vmatprep.subr.mxu0 0.0
        %2784 = vmatpush1.msra.mxu0 %v2204
        %2785 = vmatprep.subr.mxu0 0.0
        %2786 = vmatpush1.msra.mxu0 %v2205
        %2787 = vmatprep.subr.mxu0 0.0
        %2788 = vmatpush1.msra.mxu0 %v2206
        %2789 = vmatprep.subr.mxu0 0.0
        %2790 = vmatpush1.msra.mxu0 %v2207
        %2791 = vmatprep.subr.mxu0 0.0
        %2792 = vmatpush1.msra.mxu0 %v2208
        %2793 = vmatprep.subr.mxu0 0.0
        %2794 = vmatpush1.msra.mxu0 %v2209
        %2795 = vmatprep.subr.mxu0 0.0
        %2796 = vmatpush1.msra.mxu0 %v2210
        %2797 = vmatprep.subr.mxu0 0.0
        %2798 = vmatpush1.msra.mxu0 %v2211
        %2799 = vmatprep.subr.mxu0 0.0
        %2800 = vmatpush1.msra.mxu0 %v2212
        %2801 = vmatprep.subr.mxu0 0.0
        %2802 = vmatpush1.msra.mxu0 %v2213
        %2803 = vmatprep.subr.mxu0 0.0
        %2804 = vmatpush1.msra.mxu0 %v2214
        %2805 = vmatprep.subr.mxu0 0.0
        %2806 = vmatpush1.msra.mxu0 %v2215
        %2807 = vmatprep.subr.mxu0 0.0
        %2808 = vmatpush1.msra.mxu0 %v2216
        %2809 = vmatprep.subr.mxu0 0.0
        %2810 = vmatpush1.msra.mxu0 %v2217
        %2811 = vmatprep.subr.mxu0 0.0
        %2812 = vmatpush1.msra.mxu0 %v2218
        %2813 = vmatprep.subr.mxu0 0.0
        %2814 = vmatpush1.msra.mxu0 %v2219
        %2815 = vmatprep.subr.mxu0 0.0
        %2816 = vmatpush1.msra.mxu0 %v2220
        %2817 = vmatprep.subr.mxu0 0.0
        %2818 = vmatpush1.msra.mxu0 %v2221
        %2819 = vmatprep.subr.mxu0 0.0
        %2820 = vmatpush1.msra.mxu0 %v2222
        %2821 = vmatprep.subr.mxu0 0.0
        %2822 = vmatpush1.msra.mxu0 %v2223
        %2823 = vmatprep.subr.mxu0 0.0
        %2824 = vmatpush1.msra.mxu0 %v2224
        %2825 = vmatprep.subr.mxu0 0.0
        %2826 = vmatpush1.msra.mxu0 %v2225
        %2827 = vmatprep.subr.mxu0 0.0
        %2828 = vmatpush1.msra.mxu0 %v2226
        %2829 = vmatprep.subr.mxu0 0.0
        %2830 = vmatpush1.msra.mxu0 %v2227
        %2831 = vmatprep.subr.mxu0 0.0
        %2832 = vmatpush1.msra.mxu0 %v2228
        %2833 = vmatprep.subr.mxu0 0.0
        %2834 = vmatpush1.msra.mxu0 %v2229
        %2835 = vmatprep.subr.mxu0 0.0
        %2836 = vmatpush1.msra.mxu0 %v2230
        %2837 = vmatprep.mubr.f32.mxu0 %v1816
        %2838 = vmatmul.mubr.f32.gmra.mrb[0].mxu0 %v1815
        %v2839 = vpop.f32.mrb[0].mxu0
        %v2840 = vadd.f32 %v2595, %v2839
        %v2841 = vpop.f32.mrb[0].mxu0
        %2842 = vmatprep.mubr.f32.mxu0 %v1825
        %2843 = vmatmul.mubr.f32.gmra.mrb[0].mxu0 %v1824
        %v2844 = vpop.f32.mrb[0].mxu0
        %v2845 = vadd.f32 %v2600, %v2844
        %v2846 = vpop.f32.mrb[0].mxu0
        %2847 = vmatprep.mubr.f32.mxu0 %v1834
        %2848 = vmatmul.mubr.f32.gmra.mrb[0].mxu0 %v1833
        %v2849 = vpop.f32.mrb[0].mxu0
        %v2850 = vadd.f32 %v2605, %v2849
        %v2851 = vpop.f32.mrb[0].mxu0
        %2852 = vmatprep.mubr.f32.mxu0 %v1843
        %2853 = vmatmul.mubr.f32.gmra.mrb[0].mxu0 %v1842
        %v2854 = vpop.f32.mrb[0].mxu0
        %v2855 = vadd.f32 %v2610, %v2854
        %v2856 = vpop.f32.mrb[0].mxu0
        %2857 = vmatprep.mubr.f32.mxu0 %v1852
        %2858 = vmatmul.mubr.f32.gmra.mrb[0].mxu0 %v1851
        %v2859 = vpop.f32.mrb[0].mxu0
        %v2860 = vadd.f32 %v2615, %v2859
        %v2861 = vpop.f32.mrb[0].mxu0
        %2862 = vmatprep.mubr.f32.mxu0 %v1861
        %2863 = vmatmul.mubr.f32.gmra.mrb[0].mxu0 %v1860
        %v2864 = vpop.f32.mrb[0].mxu0
        %v2865 = vadd.f32 %v2620, %v2864
        %v2866 = vpop.f32.mrb[0].mxu0
        %2867 = vmatprep.mubr.f32.mxu0 %v1870
        %2868 = vmatmul.mubr.f32.gmra.mrb[0].mxu0 %v1869
        %v2869 = vpop.f32.mrb[0].mxu0
        %v2870 = vadd.f32 %v2625, %v2869
        %v2871 = vpop.f32.mrb[0].mxu0
        %2872 = vmatprep.mubr.f32.mxu0 %v1879
        %2873 = vmatmul.mubr.f32.gmra.mrb[0].mxu0 %v1878
        %v2874 = vpop.f32.mrb[0].mxu0
        %v2875 = vadd.f32 %v2630, %v2874
        %v2876 = vpop.f32.mrb[0].mxu0
        %2877 = vmatprep.mubr.f32.mxu0 %v1888
        %2878 = vmatmul.mubr.f32.gmra.mrb[0].mxu0 %v1887
        %v2879 = vpop.f32.mrb[0].mxu0
        %v2880 = vadd.f32 %v2635, %v2879
        %v2881 = vpop.f32.mrb[0].mxu0
        %2882 = vmatprep.mubr.f32.mxu0 %v1897
        %2883 = vmatmul.mubr.f32.gmra.mrb[0].mxu0 %v1896
        %v2884 = vpop.f32.mrb[0].mxu0
        %v2885 = vadd.f32 %v2640, %v2884
        %v2886 = vpop.f32.mrb[0].mxu0
        %2887 = vmatprep.mubr.f32.mxu0 %v1906
        %2888 = vmatmul.mubr.f32.gmra.mrb[0].mxu0 %v1905
        %v2889 = vpop.f32.mrb[0].mxu0
        %v2890 = vadd.f32 %v2645, %v2889
        %v2891 = vpop.f32.mrb[0].mxu0
        %2892 = vmatprep.mubr.f32.mxu0 %v1915
        %2893 = vmatmul.mubr.f32.gmra.mrb[0].mxu0 %v1914
        %v2894 = vpop.f32.mrb[0].mxu0
        %v2895 = vadd.f32 %v2650, %v2894
        %v2896 = vpop.f32.mrb[0].mxu0
        %2897 = vmatprep.mubr.f32.mxu0 %v1924
        %2898 = vmatmul.mubr.f32.gmra.mrb[0].mxu0 %v1923
        %v2899 = vpop.f32.mrb[0].mxu0
        %v2900 = vadd.f32 %v2655, %v2899
        %v2901 = vpop.f32.mrb[0].mxu0
        %2902 = vmatprep.mubr.f32.mxu0 %v1933
        %2903 = vmatmul.mubr.f32.gmra.mrb[0].mxu0 %v1932
        %v2904 = vpop.f32.mrb[0].mxu0
        %v2905 = vadd.f32 %v2660, %v2904
        %v2906 = vpop.f32.mrb[0].mxu0
        %2907 = vmatprep.mubr.f32.mxu0 %v1942
        %2908 = vmatmul.mubr.f32.gmra.mrb[0].mxu0 %v1941
        %v2909 = vpop.f32.mrb[0].mxu0
        %v2910 = vadd.f32 %v2665, %v2909
        %v2911 = vpop.f32.mrb[0].mxu0
        %2912 = vmatprep.mubr.f32.mxu0 %v1951
        %2913 = vmatmul.mubr.f32.gmra.mrb[0].mxu0 %v1950
        %v2914 = vpop.f32.mrb[0].mxu0
        %v2915 = vadd.f32 %v2670, %v2914
        %v2916 = vpop.f32.mrb[0].mxu0
        %2917 = vmatprep.mubr.f32.mxu0 %v1960
        %2918 = vmatmul.mubr.f32.gmra.mrb[0].mxu0 %v1959
        %v2919 = vpop.f32.mrb[0].mxu0
        %v2920 = vadd.f32 %v2675, %v2919
        %v2921 = vpop.f32.mrb[0].mxu0
        %2922 = vmatprep.mubr.f32.mxu0 %v1969
        %2923 = vmatmul.mubr.f32.gmra.mrb[0].mxu0 %v1968
        %v2924 = vpop.f32.mrb[0].mxu0
        %v2925 = vadd.f32 %v2680, %v2924
        %v2926 = vpop.f32.mrb[0].mxu0
        %2927 = vmatprep.mubr.f32.mxu0 %v1978
        %2928 = vmatmul.mubr.f32.gmra.mrb[0].mxu0 %v1977
        %v2929 = vpop.f32.mrb[0].mxu0
        %v2930 = vadd.f32 %v2685, %v2929
        %v2931 = vpop.f32.mrb[0].mxu0
        %2932 = vmatprep.mubr.f32.mxu0 %v1987
        %2933 = vmatmul.mubr.f32.gmra.mrb[0].mxu0 %v1986
        %v2934 = vpop.f32.mrb[0].mxu0
        %v2935 = vadd.f32 %v2690, %v2934
        %v2936 = vpop.f32.mrb[0].mxu0
        %2937 = vmatprep.mubr.f32.mxu0 %v1996
        %2938 = vmatmul.mubr.f32.gmra.mrb[0].mxu0 %v1995
        %v2939 = vpop.f32.mrb[0].mxu0
        %v2940 = vadd.f32 %v2695, %v2939
        %v2941 = vpop.f32.mrb[0].mxu0
        %2942 = vmatprep.mubr.f32.mxu0 %v2005
        %2943 = vmatmul.mubr.f32.gmra.mrb[0].mxu0 %v2004
        %v2944 = vpop.f32.mrb[0].mxu0
        %v2945 = vadd.f32 %v2700, %v2944
        %v2946 = vpop.f32.mrb[0].mxu0
        %2947 = vmatprep.mubr.f32.mxu0 %v2014
        %2948 = vmatmul.mubr.f32.gmra.mrb[0].mxu0 %v2013
        %v2949 = vpop.f32.mrb[0].mxu0
        %v2950 = vadd.f32 %v2705, %v2949
        %v2951 = vpop.f32.mrb[0].mxu0
        %2952 = vmatprep.mubr.f32.mxu0 %v2023
        %2953 = vmatmul.mubr.f32.gmra.mrb[0].mxu0 %v2022
        %v2954 = vpop.f32.mrb[0].mxu0
        %v2955 = vadd.f32 %v2710, %v2954
        %v2956 = vpop.f32.mrb[0].mxu0
        %2957 = vmatprep.mubr.f32.mxu0 %v2032
        %2958 = vmatmul.mubr.f32.gmra.mrb[0].mxu0 %v2031
        %v2959 = vpop.f32.mrb[0].mxu0
        %v2960 = vadd.f32 %v2715, %v2959
        %v2961 = vpop.f32.mrb[0].mxu0
        %2962 = vmatprep.mubr.f32.mxu0 %v2041
        %2963 = vmatmul.mubr.f32.gmra.mrb[0].mxu0 %v2040
        %v2964 = vpop.f32.mrb[0].mxu0
        %v2965 = vadd.f32 %v2720, %v2964
        %v2966 = vpop.f32.mrb[0].mxu0
        %2967 = vmatprep.mubr.f32.mxu0 %v2050
        %2968 = vmatmul.mubr.f32.gmra.mrb[0].mxu0 %v2049
        %v2969 = vpop.f32.mrb[0].mxu0
        %v2970 = vadd.f32 %v2725, %v2969
        %v2971 = vpop.f32.mrb[0].mxu0
        %2972 = vmatprep.mubr.f32.mxu0 %v2059
        %2973 = vmatmul.mubr.f32.gmra.mrb[0].mxu0 %v2058
        %v2974 = vpop.f32.mrb[0].mxu0
        %v2975 = vadd.f32 %v2730, %v2974
        %v2976 = vpop.f32.mrb[0].mxu0
        %2977 = vmatprep.mubr.f32.mxu0 %v2068
        %2978 = vmatmul.mubr.f32.gmra.mrb[0].mxu0 %v2067
        %v2979 = vpop.f32.mrb[0].mxu0
        %v2980 = vadd.f32 %v2735, %v2979
        %v2981 = vpop.f32.mrb[0].mxu0
        %2982 = vmatprep.mubr.f32.mxu0 %v2077
        %2983 = vmatmul.mubr.f32.gmra.mrb[0].mxu0 %v2076
        %v2984 = vpop.f32.mrb[0].mxu0
        %v2985 = vadd.f32 %v2740, %v2984
        %v2986 = vpop.f32.mrb[0].mxu0
        %2987 = vmatprep.mubr.f32.mxu0 %v2086
        %2988 = vmatmul.mubr.f32.gmra.mrb[0].mxu0 %v2085
        %v2989 = vpop.f32.mrb[0].mxu0
        %v2990 = vadd.f32 %v2745, %v2989
        %v2991 = vpop.f32.mrb[0].mxu0
        %2992 = vmatprep.mubr.f32.mxu0 %v2095
        %2993 = vmatmul.mubr.f32.gmra.mrb[0].mxu0 %v2094
        %v2994 = vpop.f32.mrb[0].mxu0
        %v2995 = vadd.f32 %v2750, %v2994
        %v2996 = vpop.f32.mrb[0].mxu0
        %2997 = vmatprep.mubr.f32.mxu0 %v2104
        %2998 = vmatmul.mubr.f32.gmra.mrb[0].mxu0 %v2103
        %v2999 = vpop.f32.mrb[0].mxu0
        %v3000 = vadd.f32 %v2755, %v2999
        %v3001 = vpop.f32.mrb[0].mxu0
        %3002 = vmatprep.mubr.f32.mxu0 %v2113
        %3003 = vmatmul.mubr.f32.gmra.mrb[0].mxu0 %v2112
        %v3004 = vpop.f32.mrb[0].mxu0
        %v3005 = vadd.f32 %v2760, %v3004
        %v3006 = vpop.f32.mrb[0].mxu0
        %3007 = vmatprep.mubr.f32.mxu0 %v2122
        %3008 = vmatmul.mubr.f32.gmra.mrb[0].mxu0 %v2121
        %v3009 = vpop.f32.mrb[0].mxu0
        %v3010 = vadd.f32 %v2765, %v3009
        %v3011 = vpop.f32.mrb[0].mxu0
        %3012 = vmatprep.mubr.f32.mxu0 %v2131
        %3013 = vmatmul.mubr.f32.gmra.mrb[0].mxu0 %v2130
        %v3014 = vpop.f32.mrb[0].mxu0
        %v3015 = vadd.f32 %v2770, %v3014
        %v3016 = vpop.f32.mrb[0].mxu0
        %3017 = vdwg.mxu0
        %3018 = vmatprep.subr.mxu0 0.0
        %3019 = vmatpush1.msra.mxu0 %v2231
        %3020 = vmatprep.subr.mxu0 0.0
        %3021 = vmatpush1.msra.mxu0 %v2232
        %3022 = vmatprep.subr.mxu0 0.0
        %3023 = vmatpush1.msra.mxu0 %v2233
        %3024 = vmatprep.subr.mxu0 0.0
        %3025 = vmatpush1.msra.mxu0 %v2234
        %3026 = vmatprep.subr.mxu0 0.0
        %3027 = vmatpush1.msra.mxu0 %v2235
        %3028 = vmatprep.subr.mxu0 0.0
        %3029 = vmatpush1.msra.mxu0 %v2236
        %3030 = vmatprep.subr.mxu0 0.0
        %3031 = vmatpush1.msra.mxu0 %v2237
        %3032 = vmatprep.subr.mxu0 0.0
        %3033 = vmatpush1.msra.mxu0 %v2238
        %3034 = vmatprep.subr.mxu0 0.0
        %3035 = vmatpush1.msra.mxu0 %v2239
        %3036 = vmatprep.subr.mxu0 0.0
        %3037 = vmatpush1.msra.mxu0 %v2240
        %3038 = vmatprep.subr.mxu0 0.0
        %3039 = vmatpush1.msra.mxu0 %v2241
        %3040 = vmatprep.subr.mxu0 0.0
        %3041 = vmatpush1.msra.mxu0 %v2242
        %3042 = vmatprep.subr.mxu0 0.0
        %3043 = vmatpush1.msra.mxu0 %v2243
        %3044 = vmatprep.subr.mxu0 0.0
        %3045 = vmatpush1.msra.mxu0 %v2244
        %3046 = vmatprep.subr.mxu0 0.0
        %3047 = vmatpush1.msra.mxu0 %v2245
        %3048 = vmatprep.subr.mxu0 0.0
        %3049 = vmatpush1.msra.mxu0 %v2246
        %3050 = vmatprep.subr.mxu0 0.0
        %3051 = vmatpush1.msra.mxu0 %v2247
        %3052 = vmatprep.subr.mxu0 0.0
        %3053 = vmatpush1.msra.mxu0 %v2248
        %3054 = vmatprep.subr.mxu0 0.0
        %3055 = vmatpush1.msra.mxu0 %v2249
        %3056 = vmatprep.subr.mxu0 0.0
        %3057 = vmatpush1.msra.mxu0 %v2250
        %3058 = vmatprep.subr.mxu0 0.0
        %3059 = vmatpush1.msra.mxu0 %v2251
        %3060 = vmatprep.subr.mxu0 0.0
        %3061 = vmatpush1.msra.mxu0 %v2252
        %3062 = vmatprep.subr.mxu0 0.0
        %3063 = vmatpush1.msra.mxu0 %v2253
        %3064 = vmatprep.subr.mxu0 0.0
        %3065 = vmatpush1.msra.mxu0 %v2254
        %3066 = vmatprep.subr.mxu0 0.0
        %3067 = vmatpush1.msra.mxu0 %v2255
        %3068 = vmatprep.subr.mxu0 0.0
        %3069 = vmatpush1.msra.mxu0 %v2256
        %3070 = vmatprep.subr.mxu0 0.0
        %3071 = vmatpush1.msra.mxu0 %v2257
        %3072 = vmatprep.subr.mxu0 0.0
        %3073 = vmatpush1.msra.mxu0 %v2258
        %3074 = vmatprep.subr.mxu0 0.0
        %3075 = vmatpush1.msra.mxu0 %v2259
        %3076 = vmatprep.subr.mxu0 0.0
        %3077 = vmatpush1.msra.mxu0 %v2260
        %3078 = vmatprep.subr.mxu0 0.0
        %3079 = vmatpush1.msra.mxu0 %v2261
        %3080 = vmatprep.subr.mxu0 0.0
        %3081 = vmatpush1.msra.mxu0 %v2262
        %3082 = vmatprep.mubr.f32.mxu0 %v1818
        %3083 = vmatmul.mubr.f32.gmra.mrb[0].mxu0 %v1817
        %v3084 = vpop.f32.mrb[0].mxu0
        %v3085 = vadd.f32 %v2840, %v3084
        %v3086 = vpop.f32.mrb[0].mxu0
        %3087 = vmatprep.mubr.f32.mxu0 %v1827
        %3088 = vmatmul.mubr.f32.gmra.mrb[0].mxu0 %v1826
        %v3089 = vpop.f32.mrb[0].mxu0
        %v3090 = vadd.f32 %v2845, %v3089
        %v3091 = vpop.f32.mrb[0].mxu0
        %3092 = vmatprep.mubr.f32.mxu0 %v1836
        %3093 = vmatmul.mubr.f32.gmra.mrb[0].mxu0 %v1835
        %v3094 = vpop.f32.mrb[0].mxu0
        %v3095 = vadd.f32 %v2850, %v3094
        %v3096 = vpop.f32.mrb[0].mxu0
        %3097 = vmatprep.mubr.f32.mxu0 %v1845
        %3098 = vmatmul.mubr.f32.gmra.mrb[0].mxu0 %v1844
        %v3099 = vpop.f32.mrb[0].mxu0
        %v3100 = vadd.f32 %v2855, %v3099
        %v3101 = vpop.f32.mrb[0].mxu0
        %3102 = vmatprep.mubr.f32.mxu0 %v1854
        %3103 = vmatmul.mubr.f32.gmra.mrb[0].mxu0 %v1853
        %v3104 = vpop.f32.mrb[0].mxu0
        %v3105 = vadd.f32 %v2860, %v3104
        %v3106 = vpop.f32.mrb[0].mxu0
        %3107 = vmatprep.mubr.f32.mxu0 %v1863
        %3108 = vmatmul.mubr.f32.gmra.mrb[0].mxu0 %v1862
        %v3109 = vpop.f32.mrb[0].mxu0
        %v3110 = vadd.f32 %v2865, %v3109
        %v3111 = vpop.f32.mrb[0].mxu0
        %3112 = vmatprep.mubr.f32.mxu0 %v1872
        %3113 = vmatmul.mubr.f32.gmra.mrb[0].mxu0 %v1871
        %v3114 = vpop.f32.mrb[0].mxu0
        %v3115 = vadd.f32 %v2870, %v3114
        %v3116 = vpop.f32.mrb[0].mxu0
        %3117 = vmatprep.mubr.f32.mxu0 %v1881
        %3118 = vmatmul.mubr.f32.gmra.mrb[0].mxu0 %v1880
        %v3119 = vpop.f32.mrb[0].mxu0
        %v3120 = vadd.f32 %v2875, %v3119
        %v3121 = vpop.f32.mrb[0].mxu0
        %3122 = vmatprep.mubr.f32.mxu0 %v1890
        %3123 = vmatmul.mubr.f32.gmra.mrb[0].mxu0 %v1889
        %v3124 = vpop.f32.mrb[0].mxu0
        %v3125 = vadd.f32 %v2880, %v3124
        %v3126 = vpop.f32.mrb[0].mxu0
        %3127 = vmatprep.mubr.f32.mxu0 %v1899
        %3128 = vmatmul.mubr.f32.gmra.mrb[0].mxu0 %v1898
        %v3129 = vpop.f32.mrb[0].mxu0
        %v3130 = vadd.f32 %v2885, %v3129
        %v3131 = vpop.f32.mrb[0].mxu0
        %3132 = vmatprep.mubr.f32.mxu0 %v1908
        %3133 = vmatmul.mubr.f32.gmra.mrb[0].mxu0 %v1907
        %v3134 = vpop.f32.mrb[0].mxu0
        %v3135 = vadd.f32 %v2890, %v3134
        %v3136 = vpop.f32.mrb[0].mxu0
        %3137 = vmatprep.mubr.f32.mxu0 %v1917
        %3138 = vmatmul.mubr.f32.gmra.mrb[0].mxu0 %v1916
        %v3139 = vpop.f32.mrb[0].mxu0
        %v3140 = vadd.f32 %v2895, %v3139
        %v3141 = vpop.f32.mrb[0].mxu0
        %3142 = vmatprep.mubr.f32.mxu0 %v1926
        %3143 = vmatmul.mubr.f32.gmra.mrb[0].mxu0 %v1925
        %v3144 = vpop.f32.mrb[0].mxu0
        %v3145 = vadd.f32 %v2900, %v3144
        %v3146 = vpop.f32.mrb[0].mxu0
        %3147 = vmatprep.mubr.f32.mxu0 %v1935
        %3148 = vmatmul.mubr.f32.gmra.mrb[0].mxu0 %v1934
        %v3149 = vpop.f32.mrb[0].mxu0
        %v3150 = vadd.f32 %v2905, %v3149
        %v3151 = vpop.f32.mrb[0].mxu0
        %3152 = vmatprep.mubr.f32.mxu0 %v1944
        %3153 = vmatmul.mubr.f32.gmra.mrb[0].mxu0 %v1943
        %v3154 = vpop.f32.mrb[0].mxu0
        %v3155 = vadd.f32 %v2910, %v3154
        %v3156 = vpop.f32.mrb[0].mxu0
        %3157 = vmatprep.mubr.f32.mxu0 %v1953
        %3158 = vmatmul.mubr.f32.gmra.mrb[0].mxu0 %v1952
        %v3159 = vpop.f32.mrb[0].mxu0
        %v3160 = vadd.f32 %v2915, %v3159
        %v3161 = vpop.f32.mrb[0].mxu0
        %3162 = vmatprep.mubr.f32.mxu0 %v1962
        %3163 = vmatmul.mubr.f32.gmra.mrb[0].mxu0 %v1961
        %v3164 = vpop.f32.mrb[0].mxu0
        %v3165 = vadd.f32 %v2920, %v3164
        %v3166 = vpop.f32.mrb[0].mxu0
        %3167 = vmatprep.mubr.f32.mxu0 %v1971
        %3168 = vmatmul.mubr.f32.gmra.mrb[0].mxu0 %v1970
        %v3169 = vpop.f32.mrb[0].mxu0
        %v3170 = vadd.f32 %v2925, %v3169
        %v3171 = vpop.f32.mrb[0].mxu0
        %3172 = vmatprep.mubr.f32.mxu0 %v1980
        %3173 = vmatmul.mubr.f32.gmra.mrb[0].mxu0 %v1979
        %v3174 = vpop.f32.mrb[0].mxu0
        %v3175 = vadd.f32 %v2930, %v3174
        %v3176 = vpop.f32.mrb[0].mxu0
        %3177 = vmatprep.mubr.f32.mxu0 %v1989
        %3178 = vmatmul.mubr.f32.gmra.mrb[0].mxu0 %v1988
        %v3179 = vpop.f32.mrb[0].mxu0
        %v3180 = vadd.f32 %v2935, %v3179
        %v3181 = vpop.f32.mrb[0].mxu0
        %3182 = vmatprep.mubr.f32.mxu0 %v1998
        %3183 = vmatmul.mubr.f32.gmra.mrb[0].mxu0 %v1997
        %v3184 = vpop.f32.mrb[0].mxu0
        %v3185 = vadd.f32 %v2940, %v3184
        %v3186 = vpop.f32.mrb[0].mxu0
        %3187 = vmatprep.mubr.f32.mxu0 %v2007
        %3188 = vmatmul.mubr.f32.gmra.mrb[0].mxu0 %v2006
        %v3189 = vpop.f32.mrb[0].mxu0
        %v3190 = vadd.f32 %v2945, %v3189
        %v3191 = vpop.f32.mrb[0].mxu0
        %3192 = vmatprep.mubr.f32.mxu0 %v2016
        %3193 = vmatmul.mubr.f32.gmra.mrb[0].mxu0 %v2015
        %v3194 = vpop.f32.mrb[0].mxu0
        %v3195 = vadd.f32 %v2950, %v3194
        %v3196 = vpop.f32.mrb[0].mxu0
        %3197 = vmatprep.mubr.f32.mxu0 %v2025
        %3198 = vmatmul.mubr.f32.gmra.mrb[0].mxu0 %v2024
        %v3199 = vpop.f32.mrb[0].mxu0
        %v3200 = vadd.f32 %v2955, %v3199
        %v3201 = vpop.f32.mrb[0].mxu0
        %3202 = vmatprep.mubr.f32.mxu0 %v2034
        %3203 = vmatmul.mubr.f32.gmra.mrb[0].mxu0 %v2033
        %v3204 = vpop.f32.mrb[0].mxu0
        %v3205 = vadd.f32 %v2960, %v3204
        %v3206 = vpop.f32.mrb[0].mxu0
        %3207 = vmatprep.mubr.f32.mxu0 %v2043
        %3208 = vmatmul.mubr.f32.gmra.mrb[0].mxu0 %v2042
        %v3209 = vpop.f32.mrb[0].mxu0
        %v3210 = vadd.f32 %v2965, %v3209
        %v3211 = vpop.f32.mrb[0].mxu0
        %3212 = vmatprep.mubr.f32.mxu0 %v2052
        %3213 = vmatmul.mubr.f32.gmra.mrb[0].mxu0 %v2051
        %v3214 = vpop.f32.mrb[0].mxu0
        %v3215 = vadd.f32 %v2970, %v3214
        %v3216 = vpop.f32.mrb[0].mxu0
        %3217 = vmatprep.mubr.f32.mxu0 %v2061
        %3218 = vmatmul.mubr.f32.gmra.mrb[0].mxu0 %v2060
        %v3219 = vpop.f32.mrb[0].mxu0
        %v3220 = vadd.f32 %v2975, %v3219
        %v3221 = vpop.f32.mrb[0].mxu0
        %3222 = vmatprep.mubr.f32.mxu0 %v2070
        %3223 = vmatmul.mubr.f32.gmra.mrb[0].mxu0 %v2069
        %v3224 = vpop.f32.mrb[0].mxu0
        %v3225 = vadd.f32 %v2980, %v3224
        %v3226 = vpop.f32.mrb[0].mxu0
        %3227 = vmatprep.mubr.f32.mxu0 %v2079
        %3228 = vmatmul.mubr.f32.gmra.mrb[0].mxu0 %v2078
        %v3229 = vpop.f32.mrb[0].mxu0
        %v3230 = vadd.f32 %v2985, %v3229
        %v3231 = vpop.f32.mrb[0].mxu0
        %3232 = vmatprep.mubr.f32.mxu0 %v2088
        %3233 = vmatmul.mubr.f32.gmra.mrb[0].mxu0 %v2087
        %v3234 = vpop.f32.mrb[0].mxu0
        %v3235 = vadd.f32 %v2990, %v3234
        %v3236 = vpop.f32.mrb[0].mxu0
        %3237 = vmatprep.mubr.f32.mxu0 %v2097
        %3238 = vmatmul.mubr.f32.gmra.mrb[0].mxu0 %v2096
        %v3239 = vpop.f32.mrb[0].mxu0
        %v3240 = vadd.f32 %v2995, %v3239
        %v3241 = vpop.f32.mrb[0].mxu0
        %3242 = vmatprep.mubr.f32.mxu0 %v2106
        %3243 = vmatmul.mubr.f32.gmra.mrb[0].mxu0 %v2105
        %v3244 = vpop.f32.mrb[0].mxu0
        %v3245 = vadd.f32 %v3000, %v3244
        %v3246 = vpop.f32.mrb[0].mxu0
        %3247 = vmatprep.mubr.f32.mxu0 %v2115
        %3248 = vmatmul.mubr.f32.gmra.mrb[0].mxu0 %v2114
        %v3249 = vpop.f32.mrb[0].mxu0
        %v3250 = vadd.f32 %v3005, %v3249
        %v3251 = vpop.f32.mrb[0].mxu0
        %3252 = vmatprep.mubr.f32.mxu0 %v2124
        %3253 = vmatmul.mubr.f32.gmra.mrb[0].mxu0 %v2123
        %v3254 = vpop.f32.mrb[0].mxu0
        %v3255 = vadd.f32 %v3010, %v3254
        %v3256 = vpop.f32.mrb[0].mxu0
        %3257 = vmatprep.mubr.f32.mxu0 %v2133
        %3258 = vmatmul.mubr.f32.gmra.mrb[0].mxu0 %v2132
        %v3259 = vpop.f32.mrb[0].mxu0
        %v3260 = vadd.f32 %v3015, %v3259
        %v3261 = vpop.f32.mrb[0].mxu0
        %3262 = vdwg.mxu0
        %3263 = vmatprep.subr.mxu0 0.0
        %3264 = vmatpush1.msra.mxu0 %v2263
        %3265 = vmatprep.subr.mxu0 0.0
        %3266 = vmatpush1.msra.mxu0 %v2264
        %3267 = vmatprep.subr.mxu0 0.0
        %3268 = vmatpush1.msra.mxu0 %v2265
        %3269 = vmatprep.subr.mxu0 0.0
        %3270 = vmatpush1.msra.mxu0 %v2266
        %3271 = vmatprep.subr.mxu0 0.0
        %3272 = vmatpush1.msra.mxu0 %v2267
        %3273 = vmatprep.subr.mxu0 0.0
        %3274 = vmatpush1.msra.mxu0 %v2268
        %3275 = vmatprep.subr.mxu0 0.0
        %3276 = vmatpush1.msra.mxu0 %v2269
        %3277 = vmatprep.subr.mxu0 0.0
        %3278 = vmatpush1.msra.mxu0 %v2270
        %3279 = vmatprep.subr.mxu0 0.0
        %3280 = vmatpush1.msra.mxu0 %v2271
        %3281 = vmatprep.subr.mxu0 0.0
        %3282 = vmatpush1.msra.mxu0 %v2272
        %3283 = vmatprep.subr.mxu0 0.0
        %3284 = vmatpush1.msra.mxu0 %v2273
        %3285 = vmatprep.subr.mxu0 0.0
        %3286 = vmatpush1.msra.mxu0 %v2274
        %3287 = vmatprep.subr.mxu0 0.0
        %3288 = vmatpush1.msra.mxu0 %v2275
        %3289 = vmatprep.subr.mxu0 0.0
        %3290 = vmatpush1.msra.mxu0 %v2276
        %3291 = vmatprep.subr.mxu0 0.0
        %3292 = vmatpush1.msra.mxu0 %v2277
        %3293 = vmatprep.subr.mxu0 0.0
        %3294 = vmatpush1.msra.mxu0 %v2278
        %3295 = vmatprep.subr.mxu0 0.0
        %3296 = vmatpush1.msra.mxu0 0.0
        %3297 = vmatprep.subr.mxu0 0.0
        %3298 = vmatpush1.msra.mxu0 0.0
        %3299 = vmatprep.subr.mxu0 0.0
        %3300 = vmatpush1.msra.mxu0 0.0
        %3301 = vmatprep.subr.mxu0 0.0
        %3302 = vmatpush1.msra.mxu0 0.0
        %3303 = vmatprep.subr.mxu0 0.0
        %3304 = vmatpush1.msra.mxu0 0.0
        %3305 = vmatprep.subr.mxu0 0.0
        %3306 = vmatpush1.msra.mxu0 0.0
        %3307 = vmatprep.subr.mxu0 0.0
        %3308 = vmatpush1.msra.mxu0 0.0
        %3309 = vmatprep.subr.mxu0 0.0
        %3310 = vmatpush1.msra.mxu0 0.0
        %3311 = vmatprep.subr.mxu0 0.0
        %3312 = vmatpush1.msra.mxu0 0.0
        %3313 = vmatprep.subr.mxu0 0.0
        %3314 = vmatpush1.msra.mxu0 0.0
        %3315 = vmatprep.subr.mxu0 0.0
        %3316 = vmatpush1.msra.mxu0 0.0
        %3317 = vmatprep.subr.mxu0 0.0
        %3318 = vmatpush1.msra.mxu0 0.0
        %3319 = vmatprep.subr.mxu0 0.0
        %3320 = vmatpush1.msra.mxu0 0.0
        %3321 = vmatprep.subr.mxu0 0.0
        %3322 = vmatpush1.msra.mxu0 0.0
        %3323 = vmatprep.subr.mxu0 0.0
        %3324 = vmatpush1.msra.mxu0 0.0
        %3325 = vmatprep.subr.mxu0 0.0
        %3326 = vmatpush1.msra.mxu0 0.0
        %3327 = vmatprep.mubr.f32.mxu0 0.0
        %3328 = vmatmul.mubr.f32.gmra.mrb[0].mxu0 %v1819
        %v3329 = vpop.f32.mrb[0].mxu0
        %v3330 = vadd.f32 %v3085, %v3329
        %v3331 = vpop.f32.mrb[0].mxu0
        %3332 = vmatprep.mubr.f32.mxu0 0.0
        %3333 = vmatmul.mubr.f32.gmra.mrb[0].mxu0 %v1828
        %v3334 = vpop.f32.mrb[0].mxu0
        %v3335 = vadd.f32 %v3090, %v3334
        %v3336 = vpop.f32.mrb[0].mxu0
        %3337 = vmatprep.mubr.f32.mxu0 0.0
        %3338 = vmatmul.mubr.f32.gmra.mrb[0].mxu0 %v1837
        %v3339 = vpop.f32.mrb[0].mxu0
        %v3340 = vadd.f32 %v3095, %v3339
        %v3341 = vpop.f32.mrb[0].mxu0
        %3342 = vmatprep.mubr.f32.mxu0 0.0
        %3343 = vmatmul.mubr.f32.gmra.mrb[0].mxu0 %v1846
        %v3344 = vpop.f32.mrb[0].mxu0
        %v3345 = vadd.f32 %v3100, %v3344
        %v3346 = vpop.f32.mrb[0].mxu0
        %3347 = vmatprep.mubr.f32.mxu0 0.0
        %3348 = vmatmul.mubr.f32.gmra.mrb[0].mxu0 %v1855
        %v3349 = vpop.f32.mrb[0].mxu0
        %v3350 = vadd.f32 %v3105, %v3349
        %v3351 = vpop.f32.mrb[0].mxu0
        %3352 = vmatprep.mubr.f32.mxu0 0.0
        %3353 = vmatmul.mubr.f32.gmra.mrb[0].mxu0 %v1864
        %v3354 = vpop.f32.mrb[0].mxu0
        %v3355 = vadd.f32 %v3110, %v3354
        %v3356 = vpop.f32.mrb[0].mxu0
        %3357 = vmatprep.mubr.f32.mxu0 0.0
        %3358 = vmatmul.mubr.f32.gmra.mrb[0].mxu0 %v1873
        %v3359 = vpop.f32.mrb[0].mxu0
        %v3360 = vadd.f32 %v3115, %v3359
        %v3361 = vpop.f32.mrb[0].mxu0
        %3362 = vmatprep.mubr.f32.mxu0 0.0
        %3363 = vmatmul.mubr.f32.gmra.mrb[0].mxu0 %v1882
        %v3364 = vpop.f32.mrb[0].mxu0
        %v3365 = vadd.f32 %v3120, %v3364
        %v3366 = vpop.f32.mrb[0].mxu0
        %3367 = vmatprep.mubr.f32.mxu0 0.0
        %3368 = vmatmul.mubr.f32.gmra.mrb[0].mxu0 %v1891
        %v3369 = vpop.f32.mrb[0].mxu0
        %v3370 = vadd.f32 %v3125, %v3369
        %v3371 = vpop.f32.mrb[0].mxu0
        %3372 = vmatprep.mubr.f32.mxu0 0.0
        %3373 = vmatmul.mubr.f32.gmra.mrb[0].mxu0 %v1900
        %v3374 = vpop.f32.mrb[0].mxu0
        %v3375 = vadd.f32 %v3130, %v3374
        %v3376 = vpop.f32.mrb[0].mxu0
        %3377 = vmatprep.mubr.f32.mxu0 0.0
        %3378 = vmatmul.mubr.f32.gmra.mrb[0].mxu0 %v1909
        %v3379 = vpop.f32.mrb[0].mxu0
        %v3380 = vadd.f32 %v3135, %v3379
        %v3381 = vpop.f32.mrb[0].mxu0
        %3382 = vmatprep.mubr.f32.mxu0 0.0
        %3383 = vmatmul.mubr.f32.gmra.mrb[0].mxu0 %v1918
        %v3384 = vpop.f32.mrb[0].mxu0
        %v3385 = vadd.f32 %v3140, %v3384
        %v3386 = vpop.f32.mrb[0].mxu0
        %3387 = vmatprep.mubr.f32.mxu0 0.0
        %3388 = vmatmul.mubr.f32.gmra.mrb[0].mxu0 %v1927
        %v3389 = vpop.f32.mrb[0].mxu0
        %v3390 = vadd.f32 %v3145, %v3389
        %v3391 = vpop.f32.mrb[0].mxu0
        %3392 = vmatprep.mubr.f32.mxu0 0.0
        %3393 = vmatmul.mubr.f32.gmra.mrb[0].mxu0 %v1936
        %v3394 = vpop.f32.mrb[0].mxu0
        %v3395 = vadd.f32 %v3150, %v3394
        %v3396 = vpop.f32.mrb[0].mxu0
        %3397 = vmatprep.mubr.f32.mxu0 0.0
        %3398 = vmatmul.mubr.f32.gmra.mrb[0].mxu0 %v1945
        %v3399 = vpop.f32.mrb[0].mxu0
        %v3400 = vadd.f32 %v3155, %v3399
        %v3401 = vpop.f32.mrb[0].mxu0
        %3402 = vmatprep.mubr.f32.mxu0 0.0
        %3403 = vmatmul.mubr.f32.gmra.mrb[0].mxu0 %v1954
        %v3404 = vpop.f32.mrb[0].mxu0
        %v3405 = vadd.f32 %v3160, %v3404
        %v3406 = vpop.f32.mrb[0].mxu0
        %3407 = vmatprep.mubr.f32.mxu0 0.0
        %3408 = vmatmul.mubr.f32.gmra.mrb[0].mxu0 %v1963
        %v3409 = vpop.f32.mrb[0].mxu0
        %v3410 = vadd.f32 %v3165, %v3409
        %v3411 = vpop.f32.mrb[0].mxu0
        %3412 = vmatprep.mubr.f32.mxu0 0.0
        %3413 = vmatmul.mubr.f32.gmra.mrb[0].mxu0 %v1972
        %v3414 = vpop.f32.mrb[0].mxu0
        %v3415 = vadd.f32 %v3170, %v3414
        %v3416 = vpop.f32.mrb[0].mxu0
        %3417 = vmatprep.mubr.f32.mxu0 0.0
        %3418 = vmatmul.mubr.f32.gmra.mrb[0].mxu0 %v1981
        %v3419 = vpop.f32.mrb[0].mxu0
        %v3420 = vadd.f32 %v3175, %v3419
        %v3421 = vpop.f32.mrb[0].mxu0
        %3422 = vmatprep.mubr.f32.mxu0 0.0
        %3423 = vmatmul.mubr.f32.gmra.mrb[0].mxu0 %v1990
        %v3424 = vpop.f32.mrb[0].mxu0
        %v3425 = vadd.f32 %v3180, %v3424
        %v3426 = vpop.f32.mrb[0].mxu0
        %3427 = vmatprep.mubr.f32.mxu0 0.0
        %3428 = vmatmul.mubr.f32.gmra.mrb[0].mxu0 %v1999
        %v3429 = vpop.f32.mrb[0].mxu0
        %v3430 = vadd.f32 %v3185, %v3429
        %v3431 = vpop.f32.mrb[0].mxu0
        %3432 = vmatprep.mubr.f32.mxu0 0.0
        %3433 = vmatmul.mubr.f32.gmra.mrb[0].mxu0 %v2008
        %v3434 = vpop.f32.mrb[0].mxu0
        %v3435 = vadd.f32 %v3190, %v3434
        %v3436 = vpop.f32.mrb[0].mxu0
        %3437 = vmatprep.mubr.f32.mxu0 0.0
        %3438 = vmatmul.mubr.f32.gmra.mrb[0].mxu0 %v2017
        %v3439 = vpop.f32.mrb[0].mxu0
        %v3440 = vadd.f32 %v3195, %v3439
        %v3441 = vpop.f32.mrb[0].mxu0
        %3442 = vmatprep.mubr.f32.mxu0 0.0
        %3443 = vmatmul.mubr.f32.gmra.mrb[0].mxu0 %v2026
        %v3444 = vpop.f32.mrb[0].mxu0
        %v3445 = vadd.f32 %v3200, %v3444
        %v3446 = vpop.f32.mrb[0].mxu0
        %3447 = vmatprep.mubr.f32.mxu0 0.0
        %3448 = vmatmul.mubr.f32.gmra.mrb[0].mxu0 %v2035
        %v3449 = vpop.f32.mrb[0].mxu0
        %v3450 = vadd.f32 %v3205, %v3449
        %v3451 = vpop.f32.mrb[0].mxu0
        %3452 = vmatprep.mubr.f32.mxu0 0.0
        %3453 = vmatmul.mubr.f32.gmra.mrb[0].mxu0 %v2044
        %v3454 = vpop.f32.mrb[0].mxu0
        %v3455 = vadd.f32 %v3210, %v3454
        %v3456 = vpop.f32.mrb[0].mxu0
        %3457 = vmatprep.mubr.f32.mxu0 0.0
        %3458 = vmatmul.mubr.f32.gmra.mrb[0].mxu0 %v2053
        %v3459 = vpop.f32.mrb[0].mxu0
        %v3460 = vadd.f32 %v3215, %v3459
        %v3461 = vpop.f32.mrb[0].mxu0
        %3462 = vmatprep.mubr.f32.mxu0 0.0
        %3463 = vmatmul.mubr.f32.gmra.mrb[0].mxu0 %v2062
        %v3464 = vpop.f32.mrb[0].mxu0
        %v3465 = vadd.f32 %v3220, %v3464
        %v3466 = vpop.f32.mrb[0].mxu0
        %3467 = vmatprep.mubr.f32.mxu0 0.0
        %3468 = vmatmul.mubr.f32.gmra.mrb[0].mxu0 %v2071
        %v3469 = vpop.f32.mrb[0].mxu0
        %v3470 = vadd.f32 %v3225, %v3469
        %v3471 = vpop.f32.mrb[0].mxu0
        %3472 = vmatprep.mubr.f32.mxu0 0.0
        %3473 = vmatmul.mubr.f32.gmra.mrb[0].mxu0 %v2080
        %v3474 = vpop.f32.mrb[0].mxu0
        %v3475 = vadd.f32 %v3230, %v3474
        %v3476 = vpop.f32.mrb[0].mxu0
        %3477 = vmatprep.mubr.f32.mxu0 0.0
        %3478 = vmatmul.mubr.f32.gmra.mrb[0].mxu0 %v2089
        %v3479 = vpop.f32.mrb[0].mxu0
        %v3480 = vadd.f32 %v3235, %v3479
        %v3481 = vpop.f32.mrb[0].mxu0
        %3482 = vmatprep.mubr.f32.mxu0 0.0
        %3483 = vmatmul.mubr.f32.gmra.mrb[0].mxu0 %v2098
        %v3484 = vpop.f32.mrb[0].mxu0
        %v3485 = vadd.f32 %v3240, %v3484
        %v3486 = vpop.f32.mrb[0].mxu0
        %3487 = vmatprep.mubr.f32.mxu0 0.0
        %3488 = vmatmul.mubr.f32.gmra.mrb[0].mxu0 %v2107
        %v3489 = vpop.f32.mrb[0].mxu0
        %v3490 = vadd.f32 %v3245, %v3489
        %v3491 = vpop.f32.mrb[0].mxu0
        %3492 = vmatprep.mubr.f32.mxu0 0.0
        %3493 = vmatmul.mubr.f32.gmra.mrb[0].mxu0 %v2116
        %v3494 = vpop.f32.mrb[0].mxu0
        %v3495 = vadd.f32 %v3250, %v3494
        %v3496 = vpop.f32.mrb[0].mxu0
        %3497 = vmatprep.mubr.f32.mxu0 0.0
        %3498 = vmatmul.mubr.f32.gmra.mrb[0].mxu0 %v2125
        %v3499 = vpop.f32.mrb[0].mxu0
        %v3500 = vadd.f32 %v3255, %v3499
        %v3501 = vpop.f32.mrb[0].mxu0
        %3502 = vmatprep.mubr.f32.mxu0 0.0
        %3503 = vmatmul.mubr.f32.gmra.mrb[0].mxu0 %v2134
        %v3504 = vpop.f32.mrb[0].mxu0
        %v3505 = vadd.f32 %v3260, %v3504
        %v3506 = vpop.f32.mrb[0].mxu0
        %3507 = vdwg.mxu0
        %v3508 = vmax.f32 %v3330, 0.0
        %v3509 = vmax.f32 %v3335, 0.0
        %v3510 = vmax.f32 %v3340, 0.0
        %v3511 = vmax.f32 %v3345, 0.0
        %v3512 = vmax.f32 %v3350, 0.0
        %v3513 = vmax.f32 %v3355, 0.0
        %v3514 = vmax.f32 %v3360, 0.0
        %v3515 = vmax.f32 %v3365, 0.0
        %v3516 = vmax.f32 %v3370, 0.0
        %v3517 = vmax.f32 %v3375, 0.0
        %v3518 = vmax.f32 %v3380, 0.0
        %v3519 = vmax.f32 %v3385, 0.0
        %v3520 = vmax.f32 %v3390, 0.0
        %v3521 = vmax.f32 %v3395, 0.0
        %v3522 = vmax.f32 %v3400, 0.0
        %v3523 = vmax.f32 %v3405, 0.0
        %v3524 = vmax.f32 %v3410, 0.0
        %v3525 = vmax.f32 %v3415, 0.0
        %v3526 = vmax.f32 %v3420, 0.0
        %v3527 = vmax.f32 %v3425, 0.0
        %v3528 = vmax.f32 %v3430, 0.0
        %v3529 = vmax.f32 %v3435, 0.0
        %v3530 = vmax.f32 %v3440, 0.0
        %v3531 = vmax.f32 %v3445, 0.0
        %v3532 = vmax.f32 %v3450, 0.0
        %v3533 = vmax.f32 %v3455, 0.0
        %v3534 = vmax.f32 %v3460, 0.0
        %v3535 = vmax.f32 %v3465, 0.0
        %v3536 = vmax.f32 %v3470, 0.0
        %v3537 = vmax.f32 %v3475, 0.0
        %v3538 = vmax.f32 %v3480, 0.0
        %v3539 = vmax.f32 %v3485, 0.0
        %v3540 = vmax.f32 %v3490, 0.0
        %v3541 = vmax.f32 %v3495, 0.0
        %v3542 = vmax.f32 %v3500, 0.0
        %v3543 = vmax.f32 %v3505, 0.0
        %v3544 = vlaneseq
        %v3545 = vshrl.u32 %v3544, 7
        %v3546 = vsub.s32 0, %v3545
        %v3547 = vrot.slane %v249, %v3546
        %v3548 = vadd.f32 %v3508, %v3547
        %v3549 = vadd.f32 %v3509, %v3547
        %v3550 = vadd.f32 %v3510, %v3547
        %v3551 = vadd.f32 %v3511, %v3547
        %v3552 = vadd.f32 %v3512, %v3547
        %v3553 = vadd.f32 %v3513, %v3547
        %v3554 = vadd.f32 %v3514, %v3547
        %v3555 = vadd.f32 %v3515, %v3547
        %v3556 = vadd.f32 %v3516, %v3547
        %v3557 = vadd.f32 %v3517, %v3547
        %v3558 = vadd.f32 %v3518, %v3547
        %v3559 = vadd.f32 %v3519, %v3547
        %v3560 = vadd.f32 %v3520, %v3547
        %v3561 = vadd.f32 %v3521, %v3547
        %v3562 = vadd.f32 %v3522, %v3547
        %v3563 = vadd.f32 %v3523, %v3547
        %v3564 = vadd.f32 %v3524, %v3547
        %v3565 = vadd.f32 %v3525, %v3547
        %v3566 = vadd.f32 %v3526, %v3547
        %v3567 = vadd.f32 %v3527, %v3547
        %v3568 = vadd.f32 %v3528, %v3547
        %v3569 = vadd.f32 %v3529, %v3547
        %v3570 = vadd.f32 %v3530, %v3547
        %v3571 = vadd.f32 %v3531, %v3547
        %v3572 = vadd.f32 %v3532, %v3547
        %v3573 = vadd.f32 %v3533, %v3547
        %v3574 = vadd.f32 %v3534, %v3547
        %v3575 = vadd.f32 %v3535, %v3547
        %v3576 = vadd.f32 %v3536, %v3547
        %v3577 = vadd.f32 %v3537, %v3547
        %v3578 = vadd.f32 %v3538, %v3547
        %v3579 = vadd.f32 %v3539, %v3547
        %v3580 = vadd.f32 %v3540, %v3547
        %v3581 = vadd.f32 %v3541, %v3547
        %v3582 = vadd.f32 %v3542, %v3547
        %v3583 = vadd.f32 %v3543, %v3547
        %v3584 = vsel %vm1055, %v3548, 0.0
        %v3585 = vsel %vm1056, %v3549, 0.0
        %v3586 = vsel %vm1057, %v3550, 0.0
        %v3587 = vsel %vm1058, %v3551, 0.0
        %v3588 = vsel %vm1059, %v3552, 0.0
        %v3589 = vsel %vm1060, %v3553, 0.0
        %v3590 = vsel %vm1061, %v3554, 0.0
        %v3591 = vsel %vm1062, %v3555, 0.0
        %v3592 = vsel %vm1063, %v3556, 0.0
        %v3593 = vsel %vm1064, %v3557, 0.0
        %v3594 = vsel %vm1065, %v3558, 0.0
        %v3595 = vsel %vm1066, %v3559, 0.0
        %v3596 = vsel %vm1067, %v3560, 0.0
        %v3597 = vsel %vm1068, %v3561, 0.0
        %v3598 = vsel %vm1069, %v3562, 0.0
        %v3599 = vsel %vm1070, %v3563, 0.0
        %v3600 = vsel %vm1071, %v3564, 0.0
        %v3601 = vsel %vm1072, %v3565, 0.0
        %v3602 = vsel %vm1073, %v3566, 0.0
        %v3603 = vsel %vm1074, %v3567, 0.0
        %v3604 = vsel %vm1075, %v3568, 0.0
        %v3605 = vsel %vm1076, %v3569, 0.0
        %v3606 = vsel %vm1077, %v3570, 0.0
        %v3607 = vsel %vm1078, %v3571, 0.0
        %v3608 = vsel %vm1079, %v3572, 0.0
        %v3609 = vsel %vm1080, %v3573, 0.0
        %v3610 = vsel %vm1081, %v3574, 0.0
        %v3611 = vsel %vm1082, %v3575, 0.0
        %v3612 = vsel %vm1083, %v3576, 0.0
        %v3613 = vsel %vm1084, %v3577, 0.0
        %v3614 = vsel %vm1085, %v3578, 0.0
        %v3615 = vsel %vm1086, %v3579, 0.0
        %v3616 = vsel %vm1087, %v3580, 0.0
        %v3617 = vsel %vm1088, %v3581, 0.0
        %v3618 = vsel %vm1089, %v3582, 0.0
        %v3619 = vsel %vm1090, %v3583, 0.0
        %3620 = vst [vmem:[#allocation2 + $0x18] sm:$0xff] %v3584
        %3621 = vst [vmem:[#allocation2 + $0x20] sm:$0xff] %v3585
        %3622 = vst [vmem:[#allocation2 + $0x28] sm:$0xff] %v3586
        %3623 = vst [vmem:[#allocation2 + $0x30] sm:$0xff] %v3587
        %3624 = vst [vmem:[#allocation2 + $0x38] sm:$0xff] %v3588
        %3625 = vst [vmem:[#allocation2 + $0x40] sm:$0xff] %v3589
        %3626 = vst [vmem:[#allocation2 + $0x48] sm:$0xff] %v3590
        %3627 = vst [vmem:[#allocation2 + $0x50] sm:$0xff] %v3591
        %3628 = vst [vmem:[#allocation2 + $0x58] sm:$0xff] %v3592
        %3629 = vst [vmem:[#allocation2 + $0x60] sm:$0xff] %v3593
        %3630 = vst [vmem:[#allocation2 + $0x68] sm:$0xff] %v3594
        %3631 = vst [vmem:[#allocation2 + $0x70] sm:$0xff] %v3595
        %3632 = vst [vmem:[#allocation2 + $0x78] sm:$0xff] %v3596
        %3633 = vst [vmem:[#allocation2 + $0x80] sm:$0xff] %v3597
        %3634 = vst [vmem:[#allocation2 + $0x88] sm:$0xff] %v3598
        %3635 = vst [vmem:[#allocation2 + $0x90] sm:$0xff] %v3599
        %3636 = vst [vmem:[#allocation2 + $0x98] sm:$0xff] %v3600
        %3637 = vst [vmem:[#allocation2 + $0xa0] sm:$0xff] %v3601
        %3638 = vst [vmem:[#allocation2 + $0xa8] sm:$0xff] %v3602
        %3639 = vst [vmem:[#allocation2 + $0xb0] sm:$0xff] %v3603
        %3640 = vst [vmem:[#allocation2 + $0xb8] sm:$0xff] %v3604
        %3641 = vst [vmem:[#allocation2 + $0xc0] sm:$0xff] %v3605
        %3642 = vst [vmem:[#allocation2 + $0xc8] sm:$0xff] %v3606
        %3643 = vst [vmem:[#allocation2 + $0xd0] sm:$0xff] %v3607
        %3644 = vst [vmem:[#allocation2 + $0xd8] sm:$0xff] %v3608
        %3645 = vst [vmem:[#allocation2 + $0xe0] sm:$0xff] %v3609
        %3646 = vst [vmem:[#allocation2 + $0xe8] sm:$0xff] %v3610
        %3647 = vst [vmem:[#allocation2 + $0xf0] sm:$0xff] %v3611
        %3648 = vst [vmem:[#allocation2 + $0xf8] sm:$0xff] %v3612
        %3649 = vst [vmem:[#allocation2 + $0x100] sm:$0xff] %v3613
        %3650 = vst [vmem:[#allocation2 + $0x108] sm:$0xff] %v3614
        %3651 = vst [vmem:[#allocation2 + $0x110] sm:$0xff] %v3615
        %3652 = vst [vmem:[#allocation2 + $0x118] sm:$0xff] %v3616
        %3653 = vst [vmem:[#allocation2 + $0x120] sm:$0xff] %v3617
        %3654 = vst [vmem:[#allocation2 + $0x128] sm:$0xff] %v3618
        %3655 = vst [vmem:[#allocation2 + $0x130] sm:$0xff] %v3619
        %v3656 = vld [vmem:[#allocation2 + $0x5] sm:$0xff]
        %v3657 = vld [vmem:[#allocation2 + $0xd] sm:$0xff]
        %v3658 = vld [vmem:[#allocation2 + $0x15] sm:$0xff]
        %v3659 = vld [vmem:[#allocation2 + $0x1d] sm:$0xff]
        %v3660 = vld [vmem:[#allocation2 + $0x25] sm:$0xff]
        %v3661 = vld [vmem:[#allocation2 + $0x2d] sm:$0xff]
        %v3662 = vld [vmem:[#allocation2 + $0x35] sm:$0xff]
        %v3663 = vld [vmem:[#allocation2 + $0x3d] sm:$0xff]
        %v3664 = vld [vmem:[#allocation2 + $0x45] sm:$0xff]
        %v3665 = vld [vmem:[#allocation2 + $0x4d] sm:$0xff]
        %v3666 = vld [vmem:[#allocation2 + $0x55] sm:$0xff]
        %v3667 = vld [vmem:[#allocation2 + $0x5d] sm:$0xff]
        %v3668 = vld [vmem:[#allocation2 + $0x65] sm:$0xff]
        %v3669 = vld [vmem:[#allocation2 + $0x6d] sm:$0xff]
        %v3670 = vld [vmem:[#allocation2 + $0x75] sm:$0xff]
        %v3671 = vld [vmem:[#allocation2 + $0x7d] sm:$0xff]
        %v3672 = vld [vmem:[#allocation2 + $0x85] sm:$0xff]
        %v3673 = vld [vmem:[#allocation2 + $0x8d] sm:$0xff]
        %v3674 = vld [vmem:[#allocation2 + $0x95] sm:$0xff]
        %v3675 = vld [vmem:[#allocation2 + $0x9d] sm:$0xff]
        %v3676 = vld [vmem:[#allocation2 + $0xa5] sm:$0xff]
        %v3677 = vld [vmem:[#allocation2 + $0xad] sm:$0xff]
        %v3678 = vld [vmem:[#allocation2 + $0xb5] sm:$0xff]
        %v3679 = vld [vmem:[#allocation2 + $0xbd] sm:$0xff]
        %v3680 = vld [vmem:[#allocation2 + $0xc5] sm:$0xff]
        %v3681 = vld [vmem:[#allocation2 + $0xcd] sm:$0xff]
        %v3682 = vld [vmem:[#allocation2 + $0xd5] sm:$0xff]
        %v3683 = vld [vmem:[#allocation2 + $0xdd] sm:$0xff]
        %v3684 = vld [vmem:[#allocation2 + $0xe5] sm:$0xff]
        %v3685 = vld [vmem:[#allocation2 + $0xed] sm:$0xff]
        %v3686 = vld [vmem:[#allocation2 + $0xf5] sm:$0xff]
        %v3687 = vld [vmem:[#allocation2 + $0xfd] sm:$0xff]
        %v3688 = vld [vmem:[#allocation2 + $0x105] sm:$0xff]
        %v3689 = vld [vmem:[#allocation2 + $0x10d] sm:$0xff]
        %v3690 = vld [vmem:[#allocation2 + $0x115] sm:$0xff]
        %v3691 = vld [vmem:[#allocation2 + $0x11d] sm:$0xff]
        %3692 = vst [vmem:[#allocation3] sm:$0xff] %v3656
        %3693 = vst [vmem:[#allocation3 + $0x48] sm:$0xff] %v3657
        %3694 = vst [vmem:[#allocation3 + $0x90] sm:$0xff] %v3658
        %3695 = vst [vmem:[#allocation3 + $0xd8] sm:$0xff] %v3659
        %3696 = vst [vmem:[#allocation3 + $0x120] sm:$0xff] %v3660
        %3697 = vst [vmem:[#allocation3 + $0x168] sm:$0xff] %v3661
        %3698 = vst [vmem:[#allocation3 + $0x1b0] sm:$0xff] %v3662
        %3699 = vst [vmem:[#allocation3 + $0x1f8] sm:$0xff] %v3663
        %3700 = vst [vmem:[#allocation3 + $0x240] sm:$0xff] %v3664
        %3701 = vst [vmem:[#allocation3 + $0x288] sm:$0xff] %v3665
        %3702 = vst [vmem:[#allocation3 + $0x2d0] sm:$0xff] %v3666
        %3703 = vst [vmem:[#allocation3 + $0x318] sm:$0xff] %v3667
        %3704 = vst [vmem:[#allocation3 + $0x360] sm:$0xff] %v3668
        %3705 = vst [vmem:[#allocation3 + $0x3a8] sm:$0xff] %v3669
        %3706 = vst [vmem:[#allocation3 + $0x3f0] sm:$0xff] %v3670
        %3707 = vst [vmem:[#allocation3 + $0x438] sm:$0xff] %v3671
        %3708 = vst [vmem:[#allocation3 + $0x480] sm:$0xff] %v3672
        %3709 = vst [vmem:[#allocation3 + $0x4c8] sm:$0xff] %v3673
        %3710 = vst [vmem:[#allocation3 + $0x510] sm:$0xff] %v3674
        %3711 = vst [vmem:[#allocation3 + $0x558] sm:$0xff] %v3675
        %3712 = vst [vmem:[#allocation3 + $0x5a0] sm:$0xff] %v3676
        %3713 = vst [vmem:[#allocation3 + $0x5e8] sm:$0xff] %v3677
        %3714 = vst [vmem:[#allocation3 + $0x630] sm:$0xff] %v3678
        %3715 = vst [vmem:[#allocation3 + $0x678] sm:$0xff] %v3679
        %3716 = vst [vmem:[#allocation3 + $0x6c0] sm:$0xff] %v3680
        %3717 = vst [vmem:[#allocation3 + $0x708] sm:$0xff] %v3681
        %3718 = vst [vmem:[#allocation3 + $0x750] sm:$0xff] %v3682
        %3719 = vst [vmem:[#allocation3 + $0x798] sm:$0xff] %v3683
        %3720 = vst [vmem:[#allocation3 + $0x7e0] sm:$0xff] %v3684
        %3721 = vst [vmem:[#allocation3 + $0x828] sm:$0xff] %v3685
        %3722 = vst [vmem:[#allocation3 + $0x870] sm:$0xff] %v3686
        %3723 = vst [vmem:[#allocation3 + $0x8b8] sm:$0xff] %v3687
        %3724 = vst [vmem:[#allocation3 + $0x900] sm:$0xff] %v3688
        %3725 = vst [vmem:[#allocation3 + $0x948] sm:$0xff] %v3689
        %3726 = vst [vmem:[#allocation3 + $0x990] sm:$0xff] %v3690
        %3727 = vst [vmem:[#allocation3 + $0x9d8] sm:$0xff] %v3691
        %v3728 = vld [vmem:[#allocation2 + $0x6] sm:$0xff]
        %v3729 = vld [vmem:[#allocation2 + $0xe] sm:$0xff]
        %v3730 = vld [vmem:[#allocation2 + $0x16] sm:$0xff]
        %v3731 = vld [vmem:[#allocation2 + $0x1e] sm:$0xff]
        %v3732 = vld [vmem:[#allocation2 + $0x26] sm:$0xff]
        %v3733 = vld [vmem:[#allocation2 + $0x2e] sm:$0xff]
        %v3734 = vld [vmem:[#allocation2 + $0x36] sm:$0xff]
        %v3735 = vld [vmem:[#allocation2 + $0x3e] sm:$0xff]
        %v3736 = vld [vmem:[#allocation2 + $0x46] sm:$0xff]
        %v3737 = vld [vmem:[#allocation2 + $0x4e] sm:$0xff]
        %v3738 = vld [vmem:[#allocation2 + $0x56] sm:$0xff]
        %v3739 = vld [vmem:[#allocation2 + $0x5e] sm:$0xff]
        %v3740 = vld [vmem:[#allocation2 + $0x66] sm:$0xff]
        %v3741 = vld [vmem:[#allocation2 + $0x6e] sm:$0xff]
        %v3742 = vld [vmem:[#allocation2 + $0x76] sm:$0xff]
        %v3743 = vld [vmem:[#allocation2 + $0x7e] sm:$0xff]
        %v3744 = vld [vmem:[#allocation2 + $0x86] sm:$0xff]
        %v3745 = vld [vmem:[#allocation2 + $0x8e] sm:$0xff]
        %v3746 = vld [vmem:[#allocation2 + $0x96] sm:$0xff]
        %v3747 = vld [vmem:[#allocation2 + $0x9e] sm:$0xff]
        %v3748 = vld [vmem:[#allocation2 + $0xa6] sm:$0xff]
        %v3749 = vld [vmem:[#allocation2 + $0xae] sm:$0xff]
        %v3750 = vld [vmem:[#allocation2 + $0xb6] sm:$0xff]
        %v3751 = vld [vmem:[#allocation2 + $0xbe] sm:$0xff]
        %v3752 = vld [vmem:[#allocation2 + $0xc6] sm:$0xff]
        %v3753 = vld [vmem:[#allocation2 + $0xce] sm:$0xff]
        %v3754 = vld [vmem:[#allocation2 + $0xd6] sm:$0xff]
        %v3755 = vld [vmem:[#allocation2 + $0xde] sm:$0xff]
        %v3756 = vld [vmem:[#allocation2 + $0xe6] sm:$0xff]
        %v3757 = vld [vmem:[#allocation2 + $0xee] sm:$0xff]
        %v3758 = vld [vmem:[#allocation2 + $0xf6] sm:$0xff]
        %v3759 = vld [vmem:[#allocation2 + $0xfe] sm:$0xff]
        %v3760 = vld [vmem:[#allocation2 + $0x106] sm:$0xff]
        %v3761 = vld [vmem:[#allocation2 + $0x10e] sm:$0xff]
        %v3762 = vld [vmem:[#allocation2 + $0x116] sm:$0xff]
        %v3763 = vld [vmem:[#allocation2 + $0x11e] sm:$0xff]
        %3764 = vst [vmem:[#allocation3 + $0x8] sm:$0xff] %v3728
        %3765 = vst [vmem:[#allocation3 + $0x50] sm:$0xff] %v3729
        %3766 = vst [vmem:[#allocation3 + $0x98] sm:$0xff] %v3730
        %3767 = vst [vmem:[#allocation3 + $0xe0] sm:$0xff] %v3731
        %3768 = vst [vmem:[#allocation3 + $0x128] sm:$0xff] %v3732
        %3769 = vst [vmem:[#allocation3 + $0x170] sm:$0xff] %v3733
        %3770 = vst [vmem:[#allocation3 + $0x1b8] sm:$0xff] %v3734
        %3771 = vst [vmem:[#allocation3 + $0x200] sm:$0xff] %v3735
        %3772 = vst [vmem:[#allocation3 + $0x248] sm:$0xff] %v3736
        %3773 = vst [vmem:[#allocation3 + $0x290] sm:$0xff] %v3737
        %3774 = vst [vmem:[#allocation3 + $0x2d8] sm:$0xff] %v3738
        %3775 = vst [vmem:[#allocation3 + $0x320] sm:$0xff] %v3739
        %3776 = vst [vmem:[#allocation3 + $0x368] sm:$0xff] %v3740
        %3777 = vst [vmem:[#allocation3 + $0x3b0] sm:$0xff] %v3741
        %3778 = vst [vmem:[#allocation3 + $0x3f8] sm:$0xff] %v3742
        %3779 = vst [vmem:[#allocation3 + $0x440] sm:$0xff] %v3743
        %3780 = vst [vmem:[#allocation3 + $0x488] sm:$0xff] %v3744
        %3781 = vst [vmem:[#allocation3 + $0x4d0] sm:$0xff] %v3745
        %3782 = vst [vmem:[#allocation3 + $0x518] sm:$0xff] %v3746
        %3783 = vst [vmem:[#allocation3 + $0x560] sm:$0xff] %v3747
        %3784 = vst [vmem:[#allocation3 + $0x5a8] sm:$0xff] %v3748
        %3785 = vst [vmem:[#allocation3 + $0x5f0] sm:$0xff] %v3749
        %3786 = vst [vmem:[#allocation3 + $0x638] sm:$0xff] %v3750
        %3787 = vst [vmem:[#allocation3 + $0x680] sm:$0xff] %v3751
        %3788 = vst [vmem:[#allocation3 + $0x6c8] sm:$0xff] %v3752
        %3789 = vst [vmem:[#allocation3 + $0x710] sm:$0xff] %v3753
        %3790 = vst [vmem:[#allocation3 + $0x758] sm:$0xff] %v3754
        %3791 = vst [vmem:[#allocation3 + $0x7a0] sm:$0xff] %v3755
        %3792 = vst [vmem:[#allocation3 + $0x7e8] sm:$0xff] %v3756
        %3793 = vst [vmem:[#allocation3 + $0x830] sm:$0xff] %v3757
        %3794 = vst [vmem:[#allocation3 + $0x878] sm:$0xff] %v3758
        %3795 = vst [vmem:[#allocation3 + $0x8c0] sm:$0xff] %v3759
        %3796 = vst [vmem:[#allocation3 + $0x908] sm:$0xff] %v3760
        %3797 = vst [vmem:[#allocation3 + $0x950] sm:$0xff] %v3761
        %3798 = vst [vmem:[#allocation3 + $0x998] sm:$0xff] %v3762
        %3799 = vst [vmem:[#allocation3 + $0x9e0] sm:$0xff] %v3763
        %v3800 = vld [vmem:[#allocation2 + $0x7] sm:$0xff]
        %v3801 = vld [vmem:[#allocation2 + $0xf] sm:$0xff]
        %v3802 = vld [vmem:[#allocation2 + $0x17] sm:$0xff]
        %v3803 = vld [vmem:[#allocation2 + $0x1f] sm:$0xff]
        %v3804 = vld [vmem:[#allocation2 + $0x27] sm:$0xff]
        %v3805 = vld [vmem:[#allocation2 + $0x2f] sm:$0xff]
        %v3806 = vld [vmem:[#allocation2 + $0x37] sm:$0xff]
        %v3807 = vld [vmem:[#allocation2 + $0x3f] sm:$0xff]
        %v3808 = vld [vmem:[#allocation2 + $0x47] sm:$0xff]
        %v3809 = vld [vmem:[#allocation2 + $0x4f] sm:$0xff]
        %v3810 = vld [vmem:[#allocation2 + $0x57] sm:$0xff]
        %v3811 = vld [vmem:[#allocation2 + $0x5f] sm:$0xff]
        %v3812 = vld [vmem:[#allocation2 + $0x67] sm:$0xff]
        %v3813 = vld [vmem:[#allocation2 + $0x6f] sm:$0xff]
        %v3814 = vld [vmem:[#allocation2 + $0x77] sm:$0xff]
        %v3815 = vld [vmem:[#allocation2 + $0x7f] sm:$0xff]
        %v3816 = vld [vmem:[#allocation2 + $0x87] sm:$0xff]
        %v3817 = vld [vmem:[#allocation2 + $0x8f] sm:$0xff]
        %v3818 = vld [vmem:[#allocation2 + $0x97] sm:$0xff]
        %v3819 = vld [vmem:[#allocation2 + $0x9f] sm:$0xff]
        %v3820 = vld [vmem:[#allocation2 + $0xa7] sm:$0xff]
        %v3821 = vld [vmem:[#allocation2 + $0xaf] sm:$0xff]
        %v3822 = vld [vmem:[#allocation2 + $0xb7] sm:$0xff]
        %v3823 = vld [vmem:[#allocation2 + $0xbf] sm:$0xff]
        %v3824 = vld [vmem:[#allocation2 + $0xc7] sm:$0xff]
        %v3825 = vld [vmem:[#allocation2 + $0xcf] sm:$0xff]
        %v3826 = vld [vmem:[#allocation2 + $0xd7] sm:$0xff]
        %v3827 = vld [vmem:[#allocation2 + $0xdf] sm:$0xff]
        %v3828 = vld [vmem:[#allocation2 + $0xe7] sm:$0xff]
        %v3829 = vld [vmem:[#allocation2 + $0xef] sm:$0xff]
        %v3830 = vld [vmem:[#allocation2 + $0xf7] sm:$0xff]
        %v3831 = vld [vmem:[#allocation2 + $0xff] sm:$0xff]
        %v3832 = vld [vmem:[#allocation2 + $0x107] sm:$0xff]
        %v3833 = vld [vmem:[#allocation2 + $0x10f] sm:$0xff]
        %v3834 = vld [vmem:[#allocation2 + $0x117] sm:$0xff]
        %v3835 = vld [vmem:[#allocation2 + $0x11f] sm:$0xff]
        %3836 = vst [vmem:[#allocation3 + $0x10] sm:$0xff] %v3800
        %3837 = vst [vmem:[#allocation3 + $0x58] sm:$0xff] %v3801
        %3838 = vst [vmem:[#allocation3 + $0xa0] sm:$0xff] %v3802
        %3839 = vst [vmem:[#allocation3 + $0xe8] sm:$0xff] %v3803
        %3840 = vst [vmem:[#allocation3 + $0x130] sm:$0xff] %v3804
        %3841 = vst [vmem:[#allocation3 + $0x178] sm:$0xff] %v3805
        %3842 = vst [vmem:[#allocation3 + $0x1c0] sm:$0xff] %v3806
        %3843 = vst [vmem:[#allocation3 + $0x208] sm:$0xff] %v3807
        %3844 = vst [vmem:[#allocation3 + $0x250] sm:$0xff] %v3808
        %3845 = vst [vmem:[#allocation3 + $0x298] sm:$0xff] %v3809
        %3846 = vst [vmem:[#allocation3 + $0x2e0] sm:$0xff] %v3810
        %3847 = vst [vmem:[#allocation3 + $0x328] sm:$0xff] %v3811
        %3848 = vst [vmem:[#allocation3 + $0x370] sm:$0xff] %v3812
        %3849 = vst [vmem:[#allocation3 + $0x3b8] sm:$0xff] %v3813
        %3850 = vst [vmem:[#allocation3 + $0x400] sm:$0xff] %v3814
        %3851 = vst [vmem:[#allocation3 + $0x448] sm:$0xff] %v3815
        %3852 = vst [vmem:[#allocation3 + $0x490] sm:$0xff] %v3816
        %3853 = vst [vmem:[#allocation3 + $0x4d8] sm:$0xff] %v3817
        %3854 = vst [vmem:[#allocation3 + $0x520] sm:$0xff] %v3818
        %3855 = vst [vmem:[#allocation3 + $0x568] sm:$0xff] %v3819
        %3856 = vst [vmem:[#allocation3 + $0x5b0] sm:$0xff] %v3820
        %3857 = vst [vmem:[#allocation3 + $0x5f8] sm:$0xff] %v3821
        %3858 = vst [vmem:[#allocation3 + $0x640] sm:$0xff] %v3822
        %3859 = vst [vmem:[#allocation3 + $0x688] sm:$0xff] %v3823
        %3860 = vst [vmem:[#allocation3 + $0x6d0] sm:$0xff] %v3824
        %3861 = vst [vmem:[#allocation3 + $0x718] sm:$0xff] %v3825
        %3862 = vst [vmem:[#allocation3 + $0x760] sm:$0xff] %v3826
        %3863 = vst [vmem:[#allocation3 + $0x7a8] sm:$0xff] %v3827
        %3864 = vst [vmem:[#allocation3 + $0x7f0] sm:$0xff] %v3828
        %3865 = vst [vmem:[#allocation3 + $0x838] sm:$0xff] %v3829
        %3866 = vst [vmem:[#allocation3 + $0x880] sm:$0xff] %v3830
        %3867 = vst [vmem:[#allocation3 + $0x8c8] sm:$0xff] %v3831
        %3868 = vst [vmem:[#allocation3 + $0x910] sm:$0xff] %v3832
        %3869 = vst [vmem:[#allocation3 + $0x958] sm:$0xff] %v3833
        %3870 = vst [vmem:[#allocation3 + $0x9a0] sm:$0xff] %v3834
        %3871 = vst [vmem:[#allocation3 + $0x9e8] sm:$0xff] %v3835
        %v3872 = vld [vmem:[#allocation2 + $0x17] sm:$0xff]
        %v3873 = vld [vmem:[#allocation2 + $0x1f] sm:$0xff]
        %v3874 = vld [vmem:[#allocation2 + $0x27] sm:$0xff]
        %v3875 = vld [vmem:[#allocation2 + $0x2f] sm:$0xff]
        %v3876 = vld [vmem:[#allocation2 + $0x37] sm:$0xff]
        %v3877 = vld [vmem:[#allocation2 + $0x3f] sm:$0xff]
        %v3878 = vld [vmem:[#allocation2 + $0x47] sm:$0xff]
        %v3879 = vld [vmem:[#allocation2 + $0x4f] sm:$0xff]
        %v3880 = vld [vmem:[#allocation2 + $0x57] sm:$0xff]
        %v3881 = vld [vmem:[#allocation2 + $0x5f] sm:$0xff]
        %v3882 = vld [vmem:[#allocation2 + $0x67] sm:$0xff]
        %v3883 = vld [vmem:[#allocation2 + $0x6f] sm:$0xff]
        %v3884 = vld [vmem:[#allocation2 + $0x77] sm:$0xff]
        %v3885 = vld [vmem:[#allocation2 + $0x7f] sm:$0xff]
        %v3886 = vld [vmem:[#allocation2 + $0x87] sm:$0xff]
        %v3887 = vld [vmem:[#allocation2 + $0x8f] sm:$0xff]
        %v3888 = vld [vmem:[#allocation2 + $0x97] sm:$0xff]
        %v3889 = vld [vmem:[#allocation2 + $0x9f] sm:$0xff]
        %v3890 = vld [vmem:[#allocation2 + $0xa7] sm:$0xff]
        %v3891 = vld [vmem:[#allocation2 + $0xaf] sm:$0xff]
        %v3892 = vld [vmem:[#allocation2 + $0xb7] sm:$0xff]
        %v3893 = vld [vmem:[#allocation2 + $0xbf] sm:$0xff]
        %v3894 = vld [vmem:[#allocation2 + $0xc7] sm:$0xff]
        %v3895 = vld [vmem:[#allocation2 + $0xcf] sm:$0xff]
        %v3896 = vld [vmem:[#allocation2 + $0xd7] sm:$0xff]
        %v3897 = vld [vmem:[#allocation2 + $0xdf] sm:$0xff]
        %v3898 = vld [vmem:[#allocation2 + $0xe7] sm:$0xff]
        %v3899 = vld [vmem:[#allocation2 + $0xef] sm:$0xff]
        %v3900 = vld [vmem:[#allocation2 + $0xf7] sm:$0xff]
        %v3901 = vld [vmem:[#allocation2 + $0xff] sm:$0xff]
        %v3902 = vld [vmem:[#allocation2 + $0x107] sm:$0xff]
        %v3903 = vld [vmem:[#allocation2 + $0x10f] sm:$0xff]
        %v3904 = vld [vmem:[#allocation2 + $0x117] sm:$0xff]
        %v3905 = vld [vmem:[#allocation2 + $0x11f] sm:$0xff]
        %v3906 = vld [vmem:[#allocation2 + $0x127] sm:$0xff]
        %v3907 = vld [vmem:[#allocation2 + $0x12f] sm:$0xff]
        %3908 = vst [vmem:[#allocation3 + $0x18] sm:$0xff] %v3872
        %3909 = vst [vmem:[#allocation3 + $0x60] sm:$0xff] %v3873
        %3910 = vst [vmem:[#allocation3 + $0xa8] sm:$0xff] %v3874
        %3911 = vst [vmem:[#allocation3 + $0xf0] sm:$0xff] %v3875
        %3912 = vst [vmem:[#allocation3 + $0x138] sm:$0xff] %v3876
        %3913 = vst [vmem:[#allocation3 + $0x180] sm:$0xff] %v3877
        %3914 = vst [vmem:[#allocation3 + $0x1c8] sm:$0xff] %v3878
        %3915 = vst [vmem:[#allocation3 + $0x210] sm:$0xff] %v3879
        %3916 = vst [vmem:[#allocation3 + $0x258] sm:$0xff] %v3880
        %3917 = vst [vmem:[#allocation3 + $0x2a0] sm:$0xff] %v3881
        %3918 = vst [vmem:[#allocation3 + $0x2e8] sm:$0xff] %v3882
        %3919 = vst [vmem:[#allocation3 + $0x330] sm:$0xff] %v3883
        %3920 = vst [vmem:[#allocation3 + $0x378] sm:$0xff] %v3884
        %3921 = vst [vmem:[#allocation3 + $0x3c0] sm:$0xff] %v3885
        %3922 = vst [vmem:[#allocation3 + $0x408] sm:$0xff] %v3886
        %3923 = vst [vmem:[#allocation3 + $0x450] sm:$0xff] %v3887
        %3924 = vst [vmem:[#allocation3 + $0x498] sm:$0xff] %v3888
        %3925 = vst [vmem:[#allocation3 + $0x4e0] sm:$0xff] %v3889
        %3926 = vst [vmem:[#allocation3 + $0x528] sm:$0xff] %v3890
        %3927 = vst [vmem:[#allocation3 + $0x570] sm:$0xff] %v3891
        %3928 = vst [vmem:[#allocation3 + $0x5b8] sm:$0xff] %v3892
        %3929 = vst [vmem:[#allocation3 + $0x600] sm:$0xff] %v3893
        %3930 = vst [vmem:[#allocation3 + $0x648] sm:$0xff] %v3894
        %3931 = vst [vmem:[#allocation3 + $0x690] sm:$0xff] %v3895
        %3932 = vst [vmem:[#allocation3 + $0x6d8] sm:$0xff] %v3896
        %3933 = vst [vmem:[#allocation3 + $0x720] sm:$0xff] %v3897
        %3934 = vst [vmem:[#allocation3 + $0x768] sm:$0xff] %v3898
        %3935 = vst [vmem:[#allocation3 + $0x7b0] sm:$0xff] %v3899
        %3936 = vst [vmem:[#allocation3 + $0x7f8] sm:$0xff] %v3900
        %3937 = vst [vmem:[#allocation3 + $0x840] sm:$0xff] %v3901
        %3938 = vst [vmem:[#allocation3 + $0x888] sm:$0xff] %v3902
        %3939 = vst [vmem:[#allocation3 + $0x8d0] sm:$0xff] %v3903
        %3940 = vst [vmem:[#allocation3 + $0x918] sm:$0xff] %v3904
        %3941 = vst [vmem:[#allocation3 + $0x960] sm:$0xff] %v3905
        %3942 = vst [vmem:[#allocation3 + $0x9a8] sm:$0xff] %v3906
        %3943 = vst [vmem:[#allocation3 + $0x9f0] sm:$0xff] %v3907
        %v3944 = vld [vmem:[#allocation2 + $0x18] sm:$0xff]
        %v3945 = vld [vmem:[#allocation2 + $0x20] sm:$0xff]
        %v3946 = vld [vmem:[#allocation2 + $0x28] sm:$0xff]
        %v3947 = vld [vmem:[#allocation2 + $0x30] sm:$0xff]
        %v3948 = vld [vmem:[#allocation2 + $0x38] sm:$0xff]
        %v3949 = vld [vmem:[#allocation2 + $0x40] sm:$0xff]
        %v3950 = vld [vmem:[#allocation2 + $0x48] sm:$0xff]
        %v3951 = vld [vmem:[#allocation2 + $0x50] sm:$0xff]
        %v3952 = vld [vmem:[#allocation2 + $0x58] sm:$0xff]
        %v3953 = vld [vmem:[#allocation2 + $0x60] sm:$0xff]
        %v3954 = vld [vmem:[#allocation2 + $0x68] sm:$0xff]
        %v3955 = vld [vmem:[#allocation2 + $0x70] sm:$0xff]
        %v3956 = vld [vmem:[#allocation2 + $0x78] sm:$0xff]
        %v3957 = vld [vmem:[#allocation2 + $0x80] sm:$0xff]
        %v3958 = vld [vmem:[#allocation2 + $0x88] sm:$0xff]
        %v3959 = vld [vmem:[#allocation2 + $0x90] sm:$0xff]
        %v3960 = vld [vmem:[#allocation2 + $0x98] sm:$0xff]
        %v3961 = vld [vmem:[#allocation2 + $0xa0] sm:$0xff]
        %v3962 = vld [vmem:[#allocation2 + $0xa8] sm:$0xff]
        %v3963 = vld [vmem:[#allocation2 + $0xb0] sm:$0xff]
        %v3964 = vld [vmem:[#allocation2 + $0xb8] sm:$0xff]
        %v3965 = vld [vmem:[#allocation2 + $0xc0] sm:$0xff]
        %v3966 = vld [vmem:[#allocation2 + $0xc8] sm:$0xff]
        %v3967 = vld [vmem:[#allocation2 + $0xd0] sm:$0xff]
        %v3968 = vld [vmem:[#allocation2 + $0xd8] sm:$0xff]
        %v3969 = vld [vmem:[#allocation2 + $0xe0] sm:$0xff]
        %v3970 = vld [vmem:[#allocation2 + $0xe8] sm:$0xff]
        %v3971 = vld [vmem:[#allocation2 + $0xf0] sm:$0xff]
        %v3972 = vld [vmem:[#allocation2 + $0xf8] sm:$0xff]
        %v3973 = vld [vmem:[#allocation2 + $0x100] sm:$0xff]
        %v3974 = vld [vmem:[#allocation2 + $0x108] sm:$0xff]
        %v3975 = vld [vmem:[#allocation2 + $0x110] sm:$0xff]
        %v3976 = vld [vmem:[#allocation2 + $0x118] sm:$0xff]
        %v3977 = vld [vmem:[#allocation2 + $0x120] sm:$0xff]
        %v3978 = vld [vmem:[#allocation2 + $0x128] sm:$0xff]
        %v3979 = vld [vmem:[#allocation2 + $0x130] sm:$0xff]
        %3980 = vst [vmem:[#allocation3 + $0x20] sm:$0xff] %v3944
        %3981 = vst [vmem:[#allocation3 + $0x68] sm:$0xff] %v3945
        %3982 = vst [vmem:[#allocation3 + $0xb0] sm:$0xff] %v3946
        %3983 = vst [vmem:[#allocation3 + $0xf8] sm:$0xff] %v3947
        %3984 = vst [vmem:[#allocation3 + $0x140] sm:$0xff] %v3948
        %3985 = vst [vmem:[#allocation3 + $0x188] sm:$0xff] %v3949
        %3986 = vst [vmem:[#allocation3 + $0x1d0] sm:$0xff] %v3950
        %3987 = vst [vmem:[#allocation3 + $0x218] sm:$0xff] %v3951
        %3988 = vst [vmem:[#allocation3 + $0x260] sm:$0xff] %v3952
        %3989 = vst [vmem:[#allocation3 + $0x2a8] sm:$0xff] %v3953
        %3990 = vst [vmem:[#allocation3 + $0x2f0] sm:$0xff] %v3954
        %3991 = vst [vmem:[#allocation3 + $0x338] sm:$0xff] %v3955
        %3992 = vst [vmem:[#allocation3 + $0x380] sm:$0xff] %v3956
        %3993 = vst [vmem:[#allocation3 + $0x3c8] sm:$0xff] %v3957
        %3994 = vst [vmem:[#allocation3 + $0x410] sm:$0xff] %v3958
        %3995 = vst [vmem:[#allocation3 + $0x458] sm:$0xff] %v3959
        %3996 = vst [vmem:[#allocation3 + $0x4a0] sm:$0xff] %v3960
        %3997 = vst [vmem:[#allocation3 + $0x4e8] sm:$0xff] %v3961
        %3998 = vst [vmem:[#allocation3 + $0x530] sm:$0xff] %v3962
        %3999 = vst [vmem:[#allocation3 + $0x578] sm:$0xff] %v3963
        %4000 = vst [vmem:[#allocation3 + $0x5c0] sm:$0xff] %v3964
        %4001 = vst [vmem:[#allocation3 + $0x608] sm:$0xff] %v3965
        %4002 = vst [vmem:[#allocation3 + $0x650] sm:$0xff] %v3966
        %4003 = vst [vmem:[#allocation3 + $0x698] sm:$0xff] %v3967
        %4004 = vst [vmem:[#allocation3 + $0x6e0] sm:$0xff] %v3968
        %4005 = vst [vmem:[#allocation3 + $0x728] sm:$0xff] %v3969
        %4006 = vst [vmem:[#allocation3 + $0x770] sm:$0xff] %v3970
        %4007 = vst [vmem:[#allocation3 + $0x7b8] sm:$0xff] %v3971
        %4008 = vst [vmem:[#allocation3 + $0x800] sm:$0xff] %v3972
        %4009 = vst [vmem:[#allocation3 + $0x848] sm:$0xff] %v3973
        %4010 = vst [vmem:[#allocation3 + $0x890] sm:$0xff] %v3974
        %4011 = vst [vmem:[#allocation3 + $0x8d8] sm:$0xff] %v3975
        %4012 = vst [vmem:[#allocation3 + $0x920] sm:$0xff] %v3976
        %4013 = vst [vmem:[#allocation3 + $0x968] sm:$0xff] %v3977
        %4014 = vst [vmem:[#allocation3 + $0x9b0] sm:$0xff] %v3978
        %4015 = vst [vmem:[#allocation3 + $0x9f8] sm:$0xff] %v3979
        %v4016 = vld [vmem:[#allocation2 + $0x19] sm:$0xff]
        %v4017 = vld [vmem:[#allocation2 + $0x21] sm:$0xff]
        %v4018 = vld [vmem:[#allocation2 + $0x29] sm:$0xff]
        %v4019 = vld [vmem:[#allocation2 + $0x31] sm:$0xff]
        %v4020 = vld [vmem:[#allocation2 + $0x39] sm:$0xff]
        %v4021 = vld [vmem:[#allocation2 + $0x41] sm:$0xff]
        %v4022 = vld [vmem:[#allocation2 + $0x49] sm:$0xff]
        %v4023 = vld [vmem:[#allocation2 + $0x51] sm:$0xff]
        %v4024 = vld [vmem:[#allocation2 + $0x59] sm:$0xff]
        %v4025 = vld [vmem:[#allocation2 + $0x61] sm:$0xff]
        %v4026 = vld [vmem:[#allocation2 + $0x69] sm:$0xff]
        %v4027 = vld [vmem:[#allocation2 + $0x71] sm:$0xff]
        %v4028 = vld [vmem:[#allocation2 + $0x79] sm:$0xff]
        %v4029 = vld [vmem:[#allocation2 + $0x81] sm:$0xff]
        %v4030 = vld [vmem:[#allocation2 + $0x89] sm:$0xff]
        %v4031 = vld [vmem:[#allocation2 + $0x91] sm:$0xff]
        %v4032 = vld [vmem:[#allocation2 + $0x99] sm:$0xff]
        %v4033 = vld [vmem:[#allocation2 + $0xa1] sm:$0xff]
        %v4034 = vld [vmem:[#allocation2 + $0xa9] sm:$0xff]
        %v4035 = vld [vmem:[#allocation2 + $0xb1] sm:$0xff]
        %v4036 = vld [vmem:[#allocation2 + $0xb9] sm:$0xff]
        %v4037 = vld [vmem:[#allocation2 + $0xc1] sm:$0xff]
        %v4038 = vld [vmem:[#allocation2 + $0xc9] sm:$0xff]
        %v4039 = vld [vmem:[#allocation2 + $0xd1] sm:$0xff]
        %v4040 = vld [vmem:[#allocation2 + $0xd9] sm:$0xff]
        %v4041 = vld [vmem:[#allocation2 + $0xe1] sm:$0xff]
        %v4042 = vld [vmem:[#allocation2 + $0xe9] sm:$0xff]
        %v4043 = vld [vmem:[#allocation2 + $0xf1] sm:$0xff]
        %v4044 = vld [vmem:[#allocation2 + $0xf9] sm:$0xff]
        %v4045 = vld [vmem:[#allocation2 + $0x101] sm:$0xff]
        %v4046 = vld [vmem:[#allocation2 + $0x109] sm:$0xff]
        %v4047 = vld [vmem:[#allocation2 + $0x111] sm:$0xff]
        %v4048 = vld [vmem:[#allocation2 + $0x119] sm:$0xff]
        %v4049 = vld [vmem:[#allocation2 + $0x121] sm:$0xff]
        %v4050 = vld [vmem:[#allocation2 + $0x129] sm:$0xff]
        %v4051 = vld [vmem:[#allocation2 + $0x131] sm:$0xff]
        %4052 = vst [vmem:[#allocation3 + $0x28] sm:$0xff] %v4016
        %4053 = vst [vmem:[#allocation3 + $0x70] sm:$0xff] %v4017
        %4054 = vst [vmem:[#allocation3 + $0xb8] sm:$0xff] %v4018
        %4055 = vst [vmem:[#allocation3 + $0x100] sm:$0xff] %v4019
        %4056 = vst [vmem:[#allocation3 + $0x148] sm:$0xff] %v4020
        %4057 = vst [vmem:[#allocation3 + $0x190] sm:$0xff] %v4021
        %4058 = vst [vmem:[#allocation3 + $0x1d8] sm:$0xff] %v4022
        %4059 = vst [vmem:[#allocation3 + $0x220] sm:$0xff] %v4023
        %4060 = vst [vmem:[#allocation3 + $0x268] sm:$0xff] %v4024
        %4061 = vst [vmem:[#allocation3 + $0x2b0] sm:$0xff] %v4025
        %4062 = vst [vmem:[#allocation3 + $0x2f8] sm:$0xff] %v4026
        %4063 = vst [vmem:[#allocation3 + $0x340] sm:$0xff] %v4027
        %4064 = vst [vmem:[#allocation3 + $0x388] sm:$0xff] %v4028
        %4065 = vst [vmem:[#allocation3 + $0x3d0] sm:$0xff] %v4029
        %4066 = vst [vmem:[#allocation3 + $0x418] sm:$0xff] %v4030
        %4067 = vst [vmem:[#allocation3 + $0x460] sm:$0xff] %v4031
        %4068 = vst [vmem:[#allocation3 + $0x4a8] sm:$0xff] %v4032
        %4069 = vst [vmem:[#allocation3 + $0x4f0] sm:$0xff] %v4033
        %4070 = vst [vmem:[#allocation3 + $0x538] sm:$0xff] %v4034
        %4071 = vst [vmem:[#allocation3 + $0x580] sm:$0xff] %v4035
        %4072 = vst [vmem:[#allocation3 + $0x5c8] sm:$0xff] %v4036
        %4073 = vst [vmem:[#allocation3 + $0x610] sm:$0xff] %v4037
        %4074 = vst [vmem:[#allocation3 + $0x658] sm:$0xff] %v4038
        %4075 = vst [vmem:[#allocation3 + $0x6a0] sm:$0xff] %v4039
        %4076 = vst [vmem:[#allocation3 + $0x6e8] sm:$0xff] %v4040
        %4077 = vst [vmem:[#allocation3 + $0x730] sm:$0xff] %v4041
        %4078 = vst [vmem:[#allocation3 + $0x778] sm:$0xff] %v4042
        %4079 = vst [vmem:[#allocation3 + $0x7c0] sm:$0xff] %v4043
        %4080 = vst [vmem:[#allocation3 + $0x808] sm:$0xff] %v4044
        %4081 = vst [vmem:[#allocation3 + $0x850] sm:$0xff] %v4045
        %4082 = vst [vmem:[#allocation3 + $0x898] sm:$0xff] %v4046
        %4083 = vst [vmem:[#allocation3 + $0x8e0] sm:$0xff] %v4047
        %4084 = vst [vmem:[#allocation3 + $0x928] sm:$0xff] %v4048
        %4085 = vst [vmem:[#allocation3 + $0x970] sm:$0xff] %v4049
        %4086 = vst [vmem:[#allocation3 + $0x9b8] sm:$0xff] %v4050
        %4087 = vst [vmem:[#allocation3 + $0xa00] sm:$0xff] %v4051
        %v4088 = vld [vmem:[#allocation2 + $0x29] sm:$0xff]
        %v4089 = vld [vmem:[#allocation2 + $0x31] sm:$0xff]
        %v4090 = vld [vmem:[#allocation2 + $0x39] sm:$0xff]
        %v4091 = vld [vmem:[#allocation2 + $0x41] sm:$0xff]
        %v4092 = vld [vmem:[#allocation2 + $0x49] sm:$0xff]
        %v4093 = vld [vmem:[#allocation2 + $0x51] sm:$0xff]
        %v4094 = vld [vmem:[#allocation2 + $0x59] sm:$0xff]
        %v4095 = vld [vmem:[#allocation2 + $0x61] sm:$0xff]
        %v4096 = vld [vmem:[#allocation2 + $0x69] sm:$0xff]
        %v4097 = vld [vmem:[#allocation2 + $0x71] sm:$0xff]
        %v4098 = vld [vmem:[#allocation2 + $0x79] sm:$0xff]
        %v4099 = vld [vmem:[#allocation2 + $0x81] sm:$0xff]
        %v4100 = vld [vmem:[#allocation2 + $0x89] sm:$0xff]
        %v4101 = vld [vmem:[#allocation2 + $0x91] sm:$0xff]
        %v4102 = vld [vmem:[#allocation2 + $0x99] sm:$0xff]
        %v4103 = vld [vmem:[#allocation2 + $0xa1] sm:$0xff]
        %v4104 = vld [vmem:[#allocation2 + $0xa9] sm:$0xff]
        %v4105 = vld [vmem:[#allocation2 + $0xb1] sm:$0xff]
        %v4106 = vld [vmem:[#allocation2 + $0xb9] sm:$0xff]
        %v4107 = vld [vmem:[#allocation2 + $0xc1] sm:$0xff]
        %v4108 = vld [vmem:[#allocation2 + $0xc9] sm:$0xff]
        %v4109 = vld [vmem:[#allocation2 + $0xd1] sm:$0xff]
        %v4110 = vld [vmem:[#allocation2 + $0xd9] sm:$0xff]
        %v4111 = vld [vmem:[#allocation2 + $0xe1] sm:$0xff]
        %v4112 = vld [vmem:[#allocation2 + $0xe9] sm:$0xff]
        %v4113 = vld [vmem:[#allocation2 + $0xf1] sm:$0xff]
        %v4114 = vld [vmem:[#allocation2 + $0xf9] sm:$0xff]
        %v4115 = vld [vmem:[#allocation2 + $0x101] sm:$0xff]
        %v4116 = vld [vmem:[#allocation2 + $0x109] sm:$0xff]
        %v4117 = vld [vmem:[#allocation2 + $0x111] sm:$0xff]
        %v4118 = vld [vmem:[#allocation2 + $0x119] sm:$0xff]
        %v4119 = vld [vmem:[#allocation2 + $0x121] sm:$0xff]
        %v4120 = vld [vmem:[#allocation2 + $0x129] sm:$0xff]
        %v4121 = vld [vmem:[#allocation2 + $0x131] sm:$0xff]
        %v4122 = vld [vmem:[#allocation2 + $0x139] sm:$0xff]
        %v4123 = vld [vmem:[#allocation2 + $0x141] sm:$0xff]
        %4124 = vst [vmem:[#allocation3 + $0x30] sm:$0xff] %v4088
        %4125 = vst [vmem:[#allocation3 + $0x78] sm:$0xff] %v4089
        %4126 = vst [vmem:[#allocation3 + $0xc0] sm:$0xff] %v4090
        %4127 = vst [vmem:[#allocation3 + $0x108] sm:$0xff] %v4091
        %4128 = vst [vmem:[#allocation3 + $0x150] sm:$0xff] %v4092
        %4129 = vst [vmem:[#allocation3 + $0x198] sm:$0xff] %v4093
        %4130 = vst [vmem:[#allocation3 + $0x1e0] sm:$0xff] %v4094
        %4131 = vst [vmem:[#allocation3 + $0x228] sm:$0xff] %v4095
        %4132 = vst [vmem:[#allocation3 + $0x270] sm:$0xff] %v4096
        %4133 = vst [vmem:[#allocation3 + $0x2b8] sm:$0xff] %v4097
        %4134 = vst [vmem:[#allocation3 + $0x300] sm:$0xff] %v4098
        %4135 = vst [vmem:[#allocation3 + $0x348] sm:$0xff] %v4099
        %4136 = vst [vmem:[#allocation3 + $0x390] sm:$0xff] %v4100
        %4137 = vst [vmem:[#allocation3 + $0x3d8] sm:$0xff] %v4101
        %4138 = vst [vmem:[#allocation3 + $0x420] sm:$0xff] %v4102
        %4139 = vst [vmem:[#allocation3 + $0x468] sm:$0xff] %v4103
        %4140 = vst [vmem:[#allocation3 + $0x4b0] sm:$0xff] %v4104
        %4141 = vst [vmem:[#allocation3 + $0x4f8] sm:$0xff] %v4105
        %4142 = vst [vmem:[#allocation3 + $0x540] sm:$0xff] %v4106
        %4143 = vst [vmem:[#allocation3 + $0x588] sm:$0xff] %v4107
        %4144 = vst [vmem:[#allocation3 + $0x5d0] sm:$0xff] %v4108
        %4145 = vst [vmem:[#allocation3 + $0x618] sm:$0xff] %v4109
        %4146 = vst [vmem:[#allocation3 + $0x660] sm:$0xff] %v4110
        %4147 = vst [vmem:[#allocation3 + $0x6a8] sm:$0xff] %v4111
        %4148 = vst [vmem:[#allocation3 + $0x6f0] sm:$0xff] %v4112
        %4149 = vst [vmem:[#allocation3 + $0x738] sm:$0xff] %v4113
        %4150 = vst [vmem:[#allocation3 + $0x780] sm:$0xff] %v4114
        %4151 = vst [vmem:[#allocation3 + $0x7c8] sm:$0xff] %v4115
        %4152 = vst [vmem:[#allocation3 + $0x810] sm:$0xff] %v4116
        %4153 = vst [vmem:[#allocation3 + $0x858] sm:$0xff] %v4117
        %4154 = vst [vmem:[#allocation3 + $0x8a0] sm:$0xff] %v4118
        %4155 = vst [vmem:[#allocation3 + $0x8e8] sm:$0xff] %v4119
        %4156 = vst [vmem:[#allocation3 + $0x930] sm:$0xff] %v4120
        %4157 = vst [vmem:[#allocation3 + $0x978] sm:$0xff] %v4121
        %4158 = vst [vmem:[#allocation3 + $0x9c0] sm:$0xff] %v4122
        %4159 = vst [vmem:[#allocation3 + $0xa08] sm:$0xff] %v4123
        %v4160 = vld [vmem:[#allocation2 + $0x2a] sm:$0xff]
        %v4161 = vld [vmem:[#allocation2 + $0x32] sm:$0xff]
        %v4162 = vld [vmem:[#allocation2 + $0x3a] sm:$0xff]
        %v4163 = vld [vmem:[#allocation2 + $0x42] sm:$0xff]
        %v4164 = vld [vmem:[#allocation2 + $0x4a] sm:$0xff]
        %v4165 = vld [vmem:[#allocation2 + $0x52] sm:$0xff]
        %v4166 = vld [vmem:[#allocation2 + $0x5a] sm:$0xff]
        %v4167 = vld [vmem:[#allocation2 + $0x62] sm:$0xff]
        %v4168 = vld [vmem:[#allocation2 + $0x6a] sm:$0xff]
        %v4169 = vld [vmem:[#allocation2 + $0x72] sm:$0xff]
        %v4170 = vld [vmem:[#allocation2 + $0x7a] sm:$0xff]
        %v4171 = vld [vmem:[#allocation2 + $0x82] sm:$0xff]
        %v4172 = vld [vmem:[#allocation2 + $0x8a] sm:$0xff]
        %v4173 = vld [vmem:[#allocation2 + $0x92] sm:$0xff]
        %v4174 = vld [vmem:[#allocation2 + $0x9a] sm:$0xff]
        %v4175 = vld [vmem:[#allocation2 + $0xa2] sm:$0xff]
        %v4176 = vld [vmem:[#allocation2 + $0xaa] sm:$0xff]
        %v4177 = vld [vmem:[#allocation2 + $0xb2] sm:$0xff]
        %v4178 = vld [vmem:[#allocation2 + $0xba] sm:$0xff]
        %v4179 = vld [vmem:[#allocation2 + $0xc2] sm:$0xff]
        %v4180 = vld [vmem:[#allocation2 + $0xca] sm:$0xff]
        %v4181 = vld [vmem:[#allocation2 + $0xd2] sm:$0xff]
        %v4182 = vld [vmem:[#allocation2 + $0xda] sm:$0xff]
        %v4183 = vld [vmem:[#allocation2 + $0xe2] sm:$0xff]
        %v4184 = vld [vmem:[#allocation2 + $0xea] sm:$0xff]
        %v4185 = vld [vmem:[#allocation2 + $0xf2] sm:$0xff]
        %v4186 = vld [vmem:[#allocation2 + $0xfa] sm:$0xff]
        %v4187 = vld [vmem:[#allocation2 + $0x102] sm:$0xff]
        %v4188 = vld [vmem:[#allocation2 + $0x10a] sm:$0xff]
        %v4189 = vld [vmem:[#allocation2 + $0x112] sm:$0xff]
        %v4190 = vld [vmem:[#allocation2 + $0x11a] sm:$0xff]
        %v4191 = vld [vmem:[#allocation2 + $0x122] sm:$0xff]
        %v4192 = vld [vmem:[#allocation2 + $0x12a] sm:$0xff]
        %v4193 = vld [vmem:[#allocation2 + $0x132] sm:$0xff]
        %v4194 = vld [vmem:[#allocation2 + $0x13a] sm:$0xff]
        %v4195 = vld [vmem:[#allocation2 + $0x142] sm:$0xff]
        %4196 = vst [vmem:[#allocation3 + $0x38] sm:$0xff] %v4160
        %4197 = vst [vmem:[#allocation3 + $0x80] sm:$0xff] %v4161
        %4198 = vst [vmem:[#allocation3 + $0xc8] sm:$0xff] %v4162
        %4199 = vst [vmem:[#allocation3 + $0x110] sm:$0xff] %v4163
        %4200 = vst [vmem:[#allocation3 + $0x158] sm:$0xff] %v4164
        %4201 = vst [vmem:[#allocation3 + $0x1a0] sm:$0xff] %v4165
        %4202 = vst [vmem:[#allocation3 + $0x1e8] sm:$0xff] %v4166
        %4203 = vst [vmem:[#allocation3 + $0x230] sm:$0xff] %v4167
        %4204 = vst [vmem:[#allocation3 + $0x278] sm:$0xff] %v4168
        %4205 = vst [vmem:[#allocation3 + $0x2c0] sm:$0xff] %v4169
        %4206 = vst [vmem:[#allocation3 + $0x308] sm:$0xff] %v4170
        %4207 = vst [vmem:[#allocation3 + $0x350] sm:$0xff] %v4171
        %4208 = vst [vmem:[#allocation3 + $0x398] sm:$0xff] %v4172
        %4209 = vst [vmem:[#allocation3 + $0x3e0] sm:$0xff] %v4173
        %4210 = vst [vmem:[#allocation3 + $0x428] sm:$0xff] %v4174
        %4211 = vst [vmem:[#allocation3 + $0x470] sm:$0xff] %v4175
        %4212 = vst [vmem:[#allocation3 + $0x4b8] sm:$0xff] %v4176
        %4213 = vst [vmem:[#allocation3 + $0x500] sm:$0xff] %v4177
        %4214 = vst [vmem:[#allocation3 + $0x548] sm:$0xff] %v4178
        %4215 = vst [vmem:[#allocation3 + $0x590] sm:$0xff] %v4179
        %4216 = vst [vmem:[#allocation3 + $0x5d8] sm:$0xff] %v4180
        %4217 = vst [vmem:[#allocation3 + $0x620] sm:$0xff] %v4181
        %4218 = vst [vmem:[#allocation3 + $0x668] sm:$0xff] %v4182
        %4219 = vst [vmem:[#allocation3 + $0x6b0] sm:$0xff] %v4183
        %4220 = vst [vmem:[#allocation3 + $0x6f8] sm:$0xff] %v4184
        %4221 = vst [vmem:[#allocation3 + $0x740] sm:$0xff] %v4185
        %4222 = vst [vmem:[#allocation3 + $0x788] sm:$0xff] %v4186
        %4223 = vst [vmem:[#allocation3 + $0x7d0] sm:$0xff] %v4187
        %4224 = vst [vmem:[#allocation3 + $0x818] sm:$0xff] %v4188
        %4225 = vst [vmem:[#allocation3 + $0x860] sm:$0xff] %v4189
        %4226 = vst [vmem:[#allocation3 + $0x8a8] sm:$0xff] %v4190
        %4227 = vst [vmem:[#allocation3 + $0x8f0] sm:$0xff] %v4191
        %4228 = vst [vmem:[#allocation3 + $0x938] sm:$0xff] %v4192
        %4229 = vst [vmem:[#allocation3 + $0x980] sm:$0xff] %v4193
        %4230 = vst [vmem:[#allocation3 + $0x9c8] sm:$0xff] %v4194
        %4231 = vst [vmem:[#allocation3 + $0xa10] sm:$0xff] %v4195
        %v4232 = vld [vmem:[#allocation2 + $0x2b] sm:$0xff]
        %v4233 = vld [vmem:[#allocation2 + $0x33] sm:$0xff]
        %v4234 = vld [vmem:[#allocation2 + $0x3b] sm:$0xff]
        %v4235 = vld [vmem:[#allocation2 + $0x43] sm:$0xff]
        %v4236 = vld [vmem:[#allocation2 + $0x4b] sm:$0xff]
        %v4237 = vld [vmem:[#allocation2 + $0x53] sm:$0xff]
        %v4238 = vld [vmem:[#allocation2 + $0x5b] sm:$0xff]
        %v4239 = vld [vmem:[#allocation2 + $0x63] sm:$0xff]
        %v4240 = vld [vmem:[#allocation2 + $0x6b] sm:$0xff]
        %v4241 = vld [vmem:[#allocation2 + $0x73] sm:$0xff]
        %v4242 = vld [vmem:[#allocation2 + $0x7b] sm:$0xff]
        %v4243 = vld [vmem:[#allocation2 + $0x83] sm:$0xff]
        %v4244 = vld [vmem:[#allocation2 + $0x8b] sm:$0xff]
        %v4245 = vld [vmem:[#allocation2 + $0x93] sm:$0xff]
        %v4246 = vld [vmem:[#allocation2 + $0x9b] sm:$0xff]
        %v4247 = vld [vmem:[#allocation2 + $0xa3] sm:$0xff]
        %v4248 = vld [vmem:[#allocation2 + $0xab] sm:$0xff]
        %v4249 = vld [vmem:[#allocation2 + $0xb3] sm:$0xff]
        %v4250 = vld [vmem:[#allocation2 + $0xbb] sm:$0xff]
        %v4251 = vld [vmem:[#allocation2 + $0xc3] sm:$0xff]
        %v4252 = vld [vmem:[#allocation2 + $0xcb] sm:$0xff]
        %v4253 = vld [vmem:[#allocation2 + $0xd3] sm:$0xff]
        %v4254 = vld [vmem:[#allocation2 + $0xdb] sm:$0xff]
        %v4255 = vld [vmem:[#allocation2 + $0xe3] sm:$0xff]
        %v4256 = vld [vmem:[#allocation2 + $0xeb] sm:$0xff]
        %v4257 = vld [vmem:[#allocation2 + $0xf3] sm:$0xff]
        %v4258 = vld [vmem:[#allocation2 + $0xfb] sm:$0xff]
        %v4259 = vld [vmem:[#allocation2 + $0x103] sm:$0xff]
        %v4260 = vld [vmem:[#allocation2 + $0x10b] sm:$0xff]
        %v4261 = vld [vmem:[#allocation2 + $0x113] sm:$0xff]
        %v4262 = vld [vmem:[#allocation2 + $0x11b] sm:$0xff]
        %v4263 = vld [vmem:[#allocation2 + $0x123] sm:$0xff]
        %v4264 = vld [vmem:[#allocation2 + $0x12b] sm:$0xff]
        %v4265 = vld [vmem:[#allocation2 + $0x133] sm:$0xff]
        %v4266 = vld [vmem:[#allocation2 + $0x13b] sm:$0xff]
        %v4267 = vld [vmem:[#allocation2 + $0x143] sm:$0xff]
        %4268 = vst [vmem:[#allocation3 + $0x40] sm:$0xff] %v4232
        %4269 = vst [vmem:[#allocation3 + $0x88] sm:$0xff] %v4233
        %4270 = vst [vmem:[#allocation3 + $0xd0] sm:$0xff] %v4234
        %4271 = vst [vmem:[#allocation3 + $0x118] sm:$0xff] %v4235
        %4272 = vst [vmem:[#allocation3 + $0x160] sm:$0xff] %v4236
        %4273 = vst [vmem:[#allocation3 + $0x1a8] sm:$0xff] %v4237
        %4274 = vst [vmem:[#allocation3 + $0x1f0] sm:$0xff] %v4238
        %4275 = vst [vmem:[#allocation3 + $0x238] sm:$0xff] %v4239
        %4276 = vst [vmem:[#allocation3 + $0x280] sm:$0xff] %v4240
        %4277 = vst [vmem:[#allocation3 + $0x2c8] sm:$0xff] %v4241
        %4278 = vst [vmem:[#allocation3 + $0x310] sm:$0xff] %v4242
        %4279 = vst [vmem:[#allocation3 + $0x358] sm:$0xff] %v4243
        %4280 = vst [vmem:[#allocation3 + $0x3a0] sm:$0xff] %v4244
        %4281 = vst [vmem:[#allocation3 + $0x3e8] sm:$0xff] %v4245
        %4282 = vst [vmem:[#allocation3 + $0x430] sm:$0xff] %v4246
        %4283 = vst [vmem:[#allocation3 + $0x478] sm:$0xff] %v4247
        %4284 = vst [vmem:[#allocation3 + $0x4c0] sm:$0xff] %v4248
        %4285 = vst [vmem:[#allocation3 + $0x508] sm:$0xff] %v4249
        %4286 = vst [vmem:[#allocation3 + $0x550] sm:$0xff] %v4250
        %4287 = vst [vmem:[#allocation3 + $0x598] sm:$0xff] %v4251
        %4288 = vst [vmem:[#allocation3 + $0x5e0] sm:$0xff] %v4252
        %4289 = vst [vmem:[#allocation3 + $0x628] sm:$0xff] %v4253
        %4290 = vst [vmem:[#allocation3 + $0x670] sm:$0xff] %v4254
        %4291 = vst [vmem:[#allocation3 + $0x6b8] sm:$0xff] %v4255
        %4292 = vst [vmem:[#allocation3 + $0x700] sm:$0xff] %v4256
        %4293 = vst [vmem:[#allocation3 + $0x748] sm:$0xff] %v4257
        %4294 = vst [vmem:[#allocation3 + $0x790] sm:$0xff] %v4258
        %4295 = vst [vmem:[#allocation3 + $0x7d8] sm:$0xff] %v4259
        %4296 = vst [vmem:[#allocation3 + $0x820] sm:$0xff] %v4260
        %4297 = vst [vmem:[#allocation3 + $0x868] sm:$0xff] %v4261
        %4298 = vst [vmem:[#allocation3 + $0x8b0] sm:$0xff] %v4262
        %4299 = vst [vmem:[#allocation3 + $0x8f8] sm:$0xff] %v4263
        %4300 = vst [vmem:[#allocation3 + $0x940] sm:$0xff] %v4264
        %4301 = vst [vmem:[#allocation3 + $0x988] sm:$0xff] %v4265
        %4302 = vst [vmem:[#allocation3 + $0x9d0] sm:$0xff] %v4266
        %4303 = vst [vmem:[#allocation3 + $0xa18] sm:$0xff] %v4267
        %v4304 = vld [vmem:[#allocation3] sm:$0xff]
        %v4305 = vld [vmem:[#allocation3 + $0x8] sm:$0xff]
        %v4306 = vld [vmem:[#allocation3 + $0x10] sm:$0xff]
        %v4307 = vld [vmem:[#allocation3 + $0x18] sm:$0xff]
        %v4308 = vld [vmem:[#allocation3 + $0x20] sm:$0xff]
        %v4309 = vld [vmem:[#allocation3 + $0x28] sm:$0xff]
        %v4310 = vld [vmem:[#allocation3 + $0x30] sm:$0xff]
        %v4311 = vld [vmem:[#allocation3 + $0x38] sm:$0xff]
        %v4312 = vld [vmem:[#allocation3 + $0x40] sm:$0xff]
        %v4313 = vld [vmem:[#allocation3 + $0x48] sm:$0xff]
        %v4314 = vld [vmem:[#allocation3 + $0x50] sm:$0xff]
        %v4315 = vld [vmem:[#allocation3 + $0x58] sm:$0xff]
        %v4316 = vld [vmem:[#allocation3 + $0x60] sm:$0xff]
        %v4317 = vld [vmem:[#allocation3 + $0x68] sm:$0xff]
        %v4318 = vld [vmem:[#allocation3 + $0x70] sm:$0xff]
        %v4319 = vld [vmem:[#allocation3 + $0x78] sm:$0xff]
        %v4320 = vld [vmem:[#allocation3 + $0x80] sm:$0xff]
        %v4321 = vld [vmem:[#allocation3 + $0x88] sm:$0xff]
        %v4322 = vld [vmem:[#allocation3 + $0x90] sm:$0xff]
        %v4323 = vld [vmem:[#allocation3 + $0x98] sm:$0xff]
        %v4324 = vld [vmem:[#allocation3 + $0xa0] sm:$0xff]
        %v4325 = vld [vmem:[#allocation3 + $0xa8] sm:$0xff]
        %v4326 = vld [vmem:[#allocation3 + $0xb0] sm:$0xff]
        %v4327 = vld [vmem:[#allocation3 + $0xb8] sm:$0xff]
        %v4328 = vld [vmem:[#allocation3 + $0xc0] sm:$0xff]
        %v4329 = vld [vmem:[#allocation3 + $0xc8] sm:$0xff]
        %v4330 = vld [vmem:[#allocation3 + $0xd0] sm:$0xff]
        %v4331 = vld [vmem:[#allocation3 + $0xd8] sm:$0xff]
        %v4332 = vld [vmem:[#allocation3 + $0xe0] sm:$0xff]
        %v4333 = vld [vmem:[#allocation3 + $0xe8] sm:$0xff]
        %v4334 = vld [vmem:[#allocation3 + $0xf0] sm:$0xff]
        %v4335 = vld [vmem:[#allocation3 + $0xf8] sm:$0xff]
        %v4336 = vld [vmem:[#allocation3 + $0x100] sm:$0xff]
        %v4337 = vld [vmem:[#allocation3 + $0x108] sm:$0xff]
        %v4338 = vld [vmem:[#allocation3 + $0x110] sm:$0xff]
        %v4339 = vld [vmem:[#allocation3 + $0x118] sm:$0xff]
        %v4340 = vld [vmem:[#allocation3 + $0x120] sm:$0xff]
        %v4341 = vld [vmem:[#allocation3 + $0x128] sm:$0xff]
        %v4342 = vld [vmem:[#allocation3 + $0x130] sm:$0xff]
        %v4343 = vld [vmem:[#allocation3 + $0x138] sm:$0xff]
        %v4344 = vld [vmem:[#allocation3 + $0x140] sm:$0xff]
        %v4345 = vld [vmem:[#allocation3 + $0x148] sm:$0xff]
        %v4346 = vld [vmem:[#allocation3 + $0x150] sm:$0xff]
        %v4347 = vld [vmem:[#allocation3 + $0x158] sm:$0xff]
        %v4348 = vld [vmem:[#allocation3 + $0x160] sm:$0xff]
        %v4349 = vld [vmem:[#allocation3 + $0x168] sm:$0xff]
        %v4350 = vld [vmem:[#allocation3 + $0x170] sm:$0xff]
        %v4351 = vld [vmem:[#allocation3 + $0x178] sm:$0xff]
        %v4352 = vld [vmem:[#allocation3 + $0x180] sm:$0xff]
        %v4353 = vld [vmem:[#allocation3 + $0x188] sm:$0xff]
        %v4354 = vld [vmem:[#allocation3 + $0x190] sm:$0xff]
        %v4355 = vld [vmem:[#allocation3 + $0x198] sm:$0xff]
        %v4356 = vld [vmem:[#allocation3 + $0x1a0] sm:$0xff]
        %v4357 = vld [vmem:[#allocation3 + $0x1a8] sm:$0xff]
        %v4358 = vld [vmem:[#allocation3 + $0x1b0] sm:$0xff]
        %v4359 = vld [vmem:[#allocation3 + $0x1b8] sm:$0xff]
        %v4360 = vld [vmem:[#allocation3 + $0x1c0] sm:$0xff]
        %v4361 = vld [vmem:[#allocation3 + $0x1c8] sm:$0xff]
        %v4362 = vld [vmem:[#allocation3 + $0x1d0] sm:$0xff]
        %v4363 = vld [vmem:[#allocation3 + $0x1d8] sm:$0xff]
        %v4364 = vld [vmem:[#allocation3 + $0x1e0] sm:$0xff]
        %v4365 = vld [vmem:[#allocation3 + $0x1e8] sm:$0xff]
        %v4366 = vld [vmem:[#allocation3 + $0x1f0] sm:$0xff]
        %v4367 = vld [vmem:[#allocation3 + $0x1f8] sm:$0xff]
        %v4368 = vld [vmem:[#allocation3 + $0x200] sm:$0xff]
        %v4369 = vld [vmem:[#allocation3 + $0x208] sm:$0xff]
        %v4370 = vld [vmem:[#allocation3 + $0x210] sm:$0xff]
        %v4371 = vld [vmem:[#allocation3 + $0x218] sm:$0xff]
        %v4372 = vld [vmem:[#allocation3 + $0x220] sm:$0xff]
        %v4373 = vld [vmem:[#allocation3 + $0x228] sm:$0xff]
        %v4374 = vld [vmem:[#allocation3 + $0x230] sm:$0xff]
        %v4375 = vld [vmem:[#allocation3 + $0x238] sm:$0xff]
        %v4376 = vld [vmem:[#allocation3 + $0x240] sm:$0xff]
        %v4377 = vld [vmem:[#allocation3 + $0x248] sm:$0xff]
        %v4378 = vld [vmem:[#allocation3 + $0x250] sm:$0xff]
        %v4379 = vld [vmem:[#allocation3 + $0x258] sm:$0xff]
        %v4380 = vld [vmem:[#allocation3 + $0x260] sm:$0xff]
        %v4381 = vld [vmem:[#allocation3 + $0x268] sm:$0xff]
        %v4382 = vld [vmem:[#allocation3 + $0x270] sm:$0xff]
        %v4383 = vld [vmem:[#allocation3 + $0x278] sm:$0xff]
        %v4384 = vld [vmem:[#allocation3 + $0x280] sm:$0xff]
        %v4385 = vld [vmem:[#allocation3 + $0x288] sm:$0xff]
        %v4386 = vld [vmem:[#allocation3 + $0x290] sm:$0xff]
        %v4387 = vld [vmem:[#allocation3 + $0x298] sm:$0xff]
        %v4388 = vld [vmem:[#allocation3 + $0x2a0] sm:$0xff]
        %v4389 = vld [vmem:[#allocation3 + $0x2a8] sm:$0xff]
        %v4390 = vld [vmem:[#allocation3 + $0x2b0] sm:$0xff]
        %v4391 = vld [vmem:[#allocation3 + $0x2b8] sm:$0xff]
        %v4392 = vld [vmem:[#allocation3 + $0x2c0] sm:$0xff]
        %v4393 = vld [vmem:[#allocation3 + $0x2c8] sm:$0xff]
        %v4394 = vld [vmem:[#allocation3 + $0x2d0] sm:$0xff]
        %v4395 = vld [vmem:[#allocation3 + $0x2d8] sm:$0xff]
        %v4396 = vld [vmem:[#allocation3 + $0x2e0] sm:$0xff]
        %v4397 = vld [vmem:[#allocation3 + $0x2e8] sm:$0xff]
        %v4398 = vld [vmem:[#allocation3 + $0x2f0] sm:$0xff]
        %v4399 = vld [vmem:[#allocation3 + $0x2f8] sm:$0xff]
        %v4400 = vld [vmem:[#allocation3 + $0x300] sm:$0xff]
        %v4401 = vld [vmem:[#allocation3 + $0x308] sm:$0xff]
        %v4402 = vld [vmem:[#allocation3 + $0x310] sm:$0xff]
        %v4403 = vld [vmem:[#allocation3 + $0x318] sm:$0xff]
        %v4404 = vld [vmem:[#allocation3 + $0x320] sm:$0xff]
        %v4405 = vld [vmem:[#allocation3 + $0x328] sm:$0xff]
        %v4406 = vld [vmem:[#allocation3 + $0x330] sm:$0xff]
        %v4407 = vld [vmem:[#allocation3 + $0x338] sm:$0xff]
        %v4408 = vld [vmem:[#allocation3 + $0x340] sm:$0xff]
        %v4409 = vld [vmem:[#allocation3 + $0x348] sm:$0xff]
        %v4410 = vld [vmem:[#allocation3 + $0x350] sm:$0xff]
        %v4411 = vld [vmem:[#allocation3 + $0x358] sm:$0xff]
        %v4412 = vld [vmem:[#allocation3 + $0x360] sm:$0xff]
        %v4413 = vld [vmem:[#allocation3 + $0x368] sm:$0xff]
        %v4414 = vld [vmem:[#allocation3 + $0x370] sm:$0xff]
        %v4415 = vld [vmem:[#allocation3 + $0x378] sm:$0xff]
        %v4416 = vld [vmem:[#allocation3 + $0x380] sm:$0xff]
        %v4417 = vld [vmem:[#allocation3 + $0x388] sm:$0xff]
        %v4418 = vld [vmem:[#allocation3 + $0x390] sm:$0xff]
        %v4419 = vld [vmem:[#allocation3 + $0x398] sm:$0xff]
        %v4420 = vld [vmem:[#allocation3 + $0x3a0] sm:$0xff]
        %v4421 = vld [vmem:[#allocation3 + $0x3a8] sm:$0xff]
        %v4422 = vld [vmem:[#allocation3 + $0x3b0] sm:$0xff]
        %v4423 = vld [vmem:[#allocation3 + $0x3b8] sm:$0xff]
        %v4424 = vld [vmem:[#allocation3 + $0x3c0] sm:$0xff]
        %v4425 = vld [vmem:[#allocation3 + $0x3c8] sm:$0xff]
        %v4426 = vld [vmem:[#allocation3 + $0x3d0] sm:$0xff]
        %v4427 = vld [vmem:[#allocation3 + $0x3d8] sm:$0xff]
        %v4428 = vld [vmem:[#allocation3 + $0x3e0] sm:$0xff]
        %v4429 = vld [vmem:[#allocation3 + $0x3e8] sm:$0xff]
        %v4430 = vld [vmem:[#allocation3 + $0x3f0] sm:$0xff]
        %v4431 = vld [vmem:[#allocation3 + $0x3f8] sm:$0xff]
        %v4432 = vld [vmem:[#allocation3 + $0x400] sm:$0xff]
        %v4433 = vld [vmem:[#allocation3 + $0x408] sm:$0xff]
        %v4434 = vld [vmem:[#allocation3 + $0x410] sm:$0xff]
        %v4435 = vld [vmem:[#allocation3 + $0x418] sm:$0xff]
        %v4436 = vld [vmem:[#allocation3 + $0x420] sm:$0xff]
        %v4437 = vld [vmem:[#allocation3 + $0x428] sm:$0xff]
        %v4438 = vld [vmem:[#allocation3 + $0x430] sm:$0xff]
        %v4439 = vld [vmem:[#allocation3 + $0x438] sm:$0xff]
        %v4440 = vld [vmem:[#allocation3 + $0x440] sm:$0xff]
        %v4441 = vld [vmem:[#allocation3 + $0x448] sm:$0xff]
        %v4442 = vld [vmem:[#allocation3 + $0x450] sm:$0xff]
        %v4443 = vld [vmem:[#allocation3 + $0x458] sm:$0xff]
        %v4444 = vld [vmem:[#allocation3 + $0x460] sm:$0xff]
        %v4445 = vld [vmem:[#allocation3 + $0x468] sm:$0xff]
        %v4446 = vld [vmem:[#allocation3 + $0x470] sm:$0xff]
        %v4447 = vld [vmem:[#allocation3 + $0x478] sm:$0xff]
        %v4448 = vld [vmem:[#allocation3 + $0x480] sm:$0xff]
        %v4449 = vld [vmem:[#allocation3 + $0x488] sm:$0xff]
        %v4450 = vld [vmem:[#allocation3 + $0x490] sm:$0xff]
        %v4451 = vld [vmem:[#allocation3 + $0x498] sm:$0xff]
        %v4452 = vld [vmem:[#allocation3 + $0x4a0] sm:$0xff]
        %v4453 = vld [vmem:[#allocation3 + $0x4a8] sm:$0xff]
        %v4454 = vld [vmem:[#allocation3 + $0x4b0] sm:$0xff]
        %v4455 = vld [vmem:[#allocation3 + $0x4b8] sm:$0xff]
        %v4456 = vld [vmem:[#allocation3 + $0x4c0] sm:$0xff]
        %v4457 = vld [vmem:[#allocation3 + $0x4c8] sm:$0xff]
        %v4458 = vld [vmem:[#allocation3 + $0x4d0] sm:$0xff]
        %v4459 = vld [vmem:[#allocation3 + $0x4d8] sm:$0xff]
        %v4460 = vld [vmem:[#allocation3 + $0x4e0] sm:$0xff]
        %v4461 = vld [vmem:[#allocation3 + $0x4e8] sm:$0xff]
        %v4462 = vld [vmem:[#allocation3 + $0x4f0] sm:$0xff]
        %v4463 = vld [vmem:[#allocation3 + $0x4f8] sm:$0xff]
        %v4464 = vld [vmem:[#allocation3 + $0x500] sm:$0xff]
        %v4465 = vld [vmem:[#allocation3 + $0x508] sm:$0xff]
        %v4466 = vld [vmem:[#allocation3 + $0x510] sm:$0xff]
        %v4467 = vld [vmem:[#allocation3 + $0x518] sm:$0xff]
        %v4468 = vld [vmem:[#allocation3 + $0x520] sm:$0xff]
        %v4469 = vld [vmem:[#allocation3 + $0x528] sm:$0xff]
        %v4470 = vld [vmem:[#allocation3 + $0x530] sm:$0xff]
        %v4471 = vld [vmem:[#allocation3 + $0x538] sm:$0xff]
        %v4472 = vld [vmem:[#allocation3 + $0x540] sm:$0xff]
        %v4473 = vld [vmem:[#allocation3 + $0x548] sm:$0xff]
        %v4474 = vld [vmem:[#allocation3 + $0x550] sm:$0xff]
        %v4475 = vld [vmem:[#allocation3 + $0x558] sm:$0xff]
        %v4476 = vld [vmem:[#allocation3 + $0x560] sm:$0xff]
        %v4477 = vld [vmem:[#allocation3 + $0x568] sm:$0xff]
        %v4478 = vld [vmem:[#allocation3 + $0x570] sm:$0xff]
        %v4479 = vld [vmem:[#allocation3 + $0x578] sm:$0xff]
        %v4480 = vld [vmem:[#allocation3 + $0x580] sm:$0xff]
        %v4481 = vld [vmem:[#allocation3 + $0x588] sm:$0xff]
        %v4482 = vld [vmem:[#allocation3 + $0x590] sm:$0xff]
        %v4483 = vld [vmem:[#allocation3 + $0x598] sm:$0xff]
        %v4484 = vld [vmem:[#allocation3 + $0x5a0] sm:$0xff]
        %v4485 = vld [vmem:[#allocation3 + $0x5a8] sm:$0xff]
        %v4486 = vld [vmem:[#allocation3 + $0x5b0] sm:$0xff]
        %v4487 = vld [vmem:[#allocation3 + $0x5b8] sm:$0xff]
        %v4488 = vld [vmem:[#allocation3 + $0x5c0] sm:$0xff]
        %v4489 = vld [vmem:[#allocation3 + $0x5c8] sm:$0xff]
        %v4490 = vld [vmem:[#allocation3 + $0x5d0] sm:$0xff]
        %v4491 = vld [vmem:[#allocation3 + $0x5d8] sm:$0xff]
        %v4492 = vld [vmem:[#allocation3 + $0x5e0] sm:$0xff]
        %v4493 = vld [vmem:[#allocation3 + $0x5e8] sm:$0xff]
        %v4494 = vld [vmem:[#allocation3 + $0x5f0] sm:$0xff]
        %v4495 = vld [vmem:[#allocation3 + $0x5f8] sm:$0xff]
        %v4496 = vld [vmem:[#allocation3 + $0x600] sm:$0xff]
        %v4497 = vld [vmem:[#allocation3 + $0x608] sm:$0xff]
        %v4498 = vld [vmem:[#allocation3 + $0x610] sm:$0xff]
        %v4499 = vld [vmem:[#allocation3 + $0x618] sm:$0xff]
        %v4500 = vld [vmem:[#allocation3 + $0x620] sm:$0xff]
        %v4501 = vld [vmem:[#allocation3 + $0x628] sm:$0xff]
        %v4502 = vld [vmem:[#allocation3 + $0x630] sm:$0xff]
        %v4503 = vld [vmem:[#allocation3 + $0x638] sm:$0xff]
        %v4504 = vld [vmem:[#allocation3 + $0x640] sm:$0xff]
        %v4505 = vld [vmem:[#allocation3 + $0x648] sm:$0xff]
        %v4506 = vld [vmem:[#allocation3 + $0x650] sm:$0xff]
        %v4507 = vld [vmem:[#allocation3 + $0x658] sm:$0xff]
        %v4508 = vld [vmem:[#allocation3 + $0x660] sm:$0xff]
        %v4509 = vld [vmem:[#allocation3 + $0x668] sm:$0xff]
        %v4510 = vld [vmem:[#allocation3 + $0x670] sm:$0xff]
        %v4511 = vld [vmem:[#allocation3 + $0x678] sm:$0xff]
        %v4512 = vld [vmem:[#allocation3 + $0x680] sm:$0xff]
        %v4513 = vld [vmem:[#allocation3 + $0x688] sm:$0xff]
        %v4514 = vld [vmem:[#allocation3 + $0x690] sm:$0xff]
        %v4515 = vld [vmem:[#allocation3 + $0x698] sm:$0xff]
        %v4516 = vld [vmem:[#allocation3 + $0x6a0] sm:$0xff]
        %v4517 = vld [vmem:[#allocation3 + $0x6a8] sm:$0xff]
        %v4518 = vld [vmem:[#allocation3 + $0x6b0] sm:$0xff]
        %v4519 = vld [vmem:[#allocation3 + $0x6b8] sm:$0xff]
        %v4520 = vld [vmem:[#allocation3 + $0x6c0] sm:$0xff]
        %v4521 = vld [vmem:[#allocation3 + $0x6c8] sm:$0xff]
        %v4522 = vld [vmem:[#allocation3 + $0x6d0] sm:$0xff]
        %v4523 = vld [vmem:[#allocation3 + $0x6d8] sm:$0xff]
        %v4524 = vld [vmem:[#allocation3 + $0x6e0] sm:$0xff]
        %v4525 = vld [vmem:[#allocation3 + $0x6e8] sm:$0xff]
        %v4526 = vld [vmem:[#allocation3 + $0x6f0] sm:$0xff]
        %v4527 = vld [vmem:[#allocation3 + $0x6f8] sm:$0xff]
        %v4528 = vld [vmem:[#allocation3 + $0x700] sm:$0xff]
        %v4529 = vld [vmem:[#allocation3 + $0x708] sm:$0xff]
        %v4530 = vld [vmem:[#allocation3 + $0x710] sm:$0xff]
        %v4531 = vld [vmem:[#allocation3 + $0x718] sm:$0xff]
        %v4532 = vld [vmem:[#allocation3 + $0x720] sm:$0xff]
        %v4533 = vld [vmem:[#allocation3 + $0x728] sm:$0xff]
        %v4534 = vld [vmem:[#allocation3 + $0x730] sm:$0xff]
        %v4535 = vld [vmem:[#allocation3 + $0x738] sm:$0xff]
        %v4536 = vld [vmem:[#allocation3 + $0x740] sm:$0xff]
        %v4537 = vld [vmem:[#allocation3 + $0x748] sm:$0xff]
        %v4538 = vld [vmem:[#allocation3 + $0x750] sm:$0xff]
        %v4539 = vld [vmem:[#allocation3 + $0x758] sm:$0xff]
        %v4540 = vld [vmem:[#allocation3 + $0x760] sm:$0xff]
        %v4541 = vld [vmem:[#allocation3 + $0x768] sm:$0xff]
        %v4542 = vld [vmem:[#allocation3 + $0x770] sm:$0xff]
        %v4543 = vld [vmem:[#allocation3 + $0x778] sm:$0xff]
        %v4544 = vld [vmem:[#allocation3 + $0x780] sm:$0xff]
        %v4545 = vld [vmem:[#allocation3 + $0x788] sm:$0xff]
        %v4546 = vld [vmem:[#allocation3 + $0x790] sm:$0xff]
        %v4547 = vld [vmem:[#allocation3 + $0x798] sm:$0xff]
        %v4548 = vld [vmem:[#allocation3 + $0x7a0] sm:$0xff]
        %v4549 = vld [vmem:[#allocation3 + $0x7a8] sm:$0xff]
        %v4550 = vld [vmem:[#allocation3 + $0x7b0] sm:$0xff]
        %v4551 = vld [vmem:[#allocation3 + $0x7b8] sm:$0xff]
        %v4552 = vld [vmem:[#allocation3 + $0x7c0] sm:$0xff]
        %v4553 = vld [vmem:[#allocation3 + $0x7c8] sm:$0xff]
        %v4554 = vld [vmem:[#allocation3 + $0x7d0] sm:$0xff]
        %v4555 = vld [vmem:[#allocation3 + $0x7d8] sm:$0xff]
        %v4556 = vld [vmem:[#allocation3 + $0x7e0] sm:$0xff]
        %v4557 = vld [vmem:[#allocation3 + $0x7e8] sm:$0xff]
        %v4558 = vld [vmem:[#allocation3 + $0x7f0] sm:$0xff]
        %v4559 = vld [vmem:[#allocation3 + $0x7f8] sm:$0xff]
        %v4560 = vld [vmem:[#allocation3 + $0x800] sm:$0xff]
        %v4561 = vld [vmem:[#allocation3 + $0x808] sm:$0xff]
        %v4562 = vld [vmem:[#allocation3 + $0x810] sm:$0xff]
        %v4563 = vld [vmem:[#allocation3 + $0x818] sm:$0xff]
        %v4564 = vld [vmem:[#allocation3 + $0x820] sm:$0xff]
        %v4565 = vld [vmem:[#allocation3 + $0x828] sm:$0xff]
        %v4566 = vld [vmem:[#allocation3 + $0x830] sm:$0xff]
        %v4567 = vld [vmem:[#allocation3 + $0x838] sm:$0xff]
        %v4568 = vld [vmem:[#allocation3 + $0x840] sm:$0xff]
        %v4569 = vld [vmem:[#allocation3 + $0x848] sm:$0xff]
        %v4570 = vld [vmem:[#allocation3 + $0x850] sm:$0xff]
        %v4571 = vld [vmem:[#allocation3 + $0x858] sm:$0xff]
        %v4572 = vld [vmem:[#allocation3 + $0x860] sm:$0xff]
        %v4573 = vld [vmem:[#allocation3 + $0x868] sm:$0xff]
        %v4574 = vld [vmem:[#allocation3 + $0x870] sm:$0xff]
        %v4575 = vld [vmem:[#allocation3 + $0x878] sm:$0xff]
        %v4576 = vld [vmem:[#allocation3 + $0x880] sm:$0xff]
        %v4577 = vld [vmem:[#allocation3 + $0x888] sm:$0xff]
        %v4578 = vld [vmem:[#allocation3 + $0x890] sm:$0xff]
        %v4579 = vld [vmem:[#allocation3 + $0x898] sm:$0xff]
        %v4580 = vld [vmem:[#allocation3 + $0x8a0] sm:$0xff]
        %v4581 = vld [vmem:[#allocation3 + $0x8a8] sm:$0xff]
        %v4582 = vld [vmem:[#allocation3 + $0x8b0] sm:$0xff]
        %v4583 = vld [vmem:[#allocation3 + $0x8b8] sm:$0xff]
        %v4584 = vld [vmem:[#allocation3 + $0x8c0] sm:$0xff]
        %v4585 = vld [vmem:[#allocation3 + $0x8c8] sm:$0xff]
        %v4586 = vld [vmem:[#allocation3 + $0x8d0] sm:$0xff]
        %v4587 = vld [vmem:[#allocation3 + $0x8d8] sm:$0xff]
        %v4588 = vld [vmem:[#allocation3 + $0x8e0] sm:$0xff]
        %v4589 = vld [vmem:[#allocation3 + $0x8e8] sm:$0xff]
        %v4590 = vld [vmem:[#allocation3 + $0x8f0] sm:$0xff]
        %v4591 = vld [vmem:[#allocation3 + $0x8f8] sm:$0xff]
        %v4592 = vld [vmem:[#allocation3 + $0x900] sm:$0xff]
        %v4593 = vld [vmem:[#allocation3 + $0x908] sm:$0xff]
        %v4594 = vld [vmem:[#allocation3 + $0x910] sm:$0xff]
        %v4595 = vld [vmem:[#allocation3 + $0x918] sm:$0xff]
        %v4596 = vld [vmem:[#allocation3 + $0x920] sm:$0xff]
        %v4597 = vld [vmem:[#allocation3 + $0x928] sm:$0xff]
        %v4598 = vld [vmem:[#allocation3 + $0x930] sm:$0xff]
        %v4599 = vld [vmem:[#allocation3 + $0x938] sm:$0xff]
        %v4600 = vld [vmem:[#allocation3 + $0x940] sm:$0xff]
        %v4601 = vld [vmem:[#allocation3 + $0x948] sm:$0xff]
        %v4602 = vld [vmem:[#allocation3 + $0x950] sm:$0xff]
        %v4603 = vld [vmem:[#allocation3 + $0x958] sm:$0xff]
        %v4604 = vld [vmem:[#allocation3 + $0x960] sm:$0xff]
        %v4605 = vld [vmem:[#allocation3 + $0x968] sm:$0xff]
        %v4606 = vld [vmem:[#allocation3 + $0x970] sm:$0xff]
        %v4607 = vld [vmem:[#allocation3 + $0x978] sm:$0xff]
        %v4608 = vld [vmem:[#allocation3 + $0x980] sm:$0xff]
        %v4609 = vld [vmem:[#allocation3 + $0x988] sm:$0xff]
        %v4610 = vld [vmem:[#allocation3 + $0x990] sm:$0xff]
        %v4611 = vld [vmem:[#allocation3 + $0x998] sm:$0xff]
        %v4612 = vld [vmem:[#allocation3 + $0x9a0] sm:$0xff]
        %v4613 = vld [vmem:[#allocation3 + $0x9a8] sm:$0xff]
        %v4614 = vld [vmem:[#allocation3 + $0x9b0] sm:$0xff]
        %v4615 = vld [vmem:[#allocation3 + $0x9b8] sm:$0xff]
        %v4616 = vld [vmem:[#allocation3 + $0x9c0] sm:$0xff]
        %v4617 = vld [vmem:[#allocation3 + $0x9c8] sm:$0xff]
        %v4618 = vld [vmem:[#allocation3 + $0x9d0] sm:$0xff]
        %v4619 = vld [vmem:[#allocation3 + $0x9d8] sm:$0xff]
        %v4620 = vld [vmem:[#allocation3 + $0x9e0] sm:$0xff]
        %v4621 = vld [vmem:[#allocation3 + $0x9e8] sm:$0xff]
        %v4622 = vld [vmem:[#allocation3 + $0x9f0] sm:$0xff]
        %v4623 = vld [vmem:[#allocation3 + $0x9f8] sm:$0xff]
        %v4624 = vld [vmem:[#allocation3 + $0xa00] sm:$0xff]
        %v4625 = vld [vmem:[#allocation3 + $0xa08] sm:$0xff]
        %v4626 = vld [vmem:[#allocation3 + $0xa10] sm:$0xff]
        %v4627 = vld [vmem:[#allocation3 + $0xa18] sm:$0xff]
        %v4628 = vld [vmem:[#allocation9] sm:$0xff]
        %v4629 = vld [vmem:[#allocation9 + $0x8] sm:$0xff]
        %v4630 = vld [vmem:[#allocation9 + $0x10] sm:$0xff]
        %v4631 = vld [vmem:[#allocation9 + $0x18] sm:$0xff]
        %v4632 = vld [vmem:[#allocation9 + $0x20] sm:$0xff]
        %v4633 = vld [vmem:[#allocation9 + $0x28] sm:$0xff]
        %v4634 = vld [vmem:[#allocation9 + $0x30] sm:$0xff]
        %v4635 = vld [vmem:[#allocation9 + $0x38] sm:$0xff]
        %v4636 = vld [vmem:[#allocation9 + $0x40] sm:$0xff]
        %v4637 = vld [vmem:[#allocation9 + $0x48] sm:$0xff]
        %v4638 = vld [vmem:[#allocation9 + $0x50] sm:$0xff]
        %v4639 = vld [vmem:[#allocation9 + $0x58] sm:$0xff]
        %v4640 = vld [vmem:[#allocation9 + $0x60] sm:$0xff]
        %v4641 = vld [vmem:[#allocation9 + $0x68] sm:$0xff]
        %v4642 = vld [vmem:[#allocation9 + $0x70] sm:$0xff]
        %v4643 = vld [vmem:[#allocation9 + $0x78] sm:$0xff]
        %v4644 = vld [vmem:[#allocation9 + $0x80] sm:$0xff]
        %v4645 = vld [vmem:[#allocation9 + $0x88] sm:$0xff]
        %v4646 = vld [vmem:[#allocation9 + $0x90] sm:$0xff]
        %v4647 = vld [vmem:[#allocation9 + $0x98] sm:$0xff]
        %v4648 = vld [vmem:[#allocation9 + $0xa0] sm:$0xff]
        %v4649 = vld [vmem:[#allocation9 + $0xa8] sm:$0xff]
        %v4650 = vld [vmem:[#allocation9 + $0xb0] sm:$0xff]
        %v4651 = vld [vmem:[#allocation9 + $0xb8] sm:$0xff]
        %v4652 = vld [vmem:[#allocation9 + $0xc0] sm:$0xff]
        %v4653 = vld [vmem:[#allocation9 + $0xc8] sm:$0xff]
        %v4654 = vld [vmem:[#allocation9 + $0xd0] sm:$0xff]
        %v4655 = vld [vmem:[#allocation9 + $0xd8] sm:$0xff]
        %v4656 = vld [vmem:[#allocation9 + $0xe0] sm:$0xff]
        %v4657 = vld [vmem:[#allocation9 + $0xe8] sm:$0xff]
        %v4658 = vld [vmem:[#allocation9 + $0xf0] sm:$0xff]
        %v4659 = vld [vmem:[#allocation9 + $0xf8] sm:$0xff]
        %v4660 = vld [vmem:[#allocation9 + $0x100] sm:$0xff]
        %v4661 = vld [vmem:[#allocation9 + $0x108] sm:$0xff]
        %v4662 = vld [vmem:[#allocation9 + $0x110] sm:$0xff]
        %v4663 = vld [vmem:[#allocation9 + $0x118] sm:$0xff]
        %v4664 = vld [vmem:[#allocation9 + $0x120] sm:$0xff]
        %v4665 = vld [vmem:[#allocation9 + $0x128] sm:$0xff]
        %v4666 = vld [vmem:[#allocation9 + $0x130] sm:$0xff]
        %v4667 = vld [vmem:[#allocation9 + $0x138] sm:$0xff]
        %v4668 = vld [vmem:[#allocation9 + $0x140] sm:$0xff]
        %v4669 = vld [vmem:[#allocation9 + $0x148] sm:$0xff]
        %v4670 = vld [vmem:[#allocation9 + $0x150] sm:$0xff]
        %v4671 = vld [vmem:[#allocation9 + $0x158] sm:$0xff]
        %v4672 = vld [vmem:[#allocation9 + $0x160] sm:$0xff]
        %v4673 = vld [vmem:[#allocation9 + $0x168] sm:$0xff]
        %v4674 = vld [vmem:[#allocation9 + $0x170] sm:$0xff]
        %v4675 = vld [vmem:[#allocation9 + $0x178] sm:$0xff]
        %v4676 = vld [vmem:[#allocation9 + $0x180] sm:$0xff]
        %v4677 = vld [vmem:[#allocation9 + $0x188] sm:$0xff]
        %v4678 = vld [vmem:[#allocation9 + $0x190] sm:$0xff]
        %v4679 = vld [vmem:[#allocation9 + $0x198] sm:$0xff]
        %v4680 = vld [vmem:[#allocation9 + $0x1a0] sm:$0xff]
        %v4681 = vld [vmem:[#allocation9 + $0x1a8] sm:$0xff]
        %v4682 = vld [vmem:[#allocation9 + $0x1b0] sm:$0xff]
        %v4683 = vld [vmem:[#allocation9 + $0x1b8] sm:$0xff]
        %v4684 = vld [vmem:[#allocation9 + $0x1c0] sm:$0xff]
        %v4685 = vld [vmem:[#allocation9 + $0x1c8] sm:$0xff]
        %v4686 = vld [vmem:[#allocation9 + $0x1d0] sm:$0xff]
        %v4687 = vld [vmem:[#allocation9 + $0x1d8] sm:$0xff]
        %v4688 = vld [vmem:[#allocation9 + $0x1e0] sm:$0xff]
        %v4689 = vld [vmem:[#allocation9 + $0x1e8] sm:$0xff]
        %v4690 = vld [vmem:[#allocation9 + $0x1f0] sm:$0xff]
        %v4691 = vld [vmem:[#allocation9 + $0x1f8] sm:$0xff]
        %v4692 = vld [vmem:[#allocation9 + $0x200] sm:$0xff]
        %v4693 = vld [vmem:[#allocation9 + $0x208] sm:$0xff]
        %v4694 = vld [vmem:[#allocation9 + $0x210] sm:$0xff]
        %v4695 = vld [vmem:[#allocation9 + $0x218] sm:$0xff]
        %v4696 = vld [vmem:[#allocation9 + $0x220] sm:$0xff]
        %v4697 = vld [vmem:[#allocation9 + $0x228] sm:$0xff]
        %v4698 = vld [vmem:[#allocation9 + $0x230] sm:$0xff]
        %v4699 = vld [vmem:[#allocation9 + $0x238] sm:$0xff]
        %v4700 = vld [vmem:[#allocation9 + $0x240] sm:$0xff]
        %v4701 = vld [vmem:[#allocation9 + $0x248] sm:$0xff]
        %v4702 = vld [vmem:[#allocation9 + $0x250] sm:$0xff]
        %v4703 = vld [vmem:[#allocation9 + $0x258] sm:$0xff]
        %v4704 = vld [vmem:[#allocation9 + $0x260] sm:$0xff]
        %v4705 = vld [vmem:[#allocation9 + $0x268] sm:$0xff]
        %v4706 = vld [vmem:[#allocation9 + $0x270] sm:$0xff]
        %v4707 = vld [vmem:[#allocation9 + $0x278] sm:$0xff]
        %v4708 = vld [vmem:[#allocation9 + $0x280] sm:$0xff]
        %v4709 = vld [vmem:[#allocation9 + $0x288] sm:$0xff]
        %v4710 = vld [vmem:[#allocation9 + $0x290] sm:$0xff]
        %v4711 = vld [vmem:[#allocation9 + $0x298] sm:$0xff]
        %v4712 = vld [vmem:[#allocation9 + $0x2a0] sm:$0xff]
        %v4713 = vld [vmem:[#allocation9 + $0x2a8] sm:$0xff]
        %v4714 = vld [vmem:[#allocation9 + $0x2b0] sm:$0xff]
        %v4715 = vld [vmem:[#allocation9 + $0x2b8] sm:$0xff]
        %v4716 = vld [vmem:[#allocation9 + $0x2c0] sm:$0xff]
        %v4717 = vld [vmem:[#allocation9 + $0x2c8] sm:$0xff]
        %v4718 = vld [vmem:[#allocation9 + $0x2d0] sm:$0xff]
        %v4719 = vld [vmem:[#allocation9 + $0x2d8] sm:$0xff]
        %v4720 = vld [vmem:[#allocation9 + $0x2e0] sm:$0xff]
        %v4721 = vld [vmem:[#allocation9 + $0x2e8] sm:$0xff]
        %v4722 = vld [vmem:[#allocation9 + $0x2f0] sm:$0xff]
        %v4723 = vld [vmem:[#allocation9 + $0x2f8] sm:$0xff]
        %v4724 = vld [vmem:[#allocation9 + $0x300] sm:$0xff]
        %v4725 = vld [vmem:[#allocation9 + $0x308] sm:$0xff]
        %v4726 = vld [vmem:[#allocation9 + $0x310] sm:$0xff]
        %v4727 = vld [vmem:[#allocation9 + $0x318] sm:$0xff]
        %v4728 = vld [vmem:[#allocation9 + $0x320] sm:$0xff]
        %v4729 = vld [vmem:[#allocation9 + $0x328] sm:$0xff]
        %v4730 = vld [vmem:[#allocation9 + $0x330] sm:$0xff]
        %v4731 = vld [vmem:[#allocation9 + $0x338] sm:$0xff]
        %v4732 = vld [vmem:[#allocation9 + $0x340] sm:$0xff]
        %v4733 = vld [vmem:[#allocation9 + $0x348] sm:$0xff]
        %v4734 = vld [vmem:[#allocation9 + $0x350] sm:$0xff]
        %v4735 = vld [vmem:[#allocation9 + $0x358] sm:$0xff]
        %v4736 = vld [vmem:[#allocation9 + $0x360] sm:$0xff]
        %v4737 = vld [vmem:[#allocation9 + $0x368] sm:$0xff]
        %v4738 = vld [vmem:[#allocation9 + $0x370] sm:$0xff]
        %v4739 = vld [vmem:[#allocation9 + $0x378] sm:$0xff]
        %v4740 = vld [vmem:[#allocation9 + $0x380] sm:$0xff]
        %v4741 = vld [vmem:[#allocation9 + $0x388] sm:$0xff]
        %v4742 = vld [vmem:[#allocation9 + $0x390] sm:$0xff]
        %v4743 = vld [vmem:[#allocation9 + $0x398] sm:$0xff]
        %v4744 = vld [vmem:[#allocation9 + $0x3a0] sm:$0xff]
        %v4745 = vld [vmem:[#allocation9 + $0x3a8] sm:$0xff]
        %v4746 = vld [vmem:[#allocation9 + $0x3b0] sm:$0xff]
        %v4747 = vld [vmem:[#allocation9 + $0x3b8] sm:$0xff]
        %v4748 = vld [vmem:[#allocation9 + $0x3c0] sm:$0xff]
        %v4749 = vld [vmem:[#allocation9 + $0x3c8] sm:$0xff]
        %v4750 = vld [vmem:[#allocation9 + $0x3d0] sm:$0xff]
        %v4751 = vld [vmem:[#allocation9 + $0x3d8] sm:$0xff]
        %v4752 = vld [vmem:[#allocation9 + $0x3e0] sm:$0xff]
        %v4753 = vld [vmem:[#allocation9 + $0x3e8] sm:$0xff]
        %v4754 = vld [vmem:[#allocation9 + $0x3f0] sm:$0xff]
        %v4755 = vld [vmem:[#allocation9 + $0x3f8] sm:$0xff]
        %v4756 = vld [vmem:[#allocation9 + $0x400] sm:$0xff]
        %v4757 = vld [vmem:[#allocation9 + $0x408] sm:$0xff]
        %v4758 = vld [vmem:[#allocation9 + $0x410] sm:$0xff]
        %v4759 = vld [vmem:[#allocation9 + $0x418] sm:$0xff]
        %v4760 = vld [vmem:[#allocation9 + $0x420] sm:$0xff]
        %v4761 = vld [vmem:[#allocation9 + $0x428] sm:$0xff]
        %v4762 = vld [vmem:[#allocation9 + $0x430] sm:$0xff]
        %v4763 = vld [vmem:[#allocation9 + $0x438] sm:$0xff]
        %v4764 = vld [vmem:[#allocation9 + $0x440] sm:$0xff]
        %v4765 = vld [vmem:[#allocation9 + $0x448] sm:$0xff]
        %v4766 = vld [vmem:[#allocation9 + $0x450] sm:$0xff]
        %v4767 = vld [vmem:[#allocation9 + $0x458] sm:$0xff]
        %v4768 = vld [vmem:[#allocation9 + $0x460] sm:$0xff]
        %v4769 = vld [vmem:[#allocation9 + $0x468] sm:$0xff]
        %v4770 = vld [vmem:[#allocation9 + $0x470] sm:$0xff]
        %v4771 = vld [vmem:[#allocation9 + $0x478] sm:$0xff]
        %4772 = vmatprep.subr.mxu0 0.0
        %4773 = vmatpush1.msra.mxu0 %v4628
        %4774 = vmatprep.subr.mxu0 0.0
        %4775 = vmatpush1.msra.mxu0 %v4629
        %4776 = vmatprep.subr.mxu0 0.0
        %4777 = vmatpush1.msra.mxu0 %v4630
        %4778 = vmatprep.subr.mxu0 0.0
        %4779 = vmatpush1.msra.mxu0 %v4631
        %4780 = vmatprep.subr.mxu0 0.0
        %4781 = vmatpush1.msra.mxu0 %v4632
        %4782 = vmatprep.subr.mxu0 0.0
        %4783 = vmatpush1.msra.mxu0 %v4633
        %4784 = vmatprep.subr.mxu0 0.0
        %4785 = vmatpush1.msra.mxu0 %v4634
        %4786 = vmatprep.subr.mxu0 0.0
        %4787 = vmatpush1.msra.mxu0 %v4635
        %4788 = vmatprep.subr.mxu0 0.0
        %4789 = vmatpush1.msra.mxu0 %v4636
        %4790 = vmatprep.subr.mxu0 0.0
        %4791 = vmatpush1.msra.mxu0 %v4637
        %4792 = vmatprep.subr.mxu0 0.0
        %4793 = vmatpush1.msra.mxu0 %v4638
        %4794 = vmatprep.subr.mxu0 0.0
        %4795 = vmatpush1.msra.mxu0 %v4639
        %4796 = vmatprep.subr.mxu0 0.0
        %4797 = vmatpush1.msra.mxu0 %v4640
        %4798 = vmatprep.subr.mxu0 0.0
        %4799 = vmatpush1.msra.mxu0 %v4641
        %4800 = vmatprep.subr.mxu0 0.0
        %4801 = vmatpush1.msra.mxu0 %v4642
        %4802 = vmatprep.subr.mxu0 0.0
        %4803 = vmatpush1.msra.mxu0 %v4643
        %4804 = vmatprep.subr.mxu0 0.0
        %4805 = vmatpush1.msra.mxu0 %v4644
        %4806 = vmatprep.subr.mxu0 0.0
        %4807 = vmatpush1.msra.mxu0 %v4645
        %4808 = vmatprep.subr.mxu0 0.0
        %4809 = vmatpush1.msra.mxu0 %v4646
        %4810 = vmatprep.subr.mxu0 0.0
        %4811 = vmatpush1.msra.mxu0 %v4647
        %4812 = vmatprep.subr.mxu0 0.0
        %4813 = vmatpush1.msra.mxu0 %v4648
        %4814 = vmatprep.subr.mxu0 0.0
        %4815 = vmatpush1.msra.mxu0 %v4649
        %4816 = vmatprep.subr.mxu0 0.0
        %4817 = vmatpush1.msra.mxu0 %v4650
        %4818 = vmatprep.subr.mxu0 0.0
        %4819 = vmatpush1.msra.mxu0 %v4651
        %4820 = vmatprep.subr.mxu0 0.0
        %4821 = vmatpush1.msra.mxu0 %v4652
        %4822 = vmatprep.subr.mxu0 0.0
        %4823 = vmatpush1.msra.mxu0 %v4653
        %4824 = vmatprep.subr.mxu0 0.0
        %4825 = vmatpush1.msra.mxu0 %v4654
        %4826 = vmatprep.subr.mxu0 0.0
        %4827 = vmatpush1.msra.mxu0 %v4655
        %4828 = vmatprep.subr.mxu0 0.0
        %4829 = vmatpush1.msra.mxu0 %v4656
        %4830 = vmatprep.subr.mxu0 0.0
        %4831 = vmatpush1.msra.mxu0 %v4657
        %4832 = vmatprep.subr.mxu0 0.0
        %4833 = vmatpush1.msra.mxu0 %v4658
        %4834 = vmatprep.subr.mxu0 0.0
        %4835 = vmatpush1.msra.mxu0 %v4659
        %4836 = vmatprep.mubr.f32.mxu0 %v4305
        %4837 = vmatmul.mubr.f32.gmra.mrb[0].mxu0 %v4304
        %v4838 = vpop.f32.mrb[0].mxu0
        %v4839 = vadd.f32 0.0, %v4838
        %v4840 = vpop.f32.mrb[0].mxu0
        %4841 = vmatprep.mubr.f32.mxu0 %v4314
        %4842 = vmatmul.mubr.f32.gmra.mrb[0].mxu0 %v4313
        %v4843 = vpop.f32.mrb[0].mxu0
        %v4844 = vadd.f32 0.0, %v4843
        %v4845 = vpop.f32.mrb[0].mxu0
        %4846 = vmatprep.mubr.f32.mxu0 %v4323
        %4847 = vmatmul.mubr.f32.gmra.mrb[0].mxu0 %v4322
        %v4848 = vpop.f32.mrb[0].mxu0
        %v4849 = vadd.f32 0.0, %v4848
        %v4850 = vpop.f32.mrb[0].mxu0
        %4851 = vmatprep.mubr.f32.mxu0 %v4332
        %4852 = vmatmul.mubr.f32.gmra.mrb[0].mxu0 %v4331
        %v4853 = vpop.f32.mrb[0].mxu0
        %v4854 = vadd.f32 0.0, %v4853
        %v4855 = vpop.f32.mrb[0].mxu0
        %4856 = vmatprep.mubr.f32.mxu0 %v4341
        %4857 = vmatmul.mubr.f32.gmra.mrb[0].mxu0 %v4340
        %v4858 = vpop.f32.mrb[0].mxu0
        %v4859 = vadd.f32 0.0, %v4858
        %v4860 = vpop.f32.mrb[0].mxu0
        %4861 = vmatprep.mubr.f32.mxu0 %v4350
        %4862 = vmatmul.mubr.f32.gmra.mrb[0].mxu0 %v4349
        %v4863 = vpop.f32.mrb[0].mxu0
        %v4864 = vadd.f32 0.0, %v4863
        %v4865 = vpop.f32.mrb[0].mxu0
        %4866 = vmatprep.mubr.f32.mxu0 %v4359
        %4867 = vmatmul.mubr.f32.gmra.mrb[0].mxu0 %v4358
        %v4868 = vpop.f32.mrb[0].mxu0
        %v4869 = vadd.f32 0.0, %v4868
        %v4870 = vpop.f32.mrb[0].mxu0
        %4871 = vmatprep.mubr.f32.mxu0 %v4368
        %4872 = vmatmul.mubr.f32.gmra.mrb[0].mxu0 %v4367
        %v4873 = vpop.f32.mrb[0].mxu0
        %v4874 = vadd.f32 0.0, %v4873
        %v4875 = vpop.f32.mrb[0].mxu0
        %4876 = vmatprep.mubr.f32.mxu0 %v4377
        %4877 = vmatmul.mubr.f32.gmra.mrb[0].mxu0 %v4376
        %v4878 = vpop.f32.mrb[0].mxu0
        %v4879 = vadd.f32 0.0, %v4878
        %v4880 = vpop.f32.mrb[0].mxu0
        %4881 = vmatprep.mubr.f32.mxu0 %v4386
        %4882 = vmatmul.mubr.f32.gmra.mrb[0].mxu0 %v4385
        %v4883 = vpop.f32.mrb[0].mxu0
        %v4884 = vadd.f32 0.0, %v4883
        %v4885 = vpop.f32.mrb[0].mxu0
        %4886 = vmatprep.mubr.f32.mxu0 %v4395
        %4887 = vmatmul.mubr.f32.gmra.mrb[0].mxu0 %v4394
        %v4888 = vpop.f32.mrb[0].mxu0
        %v4889 = vadd.f32 0.0, %v4888
        %v4890 = vpop.f32.mrb[0].mxu0
        %4891 = vmatprep.mubr.f32.mxu0 %v4404
        %4892 = vmatmul.mubr.f32.gmra.mrb[0].mxu0 %v4403
        %v4893 = vpop.f32.mrb[0].mxu0
        %v4894 = vadd.f32 0.0, %v4893
        %v4895 = vpop.f32.mrb[0].mxu0
        %4896 = vmatprep.mubr.f32.mxu0 %v4413
        %4897 = vmatmul.mubr.f32.gmra.mrb[0].mxu0 %v4412
        %v4898 = vpop.f32.mrb[0].mxu0
        %v4899 = vadd.f32 0.0, %v4898
        %v4900 = vpop.f32.mrb[0].mxu0
        %4901 = vmatprep.mubr.f32.mxu0 %v4422
        %4902 = vmatmul.mubr.f32.gmra.mrb[0].mxu0 %v4421
        %v4903 = vpop.f32.mrb[0].mxu0
        %v4904 = vadd.f32 0.0, %v4903
        %v4905 = vpop.f32.mrb[0].mxu0
        %4906 = vmatprep.mubr.f32.mxu0 %v4431
        %4907 = vmatmul.mubr.f32.gmra.mrb[0].mxu0 %v4430
        %v4908 = vpop.f32.mrb[0].mxu0
        %v4909 = vadd.f32 0.0, %v4908
        %v4910 = vpop.f32.mrb[0].mxu0
        %4911 = vmatprep.mubr.f32.mxu0 %v4440
        %4912 = vmatmul.mubr.f32.gmra.mrb[0].mxu0 %v4439
        %v4913 = vpop.f32.mrb[0].mxu0
        %v4914 = vadd.f32 0.0, %v4913
        %v4915 = vpop.f32.mrb[0].mxu0
        %4916 = vmatprep.mubr.f32.mxu0 %v4449
        %4917 = vmatmul.mubr.f32.gmra.mrb[0].mxu0 %v4448
        %v4918 = vpop.f32.mrb[0].mxu0
        %v4919 = vadd.f32 0.0, %v4918
        %v4920 = vpop.f32.mrb[0].mxu0
        %4921 = vmatprep.mubr.f32.mxu0 %v4458
        %4922 = vmatmul.mubr.f32.gmra.mrb[0].mxu0 %v4457
        %v4923 = vpop.f32.mrb[0].mxu0
        %v4924 = vadd.f32 0.0, %v4923
        %v4925 = vpop.f32.mrb[0].mxu0
        %4926 = vmatprep.mubr.f32.mxu0 %v4467
        %4927 = vmatmul.mubr.f32.gmra.mrb[0].mxu0 %v4466
        %v4928 = vpop.f32.mrb[0].mxu0
        %v4929 = vadd.f32 0.0, %v4928
        %v4930 = vpop.f32.mrb[0].mxu0
        %4931 = vmatprep.mubr.f32.mxu0 %v4476
        %4932 = vmatmul.mubr.f32.gmra.mrb[0].mxu0 %v4475
        %v4933 = vpop.f32.mrb[0].mxu0
        %v4934 = vadd.f32 0.0, %v4933
        %v4935 = vpop.f32.mrb[0].mxu0
        %4936 = vmatprep.mubr.f32.mxu0 %v4485
        %4937 = vmatmul.mubr.f32.gmra.mrb[0].mxu0 %v4484
        %v4938 = vpop.f32.mrb[0].mxu0
        %v4939 = vadd.f32 0.0, %v4938
        %v4940 = vpop.f32.mrb[0].mxu0
        %4941 = vmatprep.mubr.f32.mxu0 %v4494
        %4942 = vmatmul.mubr.f32.gmra.mrb[0].mxu0 %v4493
        %v4943 = vpop.f32.mrb[0].mxu0
        %v4944 = vadd.f32 0.0, %v4943
        %v4945 = vpop.f32.mrb[0].mxu0
        %4946 = vmatprep.mubr.f32.mxu0 %v4503
        %4947 = vmatmul.mubr.f32.gmra.mrb[0].mxu0 %v4502
        %v4948 = vpop.f32.mrb[0].mxu0
        %v4949 = vadd.f32 0.0, %v4948
        %v4950 = vpop.f32.mrb[0].mxu0
        %4951 = vmatprep.mubr.f32.mxu0 %v4512
        %4952 = vmatmul.mubr.f32.gmra.mrb[0].mxu0 %v4511
        %v4953 = vpop.f32.mrb[0].mxu0
        %v4954 = vadd.f32 0.0, %v4953
        %v4955 = vpop.f32.mrb[0].mxu0
        %4956 = vmatprep.mubr.f32.mxu0 %v4521
        %4957 = vmatmul.mubr.f32.gmra.mrb[0].mxu0 %v4520
        %v4958 = vpop.f32.mrb[0].mxu0
        %v4959 = vadd.f32 0.0, %v4958
        %v4960 = vpop.f32.mrb[0].mxu0
        %4961 = vmatprep.mubr.f32.mxu0 %v4530
        %4962 = vmatmul.mubr.f32.gmra.mrb[0].mxu0 %v4529
        %v4963 = vpop.f32.mrb[0].mxu0
        %v4964 = vadd.f32 0.0, %v4963
        %v4965 = vpop.f32.mrb[0].mxu0
        %4966 = vmatprep.mubr.f32.mxu0 %v4539
        %4967 = vmatmul.mubr.f32.gmra.mrb[0].mxu0 %v4538
        %v4968 = vpop.f32.mrb[0].mxu0
        %v4969 = vadd.f32 0.0, %v4968
        %v4970 = vpop.f32.mrb[0].mxu0
        %4971 = vmatprep.mubr.f32.mxu0 %v4548
        %4972 = vmatmul.mubr.f32.gmra.mrb[0].mxu0 %v4547
        %v4973 = vpop.f32.mrb[0].mxu0
        %v4974 = vadd.f32 0.0, %v4973
        %v4975 = vpop.f32.mrb[0].mxu0
        %4976 = vmatprep.mubr.f32.mxu0 %v4557
        %4977 = vmatmul.mubr.f32.gmra.mrb[0].mxu0 %v4556
        %v4978 = vpop.f32.mrb[0].mxu0
        %v4979 = vadd.f32 0.0, %v4978
        %v4980 = vpop.f32.mrb[0].mxu0
        %4981 = vmatprep.mubr.f32.mxu0 %v4566
        %4982 = vmatmul.mubr.f32.gmra.mrb[0].mxu0 %v4565
        %v4983 = vpop.f32.mrb[0].mxu0
        %v4984 = vadd.f32 0.0, %v4983
        %v4985 = vpop.f32.mrb[0].mxu0
        %4986 = vmatprep.mubr.f32.mxu0 %v4575
        %4987 = vmatmul.mubr.f32.gmra.mrb[0].mxu0 %v4574
        %v4988 = vpop.f32.mrb[0].mxu0
        %v4989 = vadd.f32 0.0, %v4988
        %v4990 = vpop.f32.mrb[0].mxu0
        %4991 = vmatprep.mubr.f32.mxu0 %v4584
        %4992 = vmatmul.mubr.f32.gmra.mrb[0].mxu0 %v4583
        %v4993 = vpop.f32.mrb[0].mxu0
        %v4994 = vadd.f32 0.0, %v4993
        %v4995 = vpop.f32.mrb[0].mxu0
        %4996 = vmatprep.mubr.f32.mxu0 %v4593
        %4997 = vmatmul.mubr.f32.gmra.mrb[0].mxu0 %v4592
        %v4998 = vpop.f32.mrb[0].mxu0
        %v4999 = vadd.f32 0.0, %v4998
        %v5000 = vpop.f32.mrb[0].mxu0
        %5001 = vmatprep.mubr.f32.mxu0 %v4602
        %5002 = vmatmul.mubr.f32.gmra.mrb[0].mxu0 %v4601
        %v5003 = vpop.f32.mrb[0].mxu0
        %v5004 = vadd.f32 0.0, %v5003
        %v5005 = vpop.f32.mrb[0].mxu0
        %5006 = vmatprep.mubr.f32.mxu0 %v4611
        %5007 = vmatmul.mubr.f32.gmra.mrb[0].mxu0 %v4610
        %v5008 = vpop.f32.mrb[0].mxu0
        %v5009 = vadd.f32 0.0, %v5008
        %v5010 = vpop.f32.mrb[0].mxu0
        %5011 = vmatprep.mubr.f32.mxu0 %v4620
        %5012 = vmatmul.mubr.f32.gmra.mrb[0].mxu0 %v4619
        %v5013 = vpop.f32.mrb[0].mxu0
        %v5014 = vadd.f32 0.0, %v5013
        %v5015 = vpop.f32.mrb[0].mxu0
        %5016 = vdwg.mxu0
        %5017 = vmatprep.subr.mxu0 0.0
        %5018 = vmatpush1.msra.mxu0 %v4660
        %5019 = vmatprep.subr.mxu0 0.0
        %5020 = vmatpush1.msra.mxu0 %v4661
        %5021 = vmatprep.subr.mxu0 0.0
        %5022 = vmatpush1.msra.mxu0 %v4662
        %5023 = vmatprep.subr.mxu0 0.0
        %5024 = vmatpush1.msra.mxu0 %v4663
        %5025 = vmatprep.subr.mxu0 0.0
        %5026 = vmatpush1.msra.mxu0 %v4664
        %5027 = vmatprep.subr.mxu0 0.0
        %5028 = vmatpush1.msra.mxu0 %v4665
        %5029 = vmatprep.subr.mxu0 0.0
        %5030 = vmatpush1.msra.mxu0 %v4666
        %5031 = vmatprep.subr.mxu0 0.0
        %5032 = vmatpush1.msra.mxu0 %v4667
        %5033 = vmatprep.subr.mxu0 0.0
        %5034 = vmatpush1.msra.mxu0 %v4668
        %5035 = vmatprep.subr.mxu0 0.0
        %5036 = vmatpush1.msra.mxu0 %v4669
        %5037 = vmatprep.subr.mxu0 0.0
        %5038 = vmatpush1.msra.mxu0 %v4670
        %5039 = vmatprep.subr.mxu0 0.0
        %5040 = vmatpush1.msra.mxu0 %v4671
        %5041 = vmatprep.subr.mxu0 0.0
        %5042 = vmatpush1.msra.mxu0 %v4672
        %5043 = vmatprep.subr.mxu0 0.0
        %5044 = vmatpush1.msra.mxu0 %v4673
        %5045 = vmatprep.subr.mxu0 0.0
        %5046 = vmatpush1.msra.mxu0 %v4674
        %5047 = vmatprep.subr.mxu0 0.0
        %5048 = vmatpush1.msra.mxu0 %v4675
        %5049 = vmatprep.subr.mxu0 0.0
        %5050 = vmatpush1.msra.mxu0 %v4676
        %5051 = vmatprep.subr.mxu0 0.0
        %5052 = vmatpush1.msra.mxu0 %v4677
        %5053 = vmatprep.subr.mxu0 0.0
        %5054 = vmatpush1.msra.mxu0 %v4678
        %5055 = vmatprep.subr.mxu0 0.0
        %5056 = vmatpush1.msra.mxu0 %v4679
        %5057 = vmatprep.subr.mxu0 0.0
        %5058 = vmatpush1.msra.mxu0 %v4680
        %5059 = vmatprep.subr.mxu0 0.0
        %5060 = vmatpush1.msra.mxu0 %v4681
        %5061 = vmatprep.subr.mxu0 0.0
        %5062 = vmatpush1.msra.mxu0 %v4682
        %5063 = vmatprep.subr.mxu0 0.0
        %5064 = vmatpush1.msra.mxu0 %v4683
        %5065 = vmatprep.subr.mxu0 0.0
        %5066 = vmatpush1.msra.mxu0 %v4684
        %5067 = vmatprep.subr.mxu0 0.0
        %5068 = vmatpush1.msra.mxu0 %v4685
        %5069 = vmatprep.subr.mxu0 0.0
        %5070 = vmatpush1.msra.mxu0 %v4686
        %5071 = vmatprep.subr.mxu0 0.0
        %5072 = vmatpush1.msra.mxu0 %v4687
        %5073 = vmatprep.subr.mxu0 0.0
        %5074 = vmatpush1.msra.mxu0 %v4688
        %5075 = vmatprep.subr.mxu0 0.0
        %5076 = vmatpush1.msra.mxu0 %v4689
        %5077 = vmatprep.subr.mxu0 0.0
        %5078 = vmatpush1.msra.mxu0 %v4690
        %5079 = vmatprep.subr.mxu0 0.0
        %5080 = vmatpush1.msra.mxu0 %v4691
        %5081 = vmatprep.mubr.f32.mxu0 %v4307
        %5082 = vmatmul.mubr.f32.gmra.mrb[0].mxu0 %v4306
        %v5083 = vpop.f32.mrb[0].mxu0
        %v5084 = vadd.f32 %v4839, %v5083
        %v5085 = vpop.f32.mrb[0].mxu0
        %5086 = vmatprep.mubr.f32.mxu0 %v4316
        %5087 = vmatmul.mubr.f32.gmra.mrb[0].mxu0 %v4315
        %v5088 = vpop.f32.mrb[0].mxu0
        %v5089 = vadd.f32 %v4844, %v5088
        %v5090 = vpop.f32.mrb[0].mxu0
        %5091 = vmatprep.mubr.f32.mxu0 %v4325
        %5092 = vmatmul.mubr.f32.gmra.mrb[0].mxu0 %v4324
        %v5093 = vpop.f32.mrb[0].mxu0
        %v5094 = vadd.f32 %v4849, %v5093
        %v5095 = vpop.f32.mrb[0].mxu0
        %5096 = vmatprep.mubr.f32.mxu0 %v4334
        %5097 = vmatmul.mubr.f32.gmra.mrb[0].mxu0 %v4333
        %v5098 = vpop.f32.mrb[0].mxu0
        %v5099 = vadd.f32 %v4854, %v5098
        %v5100 = vpop.f32.mrb[0].mxu0
        %5101 = vmatprep.mubr.f32.mxu0 %v4343
        %5102 = vmatmul.mubr.f32.gmra.mrb[0].mxu0 %v4342
        %v5103 = vpop.f32.mrb[0].mxu0
        %v5104 = vadd.f32 %v4859, %v5103
        %v5105 = vpop.f32.mrb[0].mxu0
        %5106 = vmatprep.mubr.f32.mxu0 %v4352
        %5107 = vmatmul.mubr.f32.gmra.mrb[0].mxu0 %v4351
        %v5108 = vpop.f32.mrb[0].mxu0
        %v5109 = vadd.f32 %v4864, %v5108
        %v5110 = vpop.f32.mrb[0].mxu0
        %5111 = vmatprep.mubr.f32.mxu0 %v4361
        %5112 = vmatmul.mubr.f32.gmra.mrb[0].mxu0 %v4360
        %v5113 = vpop.f32.mrb[0].mxu0
        %v5114 = vadd.f32 %v4869, %v5113
        %v5115 = vpop.f32.mrb[0].mxu0
        %5116 = vmatprep.mubr.f32.mxu0 %v4370
        %5117 = vmatmul.mubr.f32.gmra.mrb[0].mxu0 %v4369
        %v5118 = vpop.f32.mrb[0].mxu0
        %v5119 = vadd.f32 %v4874, %v5118
        %v5120 = vpop.f32.mrb[0].mxu0
        %5121 = vmatprep.mubr.f32.mxu0 %v4379
        %5122 = vmatmul.mubr.f32.gmra.mrb[0].mxu0 %v4378
        %v5123 = vpop.f32.mrb[0].mxu0
        %v5124 = vadd.f32 %v4879, %v5123
        %v5125 = vpop.f32.mrb[0].mxu0
        %5126 = vmatprep.mubr.f32.mxu0 %v4388
        %5127 = vmatmul.mubr.f32.gmra.mrb[0].mxu0 %v4387
        %v5128 = vpop.f32.mrb[0].mxu0
        %v5129 = vadd.f32 %v4884, %v5128
        %v5130 = vpop.f32.mrb[0].mxu0
        %5131 = vmatprep.mubr.f32.mxu0 %v4397
        %5132 = vmatmul.mubr.f32.gmra.mrb[0].mxu0 %v4396
        %v5133 = vpop.f32.mrb[0].mxu0
        %v5134 = vadd.f32 %v4889, %v5133
        %v5135 = vpop.f32.mrb[0].mxu0
        %5136 = vmatprep.mubr.f32.mxu0 %v4406
        %5137 = vmatmul.mubr.f32.gmra.mrb[0].mxu0 %v4405
        %v5138 = vpop.f32.mrb[0].mxu0
        %v5139 = vadd.f32 %v4894, %v5138
        %v5140 = vpop.f32.mrb[0].mxu0
        %5141 = vmatprep.mubr.f32.mxu0 %v4415
        %5142 = vmatmul.mubr.f32.gmra.mrb[0].mxu0 %v4414
        %v5143 = vpop.f32.mrb[0].mxu0
        %v5144 = vadd.f32 %v4899, %v5143
        %v5145 = vpop.f32.mrb[0].mxu0
        %5146 = vmatprep.mubr.f32.mxu0 %v4424
        %5147 = vmatmul.mubr.f32.gmra.mrb[0].mxu0 %v4423
        %v5148 = vpop.f32.mrb[0].mxu0
        %v5149 = vadd.f32 %v4904, %v5148
        %v5150 = vpop.f32.mrb[0].mxu0
        %5151 = vmatprep.mubr.f32.mxu0 %v4433
        %5152 = vmatmul.mubr.f32.gmra.mrb[0].mxu0 %v4432
        %v5153 = vpop.f32.mrb[0].mxu0
        %v5154 = vadd.f32 %v4909, %v5153
        %v5155 = vpop.f32.mrb[0].mxu0
        %5156 = vmatprep.mubr.f32.mxu0 %v4442
        %5157 = vmatmul.mubr.f32.gmra.mrb[0].mxu0 %v4441
        %v5158 = vpop.f32.mrb[0].mxu0
        %v5159 = vadd.f32 %v4914, %v5158
        %v5160 = vpop.f32.mrb[0].mxu0
        %5161 = vmatprep.mubr.f32.mxu0 %v4451
        %5162 = vmatmul.mubr.f32.gmra.mrb[0].mxu0 %v4450
        %v5163 = vpop.f32.mrb[0].mxu0
        %v5164 = vadd.f32 %v4919, %v5163
        %v5165 = vpop.f32.mrb[0].mxu0
        %5166 = vmatprep.mubr.f32.mxu0 %v4460
        %5167 = vmatmul.mubr.f32.gmra.mrb[0].mxu0 %v4459
        %v5168 = vpop.f32.mrb[0].mxu0
        %v5169 = vadd.f32 %v4924, %v5168
        %v5170 = vpop.f32.mrb[0].mxu0
        %5171 = vmatprep.mubr.f32.mxu0 %v4469
        %5172 = vmatmul.mubr.f32.gmra.mrb[0].mxu0 %v4468
        %v5173 = vpop.f32.mrb[0].mxu0
        %v5174 = vadd.f32 %v4929, %v5173
        %v5175 = vpop.f32.mrb[0].mxu0
        %5176 = vmatprep.mubr.f32.mxu0 %v4478
        %5177 = vmatmul.mubr.f32.gmra.mrb[0].mxu0 %v4477
        %v5178 = vpop.f32.mrb[0].mxu0
        %v5179 = vadd.f32 %v4934, %v5178
        %v5180 = vpop.f32.mrb[0].mxu0
        %5181 = vmatprep.mubr.f32.mxu0 %v4487
        %5182 = vmatmul.mubr.f32.gmra.mrb[0].mxu0 %v4486
        %v5183 = vpop.f32.mrb[0].mxu0
        %v5184 = vadd.f32 %v4939, %v5183
        %v5185 = vpop.f32.mrb[0].mxu0
        %5186 = vmatprep.mubr.f32.mxu0 %v4496
        %5187 = vmatmul.mubr.f32.gmra.mrb[0].mxu0 %v4495
        %v5188 = vpop.f32.mrb[0].mxu0
        %v5189 = vadd.f32 %v4944, %v5188
        %v5190 = vpop.f32.mrb[0].mxu0
        %5191 = vmatprep.mubr.f32.mxu0 %v4505
        %5192 = vmatmul.mubr.f32.gmra.mrb[0].mxu0 %v4504
        %v5193 = vpop.f32.mrb[0].mxu0
        %v5194 = vadd.f32 %v4949, %v5193
        %v5195 = vpop.f32.mrb[0].mxu0
        %5196 = vmatprep.mubr.f32.mxu0 %v4514
        %5197 = vmatmul.mubr.f32.gmra.mrb[0].mxu0 %v4513
        %v5198 = vpop.f32.mrb[0].mxu0
        %v5199 = vadd.f32 %v4954, %v5198
        %v5200 = vpop.f32.mrb[0].mxu0
        %5201 = vmatprep.mubr.f32.mxu0 %v4523
        %5202 = vmatmul.mubr.f32.gmra.mrb[0].mxu0 %v4522
        %v5203 = vpop.f32.mrb[0].mxu0
        %v5204 = vadd.f32 %v4959, %v5203
        %v5205 = vpop.f32.mrb[0].mxu0
        %5206 = vmatprep.mubr.f32.mxu0 %v4532
        %5207 = vmatmul.mubr.f32.gmra.mrb[0].mxu0 %v4531
        %v5208 = vpop.f32.mrb[0].mxu0
        %v5209 = vadd.f32 %v4964, %v5208
        %v5210 = vpop.f32.mrb[0].mxu0
        %5211 = vmatprep.mubr.f32.mxu0 %v4541
        %5212 = vmatmul.mubr.f32.gmra.mrb[0].mxu0 %v4540
        %v5213 = vpop.f32.mrb[0].mxu0
        %v5214 = vadd.f32 %v4969, %v5213
        %v5215 = vpop.f32.mrb[0].mxu0
        %5216 = vmatprep.mubr.f32.mxu0 %v4550
        %5217 = vmatmul.mubr.f32.gmra.mrb[0].mxu0 %v4549
        %v5218 = vpop.f32.mrb[0].mxu0
        %v5219 = vadd.f32 %v4974, %v5218
        %v5220 = vpop.f32.mrb[0].mxu0
        %5221 = vmatprep.mubr.f32.mxu0 %v4559
        %5222 = vmatmul.mubr.f32.gmra.mrb[0].mxu0 %v4558
        %v5223 = vpop.f32.mrb[0].mxu0
        %v5224 = vadd.f32 %v4979, %v5223
        %v5225 = vpop.f32.mrb[0].mxu0
        %5226 = vmatprep.mubr.f32.mxu0 %v4568
        %5227 = vmatmul.mubr.f32.gmra.mrb[0].mxu0 %v4567
        %v5228 = vpop.f32.mrb[0].mxu0
        %v5229 = vadd.f32 %v4984, %v5228
        %v5230 = vpop.f32.mrb[0].mxu0
        %5231 = vmatprep.mubr.f32.mxu0 %v4577
        %5232 = vmatmul.mubr.f32.gmra.mrb[0].mxu0 %v4576
        %v5233 = vpop.f32.mrb[0].mxu0
        %v5234 = vadd.f32 %v4989, %v5233
        %v5235 = vpop.f32.mrb[0].mxu0
        %5236 = vmatprep.mubr.f32.mxu0 %v4586
        %5237 = vmatmul.mubr.f32.gmra.mrb[0].mxu0 %v4585
        %v5238 = vpop.f32.mrb[0].mxu0
        %v5239 = vadd.f32 %v4994, %v5238
        %v5240 = vpop.f32.mrb[0].mxu0
        %5241 = vmatprep.mubr.f32.mxu0 %v4595
        %5242 = vmatmul.mubr.f32.gmra.mrb[0].mxu0 %v4594
        %v5243 = vpop.f32.mrb[0].mxu0
        %v5244 = vadd.f32 %v4999, %v5243
        %v5245 = vpop.f32.mrb[0].mxu0
        %5246 = vmatprep.mubr.f32.mxu0 %v4604
        %5247 = vmatmul.mubr.f32.gmra.mrb[0].mxu0 %v4603
        %v5248 = vpop.f32.mrb[0].mxu0
        %v5249 = vadd.f32 %v5004, %v5248
        %v5250 = vpop.f32.mrb[0].mxu0
        %5251 = vmatprep.mubr.f32.mxu0 %v4613
        %5252 = vmatmul.mubr.f32.gmra.mrb[0].mxu0 %v4612
        %v5253 = vpop.f32.mrb[0].mxu0
        %v5254 = vadd.f32 %v5009, %v5253
        %v5255 = vpop.f32.mrb[0].mxu0
        %5256 = vmatprep.mubr.f32.mxu0 %v4622
        %5257 = vmatmul.mubr.f32.gmra.mrb[0].mxu0 %v4621
        %v5258 = vpop.f32.mrb[0].mxu0
        %v5259 = vadd.f32 %v5014, %v5258
        %v5260 = vpop.f32.mrb[0].mxu0
        %5261 = vdwg.mxu0
        %5262 = vmatprep.subr.mxu0 0.0
        %5263 = vmatpush1.msra.mxu0 %v4692
        %5264 = vmatprep.subr.mxu0 0.0
        %5265 = vmatpush1.msra.mxu0 %v4693
        %5266 = vmatprep.subr.mxu0 0.0
        %5267 = vmatpush1.msra.mxu0 %v4694
        %5268 = vmatprep.subr.mxu0 0.0
        %5269 = vmatpush1.msra.mxu0 %v4695
        %5270 = vmatprep.subr.mxu0 0.0
        %5271 = vmatpush1.msra.mxu0 %v4696
        %5272 = vmatprep.subr.mxu0 0.0
        %5273 = vmatpush1.msra.mxu0 %v4697
        %5274 = vmatprep.subr.mxu0 0.0
        %5275 = vmatpush1.msra.mxu0 %v4698
        %5276 = vmatprep.subr.mxu0 0.0
        %5277 = vmatpush1.msra.mxu0 %v4699
        %5278 = vmatprep.subr.mxu0 0.0
        %5279 = vmatpush1.msra.mxu0 %v4700
        %5280 = vmatprep.subr.mxu0 0.0
        %5281 = vmatpush1.msra.mxu0 %v4701
        %5282 = vmatprep.subr.mxu0 0.0
        %5283 = vmatpush1.msra.mxu0 %v4702
        %5284 = vmatprep.subr.mxu0 0.0
        %5285 = vmatpush1.msra.mxu0 %v4703
        %5286 = vmatprep.subr.mxu0 0.0
        %5287 = vmatpush1.msra.mxu0 %v4704
        %5288 = vmatprep.subr.mxu0 0.0
        %5289 = vmatpush1.msra.mxu0 %v4705
        %5290 = vmatprep.subr.mxu0 0.0
        %5291 = vmatpush1.msra.mxu0 %v4706
        %5292 = vmatprep.subr.mxu0 0.0
        %5293 = vmatpush1.msra.mxu0 %v4707
        %5294 = vmatprep.subr.mxu0 0.0
        %5295 = vmatpush1.msra.mxu0 %v4708
        %5296 = vmatprep.subr.mxu0 0.0
        %5297 = vmatpush1.msra.mxu0 %v4709
        %5298 = vmatprep.subr.mxu0 0.0
        %5299 = vmatpush1.msra.mxu0 %v4710
        %5300 = vmatprep.subr.mxu0 0.0
        %5301 = vmatpush1.msra.mxu0 %v4711
        %5302 = vmatprep.subr.mxu0 0.0
        %5303 = vmatpush1.msra.mxu0 %v4712
        %5304 = vmatprep.subr.mxu0 0.0
        %5305 = vmatpush1.msra.mxu0 %v4713
        %5306 = vmatprep.subr.mxu0 0.0
        %5307 = vmatpush1.msra.mxu0 %v4714
        %5308 = vmatprep.subr.mxu0 0.0
        %5309 = vmatpush1.msra.mxu0 %v4715
        %5310 = vmatprep.subr.mxu0 0.0
        %5311 = vmatpush1.msra.mxu0 %v4716
        %5312 = vmatprep.subr.mxu0 0.0
        %5313 = vmatpush1.msra.mxu0 %v4717
        %5314 = vmatprep.subr.mxu0 0.0
        %5315 = vmatpush1.msra.mxu0 %v4718
        %5316 = vmatprep.subr.mxu0 0.0
        %5317 = vmatpush1.msra.mxu0 %v4719
        %5318 = vmatprep.subr.mxu0 0.0
        %5319 = vmatpush1.msra.mxu0 %v4720
        %5320 = vmatprep.subr.mxu0 0.0
        %5321 = vmatpush1.msra.mxu0 %v4721
        %5322 = vmatprep.subr.mxu0 0.0
        %5323 = vmatpush1.msra.mxu0 %v4722
        %5324 = vmatprep.subr.mxu0 0.0
        %5325 = vmatpush1.msra.mxu0 %v4723
        %5326 = vmatprep.mubr.f32.mxu0 %v4309
        %5327 = vmatmul.mubr.f32.gmra.mrb[0].mxu0 %v4308
        %v5328 = vpop.f32.mrb[0].mxu0
        %v5329 = vadd.f32 %v5084, %v5328
        %v5330 = vpop.f32.mrb[0].mxu0
        %5331 = vmatprep.mubr.f32.mxu0 %v4318
        %5332 = vmatmul.mubr.f32.gmra.mrb[0].mxu0 %v4317
        %v5333 = vpop.f32.mrb[0].mxu0
        %v5334 = vadd.f32 %v5089, %v5333
        %v5335 = vpop.f32.mrb[0].mxu0
        %5336 = vmatprep.mubr.f32.mxu0 %v4327
        %5337 = vmatmul.mubr.f32.gmra.mrb[0].mxu0 %v4326
        %v5338 = vpop.f32.mrb[0].mxu0
        %v5339 = vadd.f32 %v5094, %v5338
        %v5340 = vpop.f32.mrb[0].mxu0
        %5341 = vmatprep.mubr.f32.mxu0 %v4336
        %5342 = vmatmul.mubr.f32.gmra.mrb[0].mxu0 %v4335
        %v5343 = vpop.f32.mrb[0].mxu0
        %v5344 = vadd.f32 %v5099, %v5343
        %v5345 = vpop.f32.mrb[0].mxu0
        %5346 = vmatprep.mubr.f32.mxu0 %v4345
        %5347 = vmatmul.mubr.f32.gmra.mrb[0].mxu0 %v4344
        %v5348 = vpop.f32.mrb[0].mxu0
        %v5349 = vadd.f32 %v5104, %v5348
        %v5350 = vpop.f32.mrb[0].mxu0
        %5351 = vmatprep.mubr.f32.mxu0 %v4354
        %5352 = vmatmul.mubr.f32.gmra.mrb[0].mxu0 %v4353
        %v5353 = vpop.f32.mrb[0].mxu0
        %v5354 = vadd.f32 %v5109, %v5353
        %v5355 = vpop.f32.mrb[0].mxu0
        %5356 = vmatprep.mubr.f32.mxu0 %v4363
        %5357 = vmatmul.mubr.f32.gmra.mrb[0].mxu0 %v4362
        %v5358 = vpop.f32.mrb[0].mxu0
        %v5359 = vadd.f32 %v5114, %v5358
        %v5360 = vpop.f32.mrb[0].mxu0
        %5361 = vmatprep.mubr.f32.mxu0 %v4372
        %5362 = vmatmul.mubr.f32.gmra.mrb[0].mxu0 %v4371
        %v5363 = vpop.f32.mrb[0].mxu0
        %v5364 = vadd.f32 %v5119, %v5363
        %v5365 = vpop.f32.mrb[0].mxu0
        %5366 = vmatprep.mubr.f32.mxu0 %v4381
        %5367 = vmatmul.mubr.f32.gmra.mrb[0].mxu0 %v4380
        %v5368 = vpop.f32.mrb[0].mxu0
        %v5369 = vadd.f32 %v5124, %v5368
        %v5370 = vpop.f32.mrb[0].mxu0
        %5371 = vmatprep.mubr.f32.mxu0 %v4390
        %5372 = vmatmul.mubr.f32.gmra.mrb[0].mxu0 %v4389
        %v5373 = vpop.f32.mrb[0].mxu0
        %v5374 = vadd.f32 %v5129, %v5373
        %v5375 = vpop.f32.mrb[0].mxu0
        %5376 = vmatprep.mubr.f32.mxu0 %v4399
        %5377 = vmatmul.mubr.f32.gmra.mrb[0].mxu0 %v4398
        %v5378 = vpop.f32.mrb[0].mxu0
        %v5379 = vadd.f32 %v5134, %v5378
        %v5380 = vpop.f32.mrb[0].mxu0
        %5381 = vmatprep.mubr.f32.mxu0 %v4408
        %5382 = vmatmul.mubr.f32.gmra.mrb[0].mxu0 %v4407
        %v5383 = vpop.f32.mrb[0].mxu0
        %v5384 = vadd.f32 %v5139, %v5383
        %v5385 = vpop.f32.mrb[0].mxu0
        %5386 = vmatprep.mubr.f32.mxu0 %v4417
        %5387 = vmatmul.mubr.f32.gmra.mrb[0].mxu0 %v4416
        %v5388 = vpop.f32.mrb[0].mxu0
        %v5389 = vadd.f32 %v5144, %v5388
        %v5390 = vpop.f32.mrb[0].mxu0
        %5391 = vmatprep.mubr.f32.mxu0 %v4426
        %5392 = vmatmul.mubr.f32.gmra.mrb[0].mxu0 %v4425
        %v5393 = vpop.f32.mrb[0].mxu0
        %v5394 = vadd.f32 %v5149, %v5393
        %v5395 = vpop.f32.mrb[0].mxu0
        %5396 = vmatprep.mubr.f32.mxu0 %v4435
        %5397 = vmatmul.mubr.f32.gmra.mrb[0].mxu0 %v4434
        %v5398 = vpop.f32.mrb[0].mxu0
        %v5399 = vadd.f32 %v5154, %v5398
        %v5400 = vpop.f32.mrb[0].mxu0
        %5401 = vmatprep.mubr.f32.mxu0 %v4444
        %5402 = vmatmul.mubr.f32.gmra.mrb[0].mxu0 %v4443
        %v5403 = vpop.f32.mrb[0].mxu0
        %v5404 = vadd.f32 %v5159, %v5403
        %v5405 = vpop.f32.mrb[0].mxu0
        %5406 = vmatprep.mubr.f32.mxu0 %v4453
        %5407 = vmatmul.mubr.f32.gmra.mrb[0].mxu0 %v4452
        %v5408 = vpop.f32.mrb[0].mxu0
        %v5409 = vadd.f32 %v5164, %v5408
        %v5410 = vpop.f32.mrb[0].mxu0
        %5411 = vmatprep.mubr.f32.mxu0 %v4462
        %5412 = vmatmul.mubr.f32.gmra.mrb[0].mxu0 %v4461
        %v5413 = vpop.f32.mrb[0].mxu0
        %v5414 = vadd.f32 %v5169, %v5413
        %v5415 = vpop.f32.mrb[0].mxu0
        %5416 = vmatprep.mubr.f32.mxu0 %v4471
        %5417 = vmatmul.mubr.f32.gmra.mrb[0].mxu0 %v4470
        %v5418 = vpop.f32.mrb[0].mxu0
        %v5419 = vadd.f32 %v5174, %v5418
        %v5420 = vpop.f32.mrb[0].mxu0
        %5421 = vmatprep.mubr.f32.mxu0 %v4480
        %5422 = vmatmul.mubr.f32.gmra.mrb[0].mxu0 %v4479
        %v5423 = vpop.f32.mrb[0].mxu0
        %v5424 = vadd.f32 %v5179, %v5423
        %v5425 = vpop.f32.mrb[0].mxu0
        %5426 = vmatprep.mubr.f32.mxu0 %v4489
        %5427 = vmatmul.mubr.f32.gmra.mrb[0].mxu0 %v4488
        %v5428 = vpop.f32.mrb[0].mxu0
        %v5429 = vadd.f32 %v5184, %v5428
        %v5430 = vpop.f32.mrb[0].mxu0
        %5431 = vmatprep.mubr.f32.mxu0 %v4498
        %5432 = vmatmul.mubr.f32.gmra.mrb[0].mxu0 %v4497
        %v5433 = vpop.f32.mrb[0].mxu0
        %v5434 = vadd.f32 %v5189, %v5433
        %v5435 = vpop.f32.mrb[0].mxu0
        %5436 = vmatprep.mubr.f32.mxu0 %v4507
        %5437 = vmatmul.mubr.f32.gmra.mrb[0].mxu0 %v4506
        %v5438 = vpop.f32.mrb[0].mxu0
        %v5439 = vadd.f32 %v5194, %v5438
        %v5440 = vpop.f32.mrb[0].mxu0
        %5441 = vmatprep.mubr.f32.mxu0 %v4516
        %5442 = vmatmul.mubr.f32.gmra.mrb[0].mxu0 %v4515
        %v5443 = vpop.f32.mrb[0].mxu0
        %v5444 = vadd.f32 %v5199, %v5443
        %v5445 = vpop.f32.mrb[0].mxu0
        %5446 = vmatprep.mubr.f32.mxu0 %v4525
        %5447 = vmatmul.mubr.f32.gmra.mrb[0].mxu0 %v4524
        %v5448 = vpop.f32.mrb[0].mxu0
        %v5449 = vadd.f32 %v5204, %v5448
        %v5450 = vpop.f32.mrb[0].mxu0
        %5451 = vmatprep.mubr.f32.mxu0 %v4534
        %5452 = vmatmul.mubr.f32.gmra.mrb[0].mxu0 %v4533
        %v5453 = vpop.f32.mrb[0].mxu0
        %v5454 = vadd.f32 %v5209, %v5453
        %v5455 = vpop.f32.mrb[0].mxu0
        %5456 = vmatprep.mubr.f32.mxu0 %v4543
        %5457 = vmatmul.mubr.f32.gmra.mrb[0].mxu0 %v4542
        %v5458 = vpop.f32.mrb[0].mxu0
        %v5459 = vadd.f32 %v5214, %v5458
        %v5460 = vpop.f32.mrb[0].mxu0
        %5461 = vmatprep.mubr.f32.mxu0 %v4552
        %5462 = vmatmul.mubr.f32.gmra.mrb[0].mxu0 %v4551
        %v5463 = vpop.f32.mrb[0].mxu0
        %v5464 = vadd.f32 %v5219, %v5463
        %v5465 = vpop.f32.mrb[0].mxu0
        %5466 = vmatprep.mubr.f32.mxu0 %v4561
        %5467 = vmatmul.mubr.f32.gmra.mrb[0].mxu0 %v4560
        %v5468 = vpop.f32.mrb[0].mxu0
        %v5469 = vadd.f32 %v5224, %v5468
        %v5470 = vpop.f32.mrb[0].mxu0
        %5471 = vmatprep.mubr.f32.mxu0 %v4570
        %5472 = vmatmul.mubr.f32.gmra.mrb[0].mxu0 %v4569
        %v5473 = vpop.f32.mrb[0].mxu0
        %v5474 = vadd.f32 %v5229, %v5473
        %v5475 = vpop.f32.mrb[0].mxu0
        %5476 = vmatprep.mubr.f32.mxu0 %v4579
        %5477 = vmatmul.mubr.f32.gmra.mrb[0].mxu0 %v4578
        %v5478 = vpop.f32.mrb[0].mxu0
        %v5479 = vadd.f32 %v5234, %v5478
        %v5480 = vpop.f32.mrb[0].mxu0
        %5481 = vmatprep.mubr.f32.mxu0 %v4588
        %5482 = vmatmul.mubr.f32.gmra.mrb[0].mxu0 %v4587
        %v5483 = vpop.f32.mrb[0].mxu0
        %v5484 = vadd.f32 %v5239, %v5483
        %v5485 = vpop.f32.mrb[0].mxu0
        %5486 = vmatprep.mubr.f32.mxu0 %v4597
        %5487 = vmatmul.mubr.f32.gmra.mrb[0].mxu0 %v4596
        %v5488 = vpop.f32.mrb[0].mxu0
        %v5489 = vadd.f32 %v5244, %v5488
        %v5490 = vpop.f32.mrb[0].mxu0
        %5491 = vmatprep.mubr.f32.mxu0 %v4606
        %5492 = vmatmul.mubr.f32.gmra.mrb[0].mxu0 %v4605
        %v5493 = vpop.f32.mrb[0].mxu0
        %v5494 = vadd.f32 %v5249, %v5493
        %v5495 = vpop.f32.mrb[0].mxu0
        %5496 = vmatprep.mubr.f32.mxu0 %v4615
        %5497 = vmatmul.mubr.f32.gmra.mrb[0].mxu0 %v4614
        %v5498 = vpop.f32.mrb[0].mxu0
        %v5499 = vadd.f32 %v5254, %v5498
        %v5500 = vpop.f32.mrb[0].mxu0
        %5501 = vmatprep.mubr.f32.mxu0 %v4624
        %5502 = vmatmul.mubr.f32.gmra.mrb[0].mxu0 %v4623
        %v5503 = vpop.f32.mrb[0].mxu0
        %v5504 = vadd.f32 %v5259, %v5503
        %v5505 = vpop.f32.mrb[0].mxu0
        %5506 = vdwg.mxu0
        %5507 = vmatprep.subr.mxu0 0.0
        %5508 = vmatpush1.msra.mxu0 %v4724
        %5509 = vmatprep.subr.mxu0 0.0
        %5510 = vmatpush1.msra.mxu0 %v4725
        %5511 = vmatprep.subr.mxu0 0.0
        %5512 = vmatpush1.msra.mxu0 %v4726
        %5513 = vmatprep.subr.mxu0 0.0
        %5514 = vmatpush1.msra.mxu0 %v4727
        %5515 = vmatprep.subr.mxu0 0.0
        %5516 = vmatpush1.msra.mxu0 %v4728
        %5517 = vmatprep.subr.mxu0 0.0
        %5518 = vmatpush1.msra.mxu0 %v4729
        %5519 = vmatprep.subr.mxu0 0.0
        %5520 = vmatpush1.msra.mxu0 %v4730
        %5521 = vmatprep.subr.mxu0 0.0
        %5522 = vmatpush1.msra.mxu0 %v4731
        %5523 = vmatprep.subr.mxu0 0.0
        %5524 = vmatpush1.msra.mxu0 %v4732
        %5525 = vmatprep.subr.mxu0 0.0
        %5526 = vmatpush1.msra.mxu0 %v4733
        %5527 = vmatprep.subr.mxu0 0.0
        %5528 = vmatpush1.msra.mxu0 %v4734
        %5529 = vmatprep.subr.mxu0 0.0
        %5530 = vmatpush1.msra.mxu0 %v4735
        %5531 = vmatprep.subr.mxu0 0.0
        %5532 = vmatpush1.msra.mxu0 %v4736
        %5533 = vmatprep.subr.mxu0 0.0
        %5534 = vmatpush1.msra.mxu0 %v4737
        %5535 = vmatprep.subr.mxu0 0.0
        %5536 = vmatpush1.msra.mxu0 %v4738
        %5537 = vmatprep.subr.mxu0 0.0
        %5538 = vmatpush1.msra.mxu0 %v4739
        %5539 = vmatprep.subr.mxu0 0.0
        %5540 = vmatpush1.msra.mxu0 %v4740
        %5541 = vmatprep.subr.mxu0 0.0
        %5542 = vmatpush1.msra.mxu0 %v4741
        %5543 = vmatprep.subr.mxu0 0.0
        %5544 = vmatpush1.msra.mxu0 %v4742
        %5545 = vmatprep.subr.mxu0 0.0
        %5546 = vmatpush1.msra.mxu0 %v4743
        %5547 = vmatprep.subr.mxu0 0.0
        %5548 = vmatpush1.msra.mxu0 %v4744
        %5549 = vmatprep.subr.mxu0 0.0
        %5550 = vmatpush1.msra.mxu0 %v4745
        %5551 = vmatprep.subr.mxu0 0.0
        %5552 = vmatpush1.msra.mxu0 %v4746
        %5553 = vmatprep.subr.mxu0 0.0
        %5554 = vmatpush1.msra.mxu0 %v4747
        %5555 = vmatprep.subr.mxu0 0.0
        %5556 = vmatpush1.msra.mxu0 %v4748
        %5557 = vmatprep.subr.mxu0 0.0
        %5558 = vmatpush1.msra.mxu0 %v4749
        %5559 = vmatprep.subr.mxu0 0.0
        %5560 = vmatpush1.msra.mxu0 %v4750
        %5561 = vmatprep.subr.mxu0 0.0
        %5562 = vmatpush1.msra.mxu0 %v4751
        %5563 = vmatprep.subr.mxu0 0.0
        %5564 = vmatpush1.msra.mxu0 %v4752
        %5565 = vmatprep.subr.mxu0 0.0
        %5566 = vmatpush1.msra.mxu0 %v4753
        %5567 = vmatprep.subr.mxu0 0.0
        %5568 = vmatpush1.msra.mxu0 %v4754
        %5569 = vmatprep.subr.mxu0 0.0
        %5570 = vmatpush1.msra.mxu0 %v4755
        %5571 = vmatprep.mubr.f32.mxu0 %v4311
        %5572 = vmatmul.mubr.f32.gmra.mrb[0].mxu0 %v4310
        %v5573 = vpop.f32.mrb[0].mxu0
        %v5574 = vadd.f32 %v5329, %v5573
        %v5575 = vpop.f32.mrb[0].mxu0
        %5576 = vmatprep.mubr.f32.mxu0 %v4320
        %5577 = vmatmul.mubr.f32.gmra.mrb[0].mxu0 %v4319
        %v5578 = vpop.f32.mrb[0].mxu0
        %v5579 = vadd.f32 %v5334, %v5578
        %v5580 = vpop.f32.mrb[0].mxu0
        %5581 = vmatprep.mubr.f32.mxu0 %v4329
        %5582 = vmatmul.mubr.f32.gmra.mrb[0].mxu0 %v4328
        %v5583 = vpop.f32.mrb[0].mxu0
        %v5584 = vadd.f32 %v5339, %v5583
        %v5585 = vpop.f32.mrb[0].mxu0
        %5586 = vmatprep.mubr.f32.mxu0 %v4338
        %5587 = vmatmul.mubr.f32.gmra.mrb[0].mxu0 %v4337
        %v5588 = vpop.f32.mrb[0].mxu0
        %v5589 = vadd.f32 %v5344, %v5588
        %v5590 = vpop.f32.mrb[0].mxu0
        %5591 = vmatprep.mubr.f32.mxu0 %v4347
        %5592 = vmatmul.mubr.f32.gmra.mrb[0].mxu0 %v4346
        %v5593 = vpop.f32.mrb[0].mxu0
        %v5594 = vadd.f32 %v5349, %v5593
        %v5595 = vpop.f32.mrb[0].mxu0
        %5596 = vmatprep.mubr.f32.mxu0 %v4356
        %5597 = vmatmul.mubr.f32.gmra.mrb[0].mxu0 %v4355
        %v5598 = vpop.f32.mrb[0].mxu0
        %v5599 = vadd.f32 %v5354, %v5598
        %v5600 = vpop.f32.mrb[0].mxu0
        %5601 = vmatprep.mubr.f32.mxu0 %v4365
        %5602 = vmatmul.mubr.f32.gmra.mrb[0].mxu0 %v4364
        %v5603 = vpop.f32.mrb[0].mxu0
        %v5604 = vadd.f32 %v5359, %v5603
        %v5605 = vpop.f32.mrb[0].mxu0
        %5606 = vmatprep.mubr.f32.mxu0 %v4374
        %5607 = vmatmul.mubr.f32.gmra.mrb[0].mxu0 %v4373
        %v5608 = vpop.f32.mrb[0].mxu0
        %v5609 = vadd.f32 %v5364, %v5608
        %v5610 = vpop.f32.mrb[0].mxu0
        %5611 = vmatprep.mubr.f32.mxu0 %v4383
        %5612 = vmatmul.mubr.f32.gmra.mrb[0].mxu0 %v4382
        %v5613 = vpop.f32.mrb[0].mxu0
        %v5614 = vadd.f32 %v5369, %v5613
        %v5615 = vpop.f32.mrb[0].mxu0
        %5616 = vmatprep.mubr.f32.mxu0 %v4392
        %5617 = vmatmul.mubr.f32.gmra.mrb[0].mxu0 %v4391
        %v5618 = vpop.f32.mrb[0].mxu0
        %v5619 = vadd.f32 %v5374, %v5618
        %v5620 = vpop.f32.mrb[0].mxu0
        %5621 = vmatprep.mubr.f32.mxu0 %v4401
        %5622 = vmatmul.mubr.f32.gmra.mrb[0].mxu0 %v4400
        %v5623 = vpop.f32.mrb[0].mxu0
        %v5624 = vadd.f32 %v5379, %v5623
        %v5625 = vpop.f32.mrb[0].mxu0
        %5626 = vmatprep.mubr.f32.mxu0 %v4410
        %5627 = vmatmul.mubr.f32.gmra.mrb[0].mxu0 %v4409
        %v5628 = vpop.f32.mrb[0].mxu0
        %v5629 = vadd.f32 %v5384, %v5628
        %v5630 = vpop.f32.mrb[0].mxu0
        %5631 = vmatprep.mubr.f32.mxu0 %v4419
        %5632 = vmatmul.mubr.f32.gmra.mrb[0].mxu0 %v4418
        %v5633 = vpop.f32.mrb[0].mxu0
        %v5634 = vadd.f32 %v5389, %v5633
        %v5635 = vpop.f32.mrb[0].mxu0
        %5636 = vmatprep.mubr.f32.mxu0 %v4428
        %5637 = vmatmul.mubr.f32.gmra.mrb[0].mxu0 %v4427
        %v5638 = vpop.f32.mrb[0].mxu0
        %v5639 = vadd.f32 %v5394, %v5638
        %v5640 = vpop.f32.mrb[0].mxu0
        %5641 = vmatprep.mubr.f32.mxu0 %v4437
        %5642 = vmatmul.mubr.f32.gmra.mrb[0].mxu0 %v4436
        %v5643 = vpop.f32.mrb[0].mxu0
        %v5644 = vadd.f32 %v5399, %v5643
        %v5645 = vpop.f32.mrb[0].mxu0
        %5646 = vmatprep.mubr.f32.mxu0 %v4446
        %5647 = vmatmul.mubr.f32.gmra.mrb[0].mxu0 %v4445
        %v5648 = vpop.f32.mrb[0].mxu0
        %v5649 = vadd.f32 %v5404, %v5648
        %v5650 = vpop.f32.mrb[0].mxu0
        %5651 = vmatprep.mubr.f32.mxu0 %v4455
        %5652 = vmatmul.mubr.f32.gmra.mrb[0].mxu0 %v4454
        %v5653 = vpop.f32.mrb[0].mxu0
        %v5654 = vadd.f32 %v5409, %v5653
        %v5655 = vpop.f32.mrb[0].mxu0
        %5656 = vmatprep.mubr.f32.mxu0 %v4464
        %5657 = vmatmul.mubr.f32.gmra.mrb[0].mxu0 %v4463
        %v5658 = vpop.f32.mrb[0].mxu0
        %v5659 = vadd.f32 %v5414, %v5658
        %v5660 = vpop.f32.mrb[0].mxu0
        %5661 = vmatprep.mubr.f32.mxu0 %v4473
        %5662 = vmatmul.mubr.f32.gmra.mrb[0].mxu0 %v4472
        %v5663 = vpop.f32.mrb[0].mxu0
        %v5664 = vadd.f32 %v5419, %v5663
        %v5665 = vpop.f32.mrb[0].mxu0
        %5666 = vmatprep.mubr.f32.mxu0 %v4482
        %5667 = vmatmul.mubr.f32.gmra.mrb[0].mxu0 %v4481
        %v5668 = vpop.f32.mrb[0].mxu0
        %v5669 = vadd.f32 %v5424, %v5668
        %v5670 = vpop.f32.mrb[0].mxu0
        %5671 = vmatprep.mubr.f32.mxu0 %v4491
        %5672 = vmatmul.mubr.f32.gmra.mrb[0].mxu0 %v4490
        %v5673 = vpop.f32.mrb[0].mxu0
        %v5674 = vadd.f32 %v5429, %v5673
        %v5675 = vpop.f32.mrb[0].mxu0
        %5676 = vmatprep.mubr.f32.mxu0 %v4500
        %5677 = vmatmul.mubr.f32.gmra.mrb[0].mxu0 %v4499
        %v5678 = vpop.f32.mrb[0].mxu0
        %v5679 = vadd.f32 %v5434, %v5678
        %v5680 = vpop.f32.mrb[0].mxu0
        %5681 = vmatprep.mubr.f32.mxu0 %v4509
        %5682 = vmatmul.mubr.f32.gmra.mrb[0].mxu0 %v4508
        %v5683 = vpop.f32.mrb[0].mxu0
        %v5684 = vadd.f32 %v5439, %v5683
        %v5685 = vpop.f32.mrb[0].mxu0
        %5686 = vmatprep.mubr.f32.mxu0 %v4518
        %5687 = vmatmul.mubr.f32.gmra.mrb[0].mxu0 %v4517
        %v5688 = vpop.f32.mrb[0].mxu0
        %v5689 = vadd.f32 %v5444, %v5688
        %v5690 = vpop.f32.mrb[0].mxu0
        %5691 = vmatprep.mubr.f32.mxu0 %v4527
        %5692 = vmatmul.mubr.f32.gmra.mrb[0].mxu0 %v4526
        %v5693 = vpop.f32.mrb[0].mxu0
        %v5694 = vadd.f32 %v5449, %v5693
        %v5695 = vpop.f32.mrb[0].mxu0
        %5696 = vmatprep.mubr.f32.mxu0 %v4536
        %5697 = vmatmul.mubr.f32.gmra.mrb[0].mxu0 %v4535
        %v5698 = vpop.f32.mrb[0].mxu0
        %v5699 = vadd.f32 %v5454, %v5698
        %v5700 = vpop.f32.mrb[0].mxu0
        %5701 = vmatprep.mubr.f32.mxu0 %v4545
        %5702 = vmatmul.mubr.f32.gmra.mrb[0].mxu0 %v4544
        %v5703 = vpop.f32.mrb[0].mxu0
        %v5704 = vadd.f32 %v5459, %v5703
        %v5705 = vpop.f32.mrb[0].mxu0
        %5706 = vmatprep.mubr.f32.mxu0 %v4554
        %5707 = vmatmul.mubr.f32.gmra.mrb[0].mxu0 %v4553
        %v5708 = vpop.f32.mrb[0].mxu0
        %v5709 = vadd.f32 %v5464, %v5708
        %v5710 = vpop.f32.mrb[0].mxu0
        %5711 = vmatprep.mubr.f32.mxu0 %v4563
        %5712 = vmatmul.mubr.f32.gmra.mrb[0].mxu0 %v4562
        %v5713 = vpop.f32.mrb[0].mxu0
        %v5714 = vadd.f32 %v5469, %v5713
        %v5715 = vpop.f32.mrb[0].mxu0
        %5716 = vmatprep.mubr.f32.mxu0 %v4572
        %5717 = vmatmul.mubr.f32.gmra.mrb[0].mxu0 %v4571
        %v5718 = vpop.f32.mrb[0].mxu0
        %v5719 = vadd.f32 %v5474, %v5718
        %v5720 = vpop.f32.mrb[0].mxu0
        %5721 = vmatprep.mubr.f32.mxu0 %v4581
        %5722 = vmatmul.mubr.f32.gmra.mrb[0].mxu0 %v4580
        %v5723 = vpop.f32.mrb[0].mxu0
        %v5724 = vadd.f32 %v5479, %v5723
        %v5725 = vpop.f32.mrb[0].mxu0
        %5726 = vmatprep.mubr.f32.mxu0 %v4590
        %5727 = vmatmul.mubr.f32.gmra.mrb[0].mxu0 %v4589
        %v5728 = vpop.f32.mrb[0].mxu0
        %v5729 = vadd.f32 %v5484, %v5728
        %v5730 = vpop.f32.mrb[0].mxu0
        %5731 = vmatprep.mubr.f32.mxu0 %v4599
        %5732 = vmatmul.mubr.f32.gmra.mrb[0].mxu0 %v4598
        %v5733 = vpop.f32.mrb[0].mxu0
        %v5734 = vadd.f32 %v5489, %v5733
        %v5735 = vpop.f32.mrb[0].mxu0
        %5736 = vmatprep.mubr.f32.mxu0 %v4608
        %5737 = vmatmul.mubr.f32.gmra.mrb[0].mxu0 %v4607
        %v5738 = vpop.f32.mrb[0].mxu0
        %v5739 = vadd.f32 %v5494, %v5738
        %v5740 = vpop.f32.mrb[0].mxu0
        %5741 = vmatprep.mubr.f32.mxu0 %v4617
        %5742 = vmatmul.mubr.f32.gmra.mrb[0].mxu0 %v4616
        %v5743 = vpop.f32.mrb[0].mxu0
        %v5744 = vadd.f32 %v5499, %v5743
        %v5745 = vpop.f32.mrb[0].mxu0
        %5746 = vmatprep.mubr.f32.mxu0 %v4626
        %5747 = vmatmul.mubr.f32.gmra.mrb[0].mxu0 %v4625
        %v5748 = vpop.f32.mrb[0].mxu0
        %v5749 = vadd.f32 %v5504, %v5748
        %v5750 = vpop.f32.mrb[0].mxu0
        %5751 = vdwg.mxu0
        %5752 = vmatprep.subr.mxu0 0.0
        %5753 = vmatpush1.msra.mxu0 %v4756
        %5754 = vmatprep.subr.mxu0 0.0
        %5755 = vmatpush1.msra.mxu0 %v4757
        %5756 = vmatprep.subr.mxu0 0.0
        %5757 = vmatpush1.msra.mxu0 %v4758
        %5758 = vmatprep.subr.mxu0 0.0
        %5759 = vmatpush1.msra.mxu0 %v4759
        %5760 = vmatprep.subr.mxu0 0.0
        %5761 = vmatpush1.msra.mxu0 %v4760
        %5762 = vmatprep.subr.mxu0 0.0
        %5763 = vmatpush1.msra.mxu0 %v4761
        %5764 = vmatprep.subr.mxu0 0.0
        %5765 = vmatpush1.msra.mxu0 %v4762
        %5766 = vmatprep.subr.mxu0 0.0
        %5767 = vmatpush1.msra.mxu0 %v4763
        %5768 = vmatprep.subr.mxu0 0.0
        %5769 = vmatpush1.msra.mxu0 %v4764
        %5770 = vmatprep.subr.mxu0 0.0
        %5771 = vmatpush1.msra.mxu0 %v4765
        %5772 = vmatprep.subr.mxu0 0.0
        %5773 = vmatpush1.msra.mxu0 %v4766
        %5774 = vmatprep.subr.mxu0 0.0
        %5775 = vmatpush1.msra.mxu0 %v4767
        %5776 = vmatprep.subr.mxu0 0.0
        %5777 = vmatpush1.msra.mxu0 %v4768
        %5778 = vmatprep.subr.mxu0 0.0
        %5779 = vmatpush1.msra.mxu0 %v4769
        %5780 = vmatprep.subr.mxu0 0.0
        %5781 = vmatpush1.msra.mxu0 %v4770
        %5782 = vmatprep.subr.mxu0 0.0
        %5783 = vmatpush1.msra.mxu0 %v4771
        %5784 = vmatprep.subr.mxu0 0.0
        %5785 = vmatpush1.msra.mxu0 0.0
        %5786 = vmatprep.subr.mxu0 0.0
        %5787 = vmatpush1.msra.mxu0 0.0
        %5788 = vmatprep.subr.mxu0 0.0
        %5789 = vmatpush1.msra.mxu0 0.0
        %5790 = vmatprep.subr.mxu0 0.0
        %5791 = vmatpush1.msra.mxu0 0.0
        %5792 = vmatprep.subr.mxu0 0.0
        %5793 = vmatpush1.msra.mxu0 0.0
        %5794 = vmatprep.subr.mxu0 0.0
        %5795 = vmatpush1.msra.mxu0 0.0
        %5796 = vmatprep.subr.mxu0 0.0
        %5797 = vmatpush1.msra.mxu0 0.0
        %5798 = vmatprep.subr.mxu0 0.0
        %5799 = vmatpush1.msra.mxu0 0.0
        %5800 = vmatprep.subr.mxu0 0.0
        %5801 = vmatpush1.msra.mxu0 0.0
        %5802 = vmatprep.subr.mxu0 0.0
        %5803 = vmatpush1.msra.mxu0 0.0
        %5804 = vmatprep.subr.mxu0 0.0
        %5805 = vmatpush1.msra.mxu0 0.0
        %5806 = vmatprep.subr.mxu0 0.0
        %5807 = vmatpush1.msra.mxu0 0.0
        %5808 = vmatprep.subr.mxu0 0.0
        %5809 = vmatpush1.msra.mxu0 0.0
        %5810 = vmatprep.subr.mxu0 0.0
        %5811 = vmatpush1.msra.mxu0 0.0
        %5812 = vmatprep.subr.mxu0 0.0
        %5813 = vmatpush1.msra.mxu0 0.0
        %5814 = vmatprep.subr.mxu0 0.0
        %5815 = vmatpush1.msra.mxu0 0.0
        %5816 = vmatprep.mubr.f32.mxu0 0.0
        %5817 = vmatmul.mubr.f32.gmra.mrb[0].mxu0 %v4312
        %v5818 = vpop.f32.mrb[0].mxu0
        %v5819 = vadd.f32 %v5574, %v5818
        %v5820 = vpop.f32.mrb[0].mxu0
        %5821 = vmatprep.mubr.f32.mxu0 0.0
        %5822 = vmatmul.mubr.f32.gmra.mrb[0].mxu0 %v4321
        %v5823 = vpop.f32.mrb[0].mxu0
        %v5824 = vadd.f32 %v5579, %v5823
        %v5825 = vpop.f32.mrb[0].mxu0
        %5826 = vmatprep.mubr.f32.mxu0 0.0
        %5827 = vmatmul.mubr.f32.gmra.mrb[0].mxu0 %v4330
        %v5828 = vpop.f32.mrb[0].mxu0
        %v5829 = vadd.f32 %v5584, %v5828
        %v5830 = vpop.f32.mrb[0].mxu0
        %5831 = vmatprep.mubr.f32.mxu0 0.0
        %5832 = vmatmul.mubr.f32.gmra.mrb[0].mxu0 %v4339
        %v5833 = vpop.f32.mrb[0].mxu0
        %v5834 = vadd.f32 %v5589, %v5833
        %v5835 = vpop.f32.mrb[0].mxu0
        %5836 = vmatprep.mubr.f32.mxu0 0.0
        %5837 = vmatmul.mubr.f32.gmra.mrb[0].mxu0 %v4348
        %v5838 = vpop.f32.mrb[0].mxu0
        %v5839 = vadd.f32 %v5594, %v5838
        %v5840 = vpop.f32.mrb[0].mxu0
        %5841 = vmatprep.mubr.f32.mxu0 0.0
        %5842 = vmatmul.mubr.f32.gmra.mrb[0].mxu0 %v4357
        %v5843 = vpop.f32.mrb[0].mxu0
        %v5844 = vadd.f32 %v5599, %v5843
        %v5845 = vpop.f32.mrb[0].mxu0
        %5846 = vmatprep.mubr.f32.mxu0 0.0
        %5847 = vmatmul.mubr.f32.gmra.mrb[0].mxu0 %v4366
        %v5848 = vpop.f32.mrb[0].mxu0
        %v5849 = vadd.f32 %v5604, %v5848
        %v5850 = vpop.f32.mrb[0].mxu0
        %5851 = vmatprep.mubr.f32.mxu0 0.0
        %5852 = vmatmul.mubr.f32.gmra.mrb[0].mxu0 %v4375
        %v5853 = vpop.f32.mrb[0].mxu0
        %v5854 = vadd.f32 %v5609, %v5853
        %v5855 = vpop.f32.mrb[0].mxu0
        %5856 = vmatprep.mubr.f32.mxu0 0.0
        %5857 = vmatmul.mubr.f32.gmra.mrb[0].mxu0 %v4384
        %v5858 = vpop.f32.mrb[0].mxu0
        %v5859 = vadd.f32 %v5614, %v5858
        %v5860 = vpop.f32.mrb[0].mxu0
        %5861 = vmatprep.mubr.f32.mxu0 0.0
        %5862 = vmatmul.mubr.f32.gmra.mrb[0].mxu0 %v4393
        %v5863 = vpop.f32.mrb[0].mxu0
        %v5864 = vadd.f32 %v5619, %v5863
        %v5865 = vpop.f32.mrb[0].mxu0
        %5866 = vmatprep.mubr.f32.mxu0 0.0
        %5867 = vmatmul.mubr.f32.gmra.mrb[0].mxu0 %v4402
        %v5868 = vpop.f32.mrb[0].mxu0
        %v5869 = vadd.f32 %v5624, %v5868
        %v5870 = vpop.f32.mrb[0].mxu0
        %5871 = vmatprep.mubr.f32.mxu0 0.0
        %5872 = vmatmul.mubr.f32.gmra.mrb[0].mxu0 %v4411
        %v5873 = vpop.f32.mrb[0].mxu0
        %v5874 = vadd.f32 %v5629, %v5873
        %v5875 = vpop.f32.mrb[0].mxu0
        %5876 = vmatprep.mubr.f32.mxu0 0.0
        %5877 = vmatmul.mubr.f32.gmra.mrb[0].mxu0 %v4420
        %v5878 = vpop.f32.mrb[0].mxu0
        %v5879 = vadd.f32 %v5634, %v5878
        %v5880 = vpop.f32.mrb[0].mxu0
        %5881 = vmatprep.mubr.f32.mxu0 0.0
        %5882 = vmatmul.mubr.f32.gmra.mrb[0].mxu0 %v4429
        %v5883 = vpop.f32.mrb[0].mxu0
        %v5884 = vadd.f32 %v5639, %v5883
        %v5885 = vpop.f32.mrb[0].mxu0
        %5886 = vmatprep.mubr.f32.mxu0 0.0
        %5887 = vmatmul.mubr.f32.gmra.mrb[0].mxu0 %v4438
        %v5888 = vpop.f32.mrb[0].mxu0
        %v5889 = vadd.f32 %v5644, %v5888
        %v5890 = vpop.f32.mrb[0].mxu0
        %5891 = vmatprep.mubr.f32.mxu0 0.0
        %5892 = vmatmul.mubr.f32.gmra.mrb[0].mxu0 %v4447
        %v5893 = vpop.f32.mrb[0].mxu0
        %v5894 = vadd.f32 %v5649, %v5893
        %v5895 = vpop.f32.mrb[0].mxu0
        %5896 = vmatprep.mubr.f32.mxu0 0.0
        %5897 = vmatmul.mubr.f32.gmra.mrb[0].mxu0 %v4456
        %v5898 = vpop.f32.mrb[0].mxu0
        %v5899 = vadd.f32 %v5654, %v5898
        %v5900 = vpop.f32.mrb[0].mxu0
        %5901 = vmatprep.mubr.f32.mxu0 0.0
        %5902 = vmatmul.mubr.f32.gmra.mrb[0].mxu0 %v4465
        %v5903 = vpop.f32.mrb[0].mxu0
        %v5904 = vadd.f32 %v5659, %v5903
        %v5905 = vpop.f32.mrb[0].mxu0
        %5906 = vmatprep.mubr.f32.mxu0 0.0
        %5907 = vmatmul.mubr.f32.gmra.mrb[0].mxu0 %v4474
        %v5908 = vpop.f32.mrb[0].mxu0
        %v5909 = vadd.f32 %v5664, %v5908
        %v5910 = vpop.f32.mrb[0].mxu0
        %5911 = vmatprep.mubr.f32.mxu0 0.0
        %5912 = vmatmul.mubr.f32.gmra.mrb[0].mxu0 %v4483
        %v5913 = vpop.f32.mrb[0].mxu0
        %v5914 = vadd.f32 %v5669, %v5913
        %v5915 = vpop.f32.mrb[0].mxu0
        %5916 = vmatprep.mubr.f32.mxu0 0.0
        %5917 = vmatmul.mubr.f32.gmra.mrb[0].mxu0 %v4492
        %v5918 = vpop.f32.mrb[0].mxu0
        %v5919 = vadd.f32 %v5674, %v5918
        %v5920 = vpop.f32.mrb[0].mxu0
        %5921 = vmatprep.mubr.f32.mxu0 0.0
        %5922 = vmatmul.mubr.f32.gmra.mrb[0].mxu0 %v4501
        %v5923 = vpop.f32.mrb[0].mxu0
        %v5924 = vadd.f32 %v5679, %v5923
        %v5925 = vpop.f32.mrb[0].mxu0
        %5926 = vmatprep.mubr.f32.mxu0 0.0
        %5927 = vmatmul.mubr.f32.gmra.mrb[0].mxu0 %v4510
        %v5928 = vpop.f32.mrb[0].mxu0
        %v5929 = vadd.f32 %v5684, %v5928
        %v5930 = vpop.f32.mrb[0].mxu0
        %5931 = vmatprep.mubr.f32.mxu0 0.0
        %5932 = vmatmul.mubr.f32.gmra.mrb[0].mxu0 %v4519
        %v5933 = vpop.f32.mrb[0].mxu0
        %v5934 = vadd.f32 %v5689, %v5933
        %v5935 = vpop.f32.mrb[0].mxu0
        %5936 = vmatprep.mubr.f32.mxu0 0.0
        %5937 = vmatmul.mubr.f32.gmra.mrb[0].mxu0 %v4528
        %v5938 = vpop.f32.mrb[0].mxu0
        %v5939 = vadd.f32 %v5694, %v5938
        %v5940 = vpop.f32.mrb[0].mxu0
        %5941 = vmatprep.mubr.f32.mxu0 0.0
        %5942 = vmatmul.mubr.f32.gmra.mrb[0].mxu0 %v4537
        %v5943 = vpop.f32.mrb[0].mxu0
        %v5944 = vadd.f32 %v5699, %v5943
        %v5945 = vpop.f32.mrb[0].mxu0
        %5946 = vmatprep.mubr.f32.mxu0 0.0
        %5947 = vmatmul.mubr.f32.gmra.mrb[0].mxu0 %v4546
        %v5948 = vpop.f32.mrb[0].mxu0
        %v5949 = vadd.f32 %v5704, %v5948
        %v5950 = vpop.f32.mrb[0].mxu0
        %5951 = vmatprep.mubr.f32.mxu0 0.0
        %5952 = vmatmul.mubr.f32.gmra.mrb[0].mxu0 %v4555
        %v5953 = vpop.f32.mrb[0].mxu0
        %v5954 = vadd.f32 %v5709, %v5953
        %v5955 = vpop.f32.mrb[0].mxu0
        %5956 = vmatprep.mubr.f32.mxu0 0.0
        %5957 = vmatmul.mubr.f32.gmra.mrb[0].mxu0 %v4564
        %v5958 = vpop.f32.mrb[0].mxu0
        %v5959 = vadd.f32 %v5714, %v5958
        %v5960 = vpop.f32.mrb[0].mxu0
        %5961 = vmatprep.mubr.f32.mxu0 0.0
        %5962 = vmatmul.mubr.f32.gmra.mrb[0].mxu0 %v4573
        %v5963 = vpop.f32.mrb[0].mxu0
        %v5964 = vadd.f32 %v5719, %v5963
        %v5965 = vpop.f32.mrb[0].mxu0
        %5966 = vmatprep.mubr.f32.mxu0 0.0
        %5967 = vmatmul.mubr.f32.gmra.mrb[0].mxu0 %v4582
        %v5968 = vpop.f32.mrb[0].mxu0
        %v5969 = vadd.f32 %v5724, %v5968
        %v5970 = vpop.f32.mrb[0].mxu0
        %5971 = vmatprep.mubr.f32.mxu0 0.0
        %5972 = vmatmul.mubr.f32.gmra.mrb[0].mxu0 %v4591
        %v5973 = vpop.f32.mrb[0].mxu0
        %v5974 = vadd.f32 %v5729, %v5973
        %v5975 = vpop.f32.mrb[0].mxu0
        %5976 = vmatprep.mubr.f32.mxu0 0.0
        %5977 = vmatmul.mubr.f32.gmra.mrb[0].mxu0 %v4600
        %v5978 = vpop.f32.mrb[0].mxu0
        %v5979 = vadd.f32 %v5734, %v5978
        %v5980 = vpop.f32.mrb[0].mxu0
        %5981 = vmatprep.mubr.f32.mxu0 0.0
        %5982 = vmatmul.mubr.f32.gmra.mrb[0].mxu0 %v4609
        %v5983 = vpop.f32.mrb[0].mxu0
        %v5984 = vadd.f32 %v5739, %v5983
        %v5985 = vpop.f32.mrb[0].mxu0
        %5986 = vmatprep.mubr.f32.mxu0 0.0
        %5987 = vmatmul.mubr.f32.gmra.mrb[0].mxu0 %v4618
        %v5988 = vpop.f32.mrb[0].mxu0
        %v5989 = vadd.f32 %v5744, %v5988
        %v5990 = vpop.f32.mrb[0].mxu0
        %5991 = vmatprep.mubr.f32.mxu0 0.0
        %5992 = vmatmul.mubr.f32.gmra.mrb[0].mxu0 %v4627
        %v5993 = vpop.f32.mrb[0].mxu0
        %v5994 = vadd.f32 %v5749, %v5993
        %v5995 = vpop.f32.mrb[0].mxu0
        %5996 = vdwg.mxu0
        %v5997 = vlaneseq
        %v5998 = vshrl.u32 %v5997, 7
        %v5999 = vsub.s32 0, %v5998
        %v6000 = vrot.slane %v251, %v5999
        %v6001 = vmul.f32 %v5819, %v6000
        %v6002 = vmul.f32 %v5824, %v6000
        %v6003 = vmul.f32 %v5829, %v6000
        %v6004 = vmul.f32 %v5834, %v6000
        %v6005 = vmul.f32 %v5839, %v6000
        %v6006 = vmul.f32 %v5844, %v6000
        %v6007 = vmul.f32 %v5849, %v6000
        %v6008 = vmul.f32 %v5854, %v6000
        %v6009 = vmul.f32 %v5859, %v6000
        %v6010 = vmul.f32 %v5864, %v6000
        %v6011 = vmul.f32 %v5869, %v6000
        %v6012 = vmul.f32 %v5874, %v6000
        %v6013 = vmul.f32 %v5879, %v6000
        %v6014 = vmul.f32 %v5884, %v6000
        %v6015 = vmul.f32 %v5889, %v6000
        %v6016 = vmul.f32 %v5894, %v6000
        %v6017 = vmul.f32 %v5899, %v6000
        %v6018 = vmul.f32 %v5904, %v6000
        %v6019 = vmul.f32 %v5909, %v6000
        %v6020 = vmul.f32 %v5914, %v6000
        %v6021 = vmul.f32 %v5919, %v6000
        %v6022 = vmul.f32 %v5924, %v6000
        %v6023 = vmul.f32 %v5929, %v6000
        %v6024 = vmul.f32 %v5934, %v6000
        %v6025 = vmul.f32 %v5939, %v6000
        %v6026 = vmul.f32 %v5944, %v6000
        %v6027 = vmul.f32 %v5949, %v6000
        %v6028 = vmul.f32 %v5954, %v6000
        %v6029 = vmul.f32 %v5959, %v6000
        %v6030 = vmul.f32 %v5964, %v6000
        %v6031 = vmul.f32 %v5969, %v6000
        %v6032 = vmul.f32 %v5974, %v6000
        %v6033 = vmul.f32 %v5979, %v6000
        %v6034 = vmul.f32 %v5984, %v6000
        %v6035 = vmul.f32 %v5989, %v6000
        %v6036 = vmul.f32 %v5994, %v6000
        %v6037 = vlaneseq
        %v6038 = vshrl.u32 %v6037, 7
        %v6039 = vsub.s32 0, %v6038
        %v6040 = vrot.slane %v250, %v6039
        %v6041 = vadd.f32 %v6001, %v6040
        %v6042 = vadd.f32 %v6002, %v6040
        %v6043 = vadd.f32 %v6003, %v6040
        %v6044 = vadd.f32 %v6004, %v6040
        %v6045 = vadd.f32 %v6005, %v6040
        %v6046 = vadd.f32 %v6006, %v6040
        %v6047 = vadd.f32 %v6007, %v6040
        %v6048 = vadd.f32 %v6008, %v6040
        %v6049 = vadd.f32 %v6009, %v6040
        %v6050 = vadd.f32 %v6010, %v6040
        %v6051 = vadd.f32 %v6011, %v6040
        %v6052 = vadd.f32 %v6012, %v6040
        %v6053 = vadd.f32 %v6013, %v6040
        %v6054 = vadd.f32 %v6014, %v6040
        %v6055 = vadd.f32 %v6015, %v6040
        %v6056 = vadd.f32 %v6016, %v6040
        %v6057 = vadd.f32 %v6017, %v6040
        %v6058 = vadd.f32 %v6018, %v6040
        %v6059 = vadd.f32 %v6019, %v6040
        %v6060 = vadd.f32 %v6020, %v6040
        %v6061 = vadd.f32 %v6021, %v6040
        %v6062 = vadd.f32 %v6022, %v6040
        %v6063 = vadd.f32 %v6023, %v6040
        %v6064 = vadd.f32 %v6024, %v6040
        %v6065 = vadd.f32 %v6025, %v6040
        %v6066 = vadd.f32 %v6026, %v6040
        %v6067 = vadd.f32 %v6027, %v6040
        %v6068 = vadd.f32 %v6028, %v6040
        %v6069 = vadd.f32 %v6029, %v6040
        %v6070 = vadd.f32 %v6030, %v6040
        %v6071 = vadd.f32 %v6031, %v6040
        %v6072 = vadd.f32 %v6032, %v6040
        %v6073 = vadd.f32 %v6033, %v6040
        %v6074 = vadd.f32 %v6034, %v6040
        %v6075 = vadd.f32 %v6035, %v6040
        %v6076 = vadd.f32 %v6036, %v6040
        %v6077 = vadd.f32 %v6041, %v943
        %v6078 = vadd.f32 %v6042, %v944
        %v6079 = vadd.f32 %v6043, %v945
        %v6080 = vadd.f32 %v6044, %v946
        %v6081 = vadd.f32 %v6045, %v947
        %v6082 = vadd.f32 %v6046, %v948
        %v6083 = vadd.f32 %v6047, %v949
        %v6084 = vadd.f32 %v6048, %v950
        %v6085 = vadd.f32 %v6049, %v951
        %v6086 = vadd.f32 %v6050, %v952
        %v6087 = vadd.f32 %v6051, %v953
        %v6088 = vadd.f32 %v6052, %v954
        %v6089 = vadd.f32 %v6053, %v955
        %v6090 = vadd.f32 %v6054, %v956
        %v6091 = vadd.f32 %v6055, %v957
        %v6092 = vadd.f32 %v6056, %v958
        %v6093 = vadd.f32 %v6057, %v959
        %v6094 = vadd.f32 %v6058, %v960
        %v6095 = vadd.f32 %v6059, %v961
        %v6096 = vadd.f32 %v6060, %v962
        %v6097 = vadd.f32 %v6061, %v963
        %v6098 = vadd.f32 %v6062, %v964
        %v6099 = vadd.f32 %v6063, %v965
        %v6100 = vadd.f32 %v6064, %v966
        %v6101 = vadd.f32 %v6065, %v967
        %v6102 = vadd.f32 %v6066, %v968
        %v6103 = vadd.f32 %v6067, %v969
        %v6104 = vadd.f32 %v6068, %v970
        %v6105 = vadd.f32 %v6069, %v971
        %v6106 = vadd.f32 %v6070, %v972
        %v6107 = vadd.f32 %v6071, %v973
        %v6108 = vadd.f32 %v6072, %v974
        %v6109 = vadd.f32 %v6073, %v975
        %v6110 = vadd.f32 %v6074, %v976
        %v6111 = vadd.f32 %v6075, %v977
        %v6112 = vadd.f32 %v6076, %v978
        %6113 = vst [vmem:[%s244] sm:$0xff] %v6077
        %6114 = vst [vmem:[%s244 + $0x8] sm:$0xff] %v6078
        %6115 = vst [vmem:[%s244 + $0x10] sm:$0xff] %v6079
        %6116 = vst [vmem:[%s244 + $0x18] sm:$0xff] %v6080
        %6117 = vst [vmem:[%s244 + $0x20] sm:$0xff] %v6081
        %6118 = vst [vmem:[%s244 + $0x28] sm:$0xff] %v6082
        %6119 = vst [vmem:[%s244 + $0x30] sm:$0xff] %v6083
        %6120 = vst [vmem:[%s244 + $0x38] sm:$0xff] %v6084
        %6121 = vst [vmem:[%s244 + $0x40] sm:$0xff] %v6085
        %6122 = vst [vmem:[%s244 + $0x48] sm:$0xff] %v6086
        %6123 = vst [vmem:[%s244 + $0x50] sm:$0xff] %v6087
        %6124 = vst [vmem:[%s244 + $0x58] sm:$0xff] %v6088
        %6125 = vst [vmem:[%s244 + $0x60] sm:$0xff] %v6089
        %6126 = vst [vmem:[%s244 + $0x68] sm:$0xff] %v6090
        %6127 = vst [vmem:[%s244 + $0x70] sm:$0xff] %v6091
        %6128 = vst [vmem:[%s244 + $0x78] sm:$0xff] %v6092
        %6129 = vst [vmem:[%s244 + $0x80] sm:$0xff] %v6093
        %6130 = vst [vmem:[%s244 + $0x88] sm:$0xff] %v6094
        %6131 = vst [vmem:[%s244 + $0x90] sm:$0xff] %v6095
        %6132 = vst [vmem:[%s244 + $0x98] sm:$0xff] %v6096
        %6133 = vst [vmem:[%s244 + $0xa0] sm:$0xff] %v6097
        %6134 = vst [vmem:[%s244 + $0xa8] sm:$0xff] %v6098
        %6135 = vst [vmem:[%s244 + $0xb0] sm:$0xff] %v6099
        %6136 = vst [vmem:[%s244 + $0xb8] sm:$0xff] %v6100
        %6137 = vst [vmem:[%s244 + $0xc0] sm:$0xff] %v6101
        %6138 = vst [vmem:[%s244 + $0xc8] sm:$0xff] %v6102
        %6139 = vst [vmem:[%s244 + $0xd0] sm:$0xff] %v6103
        %6140 = vst [vmem:[%s244 + $0xd8] sm:$0xff] %v6104
        %6141 = vst [vmem:[%s244 + $0xe0] sm:$0xff] %v6105
        %6142 = vst [vmem:[%s244 + $0xe8] sm:$0xff] %v6106
        %6143 = vst [vmem:[%s244 + $0xf0] sm:$0xff] %v6107
        %6144 = vst [vmem:[%s244 + $0xf8] sm:$0xff] %v6108
        %6145 = vst [vmem:[%s244 + $0x100] sm:$0xff] %v6109
        %6146 = vst [vmem:[%s244 + $0x108] sm:$0xff] %v6110
        %6147 = vst [vmem:[%s244 + $0x110] sm:$0xff] %v6111
        %6148 = vst [vmem:[%s244 + $0x118] sm:$0xff] %v6112
        %s6149 = sand.u32 %s119, 1
        %s6150 = scalar_lea.sflag [#allocation6], %s6149
        %s6151 = sand.u32 %s119, 1
        %s6152 = smul.addr %s6151, 288
        %s6153 = scalar_lea.vmem [#allocation10], %s6152
        // Predicated region
        $region49: #{tpu_custom_call.1} parent=35 // pred_check
          %p6154 = pneg %p129
        $region50: #{tpu_custom_call.1} parent=35 // pred_check_branch
          %6156 = sbr.rel (%p6154) target = $region52
        $region51: #{tpu_custom_call.1} parent=35 // pred_region
          %s6157 = smul.u32 36, %s22
          %s6159 = ssub.s32 4608, 4608
          %6160 = vsyncadd %s6150, %s6159
          %s6161 = smul.addr %s6157, 128
          %s6162 = scalar_lea.hbm %s4, %s6161
          %s6163 = sshll.u32 %s6153, 4
          %s6164 = int_to_ptr.vmem [resolvable:$true] %s6163
          %6169 = dma.vmem_to_hbm [thread:$0]  %s6164, 4608, %s6162, %s6150, 128, 128, 8
        $region52: #{tpu_custom_call.1} parent=35 // pred_fallthru
          _
      $region36: #{tpu_custom_call.1} parent=5 // pred_fallthru
        _
      %p6170 = scmp.le.s32.totalorder 2, %s17
      // Predicated region
      $region53: #{tpu_custom_call.1} parent=5 // pred_check
        %p6171 = pneg %p6170
      $region54: #{tpu_custom_call.1} parent=5 // pred_check_branch
        %6173 = sbr.rel (%p6171) target = $region56
      $region55: #{tpu_custom_call.1} parent=5 // pred_region
        %s6174 = ssub.s32 %s17, 2
        // Predicated region
        $region57: #{tpu_custom_call.1} parent=55 // pred_check
          %p6175 = pneg %p135
        $region58: #{tpu_custom_call.1} parent=55 // pred_check_branch
          %6177 = sbr.rel (%p6175) target = $region60
        $region59: #{tpu_custom_call.1} parent=55 // pred_region
          %s6178 = sand.u32 %s120, 1
          %s6179 = scalar_lea.sflag [#allocation6], %s6178
          %s6180 = sand.u32 %s120, 1
          %s6181 = smul.addr %s6180, 288
          %s6182 = scalar_lea.vmem [#allocation10], %s6181
          %6183 = dma.done %s6179, 4608
        $region60: #{tpu_custom_call.1} parent=55 // pred_fallthru
          _
      $region56: #{tpu_custom_call.1} parent=5 // pred_fallthru
        _
    $region6: #{tpu_custom_call.1} parent=1 // loop_footer
      %s21 = sadd.s32 1, %s17
    $region7: #{tpu_custom_call.1} parent=1 // loop_footer_branch
      %16 = sbr.rel target = $region3
    $region8: #{tpu_custom_call.1} parent=1 // loop_exit
      _
    %6184 = vsyncpa [#allocation5], 1
    %s6185 = scalar_lea.sflag [#allocation5], 1
    %6186 = vsyncpa %s6185, 1
    %6187 = vsyncpa [#allocation8], 1
    %6188 = vsyncpa [#allocation6], 1
    %s6189 = scalar_lea.sflag [#allocation6], 1
    %6190 = vsyncpa %s6189, 1

</llo_original>
